<compile_context>
chip_gen: v7x
topology: tpu7x:2x2x1
jax: 0.10.0
libtpu: 0.0.40
codegen_flags: <defaults>
</compile_context>

<pallas_src>
import math

import jax
import jax.numpy as jnp
from jax.experimental import pallas as pl
from jax.experimental.pallas import tpu as pltpu

HIDDEN = 16                # GCNConv hidden width (fixed by the module)
LSTM_H = 32                # JK lstm hidden = (num_layers * channels) // 2 = (4*16)//2
GATES = 4 * LSTM_H         # 128: one LSTM direction's gate width (i,f,g,o)
SLAB_W = 2 * GATES         # 256: slab lane width = widest packed weight (fwd|bwd W_ih)
OUT_PAD = 128              # lane-dense padded width for the final Linear output
CHUNK = 8                  # graphs per grid step -> CHUNK*N MXU rows per matmul
BIAS_ROWS = 8              # bias-slab rows (6 used, padded to 8 sublanes)


def _slab_layout(f_in):
    """Row layout of the packed bf16 weight slab (width SLAB_W)."""
    layout = {}
    row = 0

    def add(name, rows, cols):
        nonlocal row
        layout[name] = (row, row + rows, cols)
        row += rows

    add("w1", f_in, HIDDEN)            # GCNConv1 weight [f_in, 16]
    add("w2", HIDDEN, HIDDEN)          # GCNConv2 weight [16, 16]
    add("w_ih", HIDDEN, 2 * GATES)     # LSTM input proj, fwd|bwd concat [16, 256]
    add("w_hh_f", LSTM_H, GATES)       # LSTM hidden proj fwd [32, 128]
    add("w_hh_b", LSTM_H, GATES)       # LSTM hidden proj bwd [32, 128]
    add("w_att_f", LSTM_H, 1)          # JK attention, fwd half [32, 1]
    add("w_att_b", LSTM_H, 1)          # JK attention, bwd half [32, 1]
    add("w_lin", HIDDEN, OUT_PAD)      # lin1, padded to 128 lanes [16, 128]
    rows = -(-row // 16) * 16          # pad rows for bf16 sublane packing
    return layout, rows


def make_kernel(layout):
    """Build the per-chunk kernel; `layout` bakes in static slab offsets."""

    def _lstm_cell(pre, c_prev=None):
        # pre: [R, 128] f32 pre-activations, PyTorch gate order i, f, g, o.
        # One sigmoid + one tanh over the whole 128-lane block (single vreg each);
        # slicing the results costs lane shifts but no extra EUP passes.
        H = LSTM_H
        sig = jax.nn.sigmoid(pre)
        tnh = jnp.tanh(pre)
        i = sig[:, 0 * H:1 * H]
        g = tnh[:, 2 * H:3 * H]
        o = sig[:, 3 * H:4 * H]
        if c_prev is None:
            c = i * g                          # zero initial cell: f * c_prev == 0
        else:
            f = sig[:, 1 * H:2 * H]
            c = f * c_prev + i * g
        return o * jnp.tanh(c), c

    def kernel(a_ref, x_ref, w_ref, b_ref, out_ref):
        f32, bf16 = jnp.float32, jnp.bfloat16

        def W(name):
            r0, r1, c = layout[name]
            return w_ref[r0:r1, 0:c]           # static slice of the weight slab

        a = a_ref[...]                          # [R, R] bf16 block-diag adjacency
        x = x_ref[...]                          # [R, F_in] bf16 node features
        r = a.shape[0]

        b1 = b_ref[0:1, 0:HIDDEN]
        b2 = b_ref[1:2, 0:HIDDEN]
        b_f = b_ref[2:3, 0:GATES]               # b_ih_f + b_hh_f (pre-added)
        b_b = b_ref[3:4, 0:GATES]               # b_ih_b + b_hh_b
        b_att = b_ref[4:5, 0:1]
        b_lin = b_ref[5:6, 0:OUT_PAD]

        # --- GCNConv1: relu(A @ (X @ W1) + b1); dropout(eval) = identity ---
        h1 = jnp.dot(x, W("w1"), preferred_element_type=f32)
        x1 = jnp.maximum(
            jnp.dot(a, h1.astype(bf16), preferred_element_type=f32) + b1, 0.0)
        x1_b = x1.astype(bf16)

        # --- GCNConv2: relu(A @ (x1 @ W2) + b2) ---
        h2 = jnp.dot(x1_b, W("w2"), preferred_element_type=f32)
        x2 = jnp.maximum(
            jnp.dot(a, h2.astype(bf16), preferred_element_type=f32) + b2, 0.0)
        x2_b = x2.astype(bf16)

        # --- JumpingKnowledge(mode='lstm'): bidirectional LSTM over T=2 layers ---
        # Fused input projection: [x1; x2] ([2R,16]) @ [W_ih_f | W_ih_b] ([16,256]).
        x_seq = jnp.concatenate([x1_b, x2_b], axis=0)                       # [2R, 16]
        proj = jnp.dot(x_seq, W("w_ih"), preferred_element_type=f32)        # [2R, 256]
        gf_x1, gf_x2 = proj[:r, :GATES], proj[r:, :GATES]
        gb_x1, gb_x2 = proj[:r, GATES:], proj[r:, GATES:]

        # forward direction processes [x1, x2]
        hf0, cf0 = _lstm_cell(gf_x1 + b_f)                                   # zero init state
        hf1, _ = _lstm_cell(
            gf_x2 + b_f
            + jnp.dot(hf0.astype(bf16), W("w_hh_f"), preferred_element_type=f32),
            cf0)
        # backward direction processes [x2, x1]; outputs indexed by original position
        hb1, cb1 = _lstm_cell(gb_x2 + b_b)
        hb0, _ = _lstm_cell(
            gb_x1 + b_b
            + jnp.dot(hb1.astype(bf16), W("w_hh_b"), preferred_element_type=f32),
            cb1)

        # attention scores: split weight avoids the 32-lane-offset [hf|hb] concats
        h_f_all = jnp.concatenate([hf0, hf1], axis=0).astype(bf16)          # [2R, 32]
        h_b_all = jnp.concatenate([hb0, hb1], axis=0).astype(bf16)          # [2R, 32]
        s = (jnp.dot(h_f_all, W("w_att_f"), preferred_element_type=f32)
             + jnp.dot(h_b_all, W("w_att_b"), preferred_element_type=f32) + b_att)
        s0, s1 = s[:r], s[r:]                                                # [R, 1] each

        # softmax over the T=2 layer axis, weighted sum of [x1, x2]
        m = jnp.maximum(s0, s1)
        e0 = jnp.exp(s0 - m)
        e1 = jnp.exp(s1 - m)
        inv = pl.reciprocal(e0 + e1, approx=True)
        x_jk = (e0 * inv) * x1 + (e1 * inv) * x2                             # [R, 16] f32

        # --- APPNP(K=1, alpha=0): one propagation with the normalized adjacency ---
        x_prop = jnp.dot(a, x_jk.astype(bf16), preferred_element_type=f32)

        # --- lin1: Linear(16 -> num_classes), padded to 128 lanes (unmasked vst) ---
        out_ref[...] = (jnp.dot(x_prop.astype(bf16), W("w_lin"),
                                preferred_element_type=f32) + b_lin)

    return kernel


def build_params(key, in_features, num_classes):
    ks = jax.random.split(key, 12)

    def unif(k, shape, scale):
        return jax.random.uniform(k, shape, jnp.float32, -scale, scale)

    p = {}
    # GCNConv weights stored as [in, out] so the kernel does x @ W.
    p["w1"] = unif(ks[0], (in_features, HIDDEN), 1.0 / math.sqrt(in_features))
    p["b1"] = jnp.zeros((1, HIDDEN), jnp.float32)
    p["w2"] = unif(ks[1], (HIDDEN, HIDDEN), 1.0 / math.sqrt(HIDDEN))
    p["b2"] = jnp.zeros((1, HIDDEN), jnp.float32)
    # Bidirectional LSTM (input 16, hidden 32). PyTorch weight_ih_l0 is [4H, in];
    # stored transposed here ([in, 4H]) so the kernel does x @ W. Gate order i,f,g,o.
    s = 1.0 / math.sqrt(LSTM_H)
    p["w_ih_f"] = unif(ks[2], (HIDDEN, GATES), s)
    p["w_hh_f"] = unif(ks[3], (LSTM_H, GATES), s)
    p["b_ih_f"] = unif(ks[4], (1, GATES), s)
    p["b_hh_f"] = unif(ks[5], (1, GATES), s)
    p["w_ih_b"] = unif(ks[6], (HIDDEN, GATES), s)
    p["w_hh_b"] = unif(ks[7], (LSTM_H, GATES), s)
    p["b_ih_b"] = unif(ks[8], (1, GATES), s)
    p["b_hh_b"] = unif(ks[9], (1, GATES), s)
    # JK attention: Linear(2*LSTM_H, 1)
    p["w_att"] = unif(ks[10], (2 * LSTM_H, 1), 1.0 / math.sqrt(2 * LSTM_H))
    p["b_att"] = jnp.zeros((1, 1), jnp.float32)
    # lin1: Linear(16, num_classes)
    p["w_lin"] = unif(ks[11], (HIDDEN, num_classes), 1.0 / math.sqrt(HIDDEN))
    p["b_lin"] = jnp.zeros((1, num_classes), jnp.float32)
    return p


def gcn_jknet_forward(a_norm, x, params):
    """Batched forward.  a_norm: [B, N, N] normalized adjacency; x: [B, N, F_in]."""
    B, N, f_in = x.shape
    num_classes = params["w_lin"].shape[1]
    bf16 = jnp.bfloat16

    layout, w_rows = _slab_layout(f_in)

    # --- one lane-dense bf16 weight slab (collapses ~13 tiny param DMAs) ---
    wslab = jnp.zeros((w_rows, SLAB_W), jnp.float32)

    def put(slab, name, w):
        r0, r1, c = layout[name]
        return slab.at[r0:r1, 0:c].set(w)

    wslab = put(wslab, "w1", params["w1"])
    wslab = put(wslab, "w2", params["w2"])
    wslab = put(wslab, "w_ih",
                jnp.concatenate([params["w_ih_f"], params["w_ih_b"]], axis=1))
    wslab = put(wslab, "w_hh_f", params["w_hh_f"])
    wslab = put(wslab, "w_hh_b", params["w_hh_b"])
    wslab = put(wslab, "w_att_f", params["w_att"][:LSTM_H])
    wslab = put(wslab, "w_att_b", params["w_att"][LSTM_H:])
    wslab = put(wslab, "w_lin",
                jnp.zeros((HIDDEN, OUT_PAD), jnp.float32)
                .at[:, :num_classes].set(params["w_lin"]))
    wslab = wslab.astype(bf16)

    # --- one f32 bias slab (b_ih + b_hh pre-added per LSTM direction) ---
    bslab = jnp.zeros((BIAS_ROWS, SLAB_W), jnp.float32)
    bslab = bslab.at[0, :HIDDEN].set(params["b1"][0])
    bslab = bslab.at[1, :HIDDEN].set(params["b2"][0])
    bslab = bslab.at[2, :GATES].set((params["b_ih_f"] + params["b_hh_f"])[0])
    bslab = bslab.at[3, :GATES].set((params["b_ih_b"] + params["b_hh_b"])[0])
    bslab = bslab.at[4, 0].set(params["b_att"][0, 0])
    bslab = bslab.at[5, :num_classes].set(params["b_lin"][0])

    # --- pad batch to a multiple of CHUNK with empty graphs, then pack each ---
    # --- chunk as a block-diagonal adjacency (M = CHUNK*N MXU rows per step) ---
    n_chunks = -(-B // CHUNK)
    b_pad = n_chunks * CHUNK
    if b_pad != B:
        a_norm = jnp.concatenate(
            [a_norm, jnp.zeros((b_pad - B, N, N), a_norm.dtype)], axis=0)
        x = jnp.concatenate(
            [x, jnp.zeros((b_pad - B, N, f_in), x.dtype)], axis=0)

    R = CHUNK * N
    a_resh = a_norm.reshape(n_chunks, CHUNK, N, N)
    eye_c = jnp.eye(CHUNK, dtype=a_norm.dtype)
    a_block = a_resh[:, :, None, :, :] * eye_c[None, :, :, None, None]
    a_block = a_block.transpose(0, 1, 3, 2, 4).reshape(n_chunks, R, R).astype(bf16)
    x_block = x.reshape(n_chunks, R, f_in).astype(bf16)

    kernel = make_kernel(layout)
    # Grid over graph-chunks, "parallel" so v7x shards chunks across both
    # TensorCores; each chunk's operands are tiny (A block is 128 KiB bf16), so
    # default VMEM limits are fine.  TODO(synk): for N in the thousands, tile the
    # A @ X propagations with a row-block / reduction grid instead of full-resident A.
    out = pl.pallas_call(
        kernel,
        out_shape=jax.ShapeDtypeStruct((n_chunks, R, OUT_PAD), jnp.float32),
        grid=(n_chunks,),
        in_specs=[
            pl.BlockSpec((pl.Squeezed(), R, R), lambda c: (c, 0, 0)),
            pl.BlockSpec((pl.Squeezed(), R, f_in), lambda c: (c, 0, 0)),
            pl.BlockSpec((w_rows, SLAB_W), lambda c: (0, 0)),
            pl.BlockSpec((BIAS_ROWS, SLAB_W), lambda c: (0, 0)),
        ],
        out_specs=pl.BlockSpec((pl.Squeezed(), R, OUT_PAD), lambda c: (c, 0, 0)),
        compiler_params=pltpu.CompilerParams(
            dimension_semantics=("parallel",)),
    )(a_block, x_block, wslab, bslab)

    return out.reshape(b_pad, N, OUT_PAD)[:B, :, :num_classes]


if __name__ == "__main__":
    key = jax.random.PRNGKey(0)
    B = 16            # number of graphs in the batch (2 chunks of 8 -> 256 MXU rows each)
    N = 32            # nodes per graph
    F_IN = 8          # dataset.num_features
    NUM_CLASSES = 4   # dataset.num_classes

    k_x, k_adj, k_par = jax.random.split(key, 3)
    x = jax.random.normal(k_x, (B, N, F_IN), dtype=jnp.float32)

    # Deterministic random undirected graphs, then GCN-style symmetric
    # normalization D^-1/2 (A + I) D^-1/2 (built in plain JAX, per graph).
    raw = jax.random.uniform(k_adj, (B, N, N))
    adj = (raw < 0.15).astype(jnp.float32)
    adj = jnp.maximum(adj, jnp.swapaxes(adj, 1, 2))
    eye_n = jnp.eye(N, dtype=jnp.float32)
    adj = adj * (1.0 - eye_n)
    a_hat = adj + eye_n
    deg = a_hat.sum(axis=2)
    d_inv_sqrt = 1.0 / jnp.sqrt(deg)
    a_norm = d_inv_sqrt[:, :, None] * a_hat * d_inv_sqrt[:, None, :]

    params = build_params(k_par, F_IN, NUM_CLASSES)

    out = jax.block_until_ready(gcn_jknet_forward(a_norm, x, params))
    assert out.shape == (B, N, NUM_CLASSES) and out.dtype == jnp.float32
    assert bool(jnp.all(jnp.isfinite(out)))
    print("KERNEL_OK")
</pallas_src>

<mosaic_0001>
module attributes {stable_mosaic.version = 11 : i64} {
  func.func @kernel(%arg0: i32, %arg1: memref<1x256x256xbf16, #tpu.memory_space<vmem>>, %arg2: memref<1x256x8xbf16, #tpu.memory_space<vmem>>, %arg3: memref<192x256xbf16, #tpu.memory_space<vmem>>, %arg4: memref<8x256xf32, #tpu.memory_space<vmem>>, %arg5: memref<1x256x128xf32, #tpu.memory_space<vmem>>) attributes {dimension_semantics = [#tpu.dimension_semantics<parallel>], iteration_bounds = array<i64: 2>, scalar_prefetch = 0 : i64, scratch_operands = 0 : i64, tpu.core_type = #tpu.core_type<tc>, window_params = [{transform_indices = @transform_0, window_bounds = array<i64: 1, 256, 256>}, {transform_indices = @transform_1, window_bounds = array<i64: 1, 256, 8>}, {pipeline_mode = #tpu.pipeline_mode<synchronous>, transform_indices = @transform_2, window_bounds = array<i64: 192, 256>}, {pipeline_mode = #tpu.pipeline_mode<synchronous>, transform_indices = @transform_3, window_bounds = array<i64: 8, 256>}, {transform_indices = @transform_4, window_bounds = array<i64: 1, 256, 128>}]} {
    %c0 = arith.constant 0 : index
    %c0_0 = arith.constant 0 : index
    %c0_1 = arith.constant 0 : index
    %0 = vector.load %arg1[%c0, %c0_0, %c0_1] : memref<1x256x256xbf16, #tpu.memory_space<vmem>>, vector<1x256x256xbf16>
    %1 = vector.shape_cast %0 : vector<1x256x256xbf16> to vector<256x256xbf16>
    %c0_2 = arith.constant 0 : index
    %c0_3 = arith.constant 0 : index
    %c0_4 = arith.constant 0 : index
    %2 = vector.load %arg2[%c0_2, %c0_3, %c0_4] : memref<1x256x8xbf16, #tpu.memory_space<vmem>>, vector<1x256x8xbf16>
    %3 = vector.shape_cast %2 : vector<1x256x8xbf16> to vector<256x8xbf16>
    %c0_5 = arith.constant 0 : index
    %c0_6 = arith.constant 0 : index
    %4 = vector.load %arg4[%c0_5, %c0_6] : memref<8x256xf32, #tpu.memory_space<vmem>>, vector<1x16xf32>
    %c1 = arith.constant 1 : index
    %c0_7 = arith.constant 0 : index
    %5 = vector.load %arg4[%c1, %c0_7] : memref<8x256xf32, #tpu.memory_space<vmem>>, vector<1x16xf32>
    %c2 = arith.constant 2 : index
    %c0_8 = arith.constant 0 : index
    %6 = vector.load %arg4[%c2, %c0_8] : memref<8x256xf32, #tpu.memory_space<vmem>>, vector<1x128xf32>
    %c3 = arith.constant 3 : index
    %c0_9 = arith.constant 0 : index
    %7 = vector.load %arg4[%c3, %c0_9] : memref<8x256xf32, #tpu.memory_space<vmem>>, vector<1x128xf32>
    %c4 = arith.constant 4 : index
    %c0_10 = arith.constant 0 : index
    %8 = vector.load %arg4[%c4, %c0_10] : memref<8x256xf32, #tpu.memory_space<vmem>>, vector<1x1xf32>
    %c5 = arith.constant 5 : index
    %c0_11 = arith.constant 0 : index
    %9 = vector.load %arg4[%c5, %c0_11] : memref<8x256xf32, #tpu.memory_space<vmem>>, vector<1x128xf32>
    %c0_12 = arith.constant 0 : index
    %c0_13 = arith.constant 0 : index
    %10 = vector.load %arg3[%c0_12, %c0_13] : memref<192x256xbf16, #tpu.memory_space<vmem>>, vector<8x16xbf16>
    %cst = arith.constant dense<0.000000e+00> : vector<256x16xf32>
    %11 = tpu.matmul %3, %10, %cst {dimension_numbers = #tpu.dot_dimension_numbers<[1], [0], [0], [1], [0, 0, 1, 1], [], []>} : vector<256x8xbf16>, vector<8x16xbf16>, vector<256x16xf32> -> vector<256x16xf32>
    %12 = arith.truncf %11 : vector<256x16xf32> to vector<256x16xbf16>
    %cst_14 = arith.constant dense<0.000000e+00> : vector<256x16xf32>
    %13 = tpu.matmul %1, %12, %cst_14 {dimension_numbers = #tpu.dot_dimension_numbers<[1], [0], [0], [1], [0, 0, 1, 1], [], []>} : vector<256x256xbf16>, vector<256x16xbf16>, vector<256x16xf32> -> vector<256x16xf32>
    %14 = vector.broadcast %4 : vector<1x16xf32> to vector<256x16xf32>
    %15 = arith.addf %13, %14 : vector<256x16xf32>
    %cst_15 = arith.constant 0.000000e+00 : f32
    %16 = vector.broadcast %cst_15 : f32 to vector<256x16xf32>
    %17 = arith.maximumf %15, %16 : vector<256x16xf32>
    %18 = arith.truncf %17 : vector<256x16xf32> to vector<256x16xbf16>
    %c8 = arith.constant 8 : index
    %c0_16 = arith.constant 0 : index
    %19 = vector.load %arg3[%c8, %c0_16] : memref<192x256xbf16, #tpu.memory_space<vmem>>, vector<16x16xbf16>
    %cst_17 = arith.constant dense<0.000000e+00> : vector<256x16xf32>
    %20 = tpu.matmul %18, %19, %cst_17 {dimension_numbers = #tpu.dot_dimension_numbers<[1], [0], [0], [1], [0, 0, 1, 1], [], []>} : vector<256x16xbf16>, vector<16x16xbf16>, vector<256x16xf32> -> vector<256x16xf32>
    %21 = arith.truncf %20 : vector<256x16xf32> to vector<256x16xbf16>
    %cst_18 = arith.constant dense<0.000000e+00> : vector<256x16xf32>
    %22 = tpu.matmul %1, %21, %cst_18 {dimension_numbers = #tpu.dot_dimension_numbers<[1], [0], [0], [1], [0, 0, 1, 1], [], []>} : vector<256x256xbf16>, vector<256x16xbf16>, vector<256x16xf32> -> vector<256x16xf32>
    %23 = vector.broadcast %5 : vector<1x16xf32> to vector<256x16xf32>
    %24 = arith.addf %22, %23 : vector<256x16xf32>
    %cst_19 = arith.constant 0.000000e+00 : f32
    %25 = vector.broadcast %cst_19 : f32 to vector<256x16xf32>
    %26 = arith.maximumf %24, %25 : vector<256x16xf32>
    %27 = arith.truncf %26 : vector<256x16xf32> to vector<256x16xbf16>
    %28 = tpu.concatenate %18, %27 in 0 : vector<256x16xbf16>, vector<256x16xbf16> -> vector<512x16xbf16>
    %c24 = arith.constant 24 : index
    %c0_20 = arith.constant 0 : index
    %29 = vector.load %arg3[%c24, %c0_20] : memref<192x256xbf16, #tpu.memory_space<vmem>>, vector<16x256xbf16>
    %cst_21 = arith.constant dense<0.000000e+00> : vector<512x256xf32>
    %30 = tpu.matmul %28, %29, %cst_21 {dimension_numbers = #tpu.dot_dimension_numbers<[1], [0], [0], [1], [0, 0, 1, 1], [], []>} : vector<512x16xbf16>, vector<16x256xbf16>, vector<512x256xf32> -> vector<512x256xf32>
    %31 = vector.extract_strided_slice %30 {offsets = [0, 0], sizes = [256, 128], strides = [1, 1]} : vector<512x256xf32> to vector<256x128xf32>
    %32 = vector.extract_strided_slice %30 {offsets = [256, 0], sizes = [256, 128], strides = [1, 1]} : vector<512x256xf32> to vector<256x128xf32>
    %33 = vector.extract_strided_slice %30 {offsets = [0, 128], sizes = [256, 128], strides = [1, 1]} : vector<512x256xf32> to vector<256x128xf32>
    %34 = vector.extract_strided_slice %30 {offsets = [256, 128], sizes = [256, 128], strides = [1, 1]} : vector<512x256xf32> to vector<256x128xf32>
    %35 = vector.broadcast %6 : vector<1x128xf32> to vector<256x128xf32>
    %36 = arith.addf %31, %35 : vector<256x128xf32>
    %37 = arith.negf %36 : vector<256x128xf32>
    %38 = math.exp %37 : vector<256x128xf32>
    %cst_22 = arith.constant 1.000000e+00 : f32
    %39 = vector.broadcast %cst_22 : f32 to vector<256x128xf32>
    %40 = arith.addf %39, %38 : vector<256x128xf32>
    %41 = arith.divf %39, %40 : vector<256x128xf32>
    %42 = math.tanh %36 : vector<256x128xf32>
    %43 = vector.extract_strided_slice %41 {offsets = [0, 0], sizes = [256, 32], strides = [1, 1]} : vector<256x128xf32> to vector<256x32xf32>
    %44 = vector.extract_strided_slice %42 {offsets = [0, 64], sizes = [256, 32], strides = [1, 1]} : vector<256x128xf32> to vector<256x32xf32>
    %45 = vector.extract_strided_slice %41 {offsets = [0, 96], sizes = [256, 32], strides = [1, 1]} : vector<256x128xf32> to vector<256x32xf32>
    %46 = arith.mulf %43, %44 : vector<256x32xf32>
    %47 = math.tanh %46 : vector<256x32xf32>
    %48 = arith.mulf %45, %47 : vector<256x32xf32>
    %49 = vector.broadcast %6 : vector<1x128xf32> to vector<256x128xf32>
    %50 = arith.addf %32, %49 : vector<256x128xf32>
    %51 = arith.truncf %48 : vector<256x32xf32> to vector<256x32xbf16>
    %c40 = arith.constant 40 : index
    %c0_23 = arith.constant 0 : index
    %52 = vector.load %arg3[%c40, %c0_23] : memref<192x256xbf16, #tpu.memory_space<vmem>>, vector<32x128xbf16>
    %cst_24 = arith.constant dense<0.000000e+00> : vector<256x128xf32>
    %53 = tpu.matmul %51, %52, %cst_24 {dimension_numbers = #tpu.dot_dimension_numbers<[1], [0], [0], [1], [0, 0, 1, 1], [], []>} : vector<256x32xbf16>, vector<32x128xbf16>, vector<256x128xf32> -> vector<256x128xf32>
    %54 = arith.addf %50, %53 : vector<256x128xf32>
    %55 = arith.negf %54 : vector<256x128xf32>
    %56 = math.exp %55 : vector<256x128xf32>
    %cst_25 = arith.constant 1.000000e+00 : f32
    %57 = vector.broadcast %cst_25 : f32 to vector<256x128xf32>
    %58 = arith.addf %57, %56 : vector<256x128xf32>
    %59 = arith.divf %57, %58 : vector<256x128xf32>
    %60 = math.tanh %54 : vector<256x128xf32>
    %61 = vector.extract_strided_slice %59 {offsets = [0, 0], sizes = [256, 32], strides = [1, 1]} : vector<256x128xf32> to vector<256x32xf32>
    %62 = vector.extract_strided_slice %60 {offsets = [0, 64], sizes = [256, 32], strides = [1, 1]} : vector<256x128xf32> to vector<256x32xf32>
    %63 = vector.extract_strided_slice %59 {offsets = [0, 96], sizes = [256, 32], strides = [1, 1]} : vector<256x128xf32> to vector<256x32xf32>
    %64 = vector.extract_strided_slice %59 {offsets = [0, 32], sizes = [256, 32], strides = [1, 1]} : vector<256x128xf32> to vector<256x32xf32>
    %65 = arith.mulf %64, %46 : vector<256x32xf32>
    %66 = arith.mulf %61, %62 : vector<256x32xf32>
    %67 = arith.addf %65, %66 : vector<256x32xf32>
    %68 = math.tanh %67 : vector<256x32xf32>
    %69 = arith.mulf %63, %68 : vector<256x32xf32>
    %70 = vector.broadcast %7 : vector<1x128xf32> to vector<256x128xf32>
    %71 = arith.addf %34, %70 : vector<256x128xf32>
    %72 = arith.negf %71 : vector<256x128xf32>
    %73 = math.exp %72 : vector<256x128xf32>
    %cst_26 = arith.constant 1.000000e+00 : f32
    %74 = vector.broadcast %cst_26 : f32 to vector<256x128xf32>
    %75 = arith.addf %74, %73 : vector<256x128xf32>
    %76 = arith.divf %74, %75 : vector<256x128xf32>
    %77 = math.tanh %71 : vector<256x128xf32>
    %78 = vector.extract_strided_slice %76 {offsets = [0, 0], sizes = [256, 32], strides = [1, 1]} : vector<256x128xf32> to vector<256x32xf32>
    %79 = vector.extract_strided_slice %77 {offsets = [0, 64], sizes = [256, 32], strides = [1, 1]} : vector<256x128xf32> to vector<256x32xf32>
    %80 = vector.extract_strided_slice %76 {offsets = [0, 96], sizes = [256, 32], strides = [1, 1]} : vector<256x128xf32> to vector<256x32xf32>
    %81 = arith.mulf %78, %79 : vector<256x32xf32>
    %82 = math.tanh %81 : vector<256x32xf32>
    %83 = arith.mulf %80, %82 : vector<256x32xf32>
    %84 = vector.broadcast %7 : vector<1x128xf32> to vector<256x128xf32>
    %85 = arith.addf %33, %84 : vector<256x128xf32>
    %86 = arith.truncf %83 : vector<256x32xf32> to vector<256x32xbf16>
    %c72 = arith.constant 72 : index
    %c0_27 = arith.constant 0 : index
    %87 = vector.load %arg3[%c72, %c0_27] : memref<192x256xbf16, #tpu.memory_space<vmem>>, vector<32x128xbf16>
    %cst_28 = arith.constant dense<0.000000e+00> : vector<256x128xf32>
    %88 = tpu.matmul %86, %87, %cst_28 {dimension_numbers = #tpu.dot_dimension_numbers<[1], [0], [0], [1], [0, 0, 1, 1], [], []>} : vector<256x32xbf16>, vector<32x128xbf16>, vector<256x128xf32> -> vector<256x128xf32>
    %89 = arith.addf %85, %88 : vector<256x128xf32>
    %90 = arith.negf %89 : vector<256x128xf32>
    %91 = math.exp %90 : vector<256x128xf32>
    %cst_29 = arith.constant 1.000000e+00 : f32
    %92 = vector.broadcast %cst_29 : f32 to vector<256x128xf32>
    %93 = arith.addf %92, %91 : vector<256x128xf32>
    %94 = arith.divf %92, %93 : vector<256x128xf32>
    %95 = math.tanh %89 : vector<256x128xf32>
    %96 = vector.extract_strided_slice %94 {offsets = [0, 0], sizes = [256, 32], strides = [1, 1]} : vector<256x128xf32> to vector<256x32xf32>
    %97 = vector.extract_strided_slice %95 {offsets = [0, 64], sizes = [256, 32], strides = [1, 1]} : vector<256x128xf32> to vector<256x32xf32>
    %98 = vector.extract_strided_slice %94 {offsets = [0, 96], sizes = [256, 32], strides = [1, 1]} : vector<256x128xf32> to vector<256x32xf32>
    %99 = vector.extract_strided_slice %94 {offsets = [0, 32], sizes = [256, 32], strides = [1, 1]} : vector<256x128xf32> to vector<256x32xf32>
    %100 = arith.mulf %99, %81 : vector<256x32xf32>
    %101 = arith.mulf %96, %97 : vector<256x32xf32>
    %102 = arith.addf %100, %101 : vector<256x32xf32>
    %103 = math.tanh %102 : vector<256x32xf32>
    %104 = arith.mulf %98, %103 : vector<256x32xf32>
    %105 = tpu.concatenate %48, %69 in 0 : vector<256x32xf32>, vector<256x32xf32> -> vector<512x32xf32>
    %106 = arith.truncf %105 : vector<512x32xf32> to vector<512x32xbf16>
    %107 = tpu.concatenate %104, %83 in 0 : vector<256x32xf32>, vector<256x32xf32> -> vector<512x32xf32>
    %108 = arith.truncf %107 : vector<512x32xf32> to vector<512x32xbf16>
    %c104 = arith.constant 104 : index
    %c0_30 = arith.constant 0 : index
    %109 = vector.load %arg3[%c104, %c0_30] : memref<192x256xbf16, #tpu.memory_space<vmem>>, vector<32x1xbf16>
    %cst_31 = arith.constant dense<0.000000e+00> : vector<512x1xf32>
    %110 = tpu.matmul %106, %109, %cst_31 {dimension_numbers = #tpu.dot_dimension_numbers<[1], [0], [0], [1], [0, 0, 1, 1], [], []>} : vector<512x32xbf16>, vector<32x1xbf16>, vector<512x1xf32> -> vector<512x1xf32>
    %c136 = arith.constant 136 : index
    %c0_32 = arith.constant 0 : index
    %111 = vector.load %arg3[%c136, %c0_32] : memref<192x256xbf16, #tpu.memory_space<vmem>>, vector<32x1xbf16>
    %cst_33 = arith.constant dense<0.000000e+00> : vector<512x1xf32>
    %112 = tpu.matmul %108, %111, %cst_33 {dimension_numbers = #tpu.dot_dimension_numbers<[1], [0], [0], [1], [0, 0, 1, 1], [], []>} : vector<512x32xbf16>, vector<32x1xbf16>, vector<512x1xf32> -> vector<512x1xf32>
    %113 = arith.addf %110, %112 : vector<512x1xf32>
    %114 = vector.broadcast %8 : vector<1x1xf32> to vector<512x1xf32>
    %115 = arith.addf %113, %114 : vector<512x1xf32>
    %116 = vector.extract_strided_slice %115 {offsets = [0, 0], sizes = [256, 1], strides = [1, 1]} : vector<512x1xf32> to vector<256x1xf32>
    %117 = vector.extract_strided_slice %115 {offsets = [256, 0], sizes = [256, 1], strides = [1, 1]} : vector<512x1xf32> to vector<256x1xf32>
    %118 = arith.maximumf %116, %117 : vector<256x1xf32>
    %119 = arith.subf %116, %118 : vector<256x1xf32>
    %120 = math.exp %119 : vector<256x1xf32>
    %121 = arith.subf %117, %118 : vector<256x1xf32>
    %122 = math.exp %121 : vector<256x1xf32>
    %123 = arith.addf %120, %122 : vector<256x1xf32>
    %124 = tpu.reciprocal %123 {approx = true} : vector<256x1xf32> -> vector<256x1xf32>
    %125 = arith.mulf %120, %124 : vector<256x1xf32>
    %126 = vector.broadcast %125 : vector<256x1xf32> to vector<256x16xf32>
    %127 = arith.mulf %126, %17 : vector<256x16xf32>
    %128 = arith.mulf %122, %124 : vector<256x1xf32>
    %129 = vector.broadcast %128 : vector<256x1xf32> to vector<256x16xf32>
    %130 = arith.mulf %129, %26 : vector<256x16xf32>
    %131 = arith.addf %127, %130 : vector<256x16xf32>
    %132 = arith.truncf %131 : vector<256x16xf32> to vector<256x16xbf16>
    %cst_34 = arith.constant dense<0.000000e+00> : vector<256x16xf32>
    %133 = tpu.matmul %1, %132, %cst_34 {dimension_numbers = #tpu.dot_dimension_numbers<[1], [0], [0], [1], [0, 0, 1, 1], [], []>} : vector<256x256xbf16>, vector<256x16xbf16>, vector<256x16xf32> -> vector<256x16xf32>
    %134 = arith.truncf %133 : vector<256x16xf32> to vector<256x16xbf16>
    %c168 = arith.constant 168 : index
    %c0_35 = arith.constant 0 : index
    %135 = vector.load %arg3[%c168, %c0_35] : memref<192x256xbf16, #tpu.memory_space<vmem>>, vector<16x128xbf16>
    %cst_36 = arith.constant dense<0.000000e+00> : vector<256x128xf32>
    %136 = tpu.matmul %134, %135, %cst_36 {dimension_numbers = #tpu.dot_dimension_numbers<[1], [0], [0], [1], [0, 0, 1, 1], [], []>} : vector<256x16xbf16>, vector<16x128xbf16>, vector<256x128xf32> -> vector<256x128xf32>
    %137 = vector.broadcast %9 : vector<1x128xf32> to vector<256x128xf32>
    %138 = arith.addf %136, %137 : vector<256x128xf32>
    %c0_37 = arith.constant 0 : index
    %c0_38 = arith.constant 0 : index
    %c0_39 = arith.constant 0 : index
    %139 = vector.load %arg5[%c0_37, %c0_38, %c0_39] : memref<1x256x128xf32, #tpu.memory_space<vmem>>, vector<1x256x128xf32>
    %140 = vector.shape_cast %139 : vector<1x256x128xf32> to vector<256x128xf32>
    %141 = vector.shape_cast %138 : vector<256x128xf32> to vector<1x256x128xf32>
    tpu.vector_store %arg5[%c0_37, %c0_38, %c0_39], %141 {strides = array<i32>} : memref<1x256x128xf32, #tpu.memory_space<vmem>>, vector<1x256x128xf32>,
    return
  }
  func.func @transform_0(%arg0: i32) -> (i32, i32, i32) {
    %c0_i32 = arith.constant 0 : i32
    %c0_i32_0 = arith.constant 0 : i32
    %c0_i32_1 = arith.constant 0 : i32
    return %arg0, %c0_i32, %c0_i32_0 : i32, i32, i32
  }
  func.func @transform_1(%arg0: i32) -> (i32, i32, i32) {
    %c0_i32 = arith.constant 0 : i32
    %c0_i32_0 = arith.constant 0 : i32
    %c0_i32_1 = arith.constant 0 : i32
    return %arg0, %c0_i32, %c0_i32_0 : i32, i32, i32
  }
  func.func @transform_2(%arg0: i32) -> (i32, i32) {
    %c0_i32 = arith.constant 0 : i32
    %c0_i32_0 = arith.constant 0 : i32
    %c0_i32_1 = arith.constant 0 : i32
    return %c0_i32, %c0_i32_0 : i32, i32
  }
  func.func @transform_3(%arg0: i32) -> (i32, i32) {
    %c0_i32 = arith.constant 0 : i32
    %c0_i32_0 = arith.constant 0 : i32
    %c0_i32_1 = arith.constant 0 : i32
    return %c0_i32, %c0_i32_0 : i32, i32
  }
  func.func @transform_4(%arg0: i32) -> (i32, i32, i32) {
    %c0_i32 = arith.constant 0 : i32
    %c0_i32_0 = arith.constant 0 : i32
    %c0_i32_1 = arith.constant 0 : i32
    return %arg0, %c0_i32, %c0_i32_0 : i32, i32, i32
  }
}

</mosaic_0001>

<llo_original>
// kernel: tpu_custom_call.1
$region0: #{tpu_custom_call.1}
  #allocation0 [shape = 'u32[]', space=smem, size = 0x4, offset = 0x4, fixed_abs, tag = 'smem constant byte address 0x4 - core index']
  #allocation1 [shape = 'u32[144,128]{1,0:T(1,128)}', space=vmem, size = 0x12000, scoped, tag = 'internal scratch']
  %s0 = inlined_call_operand.hbm [shape: bf16[2,256,256], index: 0, kind: input, shape index: {}]
  %s1 = inlined_call_operand.vmem [shape: bf16[2,256,8], index: 1, kind: input, shape index: {}]
  %s2 = inlined_call_operand.vmem [shape: bf16[192,256], index: 2, kind: input, shape index: {}]
  %s3 = inlined_call_operand.vmem [shape: f32[8,256], index: 3, kind: input, shape index: {}]
  %s4 = inlined_call_operand.hbm [shape: f32[2,256,128], index: 4, kind: output, shape index: {}]
  %s5 = sld [smem:[#allocation0]]
  $region53: #{tpu_custom_call.1} parent=0
    _
  %s7 = ssub.s32 1, %s5
  %s8 = scalar_select 0, %s7, %s5
  $region1: #{tpu_custom_call.1} parent=0
    #allocation2 [shape = 'u8[262144]{0}', space=vmem, size = 0x40000, scoped, tag = 'input window, operand 0']
    #allocation3 [shape = 's32[2]{0}', space=sflag, size = 0x8, scoped, tag = 'scoped memory for tpu_custom_call.1']
    #allocation4 [shape = 's32[2]{0}', space=sflag, size = 0x8, scoped, tag = 'scoped memory for tpu_custom_call.1']
    #allocation5 [shape = 'u8[262144]{0}', space=vmem, size = 0x40000, scoped, tag = 'output window, operand 0']
    %9 = vsyncpa [#allocation3], 0
    %s10 = scalar_lea.sflag [#allocation3], 1
    %11 = vsyncpa %s10, 0
    %12 = vsyncpa [#allocation4], 0
    %s13 = scalar_lea.sflag [#allocation4], 1
    %14 = vsyncpa %s13, 0
    loop: start=0, step=1, limit=4
    $region2: #{tpu_custom_call.1} parent=1 // loop_pre_header
      _
    $region3: #{tpu_custom_call.1} parent=1 // loop_header
      %s16 = sphi 0, %s20
      %p17 = scmp.ge.s32.totalorder %s16, 4
      %s26 = sphi 0, %s28
      %s29 = sphi 0, %s26
      %s30 = sphi 0, %s29
      %s46 = sphi 0, %s30
      %s52 = sphi 0, %s54
      %s55 = sphi 0, %s52
      %s56 = sphi 0, %s55
      %s72 = sphi 0, %s56
      %s76 = sphi 0, %s76
      %s78 = sphi 0, %s76
      %s79 = sphi 0, %s78
      %s93 = sphi 0, %s79
      %s97 = sphi 0, %s97
      %s99 = sphi 0, %s97
      %s100 = sphi 0, %s99
      %s114 = sphi 0, %s100
      %s120 = sphi 0, %s122
      %s123 = sphi 0, %s120
      %s124 = sphi 0, %s123
      %s140 = sphi 0, %s124
    $region4: #{tpu_custom_call.1} parent=1 // loop_header_branch
      %19 = sbr.rel (%p17) target = $region8
    $region5: #{tpu_custom_call.1} parent=1 // loop_body
      %s21 = ssub.s32 %s16, 1
      %s22 = ssub.s32 %s16, 2
      %s23 = sadd.s32 %s16, 1
      %s24 = ssub.s32 %s16, %s23
      %p25 = scmp.eq.s32.totalorder %s24, 0
      %s27 = sadd.s32 %s26, 1
      %s28 = scalar_select %p25, %s26, %s27
      %p31 = pneg %p25
      %p32 = scmp.eq.s32.totalorder %s16, 1
      %p33 = por %p31, %p32
      %p34 = scmp.ne.s32.totalorder %s26, %s29
      %p35 = scmp.eq.s32.totalorder %s16, 0
      %p36 = por %p34, %p35
      %p37 = scmp.ne.s32.totalorder %s26, %s29
      %p38 = scmp.eq.s32.totalorder %s21, 1
      %p39 = por %p37, %p38
      %p40 = scmp.ne.s32.totalorder %s29, %s30
      %p41 = scmp.eq.s32.totalorder %s21, 0
      %p42 = por %p40, %p41
      %p43 = scmp.ne.s32.totalorder %s29, %s30
      %p44 = scmp.eq.s32.totalorder %s22, 1
      %p45 = por %p43, %p44
      %p47 = scmp.ne.s32.totalorder %s30, %s46
      %p48 = scmp.eq.s32.totalorder %s22, 0
      %p49 = por %p47, %p48
      %s50 = ssub.s32 %s16, %s23
      %p51 = scmp.eq.s32.totalorder %s50, 0
      %s53 = sadd.s32 %s52, 1
      %s54 = scalar_select %p51, %s52, %s53
      %p57 = pneg %p51
      %p58 = scmp.eq.s32.totalorder %s16, 1
      %p59 = por %p57, %p58
      %p60 = scmp.ne.s32.totalorder %s52, %s55
      %p61 = scmp.eq.s32.totalorder %s16, 0
      %p62 = por %p60, %p61
      %p63 = scmp.ne.s32.totalorder %s52, %s55
      %p64 = scmp.eq.s32.totalorder %s21, 1
      %p65 = por %p63, %p64
      %p66 = scmp.ne.s32.totalorder %s55, %s56
      %p67 = scmp.eq.s32.totalorder %s21, 0
      %p68 = por %p66, %p67
      %p69 = scmp.ne.s32.totalorder %s55, %s56
      %p70 = scmp.eq.s32.totalorder %s22, 1
      %p71 = por %p69, %p70
      %p73 = scmp.ne.s32.totalorder %s56, %s72
      %p74 = scmp.eq.s32.totalorder %s22, 0
      %p75 = por %p73, %p74
      %s77 = sadd.s32 %s76, 1
      %p80 = scmp.eq.s32.totalorder %s16, 1
      %p81 = scmp.ne.s32.totalorder %s76, %s78
      %p82 = scmp.eq.s32.totalorder %s16, 0
      %p83 = por %p81, %p82
      %p84 = scmp.ne.s32.totalorder %s76, %s78
      %p85 = scmp.eq.s32.totalorder %s21, 1
      %p86 = por %p84, %p85
      %p87 = scmp.ne.s32.totalorder %s78, %s79
      %p88 = scmp.eq.s32.totalorder %s21, 0
      %p89 = por %p87, %p88
      %p90 = scmp.ne.s32.totalorder %s78, %s79
      %p91 = scmp.eq.s32.totalorder %s22, 1
      %p92 = por %p90, %p91
      %p94 = scmp.ne.s32.totalorder %s79, %s93
      %p95 = scmp.eq.s32.totalorder %s22, 0
      %p96 = por %p94, %p95
      %s98 = sadd.s32 %s97, 1
      %p101 = scmp.eq.s32.totalorder %s16, 1
      %p102 = scmp.ne.s32.totalorder %s97, %s99
      %p103 = scmp.eq.s32.totalorder %s16, 0
      %p104 = por %p102, %p103
      %p105 = scmp.ne.s32.totalorder %s97, %s99
      %p106 = scmp.eq.s32.totalorder %s21, 1
      %p107 = por %p105, %p106
      %p108 = scmp.ne.s32.totalorder %s99, %s100
      %p109 = scmp.eq.s32.totalorder %s21, 0
      %p110 = por %p108, %p109
      %p111 = scmp.ne.s32.totalorder %s99, %s100
      %p112 = scmp.eq.s32.totalorder %s22, 1
      %p113 = por %p111, %p112
      %p115 = scmp.ne.s32.totalorder %s100, %s114
      %p116 = scmp.eq.s32.totalorder %s22, 0
      %p117 = por %p115, %p116
      %s118 = ssub.s32 %s16, %s23
      %p119 = scmp.eq.s32.totalorder %s118, 0
      %s121 = sadd.s32 %s120, 1
      %s122 = scalar_select %p119, %s120, %s121
      %p125 = pneg %p119
      %p126 = scmp.eq.s32.totalorder %s16, 1
      %p127 = por %p125, %p126
      %p128 = scmp.ne.s32.totalorder %s120, %s123
      %p129 = scmp.eq.s32.totalorder %s16, 0
      %p130 = por %p128, %p129
      %p131 = scmp.ne.s32.totalorder %s120, %s123
      %p132 = scmp.eq.s32.totalorder %s21, 1
      %p133 = por %p131, %p132
      %p134 = scmp.ne.s32.totalorder %s123, %s124
      %p135 = scmp.eq.s32.totalorder %s21, 0
      %p136 = por %p134, %p135
      %p137 = scmp.ne.s32.totalorder %s123, %s124
      %p138 = scmp.eq.s32.totalorder %s22, 1
      %p139 = por %p137, %p138
      %p141 = scmp.ne.s32.totalorder %s124, %s140
      %p142 = scmp.eq.s32.totalorder %s22, 0
      %p143 = por %p141, %p142
      %p144 = scmp.le.s32.totalorder 1, %s16
      %p145 = scmp.lt.s32.totalorder %s16, 3
      %p146 = pnand %p144, %p145
      %p147 = pneg %p146
      // Predicated region
      $region9: #{tpu_custom_call.1} parent=5 // pred_check
        _
      $region10: #{tpu_custom_call.1} parent=5 // pred_check_branch
        %149 = sbr.rel (%p146) target = $region12
      $region11: #{tpu_custom_call.1} parent=5 // pred_region
        %s150 = ssub.s32 %s16, 1
        // Predicated region
        $region13: #{tpu_custom_call.1} parent=11 // pred_check
          %p151 = pneg %p89
        $region14: #{tpu_custom_call.1} parent=11 // pred_check_branch
          %153 = sbr.rel (%p151) target = $region16
        $region15: #{tpu_custom_call.1} parent=11 // pred_region
          _
        $region16: #{tpu_custom_call.1} parent=11 // pred_fallthru
          _
        // Predicated region
        $region17: #{tpu_custom_call.1} parent=11 // pred_check
          %p154 = pneg %p110
        $region18: #{tpu_custom_call.1} parent=11 // pred_check_branch
          %156 = sbr.rel (%p154) target = $region20
        $region19: #{tpu_custom_call.1} parent=11 // pred_region
          _
        $region20: #{tpu_custom_call.1} parent=11 // pred_fallthru
          _
      $region12: #{tpu_custom_call.1} parent=5 // pred_fallthru
        _
      %p157 = scmp.lt.s32.totalorder %s16, 2
      // Predicated region
      $region21: #{tpu_custom_call.1} parent=5 // pred_check
        %p158 = pneg %p157
      $region22: #{tpu_custom_call.1} parent=5 // pred_check_branch
        %160 = sbr.rel (%p158) target = $region24
      $region23: #{tpu_custom_call.1} parent=5 // pred_region
        // Predicated region
        $region25: #{tpu_custom_call.1} parent=23 // pred_check
          %p161 = pneg %p36
        $region26: #{tpu_custom_call.1} parent=23 // pred_check_branch
          %163 = sbr.rel (%p161) target = $region28
        $region27: #{tpu_custom_call.1} parent=23 // pred_region
          %s164 = sand.u32 %s26, 1
          %s165 = scalar_lea.sflag [#allocation3], %s164
          %s166 = sand.u32 %s26, 1
          %s167 = smul.addr %s166, 256
          %s168 = scalar_lea.vmem [#allocation2], %s167
          %s170 = ssub.s32 4096, 4096
          %171 = vsyncadd %s165, %s170
          %s172 = smul.addr %s16, 64
          %s173 = smul.addr %s172, 64
          %s174 = scalar_lea.hbm %s0, %s173
          %s175 = sshll.u32 %s168, 4
          %s176 = int_to_ptr.vmem [resolvable:$true] %s175
          %181 = dma.hbm_to_vmem [thread:$0]  %s174, 4096, %s176, %s165, 128, 128, 8
        $region28: #{tpu_custom_call.1} parent=23 // pred_fallthru
          _
        // Predicated region
        $region29: #{tpu_custom_call.1} parent=23 // pred_check
          %p182 = pneg %p62
        $region30: #{tpu_custom_call.1} parent=23 // pred_check_branch
          %184 = sbr.rel (%p182) target = $region32
        $region31: #{tpu_custom_call.1} parent=23 // pred_region
          %p185 = scmp.lt.s32.totalorder %s16, 1
          %s186 = scalar_select %p185, %s16, 1
          %s187 = smul.addr %s186, 32
          %s188 = smul.addr %s187, 4
          %s189 = scalar_lea.vmem %s1, %s188
        $region32: #{tpu_custom_call.1} parent=23 // pred_fallthru
          _
      $region24: #{tpu_custom_call.1} parent=5 // pred_fallthru
        _
      %p190 = scmp.le.s32.totalorder 1, %s16
      %p191 = scmp.lt.s32.totalorder %s16, 3
      %p192 = pnand %p190, %p191
      %p193 = pneg %p192
      // Predicated region
      $region33: #{tpu_custom_call.1} parent=5 // pred_check
        _
      $region34: #{tpu_custom_call.1} parent=5 // pred_check_branch
        %195 = sbr.rel (%p192) target = $region36
      $region35: #{tpu_custom_call.1} parent=5 // pred_region
        %s196 = ssub.s32 %s16, 1
        %s197 = sand.u32 %s29, 1
        %s198 = scalar_lea.sflag [#allocation3], %s197
        %s199 = sand.u32 %s29, 1
        %s200 = smul.addr %s199, 256
        %s201 = scalar_lea.vmem [#allocation2], %s200
        // Predicated region
        $region37: #{tpu_custom_call.1} parent=35 // pred_check
          %p202 = pneg %p42
        $region38: #{tpu_custom_call.1} parent=35 // pred_check_branch
          %204 = sbr.rel (%p202) target = $region40
        $region39: #{tpu_custom_call.1} parent=35 // pred_region
          %205 = dma.done %s198, 4096
        $region40: #{tpu_custom_call.1} parent=35 // pred_fallthru
          _
        %s206 = sand.u32 %s29, 1
        %s207 = scalar_lea.sflag [#allocation3], %s206
        %s208 = sand.u32 %s29, 1
        %s209 = smul.addr %s208, 256
        %s210 = scalar_lea.vmem [#allocation2], %s209
        %p211 = pneg %p42
        %p212 = pneg %p39
        %p213 = scmp.lt.s32.totalorder %s21, 1
        %s214 = scalar_select %p213, %s21, 1
        %s215 = smul.addr %s214, 32
        %s216 = smul.addr %s215, 4
        %s217 = scalar_lea.vmem %s1, %s216
        %p218 = pneg %p68
        %p219 = pneg %p65
        %p220 = pneg %p89
        %p221 = pneg %p86
        %p222 = pneg %p110
        %p223 = pneg %p107
        %p224 = pneg %p136
        %p225 = pneg %p133
        %s226 = sand.u32 %s123, 1
        %s227 = scalar_lea.sflag [#allocation4], %s226
        %s228 = sand.u32 %s123, 1
        %s229 = smul.addr %s228, 256
        %s230 = scalar_lea.vmem [#allocation5], %s229
        %p231 = scmp.lt.s32.totalorder %s21, 1
        %s232 = scalar_select %p231, %s21, 1
        %s233 = smul.addr %s232, 32
        %s234 = smul.addr %s233, 4
        %s235 = scalar_lea.vmem %s1, %s234
        %v237 = vld [vmem:[%s201] sm:$0xff]
        %v238 = vld [vmem:[%s201 + $0x8] sm:$0xff]
        %v239 = vld [vmem:[%s201 + $0x10] sm:$0xff]
        %v240 = vld [vmem:[%s201 + $0x18] sm:$0xff]
        %v241 = vld [vmem:[%s201 + $0x20] sm:$0xff]
        %v242 = vld [vmem:[%s201 + $0x28] sm:$0xff]
        %v243 = vld [vmem:[%s201 + $0x30] sm:$0xff]
        %v244 = vld [vmem:[%s201 + $0x38] sm:$0xff]
        %v245 = vld [vmem:[%s201 + $0x40] sm:$0xff]
        %v246 = vld [vmem:[%s201 + $0x48] sm:$0xff]
        %v247 = vld [vmem:[%s201 + $0x50] sm:$0xff]
        %v248 = vld [vmem:[%s201 + $0x58] sm:$0xff]
        %v249 = vld [vmem:[%s201 + $0x60] sm:$0xff]
        %v250 = vld [vmem:[%s201 + $0x68] sm:$0xff]
        %v251 = vld [vmem:[%s201 + $0x70] sm:$0xff]
        %v252 = vld [vmem:[%s201 + $0x78] sm:$0xff]
        %v253 = vld [vmem:[%s201 + $0x80] sm:$0xff]
        %v254 = vld [vmem:[%s201 + $0x88] sm:$0xff]
        %v255 = vld [vmem:[%s201 + $0x90] sm:$0xff]
        %v256 = vld [vmem:[%s201 + $0x98] sm:$0xff]
        %v257 = vld [vmem:[%s201 + $0xa0] sm:$0xff]
        %v258 = vld [vmem:[%s201 + $0xa8] sm:$0xff]
        %v259 = vld [vmem:[%s201 + $0xb0] sm:$0xff]
        %v260 = vld [vmem:[%s201 + $0xb8] sm:$0xff]
        %v261 = vld [vmem:[%s201 + $0xc0] sm:$0xff]
        %v262 = vld [vmem:[%s201 + $0xc8] sm:$0xff]
        %v263 = vld [vmem:[%s201 + $0xd0] sm:$0xff]
        %v264 = vld [vmem:[%s201 + $0xd8] sm:$0xff]
        %v265 = vld [vmem:[%s201 + $0xe0] sm:$0xff]
        %v266 = vld [vmem:[%s201 + $0xe8] sm:$0xff]
        %v267 = vld [vmem:[%s201 + $0xf0] sm:$0xff]
        %v268 = vld [vmem:[%s201 + $0xf8] sm:$0xff]
        %v269 = vld [vmem:[%s235] sm:$0xf]
        %v270 = vld [vmem:[%s235 + $0x4] sm:$0xf]
        %v271 = vld [vmem:[%s235 + $0x8] sm:$0xf]
        %v272 = vld [vmem:[%s235 + $0xc] sm:$0xf]
        %v273 = vld [vmem:[%s235 + $0x10] sm:$0xf]
        %v274 = vld [vmem:[%s235 + $0x14] sm:$0xf]
        %v275 = vld [vmem:[%s235 + $0x18] sm:$0xf]
        %v276 = vld [vmem:[%s235 + $0x1c] sm:$0xf]
        %v277 = vld [vmem:[%s235 + $0x20] sm:$0xf]
        %v278 = vld [vmem:[%s235 + $0x24] sm:$0xf]
        %v279 = vld [vmem:[%s235 + $0x28] sm:$0xf]
        %v280 = vld [vmem:[%s235 + $0x2c] sm:$0xf]
        %v281 = vld [vmem:[%s235 + $0x30] sm:$0xf]
        %v282 = vld [vmem:[%s235 + $0x34] sm:$0xf]
        %v283 = vld [vmem:[%s235 + $0x38] sm:$0xf]
        %v284 = vld [vmem:[%s235 + $0x3c] sm:$0xf]
        %v285 = vld [vmem:[%s235 + $0x40] sm:$0xf]
        %v286 = vld [vmem:[%s235 + $0x44] sm:$0xf]
        %v287 = vld [vmem:[%s235 + $0x48] sm:$0xf]
        %v288 = vld [vmem:[%s235 + $0x4c] sm:$0xf]
        %v289 = vld [vmem:[%s235 + $0x50] sm:$0xf]
        %v290 = vld [vmem:[%s235 + $0x54] sm:$0xf]
        %v291 = vld [vmem:[%s235 + $0x58] sm:$0xf]
        %v292 = vld [vmem:[%s235 + $0x5c] sm:$0xf]
        %v293 = vld [vmem:[%s235 + $0x60] sm:$0xf]
        %v294 = vld [vmem:[%s235 + $0x64] sm:$0xf]
        %v295 = vld [vmem:[%s235 + $0x68] sm:$0xf]
        %v296 = vld [vmem:[%s235 + $0x6c] sm:$0xf]
        %v297 = vld [vmem:[%s235 + $0x70] sm:$0xf]
        %v298 = vld [vmem:[%s235 + $0x74] sm:$0xf]
        %v299 = vld [vmem:[%s235 + $0x78] sm:$0xf]
        %v300 = vld [vmem:[%s235 + $0x7c] sm:$0xf]
        %v301 = vld [vmem:[%s3] ss:$0 sm:$0xff]
        %v302 = vld [vmem:[%s3 + $0x1] ss:$0 sm:$0xff]
        %v303 = vld [vmem:[%s3 + $0x2] ss:$0 sm:$0xff]
        %v304 = vld [vmem:[%s3 + $0x3] ss:$0 sm:$0xff]
        %v305 = vld [vmem:[%s3 + $0x4] ss:$0 sm:$0xff]
        %v306 = vld [vmem:[%s3 + $0x5] ss:$0 sm:$0xff]
        %v307 = vld [vmem:[%s2] sm:$0xf]
        %v340 = vunpack.c.l.b16 %v269
        %v341 = vunpack.c.l.b16 %v270
        %v342 = vunpack.c.l.b16 %v271
        %v343 = vunpack.c.l.b16 %v272
        %v344 = vunpack.c.l.b16 %v273
        %v345 = vunpack.c.l.b16 %v274
        %v346 = vunpack.c.l.b16 %v275
        %v347 = vunpack.c.l.b16 %v276
        %v348 = vunpack.c.l.b16 %v277
        %v349 = vunpack.c.l.b16 %v278
        %v350 = vunpack.c.l.b16 %v279
        %v351 = vunpack.c.l.b16 %v280
        %v352 = vunpack.c.l.b16 %v281
        %v353 = vunpack.c.l.b16 %v282
        %v354 = vunpack.c.l.b16 %v283
        %v355 = vunpack.c.l.b16 %v284
        %v356 = vunpack.c.l.b16 %v285
        %v357 = vunpack.c.l.b16 %v286
        %v358 = vunpack.c.l.b16 %v287
        %v359 = vunpack.c.l.b16 %v288
        %v360 = vunpack.c.l.b16 %v289
        %v361 = vunpack.c.l.b16 %v290
        %v362 = vunpack.c.l.b16 %v291
        %v363 = vunpack.c.l.b16 %v292
        %v364 = vunpack.c.l.b16 %v293
        %v365 = vunpack.c.l.b16 %v294
        %v366 = vunpack.c.l.b16 %v295
        %v367 = vunpack.c.l.b16 %v296
        %v368 = vunpack.c.l.b16 %v297
        %v369 = vunpack.c.l.b16 %v298
        %v370 = vunpack.c.l.b16 %v299
        %v371 = vunpack.c.l.b16 %v300
        %v372 = vpack.c.b16 %v341, %v340
        %v373 = vpack.c.b16 %v343, %v342
        %v374 = vpack.c.b16 %v345, %v344
        %v375 = vpack.c.b16 %v347, %v346
        %v376 = vpack.c.b16 %v349, %v348
        %v377 = vpack.c.b16 %v351, %v350
        %v378 = vpack.c.b16 %v353, %v352
        %v379 = vpack.c.b16 %v355, %v354
        %v380 = vpack.c.b16 %v357, %v356
        %v381 = vpack.c.b16 %v359, %v358
        %v382 = vpack.c.b16 %v361, %v360
        %v383 = vpack.c.b16 %v363, %v362
        %v384 = vpack.c.b16 %v365, %v364
        %v385 = vpack.c.b16 %v367, %v366
        %v386 = vpack.c.b16 %v369, %v368
        %v387 = vpack.c.b16 %v371, %v370
        %vm388 = vcmask 64512
        %v390 = vsel %vm388, %v372, 0
        %v393 = vsel %vm388, %v373, 0
        %v396 = vsel %vm388, %v374, 0
        %v399 = vsel %vm388, %v375, 0
        %v402 = vsel %vm388, %v376, 0
        %v405 = vsel %vm388, %v377, 0
        %v408 = vsel %vm388, %v378, 0
        %v411 = vsel %vm388, %v379, 0
        %v414 = vsel %vm388, %v380, 0
        %v417 = vsel %vm388, %v381, 0
        %v420 = vsel %vm388, %v382, 0
        %v423 = vsel %vm388, %v383, 0
        %v426 = vsel %vm388, %v384, 0
        %v429 = vsel %vm388, %v385, 0
        %v432 = vsel %vm388, %v386, 0
        %v435 = vsel %vm388, %v387, 0
        %vm437 = vcmask 1043456
        %v439 = vsel %vm437, %v307, 0
        %441 = vmatprep.subr.bf16.mxu0 0
        %442 = vmatpush1.bf16.msra.mxu0 %v439
        %443 = vmatprep.subr.bf16.mxu0 0
        %444 = vmatpush1.bf16.msra.mxu0 0
        %445 = vmatprep.subr.bf16.mxu0 0
        %446 = vmatpush1.bf16.msra.mxu0 0
        %447 = vmatprep.subr.bf16.mxu0 0
        %448 = vmatpush1.bf16.msra.mxu0 0
        %449 = vmatprep.subr.bf16.mxu0 0
        %450 = vmatpush1.bf16.msra.mxu0 0
        %451 = vmatprep.subr.bf16.mxu0 0
        %452 = vmatpush1.bf16.msra.mxu0 0
        %453 = vmatprep.subr.bf16.mxu0 0
        %454 = vmatpush1.bf16.msra.mxu0 0
        %455 = vmatprep.subr.bf16.mxu0 0
        %456 = vmatpush1.bf16.msra.mxu0 0
        %457 = vmatprep.subr.bf16.mxu0 0
        %458 = vmatpush1.bf16.msra.mxu0 0
        %459 = vmatprep.subr.bf16.mxu0 0
        %460 = vmatpush1.bf16.msra.mxu0 0
        %461 = vmatprep.subr.bf16.mxu0 0
        %462 = vmatpush1.bf16.msra.mxu0 0
        %463 = vmatprep.subr.bf16.mxu0 0
        %464 = vmatpush1.bf16.msra.mxu0 0
        %465 = vmatprep.subr.bf16.mxu0 0
        %466 = vmatpush1.bf16.msra.mxu0 0
        %467 = vmatprep.subr.bf16.mxu0 0
        %468 = vmatpush1.bf16.msra.mxu0 0
        %469 = vmatprep.subr.bf16.mxu0 0
        %470 = vmatpush1.bf16.msra.mxu0 0
        %471 = vmatprep.subr.bf16.mxu0 0
        %472 = vmatpush1.bf16.msra.mxu0 0
        %473 = vmatprep.mubr.bf16.mxu0 0
        %474 = vmatmul.mubr.bf16.gmra.mrb[0].mxu0 %v390
        %v475 = vpop.f32.mrb[0].mxu0
        %v476 = vadd.f32 0.0, %v475
        %v477 = vpop.f32.mrb[0].mxu0
        %v478 = vpop.f32.mrb[0].mxu0
        %v479 = vadd.f32 0.0, %v478
        %v480 = vpop.f32.mrb[0].mxu0
        %481 = vmatprep.mubr.bf16.mxu0 0
        %482 = vmatmul.mubr.bf16.gmra.mrb[0].mxu0 %v393
        %v483 = vpop.f32.mrb[0].mxu0
        %v484 = vadd.f32 0.0, %v483
        %v485 = vpop.f32.mrb[0].mxu0
        %v486 = vpop.f32.mrb[0].mxu0
        %v487 = vadd.f32 0.0, %v486
        %v488 = vpop.f32.mrb[0].mxu0
        %489 = vmatprep.mubr.bf16.mxu0 0
        %490 = vmatmul.mubr.bf16.gmra.mrb[0].mxu0 %v396
        %v491 = vpop.f32.mrb[0].mxu0
        %v492 = vadd.f32 0.0, %v491
        %v493 = vpop.f32.mrb[0].mxu0
        %v494 = vpop.f32.mrb[0].mxu0
        %v495 = vadd.f32 0.0, %v494
        %v496 = vpop.f32.mrb[0].mxu0
        %497 = vmatprep.mubr.bf16.mxu0 0
        %498 = vmatmul.mubr.bf16.gmra.mrb[0].mxu0 %v399
        %v499 = vpop.f32.mrb[0].mxu0
        %v500 = vadd.f32 0.0, %v499
        %v501 = vpop.f32.mrb[0].mxu0
        %v502 = vpop.f32.mrb[0].mxu0
        %v503 = vadd.f32 0.0, %v502
        %v504 = vpop.f32.mrb[0].mxu0
        %505 = vmatprep.mubr.bf16.mxu0 0
        %506 = vmatmul.mubr.bf16.gmra.mrb[0].mxu0 %v402
        %v507 = vpop.f32.mrb[0].mxu0
        %v508 = vadd.f32 0.0, %v507
        %v509 = vpop.f32.mrb[0].mxu0
        %v510 = vpop.f32.mrb[0].mxu0
        %v511 = vadd.f32 0.0, %v510
        %v512 = vpop.f32.mrb[0].mxu0
        %513 = vmatprep.mubr.bf16.mxu0 0
        %514 = vmatmul.mubr.bf16.gmra.mrb[0].mxu0 %v405
        %v515 = vpop.f32.mrb[0].mxu0
        %v516 = vadd.f32 0.0, %v515
        %v517 = vpop.f32.mrb[0].mxu0
        %v518 = vpop.f32.mrb[0].mxu0
        %v519 = vadd.f32 0.0, %v518
        %v520 = vpop.f32.mrb[0].mxu0
        %521 = vmatprep.mubr.bf16.mxu0 0
        %522 = vmatmul.mubr.bf16.gmra.mrb[0].mxu0 %v408
        %v523 = vpop.f32.mrb[0].mxu0
        %v524 = vadd.f32 0.0, %v523
        %v525 = vpop.f32.mrb[0].mxu0
        %v526 = vpop.f32.mrb[0].mxu0
        %v527 = vadd.f32 0.0, %v526
        %v528 = vpop.f32.mrb[0].mxu0
        %529 = vmatprep.mubr.bf16.mxu0 0
        %530 = vmatmul.mubr.bf16.gmra.mrb[0].mxu0 %v411
        %v531 = vpop.f32.mrb[0].mxu0
        %v532 = vadd.f32 0.0, %v531
        %v533 = vpop.f32.mrb[0].mxu0
        %v534 = vpop.f32.mrb[0].mxu0
        %v535 = vadd.f32 0.0, %v534
        %v536 = vpop.f32.mrb[0].mxu0
        %537 = vmatprep.mubr.bf16.mxu0 0
        %538 = vmatmul.mubr.bf16.gmra.mrb[0].mxu0 %v414
        %v539 = vpop.f32.mrb[0].mxu0
        %v540 = vadd.f32 0.0, %v539
        %v541 = vpop.f32.mrb[0].mxu0
        %v542 = vpop.f32.mrb[0].mxu0
        %v543 = vadd.f32 0.0, %v542
        %v544 = vpop.f32.mrb[0].mxu0
        %545 = vmatprep.mubr.bf16.mxu0 0
        %546 = vmatmul.mubr.bf16.gmra.mrb[0].mxu0 %v417
        %v547 = vpop.f32.mrb[0].mxu0
        %v548 = vadd.f32 0.0, %v547
        %v549 = vpop.f32.mrb[0].mxu0
        %v550 = vpop.f32.mrb[0].mxu0
        %v551 = vadd.f32 0.0, %v550
        %v552 = vpop.f32.mrb[0].mxu0
        %553 = vmatprep.mubr.bf16.mxu0 0
        %554 = vmatmul.mubr.bf16.gmra.mrb[0].mxu0 %v420
        %v555 = vpop.f32.mrb[0].mxu0
        %v556 = vadd.f32 0.0, %v555
        %v557 = vpop.f32.mrb[0].mxu0
        %v558 = vpop.f32.mrb[0].mxu0
        %v559 = vadd.f32 0.0, %v558
        %v560 = vpop.f32.mrb[0].mxu0
        %561 = vmatprep.mubr.bf16.mxu0 0
        %562 = vmatmul.mubr.bf16.gmra.mrb[0].mxu0 %v423
        %v563 = vpop.f32.mrb[0].mxu0
        %v564 = vadd.f32 0.0, %v563
        %v565 = vpop.f32.mrb[0].mxu0
        %v566 = vpop.f32.mrb[0].mxu0
        %v567 = vadd.f32 0.0, %v566
        %v568 = vpop.f32.mrb[0].mxu0
        %569 = vmatprep.mubr.bf16.mxu0 0
        %570 = vmatmul.mubr.bf16.gmra.mrb[0].mxu0 %v426
        %v571 = vpop.f32.mrb[0].mxu0
        %v572 = vadd.f32 0.0, %v571
        %v573 = vpop.f32.mrb[0].mxu0
        %v574 = vpop.f32.mrb[0].mxu0
        %v575 = vadd.f32 0.0, %v574
        %v576 = vpop.f32.mrb[0].mxu0
        %577 = vmatprep.mubr.bf16.mxu0 0
        %578 = vmatmul.mubr.bf16.gmra.mrb[0].mxu0 %v429
        %v579 = vpop.f32.mrb[0].mxu0
        %v580 = vadd.f32 0.0, %v579
        %v581 = vpop.f32.mrb[0].mxu0
        %v582 = vpop.f32.mrb[0].mxu0
        %v583 = vadd.f32 0.0, %v582
        %v584 = vpop.f32.mrb[0].mxu0
        %585 = vmatprep.mubr.bf16.mxu0 0
        %586 = vmatmul.mubr.bf16.gmra.mrb[0].mxu0 %v432
        %v587 = vpop.f32.mrb[0].mxu0
        %v588 = vadd.f32 0.0, %v587
        %v589 = vpop.f32.mrb[0].mxu0
        %v590 = vpop.f32.mrb[0].mxu0
        %v591 = vadd.f32 0.0, %v590
        %v592 = vpop.f32.mrb[0].mxu0
        %593 = vmatprep.mubr.bf16.mxu0 0
        %594 = vmatmul.mubr.bf16.gmra.mrb[0].mxu0 %v435
        %v595 = vpop.f32.mrb[0].mxu0
        %v596 = vadd.f32 0.0, %v595
        %v597 = vpop.f32.mrb[0].mxu0
        %v598 = vpop.f32.mrb[0].mxu0
        %v599 = vadd.f32 0.0, %v598
        %v600 = vpop.f32.mrb[0].mxu0
        %601 = vdwg.mxu0
        %v602 = vpack.c.bf16 %v479, %v476
        %v603 = vpack.c.bf16 %v487, %v484
        %v604 = vpack.c.bf16 %v495, %v492
        %v605 = vpack.c.bf16 %v503, %v500
        %v606 = vpack.c.bf16 %v511, %v508
        %v607 = vpack.c.bf16 %v519, %v516
        %v608 = vpack.c.bf16 %v527, %v524
        %v609 = vpack.c.bf16 %v535, %v532
        %v610 = vpack.c.bf16 %v543, %v540
        %v611 = vpack.c.bf16 %v551, %v548
        %v612 = vpack.c.bf16 %v559, %v556
        %v613 = vpack.c.bf16 %v567, %v564
        %v614 = vpack.c.bf16 %v575, %v572
        %v615 = vpack.c.bf16 %v583, %v580
        %v616 = vpack.c.bf16 %v591, %v588
        %v617 = vpack.c.bf16 %v599, %v596
        %v650 = vunpack.c.l.b16 %v237
        %v651 = vunpack.c.h.b16 %v237
        %v652 = vunpack.c.l.b16 %v238
        %v653 = vunpack.c.h.b16 %v238
        %v654 = vunpack.c.l.b16 %v239
        %v655 = vunpack.c.h.b16 %v239
        %v656 = vunpack.c.l.b16 %v240
        %v657 = vunpack.c.h.b16 %v240
        %v658 = vunpack.c.l.b16 %v241
        %v659 = vunpack.c.h.b16 %v241
        %v660 = vunpack.c.l.b16 %v242
        %v661 = vunpack.c.h.b16 %v242
        %v662 = vunpack.c.l.b16 %v243
        %v663 = vunpack.c.h.b16 %v243
        %v664 = vunpack.c.l.b16 %v244
        %v665 = vunpack.c.h.b16 %v244
        %v666 = vunpack.c.l.b16 %v245
        %v667 = vunpack.c.h.b16 %v245
        %v668 = vunpack.c.l.b16 %v246
        %v669 = vunpack.c.h.b16 %v246
        %v670 = vunpack.c.l.b16 %v247
        %v671 = vunpack.c.h.b16 %v247
        %v672 = vunpack.c.l.b16 %v248
        %v673 = vunpack.c.h.b16 %v248
        %v674 = vunpack.c.l.b16 %v249
        %v675 = vunpack.c.h.b16 %v249
        %v676 = vunpack.c.l.b16 %v250
        %v677 = vunpack.c.h.b16 %v250
        %v678 = vunpack.c.l.b16 %v251
        %v679 = vunpack.c.h.b16 %v251
        %v680 = vunpack.c.l.b16 %v252
        %v681 = vunpack.c.h.b16 %v252
        %v682 = vunpack.c.l.b16 %v253
        %v683 = vunpack.c.h.b16 %v253
        %v684 = vunpack.c.l.b16 %v254
        %v685 = vunpack.c.h.b16 %v254
        %v686 = vunpack.c.l.b16 %v255
        %v687 = vunpack.c.h.b16 %v255
        %v688 = vunpack.c.l.b16 %v256
        %v689 = vunpack.c.h.b16 %v256
        %v690 = vunpack.c.l.b16 %v257
        %v691 = vunpack.c.h.b16 %v257
        %v692 = vunpack.c.l.b16 %v258
        %v693 = vunpack.c.h.b16 %v258
        %v694 = vunpack.c.l.b16 %v259
        %v695 = vunpack.c.h.b16 %v259
        %v696 = vunpack.c.l.b16 %v260
        %v697 = vunpack.c.h.b16 %v260
        %v698 = vunpack.c.l.b16 %v261
        %v699 = vunpack.c.h.b16 %v261
        %v700 = vunpack.c.l.b16 %v262
        %v701 = vunpack.c.h.b16 %v262
        %v702 = vunpack.c.l.b16 %v263
        %v703 = vunpack.c.h.b16 %v263
        %v704 = vunpack.c.l.b16 %v264
        %v705 = vunpack.c.h.b16 %v264
        %v706 = vunpack.c.l.b16 %v265
        %v707 = vunpack.c.h.b16 %v265
        %v708 = vunpack.c.l.b16 %v266
        %v709 = vunpack.c.h.b16 %v266
        %v710 = vunpack.c.l.b16 %v267
        %v711 = vunpack.c.h.b16 %v267
        %v712 = vunpack.c.l.b16 %v268
        %v713 = vunpack.c.h.b16 %v268
        %v714 = vpack.c.b16 %v652, %v650
        %v715 = vpack.c.b16 %v653, %v651
        %v716 = vpack.c.b16 %v656, %v654
        %v717 = vpack.c.b16 %v657, %v655
        %v718 = vpack.c.b16 %v660, %v658
        %v719 = vpack.c.b16 %v661, %v659
        %v720 = vpack.c.b16 %v664, %v662
        %v721 = vpack.c.b16 %v665, %v663
        %v722 = vpack.c.b16 %v668, %v666
        %v723 = vpack.c.b16 %v669, %v667
        %v724 = vpack.c.b16 %v672, %v670
        %v725 = vpack.c.b16 %v673, %v671
        %v726 = vpack.c.b16 %v676, %v674
        %v727 = vpack.c.b16 %v677, %v675
        %v728 = vpack.c.b16 %v680, %v678
        %v729 = vpack.c.b16 %v681, %v679
        %v730 = vpack.c.b16 %v684, %v682
        %v731 = vpack.c.b16 %v685, %v683
        %v732 = vpack.c.b16 %v688, %v686
        %v733 = vpack.c.b16 %v689, %v687
        %v734 = vpack.c.b16 %v692, %v690
        %v735 = vpack.c.b16 %v693, %v691
        %v736 = vpack.c.b16 %v696, %v694
        %v737 = vpack.c.b16 %v697, %v695
        %v738 = vpack.c.b16 %v700, %v698
        %v739 = vpack.c.b16 %v701, %v699
        %v740 = vpack.c.b16 %v704, %v702
        %v741 = vpack.c.b16 %v705, %v703
        %v742 = vpack.c.b16 %v708, %v706
        %v743 = vpack.c.b16 %v709, %v707
        %v744 = vpack.c.b16 %v712, %v710
        %v745 = vpack.c.b16 %v713, %v711
        %778 = vmatprep.subr.bf16.mxu0 0
        %779 = vmatpush1.bf16.msra.mxu0 %v602
        %780 = vmatprep.subr.bf16.mxu0 0
        %781 = vmatpush1.bf16.msra.mxu0 %v603
        %782 = vmatprep.subr.bf16.mxu0 0
        %783 = vmatpush1.bf16.msra.mxu0 %v604
        %784 = vmatprep.subr.bf16.mxu0 0
        %785 = vmatpush1.bf16.msra.mxu0 %v605
        %786 = vmatprep.subr.bf16.mxu0 0
        %787 = vmatpush1.bf16.msra.mxu0 %v606
        %788 = vmatprep.subr.bf16.mxu0 0
        %789 = vmatpush1.bf16.msra.mxu0 %v607
        %790 = vmatprep.subr.bf16.mxu0 0
        %791 = vmatpush1.bf16.msra.mxu0 %v608
        %792 = vmatprep.subr.bf16.mxu0 0
        %793 = vmatpush1.bf16.msra.mxu0 %v609
        %794 = vmatprep.subr.bf16.mxu0 0
        %795 = vmatpush1.bf16.msra.mxu0 %v610
        %796 = vmatprep.subr.bf16.mxu0 0
        %797 = vmatpush1.bf16.msra.mxu0 %v611
        %798 = vmatprep.subr.bf16.mxu0 0
        %799 = vmatpush1.bf16.msra.mxu0 %v612
        %800 = vmatprep.subr.bf16.mxu0 0
        %801 = vmatpush1.bf16.msra.mxu0 %v613
        %802 = vmatprep.subr.bf16.mxu0 0
        %803 = vmatpush1.bf16.msra.mxu0 %v614
        %804 = vmatprep.subr.bf16.mxu0 0
        %805 = vmatpush1.bf16.msra.mxu0 %v615
        %806 = vmatprep.subr.bf16.mxu0 0
        %807 = vmatpush1.bf16.msra.mxu0 %v616
        %808 = vmatprep.subr.bf16.mxu0 0
        %809 = vmatpush1.bf16.msra.mxu0 %v617
        %810 = vmatprep.mubr.bf16.mxu0 %v715
        %811 = vmatmul.mubr.bf16.gmra.mrb[0].mxu0 %v714
        %v812 = vpop.f32.mrb[0].mxu0
        %v813 = vadd.f32 %v301, %v812
        %v814 = vpop.f32.mrb[0].mxu0
        %v815 = vpop.f32.mrb[0].mxu0
        %v816 = vadd.f32 %v301, %v815
        %v817 = vpop.f32.mrb[0].mxu0
        %818 = vmatprep.mubr.bf16.mxu0 %v717
        %819 = vmatmul.mubr.bf16.gmra.mrb[0].mxu0 %v716
        %v820 = vpop.f32.mrb[0].mxu0
        %v821 = vadd.f32 %v301, %v820
        %v822 = vpop.f32.mrb[0].mxu0
        %v823 = vpop.f32.mrb[0].mxu0
        %v824 = vadd.f32 %v301, %v823
        %v825 = vpop.f32.mrb[0].mxu0
        %826 = vmatprep.mubr.bf16.mxu0 %v719
        %827 = vmatmul.mubr.bf16.gmra.mrb[0].mxu0 %v718
        %v828 = vpop.f32.mrb[0].mxu0
        %v829 = vadd.f32 %v301, %v828
        %v830 = vpop.f32.mrb[0].mxu0
        %v831 = vpop.f32.mrb[0].mxu0
        %v832 = vadd.f32 %v301, %v831
        %v833 = vpop.f32.mrb[0].mxu0
        %834 = vmatprep.mubr.bf16.mxu0 %v721
        %835 = vmatmul.mubr.bf16.gmra.mrb[0].mxu0 %v720
        %v836 = vpop.f32.mrb[0].mxu0
        %v837 = vadd.f32 %v301, %v836
        %v838 = vpop.f32.mrb[0].mxu0
        %v839 = vpop.f32.mrb[0].mxu0
        %v840 = vadd.f32 %v301, %v839
        %v841 = vpop.f32.mrb[0].mxu0
        %842 = vmatprep.mubr.bf16.mxu0 %v723
        %843 = vmatmul.mubr.bf16.gmra.mrb[0].mxu0 %v722
        %v844 = vpop.f32.mrb[0].mxu0
        %v845 = vadd.f32 %v301, %v844
        %v846 = vpop.f32.mrb[0].mxu0
        %v847 = vpop.f32.mrb[0].mxu0
        %v848 = vadd.f32 %v301, %v847
        %v849 = vpop.f32.mrb[0].mxu0
        %850 = vmatprep.mubr.bf16.mxu0 %v725
        %851 = vmatmul.mubr.bf16.gmra.mrb[0].mxu0 %v724
        %v852 = vpop.f32.mrb[0].mxu0
        %v853 = vadd.f32 %v301, %v852
        %v854 = vpop.f32.mrb[0].mxu0
        %v855 = vpop.f32.mrb[0].mxu0
        %v856 = vadd.f32 %v301, %v855
        %v857 = vpop.f32.mrb[0].mxu0
        %858 = vmatprep.mubr.bf16.mxu0 %v727
        %859 = vmatmul.mubr.bf16.gmra.mrb[0].mxu0 %v726
        %v860 = vpop.f32.mrb[0].mxu0
        %v861 = vadd.f32 %v301, %v860
        %v862 = vpop.f32.mrb[0].mxu0
        %v863 = vpop.f32.mrb[0].mxu0
        %v864 = vadd.f32 %v301, %v863
        %v865 = vpop.f32.mrb[0].mxu0
        %866 = vmatprep.mubr.bf16.mxu0 %v729
        %867 = vmatmul.mubr.bf16.gmra.mrb[0].mxu0 %v728
        %v868 = vpop.f32.mrb[0].mxu0
        %v869 = vadd.f32 %v301, %v868
        %v870 = vpop.f32.mrb[0].mxu0
        %v871 = vpop.f32.mrb[0].mxu0
        %v872 = vadd.f32 %v301, %v871
        %v873 = vpop.f32.mrb[0].mxu0
        %874 = vmatprep.mubr.bf16.mxu0 %v731
        %875 = vmatmul.mubr.bf16.gmra.mrb[0].mxu0 %v730
        %v876 = vpop.f32.mrb[0].mxu0
        %v877 = vadd.f32 %v301, %v876
        %v878 = vpop.f32.mrb[0].mxu0
        %v879 = vpop.f32.mrb[0].mxu0
        %v880 = vadd.f32 %v301, %v879
        %v881 = vpop.f32.mrb[0].mxu0
        %882 = vmatprep.mubr.bf16.mxu0 %v733
        %883 = vmatmul.mubr.bf16.gmra.mrb[0].mxu0 %v732
        %v884 = vpop.f32.mrb[0].mxu0
        %v885 = vadd.f32 %v301, %v884
        %v886 = vpop.f32.mrb[0].mxu0
        %v887 = vpop.f32.mrb[0].mxu0
        %v888 = vadd.f32 %v301, %v887
        %v889 = vpop.f32.mrb[0].mxu0
        %890 = vmatprep.mubr.bf16.mxu0 %v735
        %891 = vmatmul.mubr.bf16.gmra.mrb[0].mxu0 %v734
        %v892 = vpop.f32.mrb[0].mxu0
        %v893 = vadd.f32 %v301, %v892
        %v894 = vpop.f32.mrb[0].mxu0
        %v895 = vpop.f32.mrb[0].mxu0
        %v896 = vadd.f32 %v301, %v895
        %v897 = vpop.f32.mrb[0].mxu0
        %898 = vmatprep.mubr.bf16.mxu0 %v737
        %899 = vmatmul.mubr.bf16.gmra.mrb[0].mxu0 %v736
        %v900 = vpop.f32.mrb[0].mxu0
        %v901 = vadd.f32 %v301, %v900
        %v902 = vpop.f32.mrb[0].mxu0
        %v903 = vpop.f32.mrb[0].mxu0
        %v904 = vadd.f32 %v301, %v903
        %v905 = vpop.f32.mrb[0].mxu0
        %906 = vmatprep.mubr.bf16.mxu0 %v739
        %907 = vmatmul.mubr.bf16.gmra.mrb[0].mxu0 %v738
        %v908 = vpop.f32.mrb[0].mxu0
        %v909 = vadd.f32 %v301, %v908
        %v910 = vpop.f32.mrb[0].mxu0
        %v911 = vpop.f32.mrb[0].mxu0
        %v912 = vadd.f32 %v301, %v911
        %v913 = vpop.f32.mrb[0].mxu0
        %914 = vmatprep.mubr.bf16.mxu0 %v741
        %915 = vmatmul.mubr.bf16.gmra.mrb[0].mxu0 %v740
        %v916 = vpop.f32.mrb[0].mxu0
        %v917 = vadd.f32 %v301, %v916
        %v918 = vpop.f32.mrb[0].mxu0
        %v919 = vpop.f32.mrb[0].mxu0
        %v920 = vadd.f32 %v301, %v919
        %v921 = vpop.f32.mrb[0].mxu0
        %922 = vmatprep.mubr.bf16.mxu0 %v743
        %923 = vmatmul.mubr.bf16.gmra.mrb[0].mxu0 %v742
        %v924 = vpop.f32.mrb[0].mxu0
        %v925 = vadd.f32 %v301, %v924
        %v926 = vpop.f32.mrb[0].mxu0
        %v927 = vpop.f32.mrb[0].mxu0
        %v928 = vadd.f32 %v301, %v927
        %v929 = vpop.f32.mrb[0].mxu0
        %930 = vmatprep.mubr.bf16.mxu0 %v745
        %931 = vmatmul.mubr.bf16.gmra.mrb[0].mxu0 %v744
        %v932 = vpop.f32.mrb[0].mxu0
        %v933 = vadd.f32 %v301, %v932
        %v934 = vpop.f32.mrb[0].mxu0
        %v935 = vpop.f32.mrb[0].mxu0
        %v936 = vadd.f32 %v301, %v935
        %v937 = vpop.f32.mrb[0].mxu0
        %938 = vdwg.mxu0
        %v939 = vmax.f32 %v813, 0.0
        %v940 = vmax.f32 %v816, 0.0
        %v941 = vmax.f32 %v821, 0.0
        %v942 = vmax.f32 %v824, 0.0
        %v943 = vmax.f32 %v829, 0.0
        %v944 = vmax.f32 %v832, 0.0
        %v945 = vmax.f32 %v837, 0.0
        %v946 = vmax.f32 %v840, 0.0
        %v947 = vmax.f32 %v845, 0.0
        %v948 = vmax.f32 %v848, 0.0
        %v949 = vmax.f32 %v853, 0.0
        %v950 = vmax.f32 %v856, 0.0
        %v951 = vmax.f32 %v861, 0.0
        %v952 = vmax.f32 %v864, 0.0
        %v953 = vmax.f32 %v869, 0.0
        %v954 = vmax.f32 %v872, 0.0
        %v955 = vmax.f32 %v877, 0.0
        %v956 = vmax.f32 %v880, 0.0
        %v957 = vmax.f32 %v885, 0.0
        %v958 = vmax.f32 %v888, 0.0
        %v959 = vmax.f32 %v893, 0.0
        %v960 = vmax.f32 %v896, 0.0
        %v961 = vmax.f32 %v901, 0.0
        %v962 = vmax.f32 %v904, 0.0
        %v963 = vmax.f32 %v909, 0.0
        %v964 = vmax.f32 %v912, 0.0
        %v965 = vmax.f32 %v917, 0.0
        %v966 = vmax.f32 %v920, 0.0
        %v967 = vmax.f32 %v925, 0.0
        %v968 = vmax.f32 %v928, 0.0
        %v969 = vmax.f32 %v933, 0.0
        %v970 = vmax.f32 %v936, 0.0
        %v971 = vpack.c.bf16 %v940, %v939
        %v972 = vpack.c.bf16 %v942, %v941
        %v973 = vpack.c.bf16 %v944, %v943
        %v974 = vpack.c.bf16 %v946, %v945
        %v975 = vpack.c.bf16 %v948, %v947
        %v976 = vpack.c.bf16 %v950, %v949
        %v977 = vpack.c.bf16 %v952, %v951
        %v978 = vpack.c.bf16 %v954, %v953
        %v979 = vpack.c.bf16 %v956, %v955
        %v980 = vpack.c.bf16 %v958, %v957
        %v981 = vpack.c.bf16 %v960, %v959
        %v982 = vpack.c.bf16 %v962, %v961
        %v983 = vpack.c.bf16 %v964, %v963
        %v984 = vpack.c.bf16 %v966, %v965
        %v985 = vpack.c.bf16 %v968, %v967
        %v986 = vpack.c.bf16 %v970, %v969
        %v987 = vld [vmem:[%s2 + $0x8] sm:$0xf]
        %v988 = vld [vmem:[%s2 + $0x10] sm:$0xf]
        %v991 = vunpack.c.l.b16 %v987
        %v992 = vunpack.c.l.b16 %v988
        %v993 = vpack.c.b16 %v992, %v991
        %vm995 = vcmask 130048
        %v997 = vsel %vm995, %v971, 0
        %v1000 = vsel %vm995, %v972, 0
        %v1003 = vsel %vm995, %v973, 0
        %v1006 = vsel %vm995, %v974, 0
        %v1009 = vsel %vm995, %v975, 0
        %v1012 = vsel %vm995, %v976, 0
        %v1015 = vsel %vm995, %v977, 0
        %v1018 = vsel %vm995, %v978, 0
        %v1021 = vsel %vm995, %v979, 0
        %v1024 = vsel %vm995, %v980, 0
        %v1027 = vsel %vm995, %v981, 0
        %v1030 = vsel %vm995, %v982, 0
        %v1033 = vsel %vm995, %v983, 0
        %v1036 = vsel %vm995, %v984, 0
        %v1039 = vsel %vm995, %v985, 0
        %v1042 = vsel %vm995, %v986, 0
        %1044 = vmatprep.subr.bf16.mxu0 0
        %1045 = vmatpush1.bf16.msra.mxu0 %v993
        %1046 = vmatprep.subr.bf16.mxu0 0
        %1047 = vmatpush1.bf16.msra.mxu0 0
        %1048 = vmatprep.subr.bf16.mxu0 0
        %1049 = vmatpush1.bf16.msra.mxu0 0
        %1050 = vmatprep.subr.bf16.mxu0 0
        %1051 = vmatpush1.bf16.msra.mxu0 0
        %1052 = vmatprep.subr.bf16.mxu0 0
        %1053 = vmatpush1.bf16.msra.mxu0 0
        %1054 = vmatprep.subr.bf16.mxu0 0
        %1055 = vmatpush1.bf16.msra.mxu0 0
        %1056 = vmatprep.subr.bf16.mxu0 0
        %1057 = vmatpush1.bf16.msra.mxu0 0
        %1058 = vmatprep.subr.bf16.mxu0 0
        %1059 = vmatpush1.bf16.msra.mxu0 0
        %1060 = vmatprep.subr.bf16.mxu0 0
        %1061 = vmatpush1.bf16.msra.mxu0 0
        %1062 = vmatprep.subr.bf16.mxu0 0
        %1063 = vmatpush1.bf16.msra.mxu0 0
        %1064 = vmatprep.subr.bf16.mxu0 0
        %1065 = vmatpush1.bf16.msra.mxu0 0
        %1066 = vmatprep.subr.bf16.mxu0 0
        %1067 = vmatpush1.bf16.msra.mxu0 0
        %1068 = vmatprep.subr.bf16.mxu0 0
        %1069 = vmatpush1.bf16.msra.mxu0 0
        %1070 = vmatprep.subr.bf16.mxu0 0
        %1071 = vmatpush1.bf16.msra.mxu0 0
        %1072 = vmatprep.subr.bf16.mxu0 0
        %1073 = vmatpush1.bf16.msra.mxu0 0
        %1074 = vmatprep.subr.bf16.mxu0 0
        %1075 = vmatpush1.bf16.msra.mxu0 0
        %1076 = vmatprep.mubr.bf16.mxu0 0
        %1077 = vmatmul.mubr.bf16.gmra.mrb[0].mxu0 %v997
        %v1078 = vpop.f32.mrb[0].mxu0
        %v1079 = vadd.f32 0.0, %v1078
        %v1080 = vpop.f32.mrb[0].mxu0
        %v1081 = vpop.f32.mrb[0].mxu0
        %v1082 = vadd.f32 0.0, %v1081
        %v1083 = vpop.f32.mrb[0].mxu0
        %1084 = vmatprep.mubr.bf16.mxu0 0
        %1085 = vmatmul.mubr.bf16.gmra.mrb[0].mxu0 %v1000
        %v1086 = vpop.f32.mrb[0].mxu0
        %v1087 = vadd.f32 0.0, %v1086
        %v1088 = vpop.f32.mrb[0].mxu0
        %v1089 = vpop.f32.mrb[0].mxu0
        %v1090 = vadd.f32 0.0, %v1089
        %v1091 = vpop.f32.mrb[0].mxu0
        %1092 = vmatprep.mubr.bf16.mxu0 0
        %1093 = vmatmul.mubr.bf16.gmra.mrb[0].mxu0 %v1003
        %v1094 = vpop.f32.mrb[0].mxu0
        %v1095 = vadd.f32 0.0, %v1094
        %v1096 = vpop.f32.mrb[0].mxu0
        %v1097 = vpop.f32.mrb[0].mxu0
        %v1098 = vadd.f32 0.0, %v1097
        %v1099 = vpop.f32.mrb[0].mxu0
        %1100 = vmatprep.mubr.bf16.mxu0 0
        %1101 = vmatmul.mubr.bf16.gmra.mrb[0].mxu0 %v1006
        %v1102 = vpop.f32.mrb[0].mxu0
        %v1103 = vadd.f32 0.0, %v1102
        %v1104 = vpop.f32.mrb[0].mxu0
        %v1105 = vpop.f32.mrb[0].mxu0
        %v1106 = vadd.f32 0.0, %v1105
        %v1107 = vpop.f32.mrb[0].mxu0
        %1108 = vmatprep.mubr.bf16.mxu0 0
        %1109 = vmatmul.mubr.bf16.gmra.mrb[0].mxu0 %v1009
        %v1110 = vpop.f32.mrb[0].mxu0
        %v1111 = vadd.f32 0.0, %v1110
        %v1112 = vpop.f32.mrb[0].mxu0
        %v1113 = vpop.f32.mrb[0].mxu0
        %v1114 = vadd.f32 0.0, %v1113
        %v1115 = vpop.f32.mrb[0].mxu0
        %1116 = vmatprep.mubr.bf16.mxu0 0
        %1117 = vmatmul.mubr.bf16.gmra.mrb[0].mxu0 %v1012
        %v1118 = vpop.f32.mrb[0].mxu0
        %v1119 = vadd.f32 0.0, %v1118
        %v1120 = vpop.f32.mrb[0].mxu0
        %v1121 = vpop.f32.mrb[0].mxu0
        %v1122 = vadd.f32 0.0, %v1121
        %v1123 = vpop.f32.mrb[0].mxu0
        %1124 = vmatprep.mubr.bf16.mxu0 0
        %1125 = vmatmul.mubr.bf16.gmra.mrb[0].mxu0 %v1015
        %v1126 = vpop.f32.mrb[0].mxu0
        %v1127 = vadd.f32 0.0, %v1126
        %v1128 = vpop.f32.mrb[0].mxu0
        %v1129 = vpop.f32.mrb[0].mxu0
        %v1130 = vadd.f32 0.0, %v1129
        %v1131 = vpop.f32.mrb[0].mxu0
        %1132 = vmatprep.mubr.bf16.mxu0 0
        %1133 = vmatmul.mubr.bf16.gmra.mrb[0].mxu0 %v1018
        %v1134 = vpop.f32.mrb[0].mxu0
        %v1135 = vadd.f32 0.0, %v1134
        %v1136 = vpop.f32.mrb[0].mxu0
        %v1137 = vpop.f32.mrb[0].mxu0
        %v1138 = vadd.f32 0.0, %v1137
        %v1139 = vpop.f32.mrb[0].mxu0
        %1140 = vmatprep.mubr.bf16.mxu0 0
        %1141 = vmatmul.mubr.bf16.gmra.mrb[0].mxu0 %v1021
        %v1142 = vpop.f32.mrb[0].mxu0
        %v1143 = vadd.f32 0.0, %v1142
        %v1144 = vpop.f32.mrb[0].mxu0
        %v1145 = vpop.f32.mrb[0].mxu0
        %v1146 = vadd.f32 0.0, %v1145
        %v1147 = vpop.f32.mrb[0].mxu0
        %1148 = vmatprep.mubr.bf16.mxu0 0
        %1149 = vmatmul.mubr.bf16.gmra.mrb[0].mxu0 %v1024
        %v1150 = vpop.f32.mrb[0].mxu0
        %v1151 = vadd.f32 0.0, %v1150
        %v1152 = vpop.f32.mrb[0].mxu0
        %v1153 = vpop.f32.mrb[0].mxu0
        %v1154 = vadd.f32 0.0, %v1153
        %v1155 = vpop.f32.mrb[0].mxu0
        %1156 = vmatprep.mubr.bf16.mxu0 0
        %1157 = vmatmul.mubr.bf16.gmra.mrb[0].mxu0 %v1027
        %v1158 = vpop.f32.mrb[0].mxu0
        %v1159 = vadd.f32 0.0, %v1158
        %v1160 = vpop.f32.mrb[0].mxu0
        %v1161 = vpop.f32.mrb[0].mxu0
        %v1162 = vadd.f32 0.0, %v1161
        %v1163 = vpop.f32.mrb[0].mxu0
        %1164 = vmatprep.mubr.bf16.mxu0 0
        %1165 = vmatmul.mubr.bf16.gmra.mrb[0].mxu0 %v1030
        %v1166 = vpop.f32.mrb[0].mxu0
        %v1167 = vadd.f32 0.0, %v1166
        %v1168 = vpop.f32.mrb[0].mxu0
        %v1169 = vpop.f32.mrb[0].mxu0
        %v1170 = vadd.f32 0.0, %v1169
        %v1171 = vpop.f32.mrb[0].mxu0
        %1172 = vmatprep.mubr.bf16.mxu0 0
        %1173 = vmatmul.mubr.bf16.gmra.mrb[0].mxu0 %v1033
        %v1174 = vpop.f32.mrb[0].mxu0
        %v1175 = vadd.f32 0.0, %v1174
        %v1176 = vpop.f32.mrb[0].mxu0
        %v1177 = vpop.f32.mrb[0].mxu0
        %v1178 = vadd.f32 0.0, %v1177
        %v1179 = vpop.f32.mrb[0].mxu0
        %1180 = vmatprep.mubr.bf16.mxu0 0
        %1181 = vmatmul.mubr.bf16.gmra.mrb[0].mxu0 %v1036
        %v1182 = vpop.f32.mrb[0].mxu0
        %v1183 = vadd.f32 0.0, %v1182
        %v1184 = vpop.f32.mrb[0].mxu0
        %v1185 = vpop.f32.mrb[0].mxu0
        %v1186 = vadd.f32 0.0, %v1185
        %v1187 = vpop.f32.mrb[0].mxu0
        %1188 = vmatprep.mubr.bf16.mxu0 0
        %1189 = vmatmul.mubr.bf16.gmra.mrb[0].mxu0 %v1039
        %v1190 = vpop.f32.mrb[0].mxu0
        %v1191 = vadd.f32 0.0, %v1190
        %v1192 = vpop.f32.mrb[0].mxu0
        %v1193 = vpop.f32.mrb[0].mxu0
        %v1194 = vadd.f32 0.0, %v1193
        %v1195 = vpop.f32.mrb[0].mxu0
        %1196 = vmatprep.mubr.bf16.mxu0 0
        %1197 = vmatmul.mubr.bf16.gmra.mrb[0].mxu0 %v1042
        %v1198 = vpop.f32.mrb[0].mxu0
        %v1199 = vadd.f32 0.0, %v1198
        %v1200 = vpop.f32.mrb[0].mxu0
        %v1201 = vpop.f32.mrb[0].mxu0
        %v1202 = vadd.f32 0.0, %v1201
        %v1203 = vpop.f32.mrb[0].mxu0
        %1204 = vdwg.mxu0
        %v1205 = vpack.c.bf16 %v1082, %v1079
        %v1206 = vpack.c.bf16 %v1090, %v1087
        %v1207 = vpack.c.bf16 %v1098, %v1095
        %v1208 = vpack.c.bf16 %v1106, %v1103
        %v1209 = vpack.c.bf16 %v1114, %v1111
        %v1210 = vpack.c.bf16 %v1122, %v1119
        %v1211 = vpack.c.bf16 %v1130, %v1127
        %v1212 = vpack.c.bf16 %v1138, %v1135
        %v1213 = vpack.c.bf16 %v1146, %v1143
        %v1214 = vpack.c.bf16 %v1154, %v1151
        %v1215 = vpack.c.bf16 %v1162, %v1159
        %v1216 = vpack.c.bf16 %v1170, %v1167
        %v1217 = vpack.c.bf16 %v1178, %v1175
        %v1218 = vpack.c.bf16 %v1186, %v1183
        %v1219 = vpack.c.bf16 %v1194, %v1191
        %v1220 = vpack.c.bf16 %v1202, %v1199
        %1221 = vmatprep.subr.bf16.mxu0 0
        %1222 = vmatpush1.bf16.msra.mxu0 %v1205
        %1223 = vmatprep.subr.bf16.mxu0 0
        %1224 = vmatpush1.bf16.msra.mxu0 %v1206
        %1225 = vmatprep.subr.bf16.mxu0 0
        %1226 = vmatpush1.bf16.msra.mxu0 %v1207
        %1227 = vmatprep.subr.bf16.mxu0 0
        %1228 = vmatpush1.bf16.msra.mxu0 %v1208
        %1229 = vmatprep.subr.bf16.mxu0 0
        %1230 = vmatpush1.bf16.msra.mxu0 %v1209
        %1231 = vmatprep.subr.bf16.mxu0 0
        %1232 = vmatpush1.bf16.msra.mxu0 %v1210
        %1233 = vmatprep.subr.bf16.mxu0 0
        %1234 = vmatpush1.bf16.msra.mxu0 %v1211
        %1235 = vmatprep.subr.bf16.mxu0 0
        %1236 = vmatpush1.bf16.msra.mxu0 %v1212
        %1237 = vmatprep.subr.bf16.mxu0 0
        %1238 = vmatpush1.bf16.msra.mxu0 %v1213
        %1239 = vmatprep.subr.bf16.mxu0 0
        %1240 = vmatpush1.bf16.msra.mxu0 %v1214
        %1241 = vmatprep.subr.bf16.mxu0 0
        %1242 = vmatpush1.bf16.msra.mxu0 %v1215
        %1243 = vmatprep.subr.bf16.mxu0 0
        %1244 = vmatpush1.bf16.msra.mxu0 %v1216
        %1245 = vmatprep.subr.bf16.mxu0 0
        %1246 = vmatpush1.bf16.msra.mxu0 %v1217
        %1247 = vmatprep.subr.bf16.mxu0 0
        %1248 = vmatpush1.bf16.msra.mxu0 %v1218
        %1249 = vmatprep.subr.bf16.mxu0 0
        %1250 = vmatpush1.bf16.msra.mxu0 %v1219
        %1251 = vmatprep.subr.bf16.mxu0 0
        %1252 = vmatpush1.bf16.msra.mxu0 %v1220
        %1253 = vmatprep.mubr.bf16.mxu0 %v715
        %1254 = vmatmul.mubr.bf16.gmra.mrb[0].mxu0 %v714
        %v1255 = vpop.f32.mrb[0].mxu0
        %v1256 = vadd.f32 %v302, %v1255
        %v1257 = vpop.f32.mrb[0].mxu0
        %v1258 = vpop.f32.mrb[0].mxu0
        %v1259 = vadd.f32 %v302, %v1258
        %v1260 = vpop.f32.mrb[0].mxu0
        %1261 = vmatprep.mubr.bf16.mxu0 %v717
        %1262 = vmatmul.mubr.bf16.gmra.mrb[0].mxu0 %v716
        %v1263 = vpop.f32.mrb[0].mxu0
        %v1264 = vadd.f32 %v302, %v1263
        %v1265 = vpop.f32.mrb[0].mxu0
        %v1266 = vpop.f32.mrb[0].mxu0
        %v1267 = vadd.f32 %v302, %v1266
        %v1268 = vpop.f32.mrb[0].mxu0
        %1269 = vmatprep.mubr.bf16.mxu0 %v719
        %1270 = vmatmul.mubr.bf16.gmra.mrb[0].mxu0 %v718
        %v1271 = vpop.f32.mrb[0].mxu0
        %v1272 = vadd.f32 %v302, %v1271
        %v1273 = vpop.f32.mrb[0].mxu0
        %v1274 = vpop.f32.mrb[0].mxu0
        %v1275 = vadd.f32 %v302, %v1274
        %v1276 = vpop.f32.mrb[0].mxu0
        %1277 = vmatprep.mubr.bf16.mxu0 %v721
        %1278 = vmatmul.mubr.bf16.gmra.mrb[0].mxu0 %v720
        %v1279 = vpop.f32.mrb[0].mxu0
        %v1280 = vadd.f32 %v302, %v1279
        %v1281 = vpop.f32.mrb[0].mxu0
        %v1282 = vpop.f32.mrb[0].mxu0
        %v1283 = vadd.f32 %v302, %v1282
        %v1284 = vpop.f32.mrb[0].mxu0
        %1285 = vmatprep.mubr.bf16.mxu0 %v723
        %1286 = vmatmul.mubr.bf16.gmra.mrb[0].mxu0 %v722
        %v1287 = vpop.f32.mrb[0].mxu0
        %v1288 = vadd.f32 %v302, %v1287
        %v1289 = vpop.f32.mrb[0].mxu0
        %v1290 = vpop.f32.mrb[0].mxu0
        %v1291 = vadd.f32 %v302, %v1290
        %v1292 = vpop.f32.mrb[0].mxu0
        %1293 = vmatprep.mubr.bf16.mxu0 %v725
        %1294 = vmatmul.mubr.bf16.gmra.mrb[0].mxu0 %v724
        %v1295 = vpop.f32.mrb[0].mxu0
        %v1296 = vadd.f32 %v302, %v1295
        %v1297 = vpop.f32.mrb[0].mxu0
        %v1298 = vpop.f32.mrb[0].mxu0
        %v1299 = vadd.f32 %v302, %v1298
        %v1300 = vpop.f32.mrb[0].mxu0
        %1301 = vmatprep.mubr.bf16.mxu0 %v727
        %1302 = vmatmul.mubr.bf16.gmra.mrb[0].mxu0 %v726
        %v1303 = vpop.f32.mrb[0].mxu0
        %v1304 = vadd.f32 %v302, %v1303
        %v1305 = vpop.f32.mrb[0].mxu0
        %v1306 = vpop.f32.mrb[0].mxu0
        %v1307 = vadd.f32 %v302, %v1306
        %v1308 = vpop.f32.mrb[0].mxu0
        %1309 = vmatprep.mubr.bf16.mxu0 %v729
        %1310 = vmatmul.mubr.bf16.gmra.mrb[0].mxu0 %v728
        %v1311 = vpop.f32.mrb[0].mxu0
        %v1312 = vadd.f32 %v302, %v1311
        %v1313 = vpop.f32.mrb[0].mxu0
        %v1314 = vpop.f32.mrb[0].mxu0
        %v1315 = vadd.f32 %v302, %v1314
        %v1316 = vpop.f32.mrb[0].mxu0
        %1317 = vmatprep.mubr.bf16.mxu0 %v731
        %1318 = vmatmul.mubr.bf16.gmra.mrb[0].mxu0 %v730
        %v1319 = vpop.f32.mrb[0].mxu0
        %v1320 = vadd.f32 %v302, %v1319
        %v1321 = vpop.f32.mrb[0].mxu0
        %v1322 = vpop.f32.mrb[0].mxu0
        %v1323 = vadd.f32 %v302, %v1322
        %v1324 = vpop.f32.mrb[0].mxu0
        %1325 = vmatprep.mubr.bf16.mxu0 %v733
        %1326 = vmatmul.mubr.bf16.gmra.mrb[0].mxu0 %v732
        %v1327 = vpop.f32.mrb[0].mxu0
        %v1328 = vadd.f32 %v302, %v1327
        %v1329 = vpop.f32.mrb[0].mxu0
        %v1330 = vpop.f32.mrb[0].mxu0
        %v1331 = vadd.f32 %v302, %v1330
        %v1332 = vpop.f32.mrb[0].mxu0
        %1333 = vmatprep.mubr.bf16.mxu0 %v735
        %1334 = vmatmul.mubr.bf16.gmra.mrb[0].mxu0 %v734
        %v1335 = vpop.f32.mrb[0].mxu0
        %v1336 = vadd.f32 %v302, %v1335
        %v1337 = vpop.f32.mrb[0].mxu0
        %v1338 = vpop.f32.mrb[0].mxu0
        %v1339 = vadd.f32 %v302, %v1338
        %v1340 = vpop.f32.mrb[0].mxu0
        %1341 = vmatprep.mubr.bf16.mxu0 %v737
        %1342 = vmatmul.mubr.bf16.gmra.mrb[0].mxu0 %v736
        %v1343 = vpop.f32.mrb[0].mxu0
        %v1344 = vadd.f32 %v302, %v1343
        %v1345 = vpop.f32.mrb[0].mxu0
        %v1346 = vpop.f32.mrb[0].mxu0
        %v1347 = vadd.f32 %v302, %v1346
        %v1348 = vpop.f32.mrb[0].mxu0
        %1349 = vmatprep.mubr.bf16.mxu0 %v739
        %1350 = vmatmul.mubr.bf16.gmra.mrb[0].mxu0 %v738
        %v1351 = vpop.f32.mrb[0].mxu0
        %v1352 = vadd.f32 %v302, %v1351
        %v1353 = vpop.f32.mrb[0].mxu0
        %v1354 = vpop.f32.mrb[0].mxu0
        %v1355 = vadd.f32 %v302, %v1354
        %v1356 = vpop.f32.mrb[0].mxu0
        %1357 = vmatprep.mubr.bf16.mxu0 %v741
        %1358 = vmatmul.mubr.bf16.gmra.mrb[0].mxu0 %v740
        %v1359 = vpop.f32.mrb[0].mxu0
        %v1360 = vadd.f32 %v302, %v1359
        %v1361 = vpop.f32.mrb[0].mxu0
        %v1362 = vpop.f32.mrb[0].mxu0
        %v1363 = vadd.f32 %v302, %v1362
        %v1364 = vpop.f32.mrb[0].mxu0
        %1365 = vmatprep.mubr.bf16.mxu0 %v743
        %1366 = vmatmul.mubr.bf16.gmra.mrb[0].mxu0 %v742
        %v1367 = vpop.f32.mrb[0].mxu0
        %v1368 = vadd.f32 %v302, %v1367
        %v1369 = vpop.f32.mrb[0].mxu0
        %v1370 = vpop.f32.mrb[0].mxu0
        %v1371 = vadd.f32 %v302, %v1370
        %v1372 = vpop.f32.mrb[0].mxu0
        %1373 = vmatprep.mubr.bf16.mxu0 %v745
        %1374 = vmatmul.mubr.bf16.gmra.mrb[0].mxu0 %v744
        %v1375 = vpop.f32.mrb[0].mxu0
        %v1376 = vadd.f32 %v302, %v1375
        %v1377 = vpop.f32.mrb[0].mxu0
        %v1378 = vpop.f32.mrb[0].mxu0
        %v1379 = vadd.f32 %v302, %v1378
        %v1380 = vpop.f32.mrb[0].mxu0
        %1381 = vdwg.mxu0
        %v1382 = vmax.f32 %v1256, 0.0
        %v1383 = vmax.f32 %v1259, 0.0
        %v1384 = vmax.f32 %v1264, 0.0
        %v1385 = vmax.f32 %v1267, 0.0
        %v1386 = vmax.f32 %v1272, 0.0
        %v1387 = vmax.f32 %v1275, 0.0
        %v1388 = vmax.f32 %v1280, 0.0
        %v1389 = vmax.f32 %v1283, 0.0
        %v1390 = vmax.f32 %v1288, 0.0
        %v1391 = vmax.f32 %v1291, 0.0
        %v1392 = vmax.f32 %v1296, 0.0
        %v1393 = vmax.f32 %v1299, 0.0
        %v1394 = vmax.f32 %v1304, 0.0
        %v1395 = vmax.f32 %v1307, 0.0
        %v1396 = vmax.f32 %v1312, 0.0
        %v1397 = vmax.f32 %v1315, 0.0
        %v1398 = vmax.f32 %v1320, 0.0
        %v1399 = vmax.f32 %v1323, 0.0
        %v1400 = vmax.f32 %v1328, 0.0
        %v1401 = vmax.f32 %v1331, 0.0
        %v1402 = vmax.f32 %v1336, 0.0
        %v1403 = vmax.f32 %v1339, 0.0
        %v1404 = vmax.f32 %v1344, 0.0
        %v1405 = vmax.f32 %v1347, 0.0
        %v1406 = vmax.f32 %v1352, 0.0
        %v1407 = vmax.f32 %v1355, 0.0
        %v1408 = vmax.f32 %v1360, 0.0
        %v1409 = vmax.f32 %v1363, 0.0
        %v1410 = vmax.f32 %v1368, 0.0
        %v1411 = vmax.f32 %v1371, 0.0
        %v1412 = vmax.f32 %v1376, 0.0
        %v1413 = vmax.f32 %v1379, 0.0
        %v1414 = vpack.c.bf16 %v1383, %v1382
        %v1415 = vpack.c.bf16 %v1385, %v1384
        %v1416 = vpack.c.bf16 %v1387, %v1386
        %v1417 = vpack.c.bf16 %v1389, %v1388
        %v1418 = vpack.c.bf16 %v1391, %v1390
        %v1419 = vpack.c.bf16 %v1393, %v1392
        %v1420 = vpack.c.bf16 %v1395, %v1394
        %v1421 = vpack.c.bf16 %v1397, %v1396
        %v1422 = vpack.c.bf16 %v1399, %v1398
        %v1423 = vpack.c.bf16 %v1401, %v1400
        %v1424 = vpack.c.bf16 %v1403, %v1402
        %v1425 = vpack.c.bf16 %v1405, %v1404
        %v1426 = vpack.c.bf16 %v1407, %v1406
        %v1427 = vpack.c.bf16 %v1409, %v1408
        %v1428 = vpack.c.bf16 %v1411, %v1410
        %v1429 = vpack.c.bf16 %v1413, %v1412
        %v1430 = vld [vmem:[%s2 + $0x18] sm:$0xff]
        %v1431 = vld [vmem:[%s2 + $0x20] sm:$0xff]
        %v1434 = vunpack.c.l.b16 %v1430
        %v1435 = vunpack.c.h.b16 %v1430
        %v1436 = vunpack.c.l.b16 %v1431
        %v1437 = vunpack.c.h.b16 %v1431
        %v1438 = vpack.c.b16 %v1436, %v1434
        %v1439 = vpack.c.b16 %v1437, %v1435
        %v1443 = vsel %vm995, %v1414, 0
        %v1446 = vsel %vm995, %v1415, 0
        %v1449 = vsel %vm995, %v1416, 0
        %v1452 = vsel %vm995, %v1417, 0
        %v1455 = vsel %vm995, %v1418, 0
        %v1458 = vsel %vm995, %v1419, 0
        %v1461 = vsel %vm995, %v1420, 0
        %v1464 = vsel %vm995, %v1421, 0
        %v1467 = vsel %vm995, %v1422, 0
        %v1470 = vsel %vm995, %v1423, 0
        %v1473 = vsel %vm995, %v1424, 0
        %v1476 = vsel %vm995, %v1425, 0
        %v1479 = vsel %vm995, %v1426, 0
        %v1482 = vsel %vm995, %v1427, 0
        %v1485 = vsel %vm995, %v1428, 0
        %v1488 = vsel %vm995, %v1429, 0
        %1490 = vmatprep.subr.bf16.mxu0 %v1439
        %1491 = vmatpush1.bf16.msra.mxu0 %v1438
        %1492 = vmatprep.subr.bf16.mxu0 0
        %1493 = vmatpush1.bf16.msra.mxu0 0
        %1494 = vmatprep.subr.bf16.mxu0 0
        %1495 = vmatpush1.bf16.msra.mxu0 0
        %1496 = vmatprep.subr.bf16.mxu0 0
        %1497 = vmatpush1.bf16.msra.mxu0 0
        %1498 = vmatprep.subr.bf16.mxu0 0
        %1499 = vmatpush1.bf16.msra.mxu0 0
        %1500 = vmatprep.subr.bf16.mxu0 0
        %1501 = vmatpush1.bf16.msra.mxu0 0
        %1502 = vmatprep.subr.bf16.mxu0 0
        %1503 = vmatpush1.bf16.msra.mxu0 0
        %1504 = vmatprep.subr.bf16.mxu0 0
        %1505 = vmatpush1.bf16.msra.mxu0 0
        %1506 = vmatprep.subr.bf16.mxu0 0
        %1507 = vmatpush1.bf16.msra.mxu0 0
        %1508 = vmatprep.subr.bf16.mxu0 0
        %1509 = vmatpush1.bf16.msra.mxu0 0
        %1510 = vmatprep.subr.bf16.mxu0 0
        %1511 = vmatpush1.bf16.msra.mxu0 0
        %1512 = vmatprep.subr.bf16.mxu0 0
        %1513 = vmatpush1.bf16.msra.mxu0 0
        %1514 = vmatprep.subr.bf16.mxu0 0
        %1515 = vmatpush1.bf16.msra.mxu0 0
        %1516 = vmatprep.subr.bf16.mxu0 0
        %1517 = vmatpush1.bf16.msra.mxu0 0
        %1518 = vmatprep.subr.bf16.mxu0 0
        %1519 = vmatpush1.bf16.msra.mxu0 0
        %1520 = vmatprep.subr.bf16.mxu0 0
        %1521 = vmatpush1.bf16.msra.mxu0 0
        %1522 = vmatprep.mubr.bf16.mxu0 0
        %1523 = vmatmul.mubr.bf16.gmra.mrb[0].mxu0 %v997
        %v1524 = vpop.f32.mrb[0].mxu0
        %v1525 = vadd.f32 0.0, %v1524
        %v1526 = vpop.f32.mrb[0].mxu0
        %v1527 = vadd.f32 0.0, %v1526
        %v1528 = vpop.f32.mrb[0].mxu0
        %v1529 = vadd.f32 0.0, %v1528
        %v1530 = vpop.f32.mrb[0].mxu0
        %v1531 = vadd.f32 0.0, %v1530
        %1532 = vmatprep.mubr.bf16.mxu0 0
        %1533 = vmatmul.mubr.bf16.gmra.mrb[0].mxu0 %v1000
        %v1534 = vpop.f32.mrb[0].mxu0
        %v1535 = vadd.f32 0.0, %v1534
        %v1536 = vpop.f32.mrb[0].mxu0
        %v1537 = vadd.f32 0.0, %v1536
        %v1538 = vpop.f32.mrb[0].mxu0
        %v1539 = vadd.f32 0.0, %v1538
        %v1540 = vpop.f32.mrb[0].mxu0
        %v1541 = vadd.f32 0.0, %v1540
        %1542 = vmatprep.mubr.bf16.mxu0 0
        %1543 = vmatmul.mubr.bf16.gmra.mrb[0].mxu0 %v1003
        %v1544 = vpop.f32.mrb[0].mxu0
        %v1545 = vadd.f32 0.0, %v1544
        %v1546 = vpop.f32.mrb[0].mxu0
        %v1547 = vadd.f32 0.0, %v1546
        %v1548 = vpop.f32.mrb[0].mxu0
        %v1549 = vadd.f32 0.0, %v1548
        %v1550 = vpop.f32.mrb[0].mxu0
        %v1551 = vadd.f32 0.0, %v1550
        %1552 = vmatprep.mubr.bf16.mxu0 0
        %1553 = vmatmul.mubr.bf16.gmra.mrb[0].mxu0 %v1006
        %v1554 = vpop.f32.mrb[0].mxu0
        %v1555 = vadd.f32 0.0, %v1554
        %v1556 = vpop.f32.mrb[0].mxu0
        %v1557 = vadd.f32 0.0, %v1556
        %v1558 = vpop.f32.mrb[0].mxu0
        %v1559 = vadd.f32 0.0, %v1558
        %v1560 = vpop.f32.mrb[0].mxu0
        %v1561 = vadd.f32 0.0, %v1560
        %1562 = vmatprep.mubr.bf16.mxu0 0
        %1563 = vmatmul.mubr.bf16.gmra.mrb[0].mxu0 %v1009
        %v1564 = vpop.f32.mrb[0].mxu0
        %v1565 = vadd.f32 0.0, %v1564
        %v1566 = vpop.f32.mrb[0].mxu0
        %v1567 = vadd.f32 0.0, %v1566
        %v1568 = vpop.f32.mrb[0].mxu0
        %v1569 = vadd.f32 0.0, %v1568
        %v1570 = vpop.f32.mrb[0].mxu0
        %v1571 = vadd.f32 0.0, %v1570
        %1572 = vmatprep.mubr.bf16.mxu0 0
        %1573 = vmatmul.mubr.bf16.gmra.mrb[0].mxu0 %v1012
        %v1574 = vpop.f32.mrb[0].mxu0
        %v1575 = vadd.f32 0.0, %v1574
        %v1576 = vpop.f32.mrb[0].mxu0
        %v1577 = vadd.f32 0.0, %v1576
        %v1578 = vpop.f32.mrb[0].mxu0
        %v1579 = vadd.f32 0.0, %v1578
        %v1580 = vpop.f32.mrb[0].mxu0
        %v1581 = vadd.f32 0.0, %v1580
        %1582 = vmatprep.mubr.bf16.mxu0 0
        %1583 = vmatmul.mubr.bf16.gmra.mrb[0].mxu0 %v1015
        %v1584 = vpop.f32.mrb[0].mxu0
        %v1585 = vadd.f32 0.0, %v1584
        %v1586 = vpop.f32.mrb[0].mxu0
        %v1587 = vadd.f32 0.0, %v1586
        %v1588 = vpop.f32.mrb[0].mxu0
        %v1589 = vadd.f32 0.0, %v1588
        %v1590 = vpop.f32.mrb[0].mxu0
        %v1591 = vadd.f32 0.0, %v1590
        %1592 = vmatprep.mubr.bf16.mxu0 0
        %1593 = vmatmul.mubr.bf16.gmra.mrb[0].mxu0 %v1018
        %v1594 = vpop.f32.mrb[0].mxu0
        %v1595 = vadd.f32 0.0, %v1594
        %v1596 = vpop.f32.mrb[0].mxu0
        %v1597 = vadd.f32 0.0, %v1596
        %v1598 = vpop.f32.mrb[0].mxu0
        %v1599 = vadd.f32 0.0, %v1598
        %v1600 = vpop.f32.mrb[0].mxu0
        %v1601 = vadd.f32 0.0, %v1600
        %1602 = vmatprep.mubr.bf16.mxu0 0
        %1603 = vmatmul.mubr.bf16.gmra.mrb[0].mxu0 %v1021
        %v1604 = vpop.f32.mrb[0].mxu0
        %v1605 = vadd.f32 0.0, %v1604
        %v1606 = vpop.f32.mrb[0].mxu0
        %v1607 = vadd.f32 0.0, %v1606
        %v1608 = vpop.f32.mrb[0].mxu0
        %v1609 = vadd.f32 0.0, %v1608
        %v1610 = vpop.f32.mrb[0].mxu0
        %v1611 = vadd.f32 0.0, %v1610
        %1612 = vmatprep.mubr.bf16.mxu0 0
        %1613 = vmatmul.mubr.bf16.gmra.mrb[0].mxu0 %v1024
        %v1614 = vpop.f32.mrb[0].mxu0
        %v1615 = vadd.f32 0.0, %v1614
        %v1616 = vpop.f32.mrb[0].mxu0
        %v1617 = vadd.f32 0.0, %v1616
        %v1618 = vpop.f32.mrb[0].mxu0
        %v1619 = vadd.f32 0.0, %v1618
        %v1620 = vpop.f32.mrb[0].mxu0
        %v1621 = vadd.f32 0.0, %v1620
        %1622 = vmatprep.mubr.bf16.mxu0 0
        %1623 = vmatmul.mubr.bf16.gmra.mrb[0].mxu0 %v1027
        %v1624 = vpop.f32.mrb[0].mxu0
        %v1625 = vadd.f32 0.0, %v1624
        %v1626 = vpop.f32.mrb[0].mxu0
        %v1627 = vadd.f32 0.0, %v1626
        %v1628 = vpop.f32.mrb[0].mxu0
        %v1629 = vadd.f32 0.0, %v1628
        %v1630 = vpop.f32.mrb[0].mxu0
        %v1631 = vadd.f32 0.0, %v1630
        %1632 = vmatprep.mubr.bf16.mxu0 0
        %1633 = vmatmul.mubr.bf16.gmra.mrb[0].mxu0 %v1030
        %v1634 = vpop.f32.mrb[0].mxu0
        %v1635 = vadd.f32 0.0, %v1634
        %v1636 = vpop.f32.mrb[0].mxu0
        %v1637 = vadd.f32 0.0, %v1636
        %v1638 = vpop.f32.mrb[0].mxu0
        %v1639 = vadd.f32 0.0, %v1638
        %v1640 = vpop.f32.mrb[0].mxu0
        %v1641 = vadd.f32 0.0, %v1640
        %1642 = vmatprep.mubr.bf16.mxu0 0
        %1643 = vmatmul.mubr.bf16.gmra.mrb[0].mxu0 %v1033
        %v1644 = vpop.f32.mrb[0].mxu0
        %v1645 = vadd.f32 0.0, %v1644
        %v1646 = vpop.f32.mrb[0].mxu0
        %v1647 = vadd.f32 0.0, %v1646
        %v1648 = vpop.f32.mrb[0].mxu0
        %v1649 = vadd.f32 0.0, %v1648
        %v1650 = vpop.f32.mrb[0].mxu0
        %v1651 = vadd.f32 0.0, %v1650
        %1652 = vmatprep.mubr.bf16.mxu0 0
        %1653 = vmatmul.mubr.bf16.gmra.mrb[0].mxu0 %v1036
        %v1654 = vpop.f32.mrb[0].mxu0
        %v1655 = vadd.f32 0.0, %v1654
        %v1656 = vpop.f32.mrb[0].mxu0
        %v1657 = vadd.f32 0.0, %v1656
        %v1658 = vpop.f32.mrb[0].mxu0
        %v1659 = vadd.f32 0.0, %v1658
        %v1660 = vpop.f32.mrb[0].mxu0
        %v1661 = vadd.f32 0.0, %v1660
        %1662 = vmatprep.mubr.bf16.mxu0 0
        %1663 = vmatmul.mubr.bf16.gmra.mrb[0].mxu0 %v1039
        %v1664 = vpop.f32.mrb[0].mxu0
        %v1665 = vadd.f32 0.0, %v1664
        %v1666 = vpop.f32.mrb[0].mxu0
        %v1667 = vadd.f32 0.0, %v1666
        %v1668 = vpop.f32.mrb[0].mxu0
        %v1669 = vadd.f32 0.0, %v1668
        %v1670 = vpop.f32.mrb[0].mxu0
        %v1671 = vadd.f32 0.0, %v1670
        %1672 = vmatprep.mubr.bf16.mxu0 0
        %1673 = vmatmul.mubr.bf16.gmra.mrb[0].mxu0 %v1042
        %v1674 = vpop.f32.mrb[0].mxu0
        %v1675 = vadd.f32 0.0, %v1674
        %v1676 = vpop.f32.mrb[0].mxu0
        %v1677 = vadd.f32 0.0, %v1676
        %v1678 = vpop.f32.mrb[0].mxu0
        %v1679 = vadd.f32 0.0, %v1678
        %v1680 = vpop.f32.mrb[0].mxu0
        %v1681 = vadd.f32 0.0, %v1680
        %1682 = vmatprep.mubr.bf16.mxu0 0
        %1683 = vmatmul.mubr.bf16.gmra.mrb[0].mxu0 %v1443
        %v1684 = vpop.f32.mrb[0].mxu0
        %v1685 = vadd.f32 0.0, %v1684
        %v1686 = vpop.f32.mrb[0].mxu0
        %v1687 = vadd.f32 0.0, %v1686
        %v1688 = vpop.f32.mrb[0].mxu0
        %v1689 = vadd.f32 0.0, %v1688
        %v1690 = vpop.f32.mrb[0].mxu0
        %v1691 = vadd.f32 0.0, %v1690
        %1692 = vmatprep.mubr.bf16.mxu0 0
        %1693 = vmatmul.mubr.bf16.gmra.mrb[0].mxu0 %v1446
        %v1694 = vpop.f32.mrb[0].mxu0
        %v1695 = vadd.f32 0.0, %v1694
        %v1696 = vpop.f32.mrb[0].mxu0
        %v1697 = vadd.f32 0.0, %v1696
        %v1698 = vpop.f32.mrb[0].mxu0
        %v1699 = vadd.f32 0.0, %v1698
        %v1700 = vpop.f32.mrb[0].mxu0
        %v1701 = vadd.f32 0.0, %v1700
        %1702 = vmatprep.mubr.bf16.mxu0 0
        %1703 = vmatmul.mubr.bf16.gmra.mrb[0].mxu0 %v1449
        %v1704 = vpop.f32.mrb[0].mxu0
        %v1705 = vadd.f32 0.0, %v1704
        %v1706 = vpop.f32.mrb[0].mxu0
        %v1707 = vadd.f32 0.0, %v1706
        %v1708 = vpop.f32.mrb[0].mxu0
        %v1709 = vadd.f32 0.0, %v1708
        %v1710 = vpop.f32.mrb[0].mxu0
        %v1711 = vadd.f32 0.0, %v1710
        %1712 = vmatprep.mubr.bf16.mxu0 0
        %1713 = vmatmul.mubr.bf16.gmra.mrb[0].mxu0 %v1452
        %v1714 = vpop.f32.mrb[0].mxu0
        %v1715 = vadd.f32 0.0, %v1714
        %v1716 = vpop.f32.mrb[0].mxu0
        %v1717 = vadd.f32 0.0, %v1716
        %v1718 = vpop.f32.mrb[0].mxu0
        %v1719 = vadd.f32 0.0, %v1718
        %v1720 = vpop.f32.mrb[0].mxu0
        %v1721 = vadd.f32 0.0, %v1720
        %1722 = vmatprep.mubr.bf16.mxu0 0
        %1723 = vmatmul.mubr.bf16.gmra.mrb[0].mxu0 %v1455
        %v1724 = vpop.f32.mrb[0].mxu0
        %v1725 = vadd.f32 0.0, %v1724
        %v1726 = vpop.f32.mrb[0].mxu0
        %v1727 = vadd.f32 0.0, %v1726
        %v1728 = vpop.f32.mrb[0].mxu0
        %v1729 = vadd.f32 0.0, %v1728
        %v1730 = vpop.f32.mrb[0].mxu0
        %v1731 = vadd.f32 0.0, %v1730
        %1732 = vmatprep.mubr.bf16.mxu0 0
        %1733 = vmatmul.mubr.bf16.gmra.mrb[0].mxu0 %v1458
        %v1734 = vpop.f32.mrb[0].mxu0
        %v1735 = vadd.f32 0.0, %v1734
        %v1736 = vpop.f32.mrb[0].mxu0
        %v1737 = vadd.f32 0.0, %v1736
        %v1738 = vpop.f32.mrb[0].mxu0
        %v1739 = vadd.f32 0.0, %v1738
        %v1740 = vpop.f32.mrb[0].mxu0
        %v1741 = vadd.f32 0.0, %v1740
        %1742 = vmatprep.mubr.bf16.mxu0 0
        %1743 = vmatmul.mubr.bf16.gmra.mrb[0].mxu0 %v1461
        %v1744 = vpop.f32.mrb[0].mxu0
        %v1745 = vadd.f32 0.0, %v1744
        %v1746 = vpop.f32.mrb[0].mxu0
        %v1747 = vadd.f32 0.0, %v1746
        %v1748 = vpop.f32.mrb[0].mxu0
        %v1749 = vadd.f32 0.0, %v1748
        %v1750 = vpop.f32.mrb[0].mxu0
        %v1751 = vadd.f32 0.0, %v1750
        %1752 = vmatprep.mubr.bf16.mxu0 0
        %1753 = vmatmul.mubr.bf16.gmra.mrb[0].mxu0 %v1464
        %v1754 = vpop.f32.mrb[0].mxu0
        %v1755 = vadd.f32 0.0, %v1754
        %v1756 = vpop.f32.mrb[0].mxu0
        %v1757 = vadd.f32 0.0, %v1756
        %v1758 = vpop.f32.mrb[0].mxu0
        %v1759 = vadd.f32 0.0, %v1758
        %v1760 = vpop.f32.mrb[0].mxu0
        %v1761 = vadd.f32 0.0, %v1760
        %1762 = vmatprep.mubr.bf16.mxu0 0
        %1763 = vmatmul.mubr.bf16.gmra.mrb[0].mxu0 %v1467
        %v1764 = vpop.f32.mrb[0].mxu0
        %v1765 = vadd.f32 0.0, %v1764
        %v1766 = vpop.f32.mrb[0].mxu0
        %v1767 = vadd.f32 0.0, %v1766
        %v1768 = vpop.f32.mrb[0].mxu0
        %v1769 = vadd.f32 0.0, %v1768
        %v1770 = vpop.f32.mrb[0].mxu0
        %v1771 = vadd.f32 0.0, %v1770
        %1772 = vmatprep.mubr.bf16.mxu0 0
        %1773 = vmatmul.mubr.bf16.gmra.mrb[0].mxu0 %v1470
        %v1774 = vpop.f32.mrb[0].mxu0
        %v1775 = vadd.f32 0.0, %v1774
        %v1776 = vpop.f32.mrb[0].mxu0
        %v1777 = vadd.f32 0.0, %v1776
        %v1778 = vpop.f32.mrb[0].mxu0
        %v1779 = vadd.f32 0.0, %v1778
        %v1780 = vpop.f32.mrb[0].mxu0
        %v1781 = vadd.f32 0.0, %v1780
        %1782 = vmatprep.mubr.bf16.mxu0 0
        %1783 = vmatmul.mubr.bf16.gmra.mrb[0].mxu0 %v1473
        %v1784 = vpop.f32.mrb[0].mxu0
        %v1785 = vadd.f32 0.0, %v1784
        %v1786 = vpop.f32.mrb[0].mxu0
        %v1787 = vadd.f32 0.0, %v1786
        %v1788 = vpop.f32.mrb[0].mxu0
        %v1789 = vadd.f32 0.0, %v1788
        %v1790 = vpop.f32.mrb[0].mxu0
        %v1791 = vadd.f32 0.0, %v1790
        %1792 = vmatprep.mubr.bf16.mxu0 0
        %1793 = vmatmul.mubr.bf16.gmra.mrb[0].mxu0 %v1476
        %v1794 = vpop.f32.mrb[0].mxu0
        %v1795 = vadd.f32 0.0, %v1794
        %v1796 = vpop.f32.mrb[0].mxu0
        %v1797 = vadd.f32 0.0, %v1796
        %v1798 = vpop.f32.mrb[0].mxu0
        %v1799 = vadd.f32 0.0, %v1798
        %v1800 = vpop.f32.mrb[0].mxu0
        %v1801 = vadd.f32 0.0, %v1800
        %1802 = vmatprep.mubr.bf16.mxu0 0
        %1803 = vmatmul.mubr.bf16.gmra.mrb[0].mxu0 %v1479
        %v1804 = vpop.f32.mrb[0].mxu0
        %v1805 = vadd.f32 0.0, %v1804
        %v1806 = vpop.f32.mrb[0].mxu0
        %v1807 = vadd.f32 0.0, %v1806
        %v1808 = vpop.f32.mrb[0].mxu0
        %v1809 = vadd.f32 0.0, %v1808
        %v1810 = vpop.f32.mrb[0].mxu0
        %v1811 = vadd.f32 0.0, %v1810
        %1812 = vmatprep.mubr.bf16.mxu0 0
        %1813 = vmatmul.mubr.bf16.gmra.mrb[0].mxu0 %v1482
        %v1814 = vpop.f32.mrb[0].mxu0
        %v1815 = vadd.f32 0.0, %v1814
        %v1816 = vpop.f32.mrb[0].mxu0
        %v1817 = vadd.f32 0.0, %v1816
        %v1818 = vpop.f32.mrb[0].mxu0
        %v1819 = vadd.f32 0.0, %v1818
        %v1820 = vpop.f32.mrb[0].mxu0
        %v1821 = vadd.f32 0.0, %v1820
        %1822 = vmatprep.mubr.bf16.mxu0 0
        %1823 = vmatmul.mubr.bf16.gmra.mrb[0].mxu0 %v1485
        %v1824 = vpop.f32.mrb[0].mxu0
        %v1825 = vadd.f32 0.0, %v1824
        %v1826 = vpop.f32.mrb[0].mxu0
        %v1827 = vadd.f32 0.0, %v1826
        %v1828 = vpop.f32.mrb[0].mxu0
        %v1829 = vadd.f32 0.0, %v1828
        %v1830 = vpop.f32.mrb[0].mxu0
        %v1831 = vadd.f32 0.0, %v1830
        %1832 = vmatprep.mubr.bf16.mxu0 0
        %1833 = vmatmul.mubr.bf16.gmra.mrb[0].mxu0 %v1488
        %v1834 = vpop.f32.mrb[0].mxu0
        %v1835 = vadd.f32 0.0, %v1834
        %v1836 = vpop.f32.mrb[0].mxu0
        %v1837 = vadd.f32 0.0, %v1836
        %v1838 = vpop.f32.mrb[0].mxu0
        %v1839 = vadd.f32 0.0, %v1838
        %v1840 = vpop.f32.mrb[0].mxu0
        %v1841 = vadd.f32 0.0, %v1840
        %1842 = vdwg.mxu0
        %v1843 = vadd.f32 %v1525, %v303
        %v1844 = vadd.f32 %v1529, %v303
        %v1845 = vadd.f32 %v1535, %v303
        %v1846 = vadd.f32 %v1539, %v303
        %v1847 = vadd.f32 %v1545, %v303
        %v1848 = vadd.f32 %v1549, %v303
        %v1849 = vadd.f32 %v1555, %v303
        %v1850 = vadd.f32 %v1559, %v303
        %v1851 = vadd.f32 %v1565, %v303
        %v1852 = vadd.f32 %v1569, %v303
        %v1853 = vadd.f32 %v1575, %v303
        %v1854 = vadd.f32 %v1579, %v303
        %v1855 = vadd.f32 %v1585, %v303
        %v1856 = vadd.f32 %v1589, %v303
        %v1857 = vadd.f32 %v1595, %v303
        %v1858 = vadd.f32 %v1599, %v303
        %v1859 = vadd.f32 %v1605, %v303
        %v1860 = vadd.f32 %v1609, %v303
        %v1861 = vadd.f32 %v1615, %v303
        %v1862 = vadd.f32 %v1619, %v303
        %v1863 = vadd.f32 %v1625, %v303
        %v1864 = vadd.f32 %v1629, %v303
        %v1865 = vadd.f32 %v1635, %v303
        %v1866 = vadd.f32 %v1639, %v303
        %v1867 = vadd.f32 %v1645, %v303
        %v1868 = vadd.f32 %v1649, %v303
        %v1869 = vadd.f32 %v1655, %v303
        %v1870 = vadd.f32 %v1659, %v303
        %v1871 = vadd.f32 %v1665, %v303
        %v1872 = vadd.f32 %v1669, %v303
        %v1873 = vadd.f32 %v1675, %v303
        %v1874 = vadd.f32 %v1679, %v303
        %v1875 = vxor.u32 %v1843, 2147483648
        %v1876 = vxor.u32 %v1844, 2147483648
        %v1877 = vxor.u32 %v1845, 2147483648
        %v1878 = vxor.u32 %v1846, 2147483648
        %v1879 = vxor.u32 %v1847, 2147483648
        %v1880 = vxor.u32 %v1848, 2147483648
        %v1881 = vxor.u32 %v1849, 2147483648
        %v1882 = vxor.u32 %v1850, 2147483648
        %v1883 = vxor.u32 %v1851, 2147483648
        %v1884 = vxor.u32 %v1852, 2147483648
        %v1885 = vxor.u32 %v1853, 2147483648
        %v1886 = vxor.u32 %v1854, 2147483648
        %v1887 = vxor.u32 %v1855, 2147483648
        %v1888 = vxor.u32 %v1856, 2147483648
        %v1889 = vxor.u32 %v1857, 2147483648
        %v1890 = vxor.u32 %v1858, 2147483648
        %v1891 = vxor.u32 %v1859, 2147483648
        %v1892 = vxor.u32 %v1860, 2147483648
        %v1893 = vxor.u32 %v1861, 2147483648
        %v1894 = vxor.u32 %v1862, 2147483648
        %v1895 = vxor.u32 %v1863, 2147483648
        %v1896 = vxor.u32 %v1864, 2147483648
        %v1897 = vxor.u32 %v1865, 2147483648
        %v1898 = vxor.u32 %v1866, 2147483648
        %v1899 = vxor.u32 %v1867, 2147483648
        %v1900 = vxor.u32 %v1868, 2147483648
        %v1901 = vxor.u32 %v1869, 2147483648
        %v1902 = vxor.u32 %v1870, 2147483648
        %v1903 = vxor.u32 %v1871, 2147483648
        %v1904 = vxor.u32 %v1872, 2147483648
        %v1905 = vxor.u32 %v1873, 2147483648
        %v1906 = vxor.u32 %v1874, 2147483648
        %v1907 = vmul.f32 %v1875, 1.442695
        %v1908 = vpow.pop %v1907
        %v1909 = vmul.f32 %v1876, 1.442695
        %v1910 = vpow.pop %v1909
        %v1911 = vmul.f32 %v1877, 1.442695
        %v1912 = vpow.pop %v1911
        %v1913 = vmul.f32 %v1878, 1.442695
        %v1914 = vpow.pop %v1913
        %v1915 = vmul.f32 %v1879, 1.442695
        %v1916 = vpow.pop %v1915
        %v1917 = vmul.f32 %v1880, 1.442695
        %v1918 = vpow.pop %v1917
        %v1919 = vmul.f32 %v1881, 1.442695
        %v1920 = vpow.pop %v1919
        %v1921 = vmul.f32 %v1882, 1.442695
        %v1922 = vpow.pop %v1921
        %v1923 = vmul.f32 %v1883, 1.442695
        %v1924 = vpow.pop %v1923
        %v1925 = vmul.f32 %v1884, 1.442695
        %v1926 = vpow.pop %v1925
        %v1927 = vmul.f32 %v1885, 1.442695
        %v1928 = vpow.pop %v1927
        %v1929 = vmul.f32 %v1886, 1.442695
        %v1930 = vpow.pop %v1929
        %v1931 = vmul.f32 %v1887, 1.442695
        %v1932 = vpow.pop %v1931
        %v1933 = vmul.f32 %v1888, 1.442695
        %v1934 = vpow.pop %v1933
        %v1935 = vmul.f32 %v1889, 1.442695
        %v1936 = vpow.pop %v1935
        %v1937 = vmul.f32 %v1890, 1.442695
        %v1938 = vpow.pop %v1937
        %v1939 = vmul.f32 %v1891, 1.442695
        %v1940 = vpow.pop %v1939
        %v1941 = vmul.f32 %v1892, 1.442695
        %v1942 = vpow.pop %v1941
        %v1943 = vmul.f32 %v1893, 1.442695
        %v1944 = vpow.pop %v1943
        %v1945 = vmul.f32 %v1894, 1.442695
        %v1946 = vpow.pop %v1945
        %v1947 = vmul.f32 %v1895, 1.442695
        %v1948 = vpow.pop %v1947
        %v1949 = vmul.f32 %v1896, 1.442695
        %v1950 = vpow.pop %v1949
        %v1951 = vmul.f32 %v1897, 1.442695
        %v1952 = vpow.pop %v1951
        %v1953 = vmul.f32 %v1898, 1.442695
        %v1954 = vpow.pop %v1953
        %v1955 = vmul.f32 %v1899, 1.442695
        %v1956 = vpow.pop %v1955
        %v1957 = vmul.f32 %v1900, 1.442695
        %v1958 = vpow.pop %v1957
        %v1959 = vmul.f32 %v1901, 1.442695
        %v1960 = vpow.pop %v1959
        %v1961 = vmul.f32 %v1902, 1.442695
        %v1962 = vpow.pop %v1961
        %v1963 = vmul.f32 %v1903, 1.442695
        %v1964 = vpow.pop %v1963
        %v1965 = vmul.f32 %v1904, 1.442695
        %v1966 = vpow.pop %v1965
        %v1967 = vmul.f32 %v1905, 1.442695
        %v1968 = vpow.pop %v1967
        %v1969 = vmul.f32 %v1906, 1.442695
        %v1970 = vpow.pop %v1969
        %v1971 = vadd.f32 %v1908, 1.0
        %v1972 = vadd.f32 %v1910, 1.0
        %v1973 = vadd.f32 %v1912, 1.0
        %v1974 = vadd.f32 %v1914, 1.0
        %v1975 = vadd.f32 %v1916, 1.0
        %v1976 = vadd.f32 %v1918, 1.0
        %v1977 = vadd.f32 %v1920, 1.0
        %v1978 = vadd.f32 %v1922, 1.0
        %v1979 = vadd.f32 %v1924, 1.0
        %v1980 = vadd.f32 %v1926, 1.0
        %v1981 = vadd.f32 %v1928, 1.0
        %v1982 = vadd.f32 %v1930, 1.0
        %v1983 = vadd.f32 %v1932, 1.0
        %v1984 = vadd.f32 %v1934, 1.0
        %v1985 = vadd.f32 %v1936, 1.0
        %v1986 = vadd.f32 %v1938, 1.0
        %v1987 = vadd.f32 %v1940, 1.0
        %v1988 = vadd.f32 %v1942, 1.0
        %v1989 = vadd.f32 %v1944, 1.0
        %v1990 = vadd.f32 %v1946, 1.0
        %v1991 = vadd.f32 %v1948, 1.0
        %v1992 = vadd.f32 %v1950, 1.0
        %v1993 = vadd.f32 %v1952, 1.0
        %v1994 = vadd.f32 %v1954, 1.0
        %v1995 = vadd.f32 %v1956, 1.0
        %v1996 = vadd.f32 %v1958, 1.0
        %v1997 = vadd.f32 %v1960, 1.0
        %v1998 = vadd.f32 %v1962, 1.0
        %v1999 = vadd.f32 %v1964, 1.0
        %v2000 = vadd.f32 %v1966, 1.0
        %v2001 = vadd.f32 %v1968, 1.0
        %v2002 = vadd.f32 %v1970, 1.0
        %v2003 = vrcp.pop %v1971
        %v2004 = vmul.f32 1.0, %v2003
        %v2005 = vrcp.pop %v1972
        %v2006 = vmul.f32 1.0, %v2005
        %v2007 = vrcp.pop %v1973
        %v2008 = vmul.f32 1.0, %v2007
        %v2009 = vrcp.pop %v1974
        %v2010 = vmul.f32 1.0, %v2009
        %v2011 = vrcp.pop %v1975
        %v2012 = vmul.f32 1.0, %v2011
        %v2013 = vrcp.pop %v1976
        %v2014 = vmul.f32 1.0, %v2013
        %v2015 = vrcp.pop %v1977
        %v2016 = vmul.f32 1.0, %v2015
        %v2017 = vrcp.pop %v1978
        %v2018 = vmul.f32 1.0, %v2017
        %v2019 = vrcp.pop %v1979
        %v2020 = vmul.f32 1.0, %v2019
        %v2021 = vrcp.pop %v1980
        %v2022 = vmul.f32 1.0, %v2021
        %v2023 = vrcp.pop %v1981
        %v2024 = vmul.f32 1.0, %v2023
        %v2025 = vrcp.pop %v1982
        %v2026 = vmul.f32 1.0, %v2025
        %v2027 = vrcp.pop %v1983
        %v2028 = vmul.f32 1.0, %v2027
        %v2029 = vrcp.pop %v1984
        %v2030 = vmul.f32 1.0, %v2029
        %v2031 = vrcp.pop %v1985
        %v2032 = vmul.f32 1.0, %v2031
        %v2033 = vrcp.pop %v1986
        %v2034 = vmul.f32 1.0, %v2033
        %v2035 = vrcp.pop %v1987
        %v2036 = vmul.f32 1.0, %v2035
        %v2037 = vrcp.pop %v1988
        %v2038 = vmul.f32 1.0, %v2037
        %v2039 = vrcp.pop %v1989
        %v2040 = vmul.f32 1.0, %v2039
        %v2041 = vrcp.pop %v1990
        %v2042 = vmul.f32 1.0, %v2041
        %v2043 = vrcp.pop %v1991
        %v2044 = vmul.f32 1.0, %v2043
        %v2045 = vrcp.pop %v1992
        %v2046 = vmul.f32 1.0, %v2045
        %v2047 = vrcp.pop %v1993
        %v2048 = vmul.f32 1.0, %v2047
        %v2049 = vrcp.pop %v1994
        %v2050 = vmul.f32 1.0, %v2049
        %v2051 = vrcp.pop %v1995
        %v2052 = vmul.f32 1.0, %v2051
        %v2053 = vrcp.pop %v1996
        %v2054 = vmul.f32 1.0, %v2053
        %v2055 = vrcp.pop %v1997
        %v2056 = vmul.f32 1.0, %v2055
        %v2057 = vrcp.pop %v1998
        %v2058 = vmul.f32 1.0, %v2057
        %v2059 = vrcp.pop %v1999
        %v2060 = vmul.f32 1.0, %v2059
        %v2061 = vrcp.pop %v2000
        %v2062 = vmul.f32 1.0, %v2061
        %v2063 = vrcp.pop %v2001
        %v2064 = vmul.f32 1.0, %v2063
        %v2065 = vrcp.pop %v2002
        %v2066 = vmul.f32 1.0, %v2065
        %v2067 = vtanh.pop %v1843
        %v2068 = vtanh.pop %v1844
        %v2069 = vtanh.pop %v1845
        %v2070 = vtanh.pop %v1846
        %v2071 = vtanh.pop %v1847
        %v2072 = vtanh.pop %v1848
        %v2073 = vtanh.pop %v1849
        %v2074 = vtanh.pop %v1850
        %v2075 = vtanh.pop %v1851
        %v2076 = vtanh.pop %v1852
        %v2077 = vtanh.pop %v1853
        %v2078 = vtanh.pop %v1854
        %v2079 = vtanh.pop %v1855
        %v2080 = vtanh.pop %v1856
        %v2081 = vtanh.pop %v1857
        %v2082 = vtanh.pop %v1858
        %v2083 = vtanh.pop %v1859
        %v2084 = vtanh.pop %v1860
        %v2085 = vtanh.pop %v1861
        %v2086 = vtanh.pop %v1862
        %v2087 = vtanh.pop %v1863
        %v2088 = vtanh.pop %v1864
        %v2089 = vtanh.pop %v1865
        %v2090 = vtanh.pop %v1866
        %v2091 = vtanh.pop %v1867
        %v2092 = vtanh.pop %v1868
        %v2093 = vtanh.pop %v1869
        %v2094 = vtanh.pop %v1870
        %v2095 = vtanh.pop %v1871
        %v2096 = vtanh.pop %v1872
        %v2097 = vtanh.pop %v1873
        %v2098 = vtanh.pop %v1874
        %2131 = vrot.lane.b32.xlu0 %v2067, 64
        %v2132 = vpop.permute.xlu0 %2131
        %2133 = vrot.lane.b32.xlu0 %v2068, 64
        %v2134 = vpop.permute.xlu0 %2133
        %2135 = vrot.lane.b32.xlu0 %v2069, 64
        %v2136 = vpop.permute.xlu0 %2135
        %2137 = vrot.lane.b32.xlu0 %v2070, 64
        %v2138 = vpop.permute.xlu0 %2137
        %2139 = vrot.lane.b32.xlu0 %v2071, 64
        %v2140 = vpop.permute.xlu0 %2139
        %2141 = vrot.lane.b32.xlu0 %v2072, 64
        %v2142 = vpop.permute.xlu0 %2141
        %2143 = vrot.lane.b32.xlu0 %v2073, 64
        %v2144 = vpop.permute.xlu0 %2143
        %2145 = vrot.lane.b32.xlu0 %v2074, 64
        %v2146 = vpop.permute.xlu0 %2145
        %2147 = vrot.lane.b32.xlu0 %v2075, 64
        %v2148 = vpop.permute.xlu0 %2147
        %2149 = vrot.lane.b32.xlu0 %v2076, 64
        %v2150 = vpop.permute.xlu0 %2149
        %2151 = vrot.lane.b32.xlu0 %v2077, 64
        %v2152 = vpop.permute.xlu0 %2151
        %2153 = vrot.lane.b32.xlu0 %v2078, 64
        %v2154 = vpop.permute.xlu0 %2153
        %2155 = vrot.lane.b32.xlu0 %v2079, 64
        %v2156 = vpop.permute.xlu0 %2155
        %2157 = vrot.lane.b32.xlu0 %v2080, 64
        %v2158 = vpop.permute.xlu0 %2157
        %2159 = vrot.lane.b32.xlu0 %v2081, 64
        %v2160 = vpop.permute.xlu0 %2159
        %2161 = vrot.lane.b32.xlu0 %v2082, 64
        %v2162 = vpop.permute.xlu0 %2161
        %2163 = vrot.lane.b32.xlu0 %v2083, 64
        %v2164 = vpop.permute.xlu0 %2163
        %2165 = vrot.lane.b32.xlu0 %v2084, 64
        %v2166 = vpop.permute.xlu0 %2165
        %2167 = vrot.lane.b32.xlu0 %v2085, 64
        %v2168 = vpop.permute.xlu0 %2167
        %2169 = vrot.lane.b32.xlu0 %v2086, 64
        %v2170 = vpop.permute.xlu0 %2169
        %2171 = vrot.lane.b32.xlu0 %v2087, 64
        %v2172 = vpop.permute.xlu0 %2171
        %2173 = vrot.lane.b32.xlu0 %v2088, 64
        %v2174 = vpop.permute.xlu0 %2173
        %2175 = vrot.lane.b32.xlu0 %v2089, 64
        %v2176 = vpop.permute.xlu0 %2175
        %2177 = vrot.lane.b32.xlu0 %v2090, 64
        %v2178 = vpop.permute.xlu0 %2177
        %2179 = vrot.lane.b32.xlu0 %v2091, 64
        %v2180 = vpop.permute.xlu0 %2179
        %2181 = vrot.lane.b32.xlu0 %v2092, 64
        %v2182 = vpop.permute.xlu0 %2181
        %2183 = vrot.lane.b32.xlu0 %v2093, 64
        %v2184 = vpop.permute.xlu0 %2183
        %2185 = vrot.lane.b32.xlu0 %v2094, 64
        %v2186 = vpop.permute.xlu0 %2185
        %2187 = vrot.lane.b32.xlu0 %v2095, 64
        %v2188 = vpop.permute.xlu0 %2187
        %2189 = vrot.lane.b32.xlu0 %v2096, 64
        %v2190 = vpop.permute.xlu0 %2189
        %2191 = vrot.lane.b32.xlu0 %v2097, 64
        %v2192 = vpop.permute.xlu0 %2191
        %2193 = vrot.lane.b32.xlu0 %v2098, 64
        %v2194 = vpop.permute.xlu0 %2193
        %v2227 = vmul.f32 %v2004, %v2132
        %v2228 = vmul.f32 %v2006, %v2134
        %v2229 = vmul.f32 %v2008, %v2136
        %v2230 = vmul.f32 %v2010, %v2138
        %v2231 = vmul.f32 %v2012, %v2140
        %v2232 = vmul.f32 %v2014, %v2142
        %v2233 = vmul.f32 %v2016, %v2144
        %v2234 = vmul.f32 %v2018, %v2146
        %v2235 = vmul.f32 %v2020, %v2148
        %v2236 = vmul.f32 %v2022, %v2150
        %v2237 = vmul.f32 %v2024, %v2152
        %v2238 = vmul.f32 %v2026, %v2154
        %v2239 = vmul.f32 %v2028, %v2156
        %v2240 = vmul.f32 %v2030, %v2158
        %v2241 = vmul.f32 %v2032, %v2160
        %v2242 = vmul.f32 %v2034, %v2162
        %v2243 = vmul.f32 %v2036, %v2164
        %v2244 = vmul.f32 %v2038, %v2166
        %v2245 = vmul.f32 %v2040, %v2168
        %v2246 = vmul.f32 %v2042, %v2170
        %v2247 = vmul.f32 %v2044, %v2172
        %v2248 = vmul.f32 %v2046, %v2174
        %v2249 = vmul.f32 %v2048, %v2176
        %v2250 = vmul.f32 %v2050, %v2178
        %v2251 = vmul.f32 %v2052, %v2180
        %v2252 = vmul.f32 %v2054, %v2182
        %v2253 = vmul.f32 %v2056, %v2184
        %v2254 = vmul.f32 %v2058, %v2186
        %v2255 = vmul.f32 %v2060, %v2188
        %v2256 = vmul.f32 %v2062, %v2190
        %v2257 = vmul.f32 %v2064, %v2192
        %v2258 = vmul.f32 %v2066, %v2194
        %v2259 = vtanh.pop %v2227
        %v2260 = vtanh.pop %v2228
        %v2261 = vtanh.pop %v2229
        %v2262 = vtanh.pop %v2230
        %v2263 = vtanh.pop %v2231
        %v2264 = vtanh.pop %v2232
        %v2265 = vtanh.pop %v2233
        %v2266 = vtanh.pop %v2234
        %v2267 = vtanh.pop %v2235
        %v2268 = vtanh.pop %v2236
        %v2269 = vtanh.pop %v2237
        %v2270 = vtanh.pop %v2238
        %v2271 = vtanh.pop %v2239
        %v2272 = vtanh.pop %v2240
        %v2273 = vtanh.pop %v2241
        %v2274 = vtanh.pop %v2242
        %v2275 = vtanh.pop %v2243
        %v2276 = vtanh.pop %v2244
        %v2277 = vtanh.pop %v2245
        %v2278 = vtanh.pop %v2246
        %v2279 = vtanh.pop %v2247
        %v2280 = vtanh.pop %v2248
        %v2281 = vtanh.pop %v2249
        %v2282 = vtanh.pop %v2250
        %v2283 = vtanh.pop %v2251
        %v2284 = vtanh.pop %v2252
        %v2285 = vtanh.pop %v2253
        %v2286 = vtanh.pop %v2254
        %v2287 = vtanh.pop %v2255
        %v2288 = vtanh.pop %v2256
        %v2289 = vtanh.pop %v2257
        %v2290 = vtanh.pop %v2258
        %2323 = vrot.lane.b32.xlu0 %v2259, 96
        %v2324 = vpop.permute.xlu0 %2323
        %2325 = vrot.lane.b32.xlu0 %v2260, 96
        %v2326 = vpop.permute.xlu0 %2325
        %2327 = vrot.lane.b32.xlu0 %v2261, 96
        %v2328 = vpop.permute.xlu0 %2327
        %2329 = vrot.lane.b32.xlu0 %v2262, 96
        %v2330 = vpop.permute.xlu0 %2329
        %2331 = vrot.lane.b32.xlu0 %v2263, 96
        %v2332 = vpop.permute.xlu0 %2331
        %2333 = vrot.lane.b32.xlu0 %v2264, 96
        %v2334 = vpop.permute.xlu0 %2333
        %2335 = vrot.lane.b32.xlu0 %v2265, 96
        %v2336 = vpop.permute.xlu0 %2335
        %2337 = vrot.lane.b32.xlu0 %v2266, 96
        %v2338 = vpop.permute.xlu0 %2337
        %2339 = vrot.lane.b32.xlu0 %v2267, 96
        %v2340 = vpop.permute.xlu0 %2339
        %2341 = vrot.lane.b32.xlu0 %v2268, 96
        %v2342 = vpop.permute.xlu0 %2341
        %2343 = vrot.lane.b32.xlu0 %v2269, 96
        %v2344 = vpop.permute.xlu0 %2343
        %2345 = vrot.lane.b32.xlu0 %v2270, 96
        %v2346 = vpop.permute.xlu0 %2345
        %2347 = vrot.lane.b32.xlu0 %v2271, 96
        %v2348 = vpop.permute.xlu0 %2347
        %2349 = vrot.lane.b32.xlu0 %v2272, 96
        %v2350 = vpop.permute.xlu0 %2349
        %2351 = vrot.lane.b32.xlu0 %v2273, 96
        %v2352 = vpop.permute.xlu0 %2351
        %2353 = vrot.lane.b32.xlu0 %v2274, 96
        %v2354 = vpop.permute.xlu0 %2353
        %2355 = vrot.lane.b32.xlu0 %v2275, 96
        %v2356 = vpop.permute.xlu0 %2355
        %2357 = vrot.lane.b32.xlu0 %v2276, 96
        %v2358 = vpop.permute.xlu0 %2357
        %2359 = vrot.lane.b32.xlu0 %v2277, 96
        %v2360 = vpop.permute.xlu0 %2359
        %2361 = vrot.lane.b32.xlu0 %v2278, 96
        %v2362 = vpop.permute.xlu0 %2361
        %2363 = vrot.lane.b32.xlu0 %v2279, 96
        %v2364 = vpop.permute.xlu0 %2363
        %2365 = vrot.lane.b32.xlu0 %v2280, 96
        %v2366 = vpop.permute.xlu0 %2365
        %2367 = vrot.lane.b32.xlu0 %v2281, 96
        %v2368 = vpop.permute.xlu0 %2367
        %2369 = vrot.lane.b32.xlu0 %v2282, 96
        %v2370 = vpop.permute.xlu0 %2369
        %2371 = vrot.lane.b32.xlu0 %v2283, 96
        %v2372 = vpop.permute.xlu0 %2371
        %2373 = vrot.lane.b32.xlu0 %v2284, 96
        %v2374 = vpop.permute.xlu0 %2373
        %2375 = vrot.lane.b32.xlu0 %v2285, 96
        %v2376 = vpop.permute.xlu0 %2375
        %2377 = vrot.lane.b32.xlu0 %v2286, 96
        %v2378 = vpop.permute.xlu0 %2377
        %2379 = vrot.lane.b32.xlu0 %v2287, 96
        %v2380 = vpop.permute.xlu0 %2379
        %2381 = vrot.lane.b32.xlu0 %v2288, 96
        %v2382 = vpop.permute.xlu0 %2381
        %2383 = vrot.lane.b32.xlu0 %v2289, 96
        %v2384 = vpop.permute.xlu0 %2383
        %2385 = vrot.lane.b32.xlu0 %v2290, 96
        %v2386 = vpop.permute.xlu0 %2385
        %v2419 = vmul.f32 %v2004, %v2324
        %v2420 = vmul.f32 %v2006, %v2326
        %v2421 = vmul.f32 %v2008, %v2328
        %v2422 = vmul.f32 %v2010, %v2330
        %v2423 = vmul.f32 %v2012, %v2332
        %v2424 = vmul.f32 %v2014, %v2334
        %v2425 = vmul.f32 %v2016, %v2336
        %v2426 = vmul.f32 %v2018, %v2338
        %v2427 = vmul.f32 %v2020, %v2340
        %v2428 = vmul.f32 %v2022, %v2342
        %v2429 = vmul.f32 %v2024, %v2344
        %v2430 = vmul.f32 %v2026, %v2346
        %v2431 = vmul.f32 %v2028, %v2348
        %v2432 = vmul.f32 %v2030, %v2350
        %v2433 = vmul.f32 %v2032, %v2352
        %v2434 = vmul.f32 %v2034, %v2354
        %v2435 = vmul.f32 %v2036, %v2356
        %v2436 = vmul.f32 %v2038, %v2358
        %v2437 = vmul.f32 %v2040, %v2360
        %v2438 = vmul.f32 %v2042, %v2362
        %v2439 = vmul.f32 %v2044, %v2364
        %v2440 = vmul.f32 %v2046, %v2366
        %v2441 = vmul.f32 %v2048, %v2368
        %v2442 = vmul.f32 %v2050, %v2370
        %v2443 = vmul.f32 %v2052, %v2372
        %v2444 = vmul.f32 %v2054, %v2374
        %v2445 = vmul.f32 %v2056, %v2376
        %v2446 = vmul.f32 %v2058, %v2378
        %v2447 = vmul.f32 %v2060, %v2380
        %v2448 = vmul.f32 %v2062, %v2382
        %v2449 = vmul.f32 %v2064, %v2384
        %v2450 = vmul.f32 %v2066, %v2386
        %v2451 = vadd.f32 %v1685, %v303
        %v2452 = vadd.f32 %v1689, %v303
        %v2453 = vadd.f32 %v1695, %v303
        %v2454 = vadd.f32 %v1699, %v303
        %v2455 = vadd.f32 %v1705, %v303
        %v2456 = vadd.f32 %v1709, %v303
        %v2457 = vadd.f32 %v1715, %v303
        %v2458 = vadd.f32 %v1719, %v303
        %v2459 = vadd.f32 %v1725, %v303
        %v2460 = vadd.f32 %v1729, %v303
        %v2461 = vadd.f32 %v1735, %v303
        %v2462 = vadd.f32 %v1739, %v303
        %v2463 = vadd.f32 %v1745, %v303
        %v2464 = vadd.f32 %v1749, %v303
        %v2465 = vadd.f32 %v1755, %v303
        %v2466 = vadd.f32 %v1759, %v303
        %v2467 = vadd.f32 %v1765, %v303
        %v2468 = vadd.f32 %v1769, %v303
        %v2469 = vadd.f32 %v1775, %v303
        %v2470 = vadd.f32 %v1779, %v303
        %v2471 = vadd.f32 %v1785, %v303
        %v2472 = vadd.f32 %v1789, %v303
        %v2473 = vadd.f32 %v1795, %v303
        %v2474 = vadd.f32 %v1799, %v303
        %v2475 = vadd.f32 %v1805, %v303
        %v2476 = vadd.f32 %v1809, %v303
        %v2477 = vadd.f32 %v1815, %v303
        %v2478 = vadd.f32 %v1819, %v303
        %v2479 = vadd.f32 %v1825, %v303
        %v2480 = vadd.f32 %v1829, %v303
        %v2481 = vadd.f32 %v1835, %v303
        %v2482 = vadd.f32 %v1839, %v303
        %v2483 = vpack.c.bf16 %v2420, %v2419
        %v2484 = vpack.c.bf16 %v2422, %v2421
        %v2485 = vpack.c.bf16 %v2424, %v2423
        %v2486 = vpack.c.bf16 %v2426, %v2425
        %v2487 = vpack.c.bf16 %v2428, %v2427
        %v2488 = vpack.c.bf16 %v2430, %v2429
        %v2489 = vpack.c.bf16 %v2432, %v2431
        %v2490 = vpack.c.bf16 %v2434, %v2433
        %v2491 = vpack.c.bf16 %v2436, %v2435
        %v2492 = vpack.c.bf16 %v2438, %v2437
        %v2493 = vpack.c.bf16 %v2440, %v2439
        %v2494 = vpack.c.bf16 %v2442, %v2441
        %v2495 = vpack.c.bf16 %v2444, %v2443
        %v2496 = vpack.c.bf16 %v2446, %v2445
        %v2497 = vpack.c.bf16 %v2448, %v2447
        %v2498 = vpack.c.bf16 %v2450, %v2449
        %v2499 = vld [vmem:[%s2 + $0x28] sm:$0xf]
        %v2500 = vld [vmem:[%s2 + $0x30] sm:$0xf]
        %v2501 = vld [vmem:[%s2 + $0x38] sm:$0xf]
        %v2502 = vld [vmem:[%s2 + $0x40] sm:$0xf]
        %2519 = vrot.lane.b32.xlu0 %v2483, 32
        %v2520 = vpop.permute.xlu0 %2519
        %2521 = vrot.lane.b32.xlu0 %v2484, 32
        %v2522 = vpop.permute.xlu0 %2521
        %2523 = vrot.lane.b32.xlu0 %v2485, 32
        %v2524 = vpop.permute.xlu0 %2523
        %2525 = vrot.lane.b32.xlu0 %v2486, 32
        %v2526 = vpop.permute.xlu0 %2525
        %2527 = vrot.lane.b32.xlu0 %v2487, 32
        %v2528 = vpop.permute.xlu0 %2527
        %2529 = vrot.lane.b32.xlu0 %v2488, 32
        %v2530 = vpop.permute.xlu0 %2529
        %2531 = vrot.lane.b32.xlu0 %v2489, 32
        %v2532 = vpop.permute.xlu0 %2531
        %2533 = vrot.lane.b32.xlu0 %v2490, 32
        %v2534 = vpop.permute.xlu0 %2533
        %2535 = vrot.lane.b32.xlu0 %v2491, 32
        %v2536 = vpop.permute.xlu0 %2535
        %2537 = vrot.lane.b32.xlu0 %v2492, 32
        %v2538 = vpop.permute.xlu0 %2537
        %2539 = vrot.lane.b32.xlu0 %v2493, 32
        %v2540 = vpop.permute.xlu0 %2539
        %2541 = vrot.lane.b32.xlu0 %v2494, 32
        %v2542 = vpop.permute.xlu0 %2541
        %2543 = vrot.lane.b32.xlu0 %v2495, 32
        %v2544 = vpop.permute.xlu0 %2543
        %2545 = vrot.lane.b32.xlu0 %v2496, 32
        %v2546 = vpop.permute.xlu0 %2545
        %2547 = vrot.lane.b32.xlu0 %v2497, 32
        %v2548 = vpop.permute.xlu0 %2547
        %2549 = vrot.lane.b32.xlu0 %v2498, 32
        %v2550 = vpop.permute.xlu0 %2549
        %v2555 = vunpack.c.l.b16 %v2499
        %v2556 = vunpack.c.l.b16 %v2500
        %v2557 = vunpack.c.l.b16 %v2501
        %v2558 = vunpack.c.l.b16 %v2502
        %v2559 = vpack.c.b16 %v2556, %v2555
        %v2560 = vpack.c.b16 %v2558, %v2557
        %vm2563 = vcmask 261120
        %v2565 = vsel %vm2563, %v2520, 0
        %v2568 = vsel %vm2563, %v2522, 0
        %v2571 = vsel %vm2563, %v2524, 0
        %v2574 = vsel %vm2563, %v2526, 0
        %v2577 = vsel %vm2563, %v2528, 0
        %v2580 = vsel %vm2563, %v2530, 0
        %v2583 = vsel %vm2563, %v2532, 0
        %v2586 = vsel %vm2563, %v2534, 0
        %v2589 = vsel %vm2563, %v2536, 0
        %v2592 = vsel %vm2563, %v2538, 0
        %v2595 = vsel %vm2563, %v2540, 0
        %v2598 = vsel %vm2563, %v2542, 0
        %v2601 = vsel %vm2563, %v2544, 0
        %v2604 = vsel %vm2563, %v2546, 0
        %v2607 = vsel %vm2563, %v2548, 0
        %v2610 = vsel %vm2563, %v2550, 0
        %2612 = vmatprep.subr.bf16.mxu0 0
        %2613 = vmatpush1.bf16.msra.mxu0 %v2559
        %2614 = vmatprep.subr.bf16.mxu0 0
        %2615 = vmatpush1.bf16.msra.mxu0 %v2560
        %2616 = vmatprep.subr.bf16.mxu0 0
        %2617 = vmatpush1.bf16.msra.mxu0 0
        %2618 = vmatprep.subr.bf16.mxu0 0
        %2619 = vmatpush1.bf16.msra.mxu0 0
        %2620 = vmatprep.subr.bf16.mxu0 0
        %2621 = vmatpush1.bf16.msra.mxu0 0
        %2622 = vmatprep.subr.bf16.mxu0 0
        %2623 = vmatpush1.bf16.msra.mxu0 0
        %2624 = vmatprep.subr.bf16.mxu0 0
        %2625 = vmatpush1.bf16.msra.mxu0 0
        %2626 = vmatprep.subr.bf16.mxu0 0
        %2627 = vmatpush1.bf16.msra.mxu0 0
        %2628 = vmatprep.subr.bf16.mxu0 0
        %2629 = vmatpush1.bf16.msra.mxu0 0
        %2630 = vmatprep.subr.bf16.mxu0 0
        %2631 = vmatpush1.bf16.msra.mxu0 0
        %2632 = vmatprep.subr.bf16.mxu0 0
        %2633 = vmatpush1.bf16.msra.mxu0 0
        %2634 = vmatprep.subr.bf16.mxu0 0
        %2635 = vmatpush1.bf16.msra.mxu0 0
        %2636 = vmatprep.subr.bf16.mxu0 0
        %2637 = vmatpush1.bf16.msra.mxu0 0
        %2638 = vmatprep.subr.bf16.mxu0 0
        %2639 = vmatpush1.bf16.msra.mxu0 0
        %2640 = vmatprep.subr.bf16.mxu0 0
        %2641 = vmatpush1.bf16.msra.mxu0 0
        %2642 = vmatprep.subr.bf16.mxu0 0
        %2643 = vmatpush1.bf16.msra.mxu0 0
        %2644 = vmatprep.mubr.bf16.mxu0 0
        %2645 = vmatmul.mubr.bf16.gmra.mrb[0].mxu0 %v2565
        %v2646 = vpop.f32.mrb[0].mxu0
        %v2647 = vadd.f32 0.0, %v2646
        %v2648 = vpop.f32.mrb[0].mxu0
        %v2649 = vpop.f32.mrb[0].mxu0
        %v2650 = vadd.f32 0.0, %v2649
        %v2651 = vpop.f32.mrb[0].mxu0
        %2652 = vmatprep.mubr.bf16.mxu0 0
        %2653 = vmatmul.mubr.bf16.gmra.mrb[0].mxu0 %v2568
        %v2654 = vpop.f32.mrb[0].mxu0
        %v2655 = vadd.f32 0.0, %v2654
        %v2656 = vpop.f32.mrb[0].mxu0
        %v2657 = vpop.f32.mrb[0].mxu0
        %v2658 = vadd.f32 0.0, %v2657
        %v2659 = vpop.f32.mrb[0].mxu0
        %2660 = vmatprep.mubr.bf16.mxu0 0
        %2661 = vmatmul.mubr.bf16.gmra.mrb[0].mxu0 %v2571
        %v2662 = vpop.f32.mrb[0].mxu0
        %v2663 = vadd.f32 0.0, %v2662
        %v2664 = vpop.f32.mrb[0].mxu0
        %v2665 = vpop.f32.mrb[0].mxu0
        %v2666 = vadd.f32 0.0, %v2665
        %v2667 = vpop.f32.mrb[0].mxu0
        %2668 = vmatprep.mubr.bf16.mxu0 0
        %2669 = vmatmul.mubr.bf16.gmra.mrb[0].mxu0 %v2574
        %v2670 = vpop.f32.mrb[0].mxu0
        %v2671 = vadd.f32 0.0, %v2670
        %v2672 = vpop.f32.mrb[0].mxu0
        %v2673 = vpop.f32.mrb[0].mxu0
        %v2674 = vadd.f32 0.0, %v2673
        %v2675 = vpop.f32.mrb[0].mxu0
        %2676 = vmatprep.mubr.bf16.mxu0 0
        %2677 = vmatmul.mubr.bf16.gmra.mrb[0].mxu0 %v2577
        %v2678 = vpop.f32.mrb[0].mxu0
        %v2679 = vadd.f32 0.0, %v2678
        %v2680 = vpop.f32.mrb[0].mxu0
        %v2681 = vpop.f32.mrb[0].mxu0
        %v2682 = vadd.f32 0.0, %v2681
        %v2683 = vpop.f32.mrb[0].mxu0
        %2684 = vmatprep.mubr.bf16.mxu0 0
        %2685 = vmatmul.mubr.bf16.gmra.mrb[0].mxu0 %v2580
        %v2686 = vpop.f32.mrb[0].mxu0
        %v2687 = vadd.f32 0.0, %v2686
        %v2688 = vpop.f32.mrb[0].mxu0
        %v2689 = vpop.f32.mrb[0].mxu0
        %v2690 = vadd.f32 0.0, %v2689
        %v2691 = vpop.f32.mrb[0].mxu0
        %2692 = vmatprep.mubr.bf16.mxu0 0
        %2693 = vmatmul.mubr.bf16.gmra.mrb[0].mxu0 %v2583
        %v2694 = vpop.f32.mrb[0].mxu0
        %v2695 = vadd.f32 0.0, %v2694
        %v2696 = vpop.f32.mrb[0].mxu0
        %v2697 = vpop.f32.mrb[0].mxu0
        %v2698 = vadd.f32 0.0, %v2697
        %v2699 = vpop.f32.mrb[0].mxu0
        %2700 = vmatprep.mubr.bf16.mxu0 0
        %2701 = vmatmul.mubr.bf16.gmra.mrb[0].mxu0 %v2586
        %v2702 = vpop.f32.mrb[0].mxu0
        %v2703 = vadd.f32 0.0, %v2702
        %v2704 = vpop.f32.mrb[0].mxu0
        %v2705 = vpop.f32.mrb[0].mxu0
        %v2706 = vadd.f32 0.0, %v2705
        %v2707 = vpop.f32.mrb[0].mxu0
        %2708 = vmatprep.mubr.bf16.mxu0 0
        %2709 = vmatmul.mubr.bf16.gmra.mrb[0].mxu0 %v2589
        %v2710 = vpop.f32.mrb[0].mxu0
        %v2711 = vadd.f32 0.0, %v2710
        %v2712 = vpop.f32.mrb[0].mxu0
        %v2713 = vpop.f32.mrb[0].mxu0
        %v2714 = vadd.f32 0.0, %v2713
        %v2715 = vpop.f32.mrb[0].mxu0
        %2716 = vmatprep.mubr.bf16.mxu0 0
        %2717 = vmatmul.mubr.bf16.gmra.mrb[0].mxu0 %v2592
        %v2718 = vpop.f32.mrb[0].mxu0
        %v2719 = vadd.f32 0.0, %v2718
        %v2720 = vpop.f32.mrb[0].mxu0
        %v2721 = vpop.f32.mrb[0].mxu0
        %v2722 = vadd.f32 0.0, %v2721
        %v2723 = vpop.f32.mrb[0].mxu0
        %2724 = vmatprep.mubr.bf16.mxu0 0
        %2725 = vmatmul.mubr.bf16.gmra.mrb[0].mxu0 %v2595
        %v2726 = vpop.f32.mrb[0].mxu0
        %v2727 = vadd.f32 0.0, %v2726
        %v2728 = vpop.f32.mrb[0].mxu0
        %v2729 = vpop.f32.mrb[0].mxu0
        %v2730 = vadd.f32 0.0, %v2729
        %v2731 = vpop.f32.mrb[0].mxu0
        %2732 = vmatprep.mubr.bf16.mxu0 0
        %2733 = vmatmul.mubr.bf16.gmra.mrb[0].mxu0 %v2598
        %v2734 = vpop.f32.mrb[0].mxu0
        %v2735 = vadd.f32 0.0, %v2734
        %v2736 = vpop.f32.mrb[0].mxu0
        %v2737 = vpop.f32.mrb[0].mxu0
        %v2738 = vadd.f32 0.0, %v2737
        %v2739 = vpop.f32.mrb[0].mxu0
        %2740 = vmatprep.mubr.bf16.mxu0 0
        %2741 = vmatmul.mubr.bf16.gmra.mrb[0].mxu0 %v2601
        %v2742 = vpop.f32.mrb[0].mxu0
        %v2743 = vadd.f32 0.0, %v2742
        %v2744 = vpop.f32.mrb[0].mxu0
        %v2745 = vpop.f32.mrb[0].mxu0
        %v2746 = vadd.f32 0.0, %v2745
        %v2747 = vpop.f32.mrb[0].mxu0
        %2748 = vmatprep.mubr.bf16.mxu0 0
        %2749 = vmatmul.mubr.bf16.gmra.mrb[0].mxu0 %v2604
        %v2750 = vpop.f32.mrb[0].mxu0
        %v2751 = vadd.f32 0.0, %v2750
        %v2752 = vpop.f32.mrb[0].mxu0
        %v2753 = vpop.f32.mrb[0].mxu0
        %v2754 = vadd.f32 0.0, %v2753
        %v2755 = vpop.f32.mrb[0].mxu0
        %2756 = vmatprep.mubr.bf16.mxu0 0
        %2757 = vmatmul.mubr.bf16.gmra.mrb[0].mxu0 %v2607
        %v2758 = vpop.f32.mrb[0].mxu0
        %v2759 = vadd.f32 0.0, %v2758
        %v2760 = vpop.f32.mrb[0].mxu0
        %v2761 = vpop.f32.mrb[0].mxu0
        %v2762 = vadd.f32 0.0, %v2761
        %v2763 = vpop.f32.mrb[0].mxu0
        %2764 = vmatprep.mubr.bf16.mxu0 0
        %2765 = vmatmul.mubr.bf16.gmra.mrb[0].mxu0 %v2610
        %v2766 = vpop.f32.mrb[0].mxu0
        %v2767 = vadd.f32 0.0, %v2766
        %v2768 = vpop.f32.mrb[0].mxu0
        %v2769 = vpop.f32.mrb[0].mxu0
        %v2770 = vadd.f32 0.0, %v2769
        %v2771 = vpop.f32.mrb[0].mxu0
        %2772 = vdwg.mxu0
        %v2773 = vadd.f32 %v2451, %v2647
        %v2774 = vadd.f32 %v2452, %v2650
        %v2775 = vadd.f32 %v2453, %v2655
        %v2776 = vadd.f32 %v2454, %v2658
        %v2777 = vadd.f32 %v2455, %v2663
        %v2778 = vadd.f32 %v2456, %v2666
        %v2779 = vadd.f32 %v2457, %v2671
        %v2780 = vadd.f32 %v2458, %v2674
        %v2781 = vadd.f32 %v2459, %v2679
        %v2782 = vadd.f32 %v2460, %v2682
        %v2783 = vadd.f32 %v2461, %v2687
        %v2784 = vadd.f32 %v2462, %v2690
        %v2785 = vadd.f32 %v2463, %v2695
        %v2786 = vadd.f32 %v2464, %v2698
        %v2787 = vadd.f32 %v2465, %v2703
        %v2788 = vadd.f32 %v2466, %v2706
        %v2789 = vadd.f32 %v2467, %v2711
        %v2790 = vadd.f32 %v2468, %v2714
        %v2791 = vadd.f32 %v2469, %v2719
        %v2792 = vadd.f32 %v2470, %v2722
        %v2793 = vadd.f32 %v2471, %v2727
        %v2794 = vadd.f32 %v2472, %v2730
        %v2795 = vadd.f32 %v2473, %v2735
        %v2796 = vadd.f32 %v2474, %v2738
        %v2797 = vadd.f32 %v2475, %v2743
        %v2798 = vadd.f32 %v2476, %v2746
        %v2799 = vadd.f32 %v2477, %v2751
        %v2800 = vadd.f32 %v2478, %v2754
        %v2801 = vadd.f32 %v2479, %v2759
        %v2802 = vadd.f32 %v2480, %v2762
        %v2803 = vadd.f32 %v2481, %v2767
        %v2804 = vadd.f32 %v2482, %v2770
        %v2805 = vxor.u32 %v2773, 2147483648
        %v2806 = vxor.u32 %v2774, 2147483648
        %v2807 = vxor.u32 %v2775, 2147483648
        %v2808 = vxor.u32 %v2776, 2147483648
        %v2809 = vxor.u32 %v2777, 2147483648
        %v2810 = vxor.u32 %v2778, 2147483648
        %v2811 = vxor.u32 %v2779, 2147483648
        %v2812 = vxor.u32 %v2780, 2147483648
        %v2813 = vxor.u32 %v2781, 2147483648
        %v2814 = vxor.u32 %v2782, 2147483648
        %v2815 = vxor.u32 %v2783, 2147483648
        %v2816 = vxor.u32 %v2784, 2147483648
        %v2817 = vxor.u32 %v2785, 2147483648
        %v2818 = vxor.u32 %v2786, 2147483648
        %v2819 = vxor.u32 %v2787, 2147483648
        %v2820 = vxor.u32 %v2788, 2147483648
        %v2821 = vxor.u32 %v2789, 2147483648
        %v2822 = vxor.u32 %v2790, 2147483648
        %v2823 = vxor.u32 %v2791, 2147483648
        %v2824 = vxor.u32 %v2792, 2147483648
        %v2825 = vxor.u32 %v2793, 2147483648
        %v2826 = vxor.u32 %v2794, 2147483648
        %v2827 = vxor.u32 %v2795, 2147483648
        %v2828 = vxor.u32 %v2796, 2147483648
        %v2829 = vxor.u32 %v2797, 2147483648
        %v2830 = vxor.u32 %v2798, 2147483648
        %v2831 = vxor.u32 %v2799, 2147483648
        %v2832 = vxor.u32 %v2800, 2147483648
        %v2833 = vxor.u32 %v2801, 2147483648
        %v2834 = vxor.u32 %v2802, 2147483648
        %v2835 = vxor.u32 %v2803, 2147483648
        %v2836 = vxor.u32 %v2804, 2147483648
        %v2837 = vmul.f32 %v2805, 1.442695
        %v2838 = vpow.pop %v2837
        %v2839 = vmul.f32 %v2806, 1.442695
        %v2840 = vpow.pop %v2839
        %v2841 = vmul.f32 %v2807, 1.442695
        %v2842 = vpow.pop %v2841
        %v2843 = vmul.f32 %v2808, 1.442695
        %v2844 = vpow.pop %v2843
        %v2845 = vmul.f32 %v2809, 1.442695
        %v2846 = vpow.pop %v2845
        %v2847 = vmul.f32 %v2810, 1.442695
        %v2848 = vpow.pop %v2847
        %v2849 = vmul.f32 %v2811, 1.442695
        %v2850 = vpow.pop %v2849
        %v2851 = vmul.f32 %v2812, 1.442695
        %v2852 = vpow.pop %v2851
        %v2853 = vmul.f32 %v2813, 1.442695
        %v2854 = vpow.pop %v2853
        %v2855 = vmul.f32 %v2814, 1.442695
        %v2856 = vpow.pop %v2855
        %v2857 = vmul.f32 %v2815, 1.442695
        %v2858 = vpow.pop %v2857
        %v2859 = vmul.f32 %v2816, 1.442695
        %v2860 = vpow.pop %v2859
        %v2861 = vmul.f32 %v2817, 1.442695
        %v2862 = vpow.pop %v2861
        %v2863 = vmul.f32 %v2818, 1.442695
        %v2864 = vpow.pop %v2863
        %v2865 = vmul.f32 %v2819, 1.442695
        %v2866 = vpow.pop %v2865
        %v2867 = vmul.f32 %v2820, 1.442695
        %v2868 = vpow.pop %v2867
        %v2869 = vmul.f32 %v2821, 1.442695
        %v2870 = vpow.pop %v2869
        %v2871 = vmul.f32 %v2822, 1.442695
        %v2872 = vpow.pop %v2871
        %v2873 = vmul.f32 %v2823, 1.442695
        %v2874 = vpow.pop %v2873
        %v2875 = vmul.f32 %v2824, 1.442695
        %v2876 = vpow.pop %v2875
        %v2877 = vmul.f32 %v2825, 1.442695
        %v2878 = vpow.pop %v2877
        %v2879 = vmul.f32 %v2826, 1.442695
        %v2880 = vpow.pop %v2879
        %v2881 = vmul.f32 %v2827, 1.442695
        %v2882 = vpow.pop %v2881
        %v2883 = vmul.f32 %v2828, 1.442695
        %v2884 = vpow.pop %v2883
        %v2885 = vmul.f32 %v2829, 1.442695
        %v2886 = vpow.pop %v2885
        %v2887 = vmul.f32 %v2830, 1.442695
        %v2888 = vpow.pop %v2887
        %v2889 = vmul.f32 %v2831, 1.442695
        %v2890 = vpow.pop %v2889
        %v2891 = vmul.f32 %v2832, 1.442695
        %v2892 = vpow.pop %v2891
        %v2893 = vmul.f32 %v2833, 1.442695
        %v2894 = vpow.pop %v2893
        %v2895 = vmul.f32 %v2834, 1.442695
        %v2896 = vpow.pop %v2895
        %v2897 = vmul.f32 %v2835, 1.442695
        %v2898 = vpow.pop %v2897
        %v2899 = vmul.f32 %v2836, 1.442695
        %v2900 = vpow.pop %v2899
        %v2901 = vadd.f32 %v2838, 1.0
        %v2902 = vadd.f32 %v2840, 1.0
        %v2903 = vadd.f32 %v2842, 1.0
        %v2904 = vadd.f32 %v2844, 1.0
        %v2905 = vadd.f32 %v2846, 1.0
        %v2906 = vadd.f32 %v2848, 1.0
        %v2907 = vadd.f32 %v2850, 1.0
        %v2908 = vadd.f32 %v2852, 1.0
        %v2909 = vadd.f32 %v2854, 1.0
        %v2910 = vadd.f32 %v2856, 1.0
        %v2911 = vadd.f32 %v2858, 1.0
        %v2912 = vadd.f32 %v2860, 1.0
        %v2913 = vadd.f32 %v2862, 1.0
        %v2914 = vadd.f32 %v2864, 1.0
        %v2915 = vadd.f32 %v2866, 1.0
        %v2916 = vadd.f32 %v2868, 1.0
        %v2917 = vadd.f32 %v2870, 1.0
        %v2918 = vadd.f32 %v2872, 1.0
        %v2919 = vadd.f32 %v2874, 1.0
        %v2920 = vadd.f32 %v2876, 1.0
        %v2921 = vadd.f32 %v2878, 1.0
        %v2922 = vadd.f32 %v2880, 1.0
        %v2923 = vadd.f32 %v2882, 1.0
        %v2924 = vadd.f32 %v2884, 1.0
        %v2925 = vadd.f32 %v2886, 1.0
        %v2926 = vadd.f32 %v2888, 1.0
        %v2927 = vadd.f32 %v2890, 1.0
        %v2928 = vadd.f32 %v2892, 1.0
        %v2929 = vadd.f32 %v2894, 1.0
        %v2930 = vadd.f32 %v2896, 1.0
        %v2931 = vadd.f32 %v2898, 1.0
        %v2932 = vadd.f32 %v2900, 1.0
        %v2933 = vrcp.pop %v2901
        %v2934 = vmul.f32 1.0, %v2933
        %v2935 = vrcp.pop %v2902
        %v2936 = vmul.f32 1.0, %v2935
        %v2937 = vrcp.pop %v2903
        %v2938 = vmul.f32 1.0, %v2937
        %v2939 = vrcp.pop %v2904
        %v2940 = vmul.f32 1.0, %v2939
        %v2941 = vrcp.pop %v2905
        %v2942 = vmul.f32 1.0, %v2941
        %v2943 = vrcp.pop %v2906
        %v2944 = vmul.f32 1.0, %v2943
        %v2945 = vrcp.pop %v2907
        %v2946 = vmul.f32 1.0, %v2945
        %v2947 = vrcp.pop %v2908
        %v2948 = vmul.f32 1.0, %v2947
        %v2949 = vrcp.pop %v2909
        %v2950 = vmul.f32 1.0, %v2949
        %v2951 = vrcp.pop %v2910
        %v2952 = vmul.f32 1.0, %v2951
        %v2953 = vrcp.pop %v2911
        %v2954 = vmul.f32 1.0, %v2953
        %v2955 = vrcp.pop %v2912
        %v2956 = vmul.f32 1.0, %v2955
        %v2957 = vrcp.pop %v2913
        %v2958 = vmul.f32 1.0, %v2957
        %v2959 = vrcp.pop %v2914
        %v2960 = vmul.f32 1.0, %v2959
        %v2961 = vrcp.pop %v2915
        %v2962 = vmul.f32 1.0, %v2961
        %v2963 = vrcp.pop %v2916
        %v2964 = vmul.f32 1.0, %v2963
        %v2965 = vrcp.pop %v2917
        %v2966 = vmul.f32 1.0, %v2965
        %v2967 = vrcp.pop %v2918
        %v2968 = vmul.f32 1.0, %v2967
        %v2969 = vrcp.pop %v2919
        %v2970 = vmul.f32 1.0, %v2969
        %v2971 = vrcp.pop %v2920
        %v2972 = vmul.f32 1.0, %v2971
        %v2973 = vrcp.pop %v2921
        %v2974 = vmul.f32 1.0, %v2973
        %v2975 = vrcp.pop %v2922
        %v2976 = vmul.f32 1.0, %v2975
        %v2977 = vrcp.pop %v2923
        %v2978 = vmul.f32 1.0, %v2977
        %v2979 = vrcp.pop %v2924
        %v2980 = vmul.f32 1.0, %v2979
        %v2981 = vrcp.pop %v2925
        %v2982 = vmul.f32 1.0, %v2981
        %v2983 = vrcp.pop %v2926
        %v2984 = vmul.f32 1.0, %v2983
        %v2985 = vrcp.pop %v2927
        %v2986 = vmul.f32 1.0, %v2985
        %v2987 = vrcp.pop %v2928
        %v2988 = vmul.f32 1.0, %v2987
        %v2989 = vrcp.pop %v2929
        %v2990 = vmul.f32 1.0, %v2989
        %v2991 = vrcp.pop %v2930
        %v2992 = vmul.f32 1.0, %v2991
        %v2993 = vrcp.pop %v2931
        %v2994 = vmul.f32 1.0, %v2993
        %v2995 = vrcp.pop %v2932
        %v2996 = vmul.f32 1.0, %v2995
        %v2997 = vtanh.pop %v2773
        %v2998 = vtanh.pop %v2774
        %v2999 = vtanh.pop %v2775
        %v3000 = vtanh.pop %v2776
        %v3001 = vtanh.pop %v2777
        %v3002 = vtanh.pop %v2778
        %v3003 = vtanh.pop %v2779
        %v3004 = vtanh.pop %v2780
        %v3005 = vtanh.pop %v2781
        %v3006 = vtanh.pop %v2782
        %v3007 = vtanh.pop %v2783
        %v3008 = vtanh.pop %v2784
        %v3009 = vtanh.pop %v2785
        %v3010 = vtanh.pop %v2786
        %v3011 = vtanh.pop %v2787
        %v3012 = vtanh.pop %v2788
        %v3013 = vtanh.pop %v2789
        %v3014 = vtanh.pop %v2790
        %v3015 = vtanh.pop %v2791
        %v3016 = vtanh.pop %v2792
        %v3017 = vtanh.pop %v2793
        %v3018 = vtanh.pop %v2794
        %v3019 = vtanh.pop %v2795
        %v3020 = vtanh.pop %v2796
        %v3021 = vtanh.pop %v2797
        %v3022 = vtanh.pop %v2798
        %v3023 = vtanh.pop %v2799
        %v3024 = vtanh.pop %v2800
        %v3025 = vtanh.pop %v2801
        %v3026 = vtanh.pop %v2802
        %v3027 = vtanh.pop %v2803
        %v3028 = vtanh.pop %v2804
        %3061 = vrot.lane.b32.xlu0 %v2227, 32
        %v3062 = vpop.permute.xlu0 %3061
        %3063 = vrot.lane.b32.xlu0 %v2228, 32
        %v3064 = vpop.permute.xlu0 %3063
        %3065 = vrot.lane.b32.xlu0 %v2229, 32
        %v3066 = vpop.permute.xlu0 %3065
        %3067 = vrot.lane.b32.xlu0 %v2230, 32
        %v3068 = vpop.permute.xlu0 %3067
        %3069 = vrot.lane.b32.xlu0 %v2231, 32
        %v3070 = vpop.permute.xlu0 %3069
        %3071 = vrot.lane.b32.xlu0 %v2232, 32
        %v3072 = vpop.permute.xlu0 %3071
        %3073 = vrot.lane.b32.xlu0 %v2233, 32
        %v3074 = vpop.permute.xlu0 %3073
        %3075 = vrot.lane.b32.xlu0 %v2234, 32
        %v3076 = vpop.permute.xlu0 %3075
        %3077 = vrot.lane.b32.xlu0 %v2235, 32
        %v3078 = vpop.permute.xlu0 %3077
        %3079 = vrot.lane.b32.xlu0 %v2236, 32
        %v3080 = vpop.permute.xlu0 %3079
        %3081 = vrot.lane.b32.xlu0 %v2237, 32
        %v3082 = vpop.permute.xlu0 %3081
        %3083 = vrot.lane.b32.xlu0 %v2238, 32
        %v3084 = vpop.permute.xlu0 %3083
        %3085 = vrot.lane.b32.xlu0 %v2239, 32
        %v3086 = vpop.permute.xlu0 %3085
        %3087 = vrot.lane.b32.xlu0 %v2240, 32
        %v3088 = vpop.permute.xlu0 %3087
        %3089 = vrot.lane.b32.xlu0 %v2241, 32
        %v3090 = vpop.permute.xlu0 %3089
        %3091 = vrot.lane.b32.xlu0 %v2242, 32
        %v3092 = vpop.permute.xlu0 %3091
        %3093 = vrot.lane.b32.xlu0 %v2243, 32
        %v3094 = vpop.permute.xlu0 %3093
        %3095 = vrot.lane.b32.xlu0 %v2244, 32
        %v3096 = vpop.permute.xlu0 %3095
        %3097 = vrot.lane.b32.xlu0 %v2245, 32
        %v3098 = vpop.permute.xlu0 %3097
        %3099 = vrot.lane.b32.xlu0 %v2246, 32
        %v3100 = vpop.permute.xlu0 %3099
        %3101 = vrot.lane.b32.xlu0 %v2247, 32
        %v3102 = vpop.permute.xlu0 %3101
        %3103 = vrot.lane.b32.xlu0 %v2248, 32
        %v3104 = vpop.permute.xlu0 %3103
        %3105 = vrot.lane.b32.xlu0 %v2249, 32
        %v3106 = vpop.permute.xlu0 %3105
        %3107 = vrot.lane.b32.xlu0 %v2250, 32
        %v3108 = vpop.permute.xlu0 %3107
        %3109 = vrot.lane.b32.xlu0 %v2251, 32
        %v3110 = vpop.permute.xlu0 %3109
        %3111 = vrot.lane.b32.xlu0 %v2252, 32
        %v3112 = vpop.permute.xlu0 %3111
        %3113 = vrot.lane.b32.xlu0 %v2253, 32
        %v3114 = vpop.permute.xlu0 %3113
        %3115 = vrot.lane.b32.xlu0 %v2254, 32
        %v3116 = vpop.permute.xlu0 %3115
        %3117 = vrot.lane.b32.xlu0 %v2255, 32
        %v3118 = vpop.permute.xlu0 %3117
        %3119 = vrot.lane.b32.xlu0 %v2256, 32
        %v3120 = vpop.permute.xlu0 %3119
        %3121 = vrot.lane.b32.xlu0 %v2257, 32
        %v3122 = vpop.permute.xlu0 %3121
        %3123 = vrot.lane.b32.xlu0 %v2258, 32
        %v3124 = vpop.permute.xlu0 %3123
        %v3157 = vmul.f32 %v2934, %v3062
        %v3158 = vmul.f32 %v2936, %v3064
        %v3159 = vmul.f32 %v2938, %v3066
        %v3160 = vmul.f32 %v2940, %v3068
        %v3161 = vmul.f32 %v2942, %v3070
        %v3162 = vmul.f32 %v2944, %v3072
        %v3163 = vmul.f32 %v2946, %v3074
        %v3164 = vmul.f32 %v2948, %v3076
        %v3165 = vmul.f32 %v2950, %v3078
        %v3166 = vmul.f32 %v2952, %v3080
        %v3167 = vmul.f32 %v2954, %v3082
        %v3168 = vmul.f32 %v2956, %v3084
        %v3169 = vmul.f32 %v2958, %v3086
        %v3170 = vmul.f32 %v2960, %v3088
        %v3171 = vmul.f32 %v2962, %v3090
        %v3172 = vmul.f32 %v2964, %v3092
        %v3173 = vmul.f32 %v2966, %v3094
        %v3174 = vmul.f32 %v2968, %v3096
        %v3175 = vmul.f32 %v2970, %v3098
        %v3176 = vmul.f32 %v2972, %v3100
        %v3177 = vmul.f32 %v2974, %v3102
        %v3178 = vmul.f32 %v2976, %v3104
        %v3179 = vmul.f32 %v2978, %v3106
        %v3180 = vmul.f32 %v2980, %v3108
        %v3181 = vmul.f32 %v2982, %v3110
        %v3182 = vmul.f32 %v2984, %v3112
        %v3183 = vmul.f32 %v2986, %v3114
        %v3184 = vmul.f32 %v2988, %v3116
        %v3185 = vmul.f32 %v2990, %v3118
        %v3186 = vmul.f32 %v2992, %v3120
        %v3187 = vmul.f32 %v2994, %v3122
        %v3188 = vmul.f32 %v2996, %v3124
        %3221 = vrot.lane.b32.xlu0 %v2997, 64
        %v3222 = vpop.permute.xlu0 %3221
        %3223 = vrot.lane.b32.xlu0 %v2998, 64
        %v3224 = vpop.permute.xlu0 %3223
        %3225 = vrot.lane.b32.xlu0 %v2999, 64
        %v3226 = vpop.permute.xlu0 %3225
        %3227 = vrot.lane.b32.xlu0 %v3000, 64
        %v3228 = vpop.permute.xlu0 %3227
        %3229 = vrot.lane.b32.xlu0 %v3001, 64
        %v3230 = vpop.permute.xlu0 %3229
        %3231 = vrot.lane.b32.xlu0 %v3002, 64
        %v3232 = vpop.permute.xlu0 %3231
        %3233 = vrot.lane.b32.xlu0 %v3003, 64
        %v3234 = vpop.permute.xlu0 %3233
        %3235 = vrot.lane.b32.xlu0 %v3004, 64
        %v3236 = vpop.permute.xlu0 %3235
        %3237 = vrot.lane.b32.xlu0 %v3005, 64
        %v3238 = vpop.permute.xlu0 %3237
        %3239 = vrot.lane.b32.xlu0 %v3006, 64
        %v3240 = vpop.permute.xlu0 %3239
        %3241 = vrot.lane.b32.xlu0 %v3007, 64
        %v3242 = vpop.permute.xlu0 %3241
        %3243 = vrot.lane.b32.xlu0 %v3008, 64
        %v3244 = vpop.permute.xlu0 %3243
        %3245 = vrot.lane.b32.xlu0 %v3009, 64
        %v3246 = vpop.permute.xlu0 %3245
        %3247 = vrot.lane.b32.xlu0 %v3010, 64
        %v3248 = vpop.permute.xlu0 %3247
        %3249 = vrot.lane.b32.xlu0 %v3011, 64
        %v3250 = vpop.permute.xlu0 %3249
        %3251 = vrot.lane.b32.xlu0 %v3012, 64
        %v3252 = vpop.permute.xlu0 %3251
        %3253 = vrot.lane.b32.xlu0 %v3013, 64
        %v3254 = vpop.permute.xlu0 %3253
        %3255 = vrot.lane.b32.xlu0 %v3014, 64
        %v3256 = vpop.permute.xlu0 %3255
        %3257 = vrot.lane.b32.xlu0 %v3015, 64
        %v3258 = vpop.permute.xlu0 %3257
        %3259 = vrot.lane.b32.xlu0 %v3016, 64
        %v3260 = vpop.permute.xlu0 %3259
        %3261 = vrot.lane.b32.xlu0 %v3017, 64
        %v3262 = vpop.permute.xlu0 %3261
        %3263 = vrot.lane.b32.xlu0 %v3018, 64
        %v3264 = vpop.permute.xlu0 %3263
        %3265 = vrot.lane.b32.xlu0 %v3019, 64
        %v3266 = vpop.permute.xlu0 %3265
        %3267 = vrot.lane.b32.xlu0 %v3020, 64
        %v3268 = vpop.permute.xlu0 %3267
        %3269 = vrot.lane.b32.xlu0 %v3021, 64
        %v3270 = vpop.permute.xlu0 %3269
        %3271 = vrot.lane.b32.xlu0 %v3022, 64
        %v3272 = vpop.permute.xlu0 %3271
        %3273 = vrot.lane.b32.xlu0 %v3023, 64
        %v3274 = vpop.permute.xlu0 %3273
        %3275 = vrot.lane.b32.xlu0 %v3024, 64
        %v3276 = vpop.permute.xlu0 %3275
        %3277 = vrot.lane.b32.xlu0 %v3025, 64
        %v3278 = vpop.permute.xlu0 %3277
        %3279 = vrot.lane.b32.xlu0 %v3026, 64
        %v3280 = vpop.permute.xlu0 %3279
        %3281 = vrot.lane.b32.xlu0 %v3027, 64
        %v3282 = vpop.permute.xlu0 %3281
        %3283 = vrot.lane.b32.xlu0 %v3028, 64
        %v3284 = vpop.permute.xlu0 %3283
        %v3317 = vmul.f32 %v2934, %v3222
        %v3318 = vmul.f32 %v2936, %v3224
        %v3319 = vmul.f32 %v2938, %v3226
        %v3320 = vmul.f32 %v2940, %v3228
        %v3321 = vmul.f32 %v2942, %v3230
        %v3322 = vmul.f32 %v2944, %v3232
        %v3323 = vmul.f32 %v2946, %v3234
        %v3324 = vmul.f32 %v2948, %v3236
        %v3325 = vmul.f32 %v2950, %v3238
        %v3326 = vmul.f32 %v2952, %v3240
        %v3327 = vmul.f32 %v2954, %v3242
        %v3328 = vmul.f32 %v2956, %v3244
        %v3329 = vmul.f32 %v2958, %v3246
        %v3330 = vmul.f32 %v2960, %v3248
        %v3331 = vmul.f32 %v2962, %v3250
        %v3332 = vmul.f32 %v2964, %v3252
        %v3333 = vmul.f32 %v2966, %v3254
        %v3334 = vmul.f32 %v2968, %v3256
        %v3335 = vmul.f32 %v2970, %v3258
        %v3336 = vmul.f32 %v2972, %v3260
        %v3337 = vmul.f32 %v2974, %v3262
        %v3338 = vmul.f32 %v2976, %v3264
        %v3339 = vmul.f32 %v2978, %v3266
        %v3340 = vmul.f32 %v2980, %v3268
        %v3341 = vmul.f32 %v2982, %v3270
        %v3342 = vmul.f32 %v2984, %v3272
        %v3343 = vmul.f32 %v2986, %v3274
        %v3344 = vmul.f32 %v2988, %v3276
        %v3345 = vmul.f32 %v2990, %v3278
        %v3346 = vmul.f32 %v2992, %v3280
        %v3347 = vmul.f32 %v2994, %v3282
        %v3348 = vmul.f32 %v2996, %v3284
        %3381 = vrot.lane.b32.xlu0 %v3317, 32
        %v3382 = vpop.permute.xlu0 %3381
        %3383 = vrot.lane.b32.xlu0 %v3318, 32
        %v3384 = vpop.permute.xlu0 %3383
        %3385 = vrot.lane.b32.xlu0 %v3319, 32
        %v3386 = vpop.permute.xlu0 %3385
        %3387 = vrot.lane.b32.xlu0 %v3320, 32
        %v3388 = vpop.permute.xlu0 %3387
        %3389 = vrot.lane.b32.xlu0 %v3321, 32
        %v3390 = vpop.permute.xlu0 %3389
        %3391 = vrot.lane.b32.xlu0 %v3322, 32
        %v3392 = vpop.permute.xlu0 %3391
        %3393 = vrot.lane.b32.xlu0 %v3323, 32
        %v3394 = vpop.permute.xlu0 %3393
        %3395 = vrot.lane.b32.xlu0 %v3324, 32
        %v3396 = vpop.permute.xlu0 %3395
        %3397 = vrot.lane.b32.xlu0 %v3325, 32
        %v3398 = vpop.permute.xlu0 %3397
        %3399 = vrot.lane.b32.xlu0 %v3326, 32
        %v3400 = vpop.permute.xlu0 %3399
        %3401 = vrot.lane.b32.xlu0 %v3327, 32
        %v3402 = vpop.permute.xlu0 %3401
        %3403 = vrot.lane.b32.xlu0 %v3328, 32
        %v3404 = vpop.permute.xlu0 %3403
        %3405 = vrot.lane.b32.xlu0 %v3329, 32
        %v3406 = vpop.permute.xlu0 %3405
        %3407 = vrot.lane.b32.xlu0 %v3330, 32
        %v3408 = vpop.permute.xlu0 %3407
        %3409 = vrot.lane.b32.xlu0 %v3331, 32
        %v3410 = vpop.permute.xlu0 %3409
        %3411 = vrot.lane.b32.xlu0 %v3332, 32
        %v3412 = vpop.permute.xlu0 %3411
        %3413 = vrot.lane.b32.xlu0 %v3333, 32
        %v3414 = vpop.permute.xlu0 %3413
        %3415 = vrot.lane.b32.xlu0 %v3334, 32
        %v3416 = vpop.permute.xlu0 %3415
        %3417 = vrot.lane.b32.xlu0 %v3335, 32
        %v3418 = vpop.permute.xlu0 %3417
        %3419 = vrot.lane.b32.xlu0 %v3336, 32
        %v3420 = vpop.permute.xlu0 %3419
        %3421 = vrot.lane.b32.xlu0 %v3337, 32
        %v3422 = vpop.permute.xlu0 %3421
        %3423 = vrot.lane.b32.xlu0 %v3338, 32
        %v3424 = vpop.permute.xlu0 %3423
        %3425 = vrot.lane.b32.xlu0 %v3339, 32
        %v3426 = vpop.permute.xlu0 %3425
        %3427 = vrot.lane.b32.xlu0 %v3340, 32
        %v3428 = vpop.permute.xlu0 %3427
        %3429 = vrot.lane.b32.xlu0 %v3341, 32
        %v3430 = vpop.permute.xlu0 %3429
        %3431 = vrot.lane.b32.xlu0 %v3342, 32
        %v3432 = vpop.permute.xlu0 %3431
        %3433 = vrot.lane.b32.xlu0 %v3343, 32
        %v3434 = vpop.permute.xlu0 %3433
        %3435 = vrot.lane.b32.xlu0 %v3344, 32
        %v3436 = vpop.permute.xlu0 %3435
        %3437 = vrot.lane.b32.xlu0 %v3345, 32
        %v3438 = vpop.permute.xlu0 %3437
        %3439 = vrot.lane.b32.xlu0 %v3346, 32
        %v3440 = vpop.permute.xlu0 %3439
        %3441 = vrot.lane.b32.xlu0 %v3347, 32
        %v3442 = vpop.permute.xlu0 %3441
        %3443 = vrot.lane.b32.xlu0 %v3348, 32
        %v3444 = vpop.permute.xlu0 %3443
        %v3477 = vadd.f32 %v3157, %v3382
        %v3478 = vadd.f32 %v3158, %v3384
        %v3479 = vadd.f32 %v3159, %v3386
        %v3480 = vadd.f32 %v3160, %v3388
        %v3481 = vadd.f32 %v3161, %v3390
        %v3482 = vadd.f32 %v3162, %v3392
        %v3483 = vadd.f32 %v3163, %v3394
        %v3484 = vadd.f32 %v3164, %v3396
        %v3485 = vadd.f32 %v3165, %v3398
        %v3486 = vadd.f32 %v3166, %v3400
        %v3487 = vadd.f32 %v3167, %v3402
        %v3488 = vadd.f32 %v3168, %v3404
        %v3489 = vadd.f32 %v3169, %v3406
        %v3490 = vadd.f32 %v3170, %v3408
        %v3491 = vadd.f32 %v3171, %v3410
        %v3492 = vadd.f32 %v3172, %v3412
        %v3493 = vadd.f32 %v3173, %v3414
        %v3494 = vadd.f32 %v3174, %v3416
        %v3495 = vadd.f32 %v3175, %v3418
        %v3496 = vadd.f32 %v3176, %v3420
        %v3497 = vadd.f32 %v3177, %v3422
        %v3498 = vadd.f32 %v3178, %v3424
        %v3499 = vadd.f32 %v3179, %v3426
        %v3500 = vadd.f32 %v3180, %v3428
        %v3501 = vadd.f32 %v3181, %v3430
        %v3502 = vadd.f32 %v3182, %v3432
        %v3503 = vadd.f32 %v3183, %v3434
        %v3504 = vadd.f32 %v3184, %v3436
        %v3505 = vadd.f32 %v3185, %v3438
        %v3506 = vadd.f32 %v3186, %v3440
        %v3507 = vadd.f32 %v3187, %v3442
        %v3508 = vadd.f32 %v3188, %v3444
        %v3509 = vtanh.pop %v3477
        %v3510 = vtanh.pop %v3478
        %v3511 = vtanh.pop %v3479
        %v3512 = vtanh.pop %v3480
        %v3513 = vtanh.pop %v3481
        %v3514 = vtanh.pop %v3482
        %v3515 = vtanh.pop %v3483
        %v3516 = vtanh.pop %v3484
        %v3517 = vtanh.pop %v3485
        %v3518 = vtanh.pop %v3486
        %v3519 = vtanh.pop %v3487
        %v3520 = vtanh.pop %v3488
        %v3521 = vtanh.pop %v3489
        %v3522 = vtanh.pop %v3490
        %v3523 = vtanh.pop %v3491
        %v3524 = vtanh.pop %v3492
        %v3525 = vtanh.pop %v3493
        %v3526 = vtanh.pop %v3494
        %v3527 = vtanh.pop %v3495
        %v3528 = vtanh.pop %v3496
        %v3529 = vtanh.pop %v3497
        %v3530 = vtanh.pop %v3498
        %v3531 = vtanh.pop %v3499
        %v3532 = vtanh.pop %v3500
        %v3533 = vtanh.pop %v3501
        %v3534 = vtanh.pop %v3502
        %v3535 = vtanh.pop %v3503
        %v3536 = vtanh.pop %v3504
        %v3537 = vtanh.pop %v3505
        %v3538 = vtanh.pop %v3506
        %v3539 = vtanh.pop %v3507
        %v3540 = vtanh.pop %v3508
        %3573 = vrot.lane.b32.xlu0 %v3509, 64
        %v3574 = vpop.permute.xlu0 %3573
        %3575 = vrot.lane.b32.xlu0 %v3510, 64
        %v3576 = vpop.permute.xlu0 %3575
        %3577 = vrot.lane.b32.xlu0 %v3511, 64
        %v3578 = vpop.permute.xlu0 %3577
        %3579 = vrot.lane.b32.xlu0 %v3512, 64
        %v3580 = vpop.permute.xlu0 %3579
        %3581 = vrot.lane.b32.xlu0 %v3513, 64
        %v3582 = vpop.permute.xlu0 %3581
        %3583 = vrot.lane.b32.xlu0 %v3514, 64
        %v3584 = vpop.permute.xlu0 %3583
        %3585 = vrot.lane.b32.xlu0 %v3515, 64
        %v3586 = vpop.permute.xlu0 %3585
        %3587 = vrot.lane.b32.xlu0 %v3516, 64
        %v3588 = vpop.permute.xlu0 %3587
        %3589 = vrot.lane.b32.xlu0 %v3517, 64
        %v3590 = vpop.permute.xlu0 %3589
        %3591 = vrot.lane.b32.xlu0 %v3518, 64
        %v3592 = vpop.permute.xlu0 %3591
        %3593 = vrot.lane.b32.xlu0 %v3519, 64
        %v3594 = vpop.permute.xlu0 %3593
        %3595 = vrot.lane.b32.xlu0 %v3520, 64
        %v3596 = vpop.permute.xlu0 %3595
        %3597 = vrot.lane.b32.xlu0 %v3521, 64
        %v3598 = vpop.permute.xlu0 %3597
        %3599 = vrot.lane.b32.xlu0 %v3522, 64
        %v3600 = vpop.permute.xlu0 %3599
        %3601 = vrot.lane.b32.xlu0 %v3523, 64
        %v3602 = vpop.permute.xlu0 %3601
        %3603 = vrot.lane.b32.xlu0 %v3524, 64
        %v3604 = vpop.permute.xlu0 %3603
        %3605 = vrot.lane.b32.xlu0 %v3525, 64
        %v3606 = vpop.permute.xlu0 %3605
        %3607 = vrot.lane.b32.xlu0 %v3526, 64
        %v3608 = vpop.permute.xlu0 %3607
        %3609 = vrot.lane.b32.xlu0 %v3527, 64
        %v3610 = vpop.permute.xlu0 %3609
        %3611 = vrot.lane.b32.xlu0 %v3528, 64
        %v3612 = vpop.permute.xlu0 %3611
        %3613 = vrot.lane.b32.xlu0 %v3529, 64
        %v3614 = vpop.permute.xlu0 %3613
        %3615 = vrot.lane.b32.xlu0 %v3530, 64
        %v3616 = vpop.permute.xlu0 %3615
        %3617 = vrot.lane.b32.xlu0 %v3531, 64
        %v3618 = vpop.permute.xlu0 %3617
        %3619 = vrot.lane.b32.xlu0 %v3532, 64
        %v3620 = vpop.permute.xlu0 %3619
        %3621 = vrot.lane.b32.xlu0 %v3533, 64
        %v3622 = vpop.permute.xlu0 %3621
        %3623 = vrot.lane.b32.xlu0 %v3534, 64
        %v3624 = vpop.permute.xlu0 %3623
        %3625 = vrot.lane.b32.xlu0 %v3535, 64
        %v3626 = vpop.permute.xlu0 %3625
        %3627 = vrot.lane.b32.xlu0 %v3536, 64
        %v3628 = vpop.permute.xlu0 %3627
        %3629 = vrot.lane.b32.xlu0 %v3537, 64
        %v3630 = vpop.permute.xlu0 %3629
        %3631 = vrot.lane.b32.xlu0 %v3538, 64
        %v3632 = vpop.permute.xlu0 %3631
        %3633 = vrot.lane.b32.xlu0 %v3539, 64
        %v3634 = vpop.permute.xlu0 %3633
        %3635 = vrot.lane.b32.xlu0 %v3540, 64
        %v3636 = vpop.permute.xlu0 %3635
        %v3669 = vmul.f32 %v2934, %v3574
        %v3670 = vmul.f32 %v2936, %v3576
        %v3671 = vmul.f32 %v2938, %v3578
        %v3672 = vmul.f32 %v2940, %v3580
        %v3673 = vmul.f32 %v2942, %v3582
        %v3674 = vmul.f32 %v2944, %v3584
        %v3675 = vmul.f32 %v2946, %v3586
        %v3676 = vmul.f32 %v2948, %v3588
        %v3677 = vmul.f32 %v2950, %v3590
        %v3678 = vmul.f32 %v2952, %v3592
        %v3679 = vmul.f32 %v2954, %v3594
        %v3680 = vmul.f32 %v2956, %v3596
        %v3681 = vmul.f32 %v2958, %v3598
        %v3682 = vmul.f32 %v2960, %v3600
        %v3683 = vmul.f32 %v2962, %v3602
        %v3684 = vmul.f32 %v2964, %v3604
        %v3685 = vmul.f32 %v2966, %v3606
        %v3686 = vmul.f32 %v2968, %v3608
        %v3687 = vmul.f32 %v2970, %v3610
        %v3688 = vmul.f32 %v2972, %v3612
        %v3689 = vmul.f32 %v2974, %v3614
        %v3690 = vmul.f32 %v2976, %v3616
        %v3691 = vmul.f32 %v2978, %v3618
        %v3692 = vmul.f32 %v2980, %v3620
        %v3693 = vmul.f32 %v2982, %v3622
        %v3694 = vmul.f32 %v2984, %v3624
        %v3695 = vmul.f32 %v2986, %v3626
        %v3696 = vmul.f32 %v2988, %v3628
        %v3697 = vmul.f32 %v2990, %v3630
        %v3698 = vmul.f32 %v2992, %v3632
        %v3699 = vmul.f32 %v2994, %v3634
        %v3700 = vmul.f32 %v2996, %v3636
        %v3701 = vadd.f32 %v1687, %v304
        %v3702 = vadd.f32 %v1691, %v304
        %v3703 = vadd.f32 %v1697, %v304
        %v3704 = vadd.f32 %v1701, %v304
        %v3705 = vadd.f32 %v1707, %v304
        %v3706 = vadd.f32 %v1711, %v304
        %v3707 = vadd.f32 %v1717, %v304
        %v3708 = vadd.f32 %v1721, %v304
        %v3709 = vadd.f32 %v1727, %v304
        %v3710 = vadd.f32 %v1731, %v304
        %v3711 = vadd.f32 %v1737, %v304
        %v3712 = vadd.f32 %v1741, %v304
        %v3713 = vadd.f32 %v1747, %v304
        %v3714 = vadd.f32 %v1751, %v304
        %v3715 = vadd.f32 %v1757, %v304
        %v3716 = vadd.f32 %v1761, %v304
        %v3717 = vadd.f32 %v1767, %v304
        %v3718 = vadd.f32 %v1771, %v304
        %v3719 = vadd.f32 %v1777, %v304
        %v3720 = vadd.f32 %v1781, %v304
        %v3721 = vadd.f32 %v1787, %v304
        %v3722 = vadd.f32 %v1791, %v304
        %v3723 = vadd.f32 %v1797, %v304
        %v3724 = vadd.f32 %v1801, %v304
        %v3725 = vadd.f32 %v1807, %v304
        %v3726 = vadd.f32 %v1811, %v304
        %v3727 = vadd.f32 %v1817, %v304
        %v3728 = vadd.f32 %v1821, %v304
        %v3729 = vadd.f32 %v1827, %v304
        %v3730 = vadd.f32 %v1831, %v304
        %v3731 = vadd.f32 %v1837, %v304
        %v3732 = vadd.f32 %v1841, %v304
        %v3733 = vxor.u32 %v3701, 2147483648
        %v3734 = vxor.u32 %v3702, 2147483648
        %v3735 = vxor.u32 %v3703, 2147483648
        %v3736 = vxor.u32 %v3704, 2147483648
        %v3737 = vxor.u32 %v3705, 2147483648
        %v3738 = vxor.u32 %v3706, 2147483648
        %v3739 = vxor.u32 %v3707, 2147483648
        %v3740 = vxor.u32 %v3708, 2147483648
        %v3741 = vxor.u32 %v3709, 2147483648
        %v3742 = vxor.u32 %v3710, 2147483648
        %v3743 = vxor.u32 %v3711, 2147483648
        %v3744 = vxor.u32 %v3712, 2147483648
        %v3745 = vxor.u32 %v3713, 2147483648
        %v3746 = vxor.u32 %v3714, 2147483648
        %v3747 = vxor.u32 %v3715, 2147483648
        %v3748 = vxor.u32 %v3716, 2147483648
        %v3749 = vxor.u32 %v3717, 2147483648
        %v3750 = vxor.u32 %v3718, 2147483648
        %v3751 = vxor.u32 %v3719, 2147483648
        %v3752 = vxor.u32 %v3720, 2147483648
        %v3753 = vxor.u32 %v3721, 2147483648
        %v3754 = vxor.u32 %v3722, 2147483648
        %v3755 = vxor.u32 %v3723, 2147483648
        %v3756 = vxor.u32 %v3724, 2147483648
        %v3757 = vxor.u32 %v3725, 2147483648
        %v3758 = vxor.u32 %v3726, 2147483648
        %v3759 = vxor.u32 %v3727, 2147483648
        %v3760 = vxor.u32 %v3728, 2147483648
        %v3761 = vxor.u32 %v3729, 2147483648
        %v3762 = vxor.u32 %v3730, 2147483648
        %v3763 = vxor.u32 %v3731, 2147483648
        %v3764 = vxor.u32 %v3732, 2147483648
        %v3765 = vmul.f32 %v3733, 1.442695
        %v3766 = vpow.pop %v3765
        %v3767 = vmul.f32 %v3734, 1.442695
        %v3768 = vpow.pop %v3767
        %v3769 = vmul.f32 %v3735, 1.442695
        %v3770 = vpow.pop %v3769
        %v3771 = vmul.f32 %v3736, 1.442695
        %v3772 = vpow.pop %v3771
        %v3773 = vmul.f32 %v3737, 1.442695
        %v3774 = vpow.pop %v3773
        %v3775 = vmul.f32 %v3738, 1.442695
        %v3776 = vpow.pop %v3775
        %v3777 = vmul.f32 %v3739, 1.442695
        %v3778 = vpow.pop %v3777
        %v3779 = vmul.f32 %v3740, 1.442695
        %v3780 = vpow.pop %v3779
        %v3781 = vmul.f32 %v3741, 1.442695
        %v3782 = vpow.pop %v3781
        %v3783 = vmul.f32 %v3742, 1.442695
        %v3784 = vpow.pop %v3783
        %v3785 = vmul.f32 %v3743, 1.442695
        %v3786 = vpow.pop %v3785
        %v3787 = vmul.f32 %v3744, 1.442695
        %v3788 = vpow.pop %v3787
        %v3789 = vmul.f32 %v3745, 1.442695
        %v3790 = vpow.pop %v3789
        %v3791 = vmul.f32 %v3746, 1.442695
        %v3792 = vpow.pop %v3791
        %v3793 = vmul.f32 %v3747, 1.442695
        %v3794 = vpow.pop %v3793
        %v3795 = vmul.f32 %v3748, 1.442695
        %v3796 = vpow.pop %v3795
        %v3797 = vmul.f32 %v3749, 1.442695
        %v3798 = vpow.pop %v3797
        %v3799 = vmul.f32 %v3750, 1.442695
        %v3800 = vpow.pop %v3799
        %v3801 = vmul.f32 %v3751, 1.442695
        %v3802 = vpow.pop %v3801
        %v3803 = vmul.f32 %v3752, 1.442695
        %v3804 = vpow.pop %v3803
        %v3805 = vmul.f32 %v3753, 1.442695
        %v3806 = vpow.pop %v3805
        %v3807 = vmul.f32 %v3754, 1.442695
        %v3808 = vpow.pop %v3807
        %v3809 = vmul.f32 %v3755, 1.442695
        %v3810 = vpow.pop %v3809
        %v3811 = vmul.f32 %v3756, 1.442695
        %v3812 = vpow.pop %v3811
        %v3813 = vmul.f32 %v3757, 1.442695
        %v3814 = vpow.pop %v3813
        %v3815 = vmul.f32 %v3758, 1.442695
        %v3816 = vpow.pop %v3815
        %v3817 = vmul.f32 %v3759, 1.442695
        %v3818 = vpow.pop %v3817
        %v3819 = vmul.f32 %v3760, 1.442695
        %v3820 = vpow.pop %v3819
        %v3821 = vmul.f32 %v3761, 1.442695
        %v3822 = vpow.pop %v3821
        %v3823 = vmul.f32 %v3762, 1.442695
        %v3824 = vpow.pop %v3823
        %v3825 = vmul.f32 %v3763, 1.442695
        %v3826 = vpow.pop %v3825
        %v3827 = vmul.f32 %v3764, 1.442695
        %v3828 = vpow.pop %v3827
        %v3829 = vadd.f32 %v3766, 1.0
        %v3830 = vadd.f32 %v3768, 1.0
        %v3831 = vadd.f32 %v3770, 1.0
        %v3832 = vadd.f32 %v3772, 1.0
        %v3833 = vadd.f32 %v3774, 1.0
        %v3834 = vadd.f32 %v3776, 1.0
        %v3835 = vadd.f32 %v3778, 1.0
        %v3836 = vadd.f32 %v3780, 1.0
        %v3837 = vadd.f32 %v3782, 1.0
        %v3838 = vadd.f32 %v3784, 1.0
        %v3839 = vadd.f32 %v3786, 1.0
        %v3840 = vadd.f32 %v3788, 1.0
        %v3841 = vadd.f32 %v3790, 1.0
        %v3842 = vadd.f32 %v3792, 1.0
        %v3843 = vadd.f32 %v3794, 1.0
        %v3844 = vadd.f32 %v3796, 1.0
        %v3845 = vadd.f32 %v3798, 1.0
        %v3846 = vadd.f32 %v3800, 1.0
        %v3847 = vadd.f32 %v3802, 1.0
        %v3848 = vadd.f32 %v3804, 1.0
        %v3849 = vadd.f32 %v3806, 1.0
        %v3850 = vadd.f32 %v3808, 1.0
        %v3851 = vadd.f32 %v3810, 1.0
        %v3852 = vadd.f32 %v3812, 1.0
        %v3853 = vadd.f32 %v3814, 1.0
        %v3854 = vadd.f32 %v3816, 1.0
        %v3855 = vadd.f32 %v3818, 1.0
        %v3856 = vadd.f32 %v3820, 1.0
        %v3857 = vadd.f32 %v3822, 1.0
        %v3858 = vadd.f32 %v3824, 1.0
        %v3859 = vadd.f32 %v3826, 1.0
        %v3860 = vadd.f32 %v3828, 1.0
        %v3861 = vrcp.pop %v3829
        %v3862 = vmul.f32 1.0, %v3861
        %v3863 = vrcp.pop %v3830
        %v3864 = vmul.f32 1.0, %v3863
        %v3865 = vrcp.pop %v3831
        %v3866 = vmul.f32 1.0, %v3865
        %v3867 = vrcp.pop %v3832
        %v3868 = vmul.f32 1.0, %v3867
        %v3869 = vrcp.pop %v3833
        %v3870 = vmul.f32 1.0, %v3869
        %v3871 = vrcp.pop %v3834
        %v3872 = vmul.f32 1.0, %v3871
        %v3873 = vrcp.pop %v3835
        %v3874 = vmul.f32 1.0, %v3873
        %v3875 = vrcp.pop %v3836
        %v3876 = vmul.f32 1.0, %v3875
        %v3877 = vrcp.pop %v3837
        %v3878 = vmul.f32 1.0, %v3877
        %v3879 = vrcp.pop %v3838
        %v3880 = vmul.f32 1.0, %v3879
        %v3881 = vrcp.pop %v3839
        %v3882 = vmul.f32 1.0, %v3881
        %v3883 = vrcp.pop %v3840
        %v3884 = vmul.f32 1.0, %v3883
        %v3885 = vrcp.pop %v3841
        %v3886 = vmul.f32 1.0, %v3885
        %v3887 = vrcp.pop %v3842
        %v3888 = vmul.f32 1.0, %v3887
        %v3889 = vrcp.pop %v3843
        %v3890 = vmul.f32 1.0, %v3889
        %v3891 = vrcp.pop %v3844
        %v3892 = vmul.f32 1.0, %v3891
        %v3893 = vrcp.pop %v3845
        %v3894 = vmul.f32 1.0, %v3893
        %v3895 = vrcp.pop %v3846
        %v3896 = vmul.f32 1.0, %v3895
        %v3897 = vrcp.pop %v3847
        %v3898 = vmul.f32 1.0, %v3897
        %v3899 = vrcp.pop %v3848
        %v3900 = vmul.f32 1.0, %v3899
        %v3901 = vrcp.pop %v3849
        %v3902 = vmul.f32 1.0, %v3901
        %v3903 = vrcp.pop %v3850
        %v3904 = vmul.f32 1.0, %v3903
        %v3905 = vrcp.pop %v3851
        %v3906 = vmul.f32 1.0, %v3905
        %v3907 = vrcp.pop %v3852
        %v3908 = vmul.f32 1.0, %v3907
        %v3909 = vrcp.pop %v3853
        %v3910 = vmul.f32 1.0, %v3909
        %v3911 = vrcp.pop %v3854
        %v3912 = vmul.f32 1.0, %v3911
        %v3913 = vrcp.pop %v3855
        %v3914 = vmul.f32 1.0, %v3913
        %v3915 = vrcp.pop %v3856
        %v3916 = vmul.f32 1.0, %v3915
        %v3917 = vrcp.pop %v3857
        %v3918 = vmul.f32 1.0, %v3917
        %v3919 = vrcp.pop %v3858
        %v3920 = vmul.f32 1.0, %v3919
        %v3921 = vrcp.pop %v3859
        %v3922 = vmul.f32 1.0, %v3921
        %v3923 = vrcp.pop %v3860
        %v3924 = vmul.f32 1.0, %v3923
        %v3925 = vtanh.pop %v3701
        %v3926 = vtanh.pop %v3702
        %v3927 = vtanh.pop %v3703
        %v3928 = vtanh.pop %v3704
        %v3929 = vtanh.pop %v3705
        %v3930 = vtanh.pop %v3706
        %v3931 = vtanh.pop %v3707
        %v3932 = vtanh.pop %v3708
        %v3933 = vtanh.pop %v3709
        %v3934 = vtanh.pop %v3710
        %v3935 = vtanh.pop %v3711
        %v3936 = vtanh.pop %v3712
        %v3937 = vtanh.pop %v3713
        %v3938 = vtanh.pop %v3714
        %v3939 = vtanh.pop %v3715
        %v3940 = vtanh.pop %v3716
        %v3941 = vtanh.pop %v3717
        %v3942 = vtanh.pop %v3718
        %v3943 = vtanh.pop %v3719
        %v3944 = vtanh.pop %v3720
        %v3945 = vtanh.pop %v3721
        %v3946 = vtanh.pop %v3722
        %v3947 = vtanh.pop %v3723
        %v3948 = vtanh.pop %v3724
        %v3949 = vtanh.pop %v3725
        %v3950 = vtanh.pop %v3726
        %v3951 = vtanh.pop %v3727
        %v3952 = vtanh.pop %v3728
        %v3953 = vtanh.pop %v3729
        %v3954 = vtanh.pop %v3730
        %v3955 = vtanh.pop %v3731
        %v3956 = vtanh.pop %v3732
        %3989 = vrot.lane.b32.xlu0 %v3925, 64
        %v3990 = vpop.permute.xlu0 %3989
        %3991 = vrot.lane.b32.xlu0 %v3926, 64
        %v3992 = vpop.permute.xlu0 %3991
        %3993 = vrot.lane.b32.xlu0 %v3927, 64
        %v3994 = vpop.permute.xlu0 %3993
        %3995 = vrot.lane.b32.xlu0 %v3928, 64
        %v3996 = vpop.permute.xlu0 %3995
        %3997 = vrot.lane.b32.xlu0 %v3929, 64
        %v3998 = vpop.permute.xlu0 %3997
        %3999 = vrot.lane.b32.xlu0 %v3930, 64
        %v4000 = vpop.permute.xlu0 %3999
        %4001 = vrot.lane.b32.xlu0 %v3931, 64
        %v4002 = vpop.permute.xlu0 %4001
        %4003 = vrot.lane.b32.xlu0 %v3932, 64
        %v4004 = vpop.permute.xlu0 %4003
        %4005 = vrot.lane.b32.xlu0 %v3933, 64
        %v4006 = vpop.permute.xlu0 %4005
        %4007 = vrot.lane.b32.xlu0 %v3934, 64
        %v4008 = vpop.permute.xlu0 %4007
        %4009 = vrot.lane.b32.xlu0 %v3935, 64
        %v4010 = vpop.permute.xlu0 %4009
        %4011 = vrot.lane.b32.xlu0 %v3936, 64
        %v4012 = vpop.permute.xlu0 %4011
        %4013 = vrot.lane.b32.xlu0 %v3937, 64
        %v4014 = vpop.permute.xlu0 %4013
        %4015 = vrot.lane.b32.xlu0 %v3938, 64
        %v4016 = vpop.permute.xlu0 %4015
        %4017 = vrot.lane.b32.xlu0 %v3939, 64
        %v4018 = vpop.permute.xlu0 %4017
        %4019 = vrot.lane.b32.xlu0 %v3940, 64
        %v4020 = vpop.permute.xlu0 %4019
        %4021 = vrot.lane.b32.xlu0 %v3941, 64
        %v4022 = vpop.permute.xlu0 %4021
        %4023 = vrot.lane.b32.xlu0 %v3942, 64
        %v4024 = vpop.permute.xlu0 %4023
        %4025 = vrot.lane.b32.xlu0 %v3943, 64
        %v4026 = vpop.permute.xlu0 %4025
        %4027 = vrot.lane.b32.xlu0 %v3944, 64
        %v4028 = vpop.permute.xlu0 %4027
        %4029 = vrot.lane.b32.xlu0 %v3945, 64
        %v4030 = vpop.permute.xlu0 %4029
        %4031 = vrot.lane.b32.xlu0 %v3946, 64
        %v4032 = vpop.permute.xlu0 %4031
        %4033 = vrot.lane.b32.xlu0 %v3947, 64
        %v4034 = vpop.permute.xlu0 %4033
        %4035 = vrot.lane.b32.xlu0 %v3948, 64
        %v4036 = vpop.permute.xlu0 %4035
        %4037 = vrot.lane.b32.xlu0 %v3949, 64
        %v4038 = vpop.permute.xlu0 %4037
        %4039 = vrot.lane.b32.xlu0 %v3950, 64
        %v4040 = vpop.permute.xlu0 %4039
        %4041 = vrot.lane.b32.xlu0 %v3951, 64
        %v4042 = vpop.permute.xlu0 %4041
        %4043 = vrot.lane.b32.xlu0 %v3952, 64
        %v4044 = vpop.permute.xlu0 %4043
        %4045 = vrot.lane.b32.xlu0 %v3953, 64
        %v4046 = vpop.permute.xlu0 %4045
        %4047 = vrot.lane.b32.xlu0 %v3954, 64
        %v4048 = vpop.permute.xlu0 %4047
        %4049 = vrot.lane.b32.xlu0 %v3955, 64
        %v4050 = vpop.permute.xlu0 %4049
        %4051 = vrot.lane.b32.xlu0 %v3956, 64
        %v4052 = vpop.permute.xlu0 %4051
        %v4085 = vmul.f32 %v3862, %v3990
        %v4086 = vmul.f32 %v3864, %v3992
        %v4087 = vmul.f32 %v3866, %v3994
        %v4088 = vmul.f32 %v3868, %v3996
        %v4089 = vmul.f32 %v3870, %v3998
        %v4090 = vmul.f32 %v3872, %v4000
        %v4091 = vmul.f32 %v3874, %v4002
        %v4092 = vmul.f32 %v3876, %v4004
        %v4093 = vmul.f32 %v3878, %v4006
        %v4094 = vmul.f32 %v3880, %v4008
        %v4095 = vmul.f32 %v3882, %v4010
        %v4096 = vmul.f32 %v3884, %v4012
        %v4097 = vmul.f32 %v3886, %v4014
        %v4098 = vmul.f32 %v3888, %v4016
        %v4099 = vmul.f32 %v3890, %v4018
        %v4100 = vmul.f32 %v3892, %v4020
        %v4101 = vmul.f32 %v3894, %v4022
        %v4102 = vmul.f32 %v3896, %v4024
        %v4103 = vmul.f32 %v3898, %v4026
        %v4104 = vmul.f32 %v3900, %v4028
        %v4105 = vmul.f32 %v3902, %v4030
        %v4106 = vmul.f32 %v3904, %v4032
        %v4107 = vmul.f32 %v3906, %v4034
        %v4108 = vmul.f32 %v3908, %v4036
        %v4109 = vmul.f32 %v3910, %v4038
        %v4110 = vmul.f32 %v3912, %v4040
        %v4111 = vmul.f32 %v3914, %v4042
        %v4112 = vmul.f32 %v3916, %v4044
        %v4113 = vmul.f32 %v3918, %v4046
        %v4114 = vmul.f32 %v3920, %v4048
        %v4115 = vmul.f32 %v3922, %v4050
        %v4116 = vmul.f32 %v3924, %v4052
        %v4117 = vtanh.pop %v4085
        %v4118 = vtanh.pop %v4086
        %v4119 = vtanh.pop %v4087
        %v4120 = vtanh.pop %v4088
        %v4121 = vtanh.pop %v4089
        %v4122 = vtanh.pop %v4090
        %v4123 = vtanh.pop %v4091
        %v4124 = vtanh.pop %v4092
        %v4125 = vtanh.pop %v4093
        %v4126 = vtanh.pop %v4094
        %v4127 = vtanh.pop %v4095
        %v4128 = vtanh.pop %v4096
        %v4129 = vtanh.pop %v4097
        %v4130 = vtanh.pop %v4098
        %v4131 = vtanh.pop %v4099
        %v4132 = vtanh.pop %v4100
        %v4133 = vtanh.pop %v4101
        %v4134 = vtanh.pop %v4102
        %v4135 = vtanh.pop %v4103
        %v4136 = vtanh.pop %v4104
        %v4137 = vtanh.pop %v4105
        %v4138 = vtanh.pop %v4106
        %v4139 = vtanh.pop %v4107
        %v4140 = vtanh.pop %v4108
        %v4141 = vtanh.pop %v4109
        %v4142 = vtanh.pop %v4110
        %v4143 = vtanh.pop %v4111
        %v4144 = vtanh.pop %v4112
        %v4145 = vtanh.pop %v4113
        %v4146 = vtanh.pop %v4114
        %v4147 = vtanh.pop %v4115
        %v4148 = vtanh.pop %v4116
        %4181 = vrot.lane.b32.xlu0 %v4117, 96
        %v4182 = vpop.permute.xlu0 %4181
        %4183 = vrot.lane.b32.xlu0 %v4118, 96
        %v4184 = vpop.permute.xlu0 %4183
        %4185 = vrot.lane.b32.xlu0 %v4119, 96
        %v4186 = vpop.permute.xlu0 %4185
        %4187 = vrot.lane.b32.xlu0 %v4120, 96
        %v4188 = vpop.permute.xlu0 %4187
        %4189 = vrot.lane.b32.xlu0 %v4121, 96
        %v4190 = vpop.permute.xlu0 %4189
        %4191 = vrot.lane.b32.xlu0 %v4122, 96
        %v4192 = vpop.permute.xlu0 %4191
        %4193 = vrot.lane.b32.xlu0 %v4123, 96
        %v4194 = vpop.permute.xlu0 %4193
        %4195 = vrot.lane.b32.xlu0 %v4124, 96
        %v4196 = vpop.permute.xlu0 %4195
        %4197 = vrot.lane.b32.xlu0 %v4125, 96
        %v4198 = vpop.permute.xlu0 %4197
        %4199 = vrot.lane.b32.xlu0 %v4126, 96
        %v4200 = vpop.permute.xlu0 %4199
        %4201 = vrot.lane.b32.xlu0 %v4127, 96
        %v4202 = vpop.permute.xlu0 %4201
        %4203 = vrot.lane.b32.xlu0 %v4128, 96
        %v4204 = vpop.permute.xlu0 %4203
        %4205 = vrot.lane.b32.xlu0 %v4129, 96
        %v4206 = vpop.permute.xlu0 %4205
        %4207 = vrot.lane.b32.xlu0 %v4130, 96
        %v4208 = vpop.permute.xlu0 %4207
        %4209 = vrot.lane.b32.xlu0 %v4131, 96
        %v4210 = vpop.permute.xlu0 %4209
        %4211 = vrot.lane.b32.xlu0 %v4132, 96
        %v4212 = vpop.permute.xlu0 %4211
        %4213 = vrot.lane.b32.xlu0 %v4133, 96
        %v4214 = vpop.permute.xlu0 %4213
        %4215 = vrot.lane.b32.xlu0 %v4134, 96
        %v4216 = vpop.permute.xlu0 %4215
        %4217 = vrot.lane.b32.xlu0 %v4135, 96
        %v4218 = vpop.permute.xlu0 %4217
        %4219 = vrot.lane.b32.xlu0 %v4136, 96
        %v4220 = vpop.permute.xlu0 %4219
        %4221 = vrot.lane.b32.xlu0 %v4137, 96
        %v4222 = vpop.permute.xlu0 %4221
        %4223 = vrot.lane.b32.xlu0 %v4138, 96
        %v4224 = vpop.permute.xlu0 %4223
        %4225 = vrot.lane.b32.xlu0 %v4139, 96
        %v4226 = vpop.permute.xlu0 %4225
        %4227 = vrot.lane.b32.xlu0 %v4140, 96
        %v4228 = vpop.permute.xlu0 %4227
        %4229 = vrot.lane.b32.xlu0 %v4141, 96
        %v4230 = vpop.permute.xlu0 %4229
        %4231 = vrot.lane.b32.xlu0 %v4142, 96
        %v4232 = vpop.permute.xlu0 %4231
        %4233 = vrot.lane.b32.xlu0 %v4143, 96
        %v4234 = vpop.permute.xlu0 %4233
        %4235 = vrot.lane.b32.xlu0 %v4144, 96
        %v4236 = vpop.permute.xlu0 %4235
        %4237 = vrot.lane.b32.xlu0 %v4145, 96
        %v4238 = vpop.permute.xlu0 %4237
        %4239 = vrot.lane.b32.xlu0 %v4146, 96
        %v4240 = vpop.permute.xlu0 %4239
        %4241 = vrot.lane.b32.xlu0 %v4147, 96
        %v4242 = vpop.permute.xlu0 %4241
        %4243 = vrot.lane.b32.xlu0 %v4148, 96
        %v4244 = vpop.permute.xlu0 %4243
        %v4277 = vmul.f32 %v3862, %v4182
        %v4278 = vmul.f32 %v3864, %v4184
        %v4279 = vmul.f32 %v3866, %v4186
        %v4280 = vmul.f32 %v3868, %v4188
        %v4281 = vmul.f32 %v3870, %v4190
        %v4282 = vmul.f32 %v3872, %v4192
        %v4283 = vmul.f32 %v3874, %v4194
        %v4284 = vmul.f32 %v3876, %v4196
        %v4285 = vmul.f32 %v3878, %v4198
        %v4286 = vmul.f32 %v3880, %v4200
        %v4287 = vmul.f32 %v3882, %v4202
        %v4288 = vmul.f32 %v3884, %v4204
        %v4289 = vmul.f32 %v3886, %v4206
        %v4290 = vmul.f32 %v3888, %v4208
        %v4291 = vmul.f32 %v3890, %v4210
        %v4292 = vmul.f32 %v3892, %v4212
        %v4293 = vmul.f32 %v3894, %v4214
        %v4294 = vmul.f32 %v3896, %v4216
        %v4295 = vmul.f32 %v3898, %v4218
        %v4296 = vmul.f32 %v3900, %v4220
        %v4297 = vmul.f32 %v3902, %v4222
        %v4298 = vmul.f32 %v3904, %v4224
        %v4299 = vmul.f32 %v3906, %v4226
        %v4300 = vmul.f32 %v3908, %v4228
        %v4301 = vmul.f32 %v3910, %v4230
        %v4302 = vmul.f32 %v3912, %v4232
        %v4303 = vmul.f32 %v3914, %v4234
        %v4304 = vmul.f32 %v3916, %v4236
        %v4305 = vmul.f32 %v3918, %v4238
        %v4306 = vmul.f32 %v3920, %v4240
        %v4307 = vmul.f32 %v3922, %v4242
        %v4308 = vmul.f32 %v3924, %v4244
        %v4309 = vadd.f32 %v1527, %v304
        %v4310 = vadd.f32 %v1531, %v304
        %v4311 = vadd.f32 %v1537, %v304
        %v4312 = vadd.f32 %v1541, %v304
        %v4313 = vadd.f32 %v1547, %v304
        %v4314 = vadd.f32 %v1551, %v304
        %v4315 = vadd.f32 %v1557, %v304
        %v4316 = vadd.f32 %v1561, %v304
        %v4317 = vadd.f32 %v1567, %v304
        %v4318 = vadd.f32 %v1571, %v304
        %v4319 = vadd.f32 %v1577, %v304
        %v4320 = vadd.f32 %v1581, %v304
        %v4321 = vadd.f32 %v1587, %v304
        %v4322 = vadd.f32 %v1591, %v304
        %v4323 = vadd.f32 %v1597, %v304
        %v4324 = vadd.f32 %v1601, %v304
        %v4325 = vadd.f32 %v1607, %v304
        %v4326 = vadd.f32 %v1611, %v304
        %v4327 = vadd.f32 %v1617, %v304
        %v4328 = vadd.f32 %v1621, %v304
        %v4329 = vadd.f32 %v1627, %v304
        %v4330 = vadd.f32 %v1631, %v304
        %v4331 = vadd.f32 %v1637, %v304
        %v4332 = vadd.f32 %v1641, %v304
        %v4333 = vadd.f32 %v1647, %v304
        %v4334 = vadd.f32 %v1651, %v304
        %v4335 = vadd.f32 %v1657, %v304
        %v4336 = vadd.f32 %v1661, %v304
        %v4337 = vadd.f32 %v1667, %v304
        %v4338 = vadd.f32 %v1671, %v304
        %v4339 = vadd.f32 %v1677, %v304
        %v4340 = vadd.f32 %v1681, %v304
        %v4341 = vpack.c.bf16 %v4278, %v4277
        %v4342 = vpack.c.bf16 %v4280, %v4279
        %v4343 = vpack.c.bf16 %v4282, %v4281
        %v4344 = vpack.c.bf16 %v4284, %v4283
        %v4345 = vpack.c.bf16 %v4286, %v4285
        %v4346 = vpack.c.bf16 %v4288, %v4287
        %v4347 = vpack.c.bf16 %v4290, %v4289
        %v4348 = vpack.c.bf16 %v4292, %v4291
        %v4349 = vpack.c.bf16 %v4294, %v4293
        %v4350 = vpack.c.bf16 %v4296, %v4295
        %v4351 = vpack.c.bf16 %v4298, %v4297
        %v4352 = vpack.c.bf16 %v4300, %v4299
        %v4353 = vpack.c.bf16 %v4302, %v4301
        %v4354 = vpack.c.bf16 %v4304, %v4303
        %v4355 = vpack.c.bf16 %v4306, %v4305
        %v4356 = vpack.c.bf16 %v4308, %v4307
        %v4357 = vld [vmem:[%s2 + $0x48] sm:$0xf]
        %v4358 = vld [vmem:[%s2 + $0x50] sm:$0xf]
        %v4359 = vld [vmem:[%s2 + $0x58] sm:$0xf]
        %v4360 = vld [vmem:[%s2 + $0x60] sm:$0xf]
        %4377 = vrot.lane.b32.xlu0 %v4341, 32
        %v4378 = vpop.permute.xlu0 %4377
        %4379 = vrot.lane.b32.xlu0 %v4342, 32
        %v4380 = vpop.permute.xlu0 %4379
        %4381 = vrot.lane.b32.xlu0 %v4343, 32
        %v4382 = vpop.permute.xlu0 %4381
        %4383 = vrot.lane.b32.xlu0 %v4344, 32
        %v4384 = vpop.permute.xlu0 %4383
        %4385 = vrot.lane.b32.xlu0 %v4345, 32
        %v4386 = vpop.permute.xlu0 %4385
        %4387 = vrot.lane.b32.xlu0 %v4346, 32
        %v4388 = vpop.permute.xlu0 %4387
        %4389 = vrot.lane.b32.xlu0 %v4347, 32
        %v4390 = vpop.permute.xlu0 %4389
        %4391 = vrot.lane.b32.xlu0 %v4348, 32
        %v4392 = vpop.permute.xlu0 %4391
        %4393 = vrot.lane.b32.xlu0 %v4349, 32
        %v4394 = vpop.permute.xlu0 %4393
        %4395 = vrot.lane.b32.xlu0 %v4350, 32
        %v4396 = vpop.permute.xlu0 %4395
        %4397 = vrot.lane.b32.xlu0 %v4351, 32
        %v4398 = vpop.permute.xlu0 %4397
        %4399 = vrot.lane.b32.xlu0 %v4352, 32
        %v4400 = vpop.permute.xlu0 %4399
        %4401 = vrot.lane.b32.xlu0 %v4353, 32
        %v4402 = vpop.permute.xlu0 %4401
        %4403 = vrot.lane.b32.xlu0 %v4354, 32
        %v4404 = vpop.permute.xlu0 %4403
        %4405 = vrot.lane.b32.xlu0 %v4355, 32
        %v4406 = vpop.permute.xlu0 %4405
        %4407 = vrot.lane.b32.xlu0 %v4356, 32
        %v4408 = vpop.permute.xlu0 %4407
        %v4413 = vunpack.c.l.b16 %v4357
        %v4414 = vunpack.c.l.b16 %v4358
        %v4415 = vunpack.c.l.b16 %v4359
        %v4416 = vunpack.c.l.b16 %v4360
        %v4417 = vpack.c.b16 %v4414, %v4413
        %v4418 = vpack.c.b16 %v4416, %v4415
        %v4422 = vsel %vm2563, %v4378, 0
        %v4425 = vsel %vm2563, %v4380, 0
        %v4428 = vsel %vm2563, %v4382, 0
        %v4431 = vsel %vm2563, %v4384, 0
        %v4434 = vsel %vm2563, %v4386, 0
        %v4437 = vsel %vm2563, %v4388, 0
        %v4440 = vsel %vm2563, %v4390, 0
        %v4443 = vsel %vm2563, %v4392, 0
        %v4446 = vsel %vm2563, %v4394, 0
        %v4449 = vsel %vm2563, %v4396, 0
        %v4452 = vsel %vm2563, %v4398, 0
        %v4455 = vsel %vm2563, %v4400, 0
        %v4458 = vsel %vm2563, %v4402, 0
        %v4461 = vsel %vm2563, %v4404, 0
        %v4464 = vsel %vm2563, %v4406, 0
        %v4467 = vsel %vm2563, %v4408, 0
        %4469 = vmatprep.subr.bf16.mxu0 0
        %4470 = vmatpush1.bf16.msra.mxu0 %v4417
        %4471 = vmatprep.subr.bf16.mxu0 0
        %4472 = vmatpush1.bf16.msra.mxu0 %v4418
        %4473 = vmatprep.subr.bf16.mxu0 0
        %4474 = vmatpush1.bf16.msra.mxu0 0
        %4475 = vmatprep.subr.bf16.mxu0 0
        %4476 = vmatpush1.bf16.msra.mxu0 0
        %4477 = vmatprep.subr.bf16.mxu0 0
        %4478 = vmatpush1.bf16.msra.mxu0 0
        %4479 = vmatprep.subr.bf16.mxu0 0
        %4480 = vmatpush1.bf16.msra.mxu0 0
        %4481 = vmatprep.subr.bf16.mxu0 0
        %4482 = vmatpush1.bf16.msra.mxu0 0
        %4483 = vmatprep.subr.bf16.mxu0 0
        %4484 = vmatpush1.bf16.msra.mxu0 0
        %4485 = vmatprep.subr.bf16.mxu0 0
        %4486 = vmatpush1.bf16.msra.mxu0 0
        %4487 = vmatprep.subr.bf16.mxu0 0
        %4488 = vmatpush1.bf16.msra.mxu0 0
        %4489 = vmatprep.subr.bf16.mxu0 0
        %4490 = vmatpush1.bf16.msra.mxu0 0
        %4491 = vmatprep.subr.bf16.mxu0 0
        %4492 = vmatpush1.bf16.msra.mxu0 0
        %4493 = vmatprep.subr.bf16.mxu0 0
        %4494 = vmatpush1.bf16.msra.mxu0 0
        %4495 = vmatprep.subr.bf16.mxu0 0
        %4496 = vmatpush1.bf16.msra.mxu0 0
        %4497 = vmatprep.subr.bf16.mxu0 0
        %4498 = vmatpush1.bf16.msra.mxu0 0
        %4499 = vmatprep.subr.bf16.mxu0 0
        %4500 = vmatpush1.bf16.msra.mxu0 0
        %4501 = vmatprep.mubr.bf16.mxu0 0
        %4502 = vmatmul.mubr.bf16.gmra.mrb[0].mxu0 %v4422
        %v4503 = vpop.f32.mrb[0].mxu0
        %v4504 = vadd.f32 0.0, %v4503
        %v4505 = vpop.f32.mrb[0].mxu0
        %v4506 = vpop.f32.mrb[0].mxu0
        %v4507 = vadd.f32 0.0, %v4506
        %v4508 = vpop.f32.mrb[0].mxu0
        %4509 = vmatprep.mubr.bf16.mxu0 0
        %4510 = vmatmul.mubr.bf16.gmra.mrb[0].mxu0 %v4425
        %v4511 = vpop.f32.mrb[0].mxu0
        %v4512 = vadd.f32 0.0, %v4511
        %v4513 = vpop.f32.mrb[0].mxu0
        %v4514 = vpop.f32.mrb[0].mxu0
        %v4515 = vadd.f32 0.0, %v4514
        %v4516 = vpop.f32.mrb[0].mxu0
        %4517 = vmatprep.mubr.bf16.mxu0 0
        %4518 = vmatmul.mubr.bf16.gmra.mrb[0].mxu0 %v4428
        %v4519 = vpop.f32.mrb[0].mxu0
        %v4520 = vadd.f32 0.0, %v4519
        %v4521 = vpop.f32.mrb[0].mxu0
        %v4522 = vpop.f32.mrb[0].mxu0
        %v4523 = vadd.f32 0.0, %v4522
        %v4524 = vpop.f32.mrb[0].mxu0
        %4525 = vmatprep.mubr.bf16.mxu0 0
        %4526 = vmatmul.mubr.bf16.gmra.mrb[0].mxu0 %v4431
        %v4527 = vpop.f32.mrb[0].mxu0
        %v4528 = vadd.f32 0.0, %v4527
        %v4529 = vpop.f32.mrb[0].mxu0
        %v4530 = vpop.f32.mrb[0].mxu0
        %v4531 = vadd.f32 0.0, %v4530
        %v4532 = vpop.f32.mrb[0].mxu0
        %4533 = vmatprep.mubr.bf16.mxu0 0
        %4534 = vmatmul.mubr.bf16.gmra.mrb[0].mxu0 %v4434
        %v4535 = vpop.f32.mrb[0].mxu0
        %v4536 = vadd.f32 0.0, %v4535
        %v4537 = vpop.f32.mrb[0].mxu0
        %v4538 = vpop.f32.mrb[0].mxu0
        %v4539 = vadd.f32 0.0, %v4538
        %v4540 = vpop.f32.mrb[0].mxu0
        %4541 = vmatprep.mubr.bf16.mxu0 0
        %4542 = vmatmul.mubr.bf16.gmra.mrb[0].mxu0 %v4437
        %v4543 = vpop.f32.mrb[0].mxu0
        %v4544 = vadd.f32 0.0, %v4543
        %v4545 = vpop.f32.mrb[0].mxu0
        %v4546 = vpop.f32.mrb[0].mxu0
        %v4547 = vadd.f32 0.0, %v4546
        %v4548 = vpop.f32.mrb[0].mxu0
        %4549 = vmatprep.mubr.bf16.mxu0 0
        %4550 = vmatmul.mubr.bf16.gmra.mrb[0].mxu0 %v4440
        %v4551 = vpop.f32.mrb[0].mxu0
        %v4552 = vadd.f32 0.0, %v4551
        %v4553 = vpop.f32.mrb[0].mxu0
        %v4554 = vpop.f32.mrb[0].mxu0
        %v4555 = vadd.f32 0.0, %v4554
        %v4556 = vpop.f32.mrb[0].mxu0
        %4557 = vmatprep.mubr.bf16.mxu0 0
        %4558 = vmatmul.mubr.bf16.gmra.mrb[0].mxu0 %v4443
        %v4559 = vpop.f32.mrb[0].mxu0
        %v4560 = vadd.f32 0.0, %v4559
        %v4561 = vpop.f32.mrb[0].mxu0
        %v4562 = vpop.f32.mrb[0].mxu0
        %v4563 = vadd.f32 0.0, %v4562
        %v4564 = vpop.f32.mrb[0].mxu0
        %4565 = vmatprep.mubr.bf16.mxu0 0
        %4566 = vmatmul.mubr.bf16.gmra.mrb[0].mxu0 %v4446
        %v4567 = vpop.f32.mrb[0].mxu0
        %v4568 = vadd.f32 0.0, %v4567
        %v4569 = vpop.f32.mrb[0].mxu0
        %v4570 = vpop.f32.mrb[0].mxu0
        %v4571 = vadd.f32 0.0, %v4570
        %v4572 = vpop.f32.mrb[0].mxu0
        %4573 = vmatprep.mubr.bf16.mxu0 0
        %4574 = vmatmul.mubr.bf16.gmra.mrb[0].mxu0 %v4449
        %v4575 = vpop.f32.mrb[0].mxu0
        %v4576 = vadd.f32 0.0, %v4575
        %v4577 = vpop.f32.mrb[0].mxu0
        %v4578 = vpop.f32.mrb[0].mxu0
        %v4579 = vadd.f32 0.0, %v4578
        %v4580 = vpop.f32.mrb[0].mxu0
        %4581 = vmatprep.mubr.bf16.mxu0 0
        %4582 = vmatmul.mubr.bf16.gmra.mrb[0].mxu0 %v4452
        %v4583 = vpop.f32.mrb[0].mxu0
        %v4584 = vadd.f32 0.0, %v4583
        %v4585 = vpop.f32.mrb[0].mxu0
        %v4586 = vpop.f32.mrb[0].mxu0
        %v4587 = vadd.f32 0.0, %v4586
        %v4588 = vpop.f32.mrb[0].mxu0
        %4589 = vmatprep.mubr.bf16.mxu0 0
        %4590 = vmatmul.mubr.bf16.gmra.mrb[0].mxu0 %v4455
        %v4591 = vpop.f32.mrb[0].mxu0
        %v4592 = vadd.f32 0.0, %v4591
        %v4593 = vpop.f32.mrb[0].mxu0
        %v4594 = vpop.f32.mrb[0].mxu0
        %v4595 = vadd.f32 0.0, %v4594
        %v4596 = vpop.f32.mrb[0].mxu0
        %4597 = vmatprep.mubr.bf16.mxu0 0
        %4598 = vmatmul.mubr.bf16.gmra.mrb[0].mxu0 %v4458
        %v4599 = vpop.f32.mrb[0].mxu0
        %v4600 = vadd.f32 0.0, %v4599
        %v4601 = vpop.f32.mrb[0].mxu0
        %v4602 = vpop.f32.mrb[0].mxu0
        %v4603 = vadd.f32 0.0, %v4602
        %v4604 = vpop.f32.mrb[0].mxu0
        %4605 = vmatprep.mubr.bf16.mxu0 0
        %4606 = vmatmul.mubr.bf16.gmra.mrb[0].mxu0 %v4461
        %v4607 = vpop.f32.mrb[0].mxu0
        %v4608 = vadd.f32 0.0, %v4607
        %v4609 = vpop.f32.mrb[0].mxu0
        %v4610 = vpop.f32.mrb[0].mxu0
        %v4611 = vadd.f32 0.0, %v4610
        %v4612 = vpop.f32.mrb[0].mxu0
        %4613 = vmatprep.mubr.bf16.mxu0 0
        %4614 = vmatmul.mubr.bf16.gmra.mrb[0].mxu0 %v4464
        %v4615 = vpop.f32.mrb[0].mxu0
        %v4616 = vadd.f32 0.0, %v4615
        %v4617 = vpop.f32.mrb[0].mxu0
        %v4618 = vpop.f32.mrb[0].mxu0
        %v4619 = vadd.f32 0.0, %v4618
        %v4620 = vpop.f32.mrb[0].mxu0
        %4621 = vmatprep.mubr.bf16.mxu0 0
        %4622 = vmatmul.mubr.bf16.gmra.mrb[0].mxu0 %v4467
        %v4623 = vpop.f32.mrb[0].mxu0
        %v4624 = vadd.f32 0.0, %v4623
        %v4625 = vpop.f32.mrb[0].mxu0
        %v4626 = vpop.f32.mrb[0].mxu0
        %v4627 = vadd.f32 0.0, %v4626
        %v4628 = vpop.f32.mrb[0].mxu0
        %4629 = vdwg.mxu0
        %v4630 = vadd.f32 %v4309, %v4504
        %v4631 = vadd.f32 %v4310, %v4507
        %v4632 = vadd.f32 %v4311, %v4512
        %v4633 = vadd.f32 %v4312, %v4515
        %v4634 = vadd.f32 %v4313, %v4520
        %v4635 = vadd.f32 %v4314, %v4523
        %v4636 = vadd.f32 %v4315, %v4528
        %v4637 = vadd.f32 %v4316, %v4531
        %v4638 = vadd.f32 %v4317, %v4536
        %v4639 = vadd.f32 %v4318, %v4539
        %v4640 = vadd.f32 %v4319, %v4544
        %v4641 = vadd.f32 %v4320, %v4547
        %v4642 = vadd.f32 %v4321, %v4552
        %v4643 = vadd.f32 %v4322, %v4555
        %v4644 = vadd.f32 %v4323, %v4560
        %v4645 = vadd.f32 %v4324, %v4563
        %v4646 = vadd.f32 %v4325, %v4568
        %v4647 = vadd.f32 %v4326, %v4571
        %v4648 = vadd.f32 %v4327, %v4576
        %v4649 = vadd.f32 %v4328, %v4579
        %v4650 = vadd.f32 %v4329, %v4584
        %v4651 = vadd.f32 %v4330, %v4587
        %v4652 = vadd.f32 %v4331, %v4592
        %v4653 = vadd.f32 %v4332, %v4595
        %v4654 = vadd.f32 %v4333, %v4600
        %v4655 = vadd.f32 %v4334, %v4603
        %v4656 = vadd.f32 %v4335, %v4608
        %v4657 = vadd.f32 %v4336, %v4611
        %v4658 = vadd.f32 %v4337, %v4616
        %v4659 = vadd.f32 %v4338, %v4619
        %v4660 = vadd.f32 %v4339, %v4624
        %v4661 = vadd.f32 %v4340, %v4627
        %v4662 = vxor.u32 %v4630, 2147483648
        %v4663 = vxor.u32 %v4631, 2147483648
        %v4664 = vxor.u32 %v4632, 2147483648
        %v4665 = vxor.u32 %v4633, 2147483648
        %v4666 = vxor.u32 %v4634, 2147483648
        %v4667 = vxor.u32 %v4635, 2147483648
        %v4668 = vxor.u32 %v4636, 2147483648
        %v4669 = vxor.u32 %v4637, 2147483648
        %v4670 = vxor.u32 %v4638, 2147483648
        %v4671 = vxor.u32 %v4639, 2147483648
        %v4672 = vxor.u32 %v4640, 2147483648
        %v4673 = vxor.u32 %v4641, 2147483648
        %v4674 = vxor.u32 %v4642, 2147483648
        %v4675 = vxor.u32 %v4643, 2147483648
        %v4676 = vxor.u32 %v4644, 2147483648
        %v4677 = vxor.u32 %v4645, 2147483648
        %v4678 = vxor.u32 %v4646, 2147483648
        %v4679 = vxor.u32 %v4647, 2147483648
        %v4680 = vxor.u32 %v4648, 2147483648
        %v4681 = vxor.u32 %v4649, 2147483648
        %v4682 = vxor.u32 %v4650, 2147483648
        %v4683 = vxor.u32 %v4651, 2147483648
        %v4684 = vxor.u32 %v4652, 2147483648
        %v4685 = vxor.u32 %v4653, 2147483648
        %v4686 = vxor.u32 %v4654, 2147483648
        %v4687 = vxor.u32 %v4655, 2147483648
        %v4688 = vxor.u32 %v4656, 2147483648
        %v4689 = vxor.u32 %v4657, 2147483648
        %v4690 = vxor.u32 %v4658, 2147483648
        %v4691 = vxor.u32 %v4659, 2147483648
        %v4692 = vxor.u32 %v4660, 2147483648
        %v4693 = vxor.u32 %v4661, 2147483648
        %v4694 = vmul.f32 %v4662, 1.442695
        %v4695 = vpow.pop %v4694
        %v4696 = vmul.f32 %v4663, 1.442695
        %v4697 = vpow.pop %v4696
        %v4698 = vmul.f32 %v4664, 1.442695
        %v4699 = vpow.pop %v4698
        %v4700 = vmul.f32 %v4665, 1.442695
        %v4701 = vpow.pop %v4700
        %v4702 = vmul.f32 %v4666, 1.442695
        %v4703 = vpow.pop %v4702
        %v4704 = vmul.f32 %v4667, 1.442695
        %v4705 = vpow.pop %v4704
        %v4706 = vmul.f32 %v4668, 1.442695
        %v4707 = vpow.pop %v4706
        %v4708 = vmul.f32 %v4669, 1.442695
        %v4709 = vpow.pop %v4708
        %v4710 = vmul.f32 %v4670, 1.442695
        %v4711 = vpow.pop %v4710
        %v4712 = vmul.f32 %v4671, 1.442695
        %v4713 = vpow.pop %v4712
        %v4714 = vmul.f32 %v4672, 1.442695
        %v4715 = vpow.pop %v4714
        %v4716 = vmul.f32 %v4673, 1.442695
        %v4717 = vpow.pop %v4716
        %v4718 = vmul.f32 %v4674, 1.442695
        %v4719 = vpow.pop %v4718
        %v4720 = vmul.f32 %v4675, 1.442695
        %v4721 = vpow.pop %v4720
        %v4722 = vmul.f32 %v4676, 1.442695
        %v4723 = vpow.pop %v4722
        %v4724 = vmul.f32 %v4677, 1.442695
        %v4725 = vpow.pop %v4724
        %v4726 = vmul.f32 %v4678, 1.442695
        %v4727 = vpow.pop %v4726
        %v4728 = vmul.f32 %v4679, 1.442695
        %v4729 = vpow.pop %v4728
        %v4730 = vmul.f32 %v4680, 1.442695
        %v4731 = vpow.pop %v4730
        %v4732 = vmul.f32 %v4681, 1.442695
        %v4733 = vpow.pop %v4732
        %v4734 = vmul.f32 %v4682, 1.442695
        %v4735 = vpow.pop %v4734
        %v4736 = vmul.f32 %v4683, 1.442695
        %v4737 = vpow.pop %v4736
        %v4738 = vmul.f32 %v4684, 1.442695
        %v4739 = vpow.pop %v4738
        %v4740 = vmul.f32 %v4685, 1.442695
        %v4741 = vpow.pop %v4740
        %v4742 = vmul.f32 %v4686, 1.442695
        %v4743 = vpow.pop %v4742
        %v4744 = vmul.f32 %v4687, 1.442695
        %v4745 = vpow.pop %v4744
        %v4746 = vmul.f32 %v4688, 1.442695
        %v4747 = vpow.pop %v4746
        %v4748 = vmul.f32 %v4689, 1.442695
        %v4749 = vpow.pop %v4748
        %v4750 = vmul.f32 %v4690, 1.442695
        %v4751 = vpow.pop %v4750
        %v4752 = vmul.f32 %v4691, 1.442695
        %v4753 = vpow.pop %v4752
        %v4754 = vmul.f32 %v4692, 1.442695
        %v4755 = vpow.pop %v4754
        %v4756 = vmul.f32 %v4693, 1.442695
        %v4757 = vpow.pop %v4756
        %v4758 = vadd.f32 %v4695, 1.0
        %v4759 = vadd.f32 %v4697, 1.0
        %v4760 = vadd.f32 %v4699, 1.0
        %v4761 = vadd.f32 %v4701, 1.0
        %v4762 = vadd.f32 %v4703, 1.0
        %v4763 = vadd.f32 %v4705, 1.0
        %v4764 = vadd.f32 %v4707, 1.0
        %v4765 = vadd.f32 %v4709, 1.0
        %v4766 = vadd.f32 %v4711, 1.0
        %v4767 = vadd.f32 %v4713, 1.0
        %v4768 = vadd.f32 %v4715, 1.0
        %v4769 = vadd.f32 %v4717, 1.0
        %v4770 = vadd.f32 %v4719, 1.0
        %v4771 = vadd.f32 %v4721, 1.0
        %v4772 = vadd.f32 %v4723, 1.0
        %v4773 = vadd.f32 %v4725, 1.0
        %v4774 = vadd.f32 %v4727, 1.0
        %v4775 = vadd.f32 %v4729, 1.0
        %v4776 = vadd.f32 %v4731, 1.0
        %v4777 = vadd.f32 %v4733, 1.0
        %v4778 = vadd.f32 %v4735, 1.0
        %v4779 = vadd.f32 %v4737, 1.0
        %v4780 = vadd.f32 %v4739, 1.0
        %v4781 = vadd.f32 %v4741, 1.0
        %v4782 = vadd.f32 %v4743, 1.0
        %v4783 = vadd.f32 %v4745, 1.0
        %v4784 = vadd.f32 %v4747, 1.0
        %v4785 = vadd.f32 %v4749, 1.0
        %v4786 = vadd.f32 %v4751, 1.0
        %v4787 = vadd.f32 %v4753, 1.0
        %v4788 = vadd.f32 %v4755, 1.0
        %v4789 = vadd.f32 %v4757, 1.0
        %v4790 = vrcp.pop %v4758
        %v4791 = vmul.f32 1.0, %v4790
        %v4792 = vrcp.pop %v4759
        %v4793 = vmul.f32 1.0, %v4792
        %v4794 = vrcp.pop %v4760
        %v4795 = vmul.f32 1.0, %v4794
        %v4796 = vrcp.pop %v4761
        %v4797 = vmul.f32 1.0, %v4796
        %v4798 = vrcp.pop %v4762
        %v4799 = vmul.f32 1.0, %v4798
        %v4800 = vrcp.pop %v4763
        %v4801 = vmul.f32 1.0, %v4800
        %v4802 = vrcp.pop %v4764
        %v4803 = vmul.f32 1.0, %v4802
        %v4804 = vrcp.pop %v4765
        %v4805 = vmul.f32 1.0, %v4804
        %v4806 = vrcp.pop %v4766
        %v4807 = vmul.f32 1.0, %v4806
        %v4808 = vrcp.pop %v4767
        %v4809 = vmul.f32 1.0, %v4808
        %v4810 = vrcp.pop %v4768
        %v4811 = vmul.f32 1.0, %v4810
        %v4812 = vrcp.pop %v4769
        %v4813 = vmul.f32 1.0, %v4812
        %v4814 = vrcp.pop %v4770
        %v4815 = vmul.f32 1.0, %v4814
        %v4816 = vrcp.pop %v4771
        %v4817 = vmul.f32 1.0, %v4816
        %v4818 = vrcp.pop %v4772
        %v4819 = vmul.f32 1.0, %v4818
        %v4820 = vrcp.pop %v4773
        %v4821 = vmul.f32 1.0, %v4820
        %v4822 = vrcp.pop %v4774
        %v4823 = vmul.f32 1.0, %v4822
        %v4824 = vrcp.pop %v4775
        %v4825 = vmul.f32 1.0, %v4824
        %v4826 = vrcp.pop %v4776
        %v4827 = vmul.f32 1.0, %v4826
        %v4828 = vrcp.pop %v4777
        %v4829 = vmul.f32 1.0, %v4828
        %v4830 = vrcp.pop %v4778
        %v4831 = vmul.f32 1.0, %v4830
        %v4832 = vrcp.pop %v4779
        %v4833 = vmul.f32 1.0, %v4832
        %v4834 = vrcp.pop %v4780
        %v4835 = vmul.f32 1.0, %v4834
        %v4836 = vrcp.pop %v4781
        %v4837 = vmul.f32 1.0, %v4836
        %v4838 = vrcp.pop %v4782
        %v4839 = vmul.f32 1.0, %v4838
        %v4840 = vrcp.pop %v4783
        %v4841 = vmul.f32 1.0, %v4840
        %v4842 = vrcp.pop %v4784
        %v4843 = vmul.f32 1.0, %v4842
        %v4844 = vrcp.pop %v4785
        %v4845 = vmul.f32 1.0, %v4844
        %v4846 = vrcp.pop %v4786
        %v4847 = vmul.f32 1.0, %v4846
        %v4848 = vrcp.pop %v4787
        %v4849 = vmul.f32 1.0, %v4848
        %v4850 = vrcp.pop %v4788
        %v4851 = vmul.f32 1.0, %v4850
        %v4852 = vrcp.pop %v4789
        %v4853 = vmul.f32 1.0, %v4852
        %v4854 = vtanh.pop %v4630
        %v4855 = vtanh.pop %v4631
        %v4856 = vtanh.pop %v4632
        %v4857 = vtanh.pop %v4633
        %v4858 = vtanh.pop %v4634
        %v4859 = vtanh.pop %v4635
        %v4860 = vtanh.pop %v4636
        %v4861 = vtanh.pop %v4637
        %v4862 = vtanh.pop %v4638
        %v4863 = vtanh.pop %v4639
        %v4864 = vtanh.pop %v4640
        %v4865 = vtanh.pop %v4641
        %v4866 = vtanh.pop %v4642
        %v4867 = vtanh.pop %v4643
        %v4868 = vtanh.pop %v4644
        %v4869 = vtanh.pop %v4645
        %v4870 = vtanh.pop %v4646
        %v4871 = vtanh.pop %v4647
        %v4872 = vtanh.pop %v4648
        %v4873 = vtanh.pop %v4649
        %v4874 = vtanh.pop %v4650
        %v4875 = vtanh.pop %v4651
        %v4876 = vtanh.pop %v4652
        %v4877 = vtanh.pop %v4653
        %v4878 = vtanh.pop %v4654
        %v4879 = vtanh.pop %v4655
        %v4880 = vtanh.pop %v4656
        %v4881 = vtanh.pop %v4657
        %v4882 = vtanh.pop %v4658
        %v4883 = vtanh.pop %v4659
        %v4884 = vtanh.pop %v4660
        %v4885 = vtanh.pop %v4661
        %4918 = vrot.lane.b32.xlu0 %v4085, 32
        %v4919 = vpop.permute.xlu0 %4918
        %4920 = vrot.lane.b32.xlu0 %v4086, 32
        %v4921 = vpop.permute.xlu0 %4920
        %4922 = vrot.lane.b32.xlu0 %v4087, 32
        %v4923 = vpop.permute.xlu0 %4922
        %4924 = vrot.lane.b32.xlu0 %v4088, 32
        %v4925 = vpop.permute.xlu0 %4924
        %4926 = vrot.lane.b32.xlu0 %v4089, 32
        %v4927 = vpop.permute.xlu0 %4926
        %4928 = vrot.lane.b32.xlu0 %v4090, 32
        %v4929 = vpop.permute.xlu0 %4928
        %4930 = vrot.lane.b32.xlu0 %v4091, 32
        %v4931 = vpop.permute.xlu0 %4930
        %4932 = vrot.lane.b32.xlu0 %v4092, 32
        %v4933 = vpop.permute.xlu0 %4932
        %4934 = vrot.lane.b32.xlu0 %v4093, 32
        %v4935 = vpop.permute.xlu0 %4934
        %4936 = vrot.lane.b32.xlu0 %v4094, 32
        %v4937 = vpop.permute.xlu0 %4936
        %4938 = vrot.lane.b32.xlu0 %v4095, 32
        %v4939 = vpop.permute.xlu0 %4938
        %4940 = vrot.lane.b32.xlu0 %v4096, 32
        %v4941 = vpop.permute.xlu0 %4940
        %4942 = vrot.lane.b32.xlu0 %v4097, 32
        %v4943 = vpop.permute.xlu0 %4942
        %4944 = vrot.lane.b32.xlu0 %v4098, 32
        %v4945 = vpop.permute.xlu0 %4944
        %4946 = vrot.lane.b32.xlu0 %v4099, 32
        %v4947 = vpop.permute.xlu0 %4946
        %4948 = vrot.lane.b32.xlu0 %v4100, 32
        %v4949 = vpop.permute.xlu0 %4948
        %4950 = vrot.lane.b32.xlu0 %v4101, 32
        %v4951 = vpop.permute.xlu0 %4950
        %4952 = vrot.lane.b32.xlu0 %v4102, 32
        %v4953 = vpop.permute.xlu0 %4952
        %4954 = vrot.lane.b32.xlu0 %v4103, 32
        %v4955 = vpop.permute.xlu0 %4954
        %4956 = vrot.lane.b32.xlu0 %v4104, 32
        %v4957 = vpop.permute.xlu0 %4956
        %4958 = vrot.lane.b32.xlu0 %v4105, 32
        %v4959 = vpop.permute.xlu0 %4958
        %4960 = vrot.lane.b32.xlu0 %v4106, 32
        %v4961 = vpop.permute.xlu0 %4960
        %4962 = vrot.lane.b32.xlu0 %v4107, 32
        %v4963 = vpop.permute.xlu0 %4962
        %4964 = vrot.lane.b32.xlu0 %v4108, 32
        %v4965 = vpop.permute.xlu0 %4964
        %4966 = vrot.lane.b32.xlu0 %v4109, 32
        %v4967 = vpop.permute.xlu0 %4966
        %4968 = vrot.lane.b32.xlu0 %v4110, 32
        %v4969 = vpop.permute.xlu0 %4968
        %4970 = vrot.lane.b32.xlu0 %v4111, 32
        %v4971 = vpop.permute.xlu0 %4970
        %4972 = vrot.lane.b32.xlu0 %v4112, 32
        %v4973 = vpop.permute.xlu0 %4972
        %4974 = vrot.lane.b32.xlu0 %v4113, 32
        %v4975 = vpop.permute.xlu0 %4974
        %4976 = vrot.lane.b32.xlu0 %v4114, 32
        %v4977 = vpop.permute.xlu0 %4976
        %4978 = vrot.lane.b32.xlu0 %v4115, 32
        %v4979 = vpop.permute.xlu0 %4978
        %4980 = vrot.lane.b32.xlu0 %v4116, 32
        %v4981 = vpop.permute.xlu0 %4980
        %v5014 = vmul.f32 %v4791, %v4919
        %v5015 = vmul.f32 %v4793, %v4921
        %v5016 = vmul.f32 %v4795, %v4923
        %v5017 = vmul.f32 %v4797, %v4925
        %v5018 = vmul.f32 %v4799, %v4927
        %v5019 = vmul.f32 %v4801, %v4929
        %v5020 = vmul.f32 %v4803, %v4931
        %v5021 = vmul.f32 %v4805, %v4933
        %v5022 = vmul.f32 %v4807, %v4935
        %v5023 = vmul.f32 %v4809, %v4937
        %v5024 = vmul.f32 %v4811, %v4939
        %v5025 = vmul.f32 %v4813, %v4941
        %v5026 = vmul.f32 %v4815, %v4943
        %v5027 = vmul.f32 %v4817, %v4945
        %v5028 = vmul.f32 %v4819, %v4947
        %v5029 = vmul.f32 %v4821, %v4949
        %v5030 = vmul.f32 %v4823, %v4951
        %v5031 = vmul.f32 %v4825, %v4953
        %v5032 = vmul.f32 %v4827, %v4955
        %v5033 = vmul.f32 %v4829, %v4957
        %v5034 = vmul.f32 %v4831, %v4959
        %v5035 = vmul.f32 %v4833, %v4961
        %v5036 = vmul.f32 %v4835, %v4963
        %v5037 = vmul.f32 %v4837, %v4965
        %v5038 = vmul.f32 %v4839, %v4967
        %v5039 = vmul.f32 %v4841, %v4969
        %v5040 = vmul.f32 %v4843, %v4971
        %v5041 = vmul.f32 %v4845, %v4973
        %v5042 = vmul.f32 %v4847, %v4975
        %v5043 = vmul.f32 %v4849, %v4977
        %v5044 = vmul.f32 %v4851, %v4979
        %v5045 = vmul.f32 %v4853, %v4981
        %5078 = vrot.lane.b32.xlu0 %v4854, 64
        %v5079 = vpop.permute.xlu0 %5078
        %5080 = vrot.lane.b32.xlu0 %v4855, 64
        %v5081 = vpop.permute.xlu0 %5080
        %5082 = vrot.lane.b32.xlu0 %v4856, 64
        %v5083 = vpop.permute.xlu0 %5082
        %5084 = vrot.lane.b32.xlu0 %v4857, 64
        %v5085 = vpop.permute.xlu0 %5084
        %5086 = vrot.lane.b32.xlu0 %v4858, 64
        %v5087 = vpop.permute.xlu0 %5086
        %5088 = vrot.lane.b32.xlu0 %v4859, 64
        %v5089 = vpop.permute.xlu0 %5088
        %5090 = vrot.lane.b32.xlu0 %v4860, 64
        %v5091 = vpop.permute.xlu0 %5090
        %5092 = vrot.lane.b32.xlu0 %v4861, 64
        %v5093 = vpop.permute.xlu0 %5092
        %5094 = vrot.lane.b32.xlu0 %v4862, 64
        %v5095 = vpop.permute.xlu0 %5094
        %5096 = vrot.lane.b32.xlu0 %v4863, 64
        %v5097 = vpop.permute.xlu0 %5096
        %5098 = vrot.lane.b32.xlu0 %v4864, 64
        %v5099 = vpop.permute.xlu0 %5098
        %5100 = vrot.lane.b32.xlu0 %v4865, 64
        %v5101 = vpop.permute.xlu0 %5100
        %5102 = vrot.lane.b32.xlu0 %v4866, 64
        %v5103 = vpop.permute.xlu0 %5102
        %5104 = vrot.lane.b32.xlu0 %v4867, 64
        %v5105 = vpop.permute.xlu0 %5104
        %5106 = vrot.lane.b32.xlu0 %v4868, 64
        %v5107 = vpop.permute.xlu0 %5106
        %5108 = vrot.lane.b32.xlu0 %v4869, 64
        %v5109 = vpop.permute.xlu0 %5108
        %5110 = vrot.lane.b32.xlu0 %v4870, 64
        %v5111 = vpop.permute.xlu0 %5110
        %5112 = vrot.lane.b32.xlu0 %v4871, 64
        %v5113 = vpop.permute.xlu0 %5112
        %5114 = vrot.lane.b32.xlu0 %v4872, 64
        %v5115 = vpop.permute.xlu0 %5114
        %5116 = vrot.lane.b32.xlu0 %v4873, 64
        %v5117 = vpop.permute.xlu0 %5116
        %5118 = vrot.lane.b32.xlu0 %v4874, 64
        %v5119 = vpop.permute.xlu0 %5118
        %5120 = vrot.lane.b32.xlu0 %v4875, 64
        %v5121 = vpop.permute.xlu0 %5120
        %5122 = vrot.lane.b32.xlu0 %v4876, 64
        %v5123 = vpop.permute.xlu0 %5122
        %5124 = vrot.lane.b32.xlu0 %v4877, 64
        %v5125 = vpop.permute.xlu0 %5124
        %5126 = vrot.lane.b32.xlu0 %v4878, 64
        %v5127 = vpop.permute.xlu0 %5126
        %5128 = vrot.lane.b32.xlu0 %v4879, 64
        %v5129 = vpop.permute.xlu0 %5128
        %5130 = vrot.lane.b32.xlu0 %v4880, 64
        %v5131 = vpop.permute.xlu0 %5130
        %5132 = vrot.lane.b32.xlu0 %v4881, 64
        %v5133 = vpop.permute.xlu0 %5132
        %5134 = vrot.lane.b32.xlu0 %v4882, 64
        %v5135 = vpop.permute.xlu0 %5134
        %5136 = vrot.lane.b32.xlu0 %v4883, 64
        %v5137 = vpop.permute.xlu0 %5136
        %5138 = vrot.lane.b32.xlu0 %v4884, 64
        %v5139 = vpop.permute.xlu0 %5138
        %5140 = vrot.lane.b32.xlu0 %v4885, 64
        %v5141 = vpop.permute.xlu0 %5140
        %v5174 = vmul.f32 %v4791, %v5079
        %v5175 = vmul.f32 %v4793, %v5081
        %v5176 = vmul.f32 %v4795, %v5083
        %v5177 = vmul.f32 %v4797, %v5085
        %v5178 = vmul.f32 %v4799, %v5087
        %v5179 = vmul.f32 %v4801, %v5089
        %v5180 = vmul.f32 %v4803, %v5091
        %v5181 = vmul.f32 %v4805, %v5093
        %v5182 = vmul.f32 %v4807, %v5095
        %v5183 = vmul.f32 %v4809, %v5097
        %v5184 = vmul.f32 %v4811, %v5099
        %v5185 = vmul.f32 %v4813, %v5101
        %v5186 = vmul.f32 %v4815, %v5103
        %v5187 = vmul.f32 %v4817, %v5105
        %v5188 = vmul.f32 %v4819, %v5107
        %v5189 = vmul.f32 %v4821, %v5109
        %v5190 = vmul.f32 %v4823, %v5111
        %v5191 = vmul.f32 %v4825, %v5113
        %v5192 = vmul.f32 %v4827, %v5115
        %v5193 = vmul.f32 %v4829, %v5117
        %v5194 = vmul.f32 %v4831, %v5119
        %v5195 = vmul.f32 %v4833, %v5121
        %v5196 = vmul.f32 %v4835, %v5123
        %v5197 = vmul.f32 %v4837, %v5125
        %v5198 = vmul.f32 %v4839, %v5127
        %v5199 = vmul.f32 %v4841, %v5129
        %v5200 = vmul.f32 %v4843, %v5131
        %v5201 = vmul.f32 %v4845, %v5133
        %v5202 = vmul.f32 %v4847, %v5135
        %v5203 = vmul.f32 %v4849, %v5137
        %v5204 = vmul.f32 %v4851, %v5139
        %v5205 = vmul.f32 %v4853, %v5141
        %5238 = vrot.lane.b32.xlu0 %v5174, 32
        %v5239 = vpop.permute.xlu0 %5238
        %5240 = vrot.lane.b32.xlu0 %v5175, 32
        %v5241 = vpop.permute.xlu0 %5240
        %5242 = vrot.lane.b32.xlu0 %v5176, 32
        %v5243 = vpop.permute.xlu0 %5242
        %5244 = vrot.lane.b32.xlu0 %v5177, 32
        %v5245 = vpop.permute.xlu0 %5244
        %5246 = vrot.lane.b32.xlu0 %v5178, 32
        %v5247 = vpop.permute.xlu0 %5246
        %5248 = vrot.lane.b32.xlu0 %v5179, 32
        %v5249 = vpop.permute.xlu0 %5248
        %5250 = vrot.lane.b32.xlu0 %v5180, 32
        %v5251 = vpop.permute.xlu0 %5250
        %5252 = vrot.lane.b32.xlu0 %v5181, 32
        %v5253 = vpop.permute.xlu0 %5252
        %5254 = vrot.lane.b32.xlu0 %v5182, 32
        %v5255 = vpop.permute.xlu0 %5254
        %5256 = vrot.lane.b32.xlu0 %v5183, 32
        %v5257 = vpop.permute.xlu0 %5256
        %5258 = vrot.lane.b32.xlu0 %v5184, 32
        %v5259 = vpop.permute.xlu0 %5258
        %5260 = vrot.lane.b32.xlu0 %v5185, 32
        %v5261 = vpop.permute.xlu0 %5260
        %5262 = vrot.lane.b32.xlu0 %v5186, 32
        %v5263 = vpop.permute.xlu0 %5262
        %5264 = vrot.lane.b32.xlu0 %v5187, 32
        %v5265 = vpop.permute.xlu0 %5264
        %5266 = vrot.lane.b32.xlu0 %v5188, 32
        %v5267 = vpop.permute.xlu0 %5266
        %5268 = vrot.lane.b32.xlu0 %v5189, 32
        %v5269 = vpop.permute.xlu0 %5268
        %5270 = vrot.lane.b32.xlu0 %v5190, 32
        %v5271 = vpop.permute.xlu0 %5270
        %5272 = vrot.lane.b32.xlu0 %v5191, 32
        %v5273 = vpop.permute.xlu0 %5272
        %5274 = vrot.lane.b32.xlu0 %v5192, 32
        %v5275 = vpop.permute.xlu0 %5274
        %5276 = vrot.lane.b32.xlu0 %v5193, 32
        %v5277 = vpop.permute.xlu0 %5276
        %5278 = vrot.lane.b32.xlu0 %v5194, 32
        %v5279 = vpop.permute.xlu0 %5278
        %5280 = vrot.lane.b32.xlu0 %v5195, 32
        %v5281 = vpop.permute.xlu0 %5280
        %5282 = vrot.lane.b32.xlu0 %v5196, 32
        %v5283 = vpop.permute.xlu0 %5282
        %5284 = vrot.lane.b32.xlu0 %v5197, 32
        %v5285 = vpop.permute.xlu0 %5284
        %5286 = vrot.lane.b32.xlu0 %v5198, 32
        %v5287 = vpop.permute.xlu0 %5286
        %5288 = vrot.lane.b32.xlu0 %v5199, 32
        %v5289 = vpop.permute.xlu0 %5288
        %5290 = vrot.lane.b32.xlu0 %v5200, 32
        %v5291 = vpop.permute.xlu0 %5290
        %5292 = vrot.lane.b32.xlu0 %v5201, 32
        %v5293 = vpop.permute.xlu0 %5292
        %5294 = vrot.lane.b32.xlu0 %v5202, 32
        %v5295 = vpop.permute.xlu0 %5294
        %5296 = vrot.lane.b32.xlu0 %v5203, 32
        %v5297 = vpop.permute.xlu0 %5296
        %5298 = vrot.lane.b32.xlu0 %v5204, 32
        %v5299 = vpop.permute.xlu0 %5298
        %5300 = vrot.lane.b32.xlu0 %v5205, 32
        %v5301 = vpop.permute.xlu0 %5300
        %v5334 = vadd.f32 %v5014, %v5239
        %v5335 = vadd.f32 %v5015, %v5241
        %v5336 = vadd.f32 %v5016, %v5243
        %v5337 = vadd.f32 %v5017, %v5245
        %v5338 = vadd.f32 %v5018, %v5247
        %v5339 = vadd.f32 %v5019, %v5249
        %v5340 = vadd.f32 %v5020, %v5251
        %v5341 = vadd.f32 %v5021, %v5253
        %v5342 = vadd.f32 %v5022, %v5255
        %v5343 = vadd.f32 %v5023, %v5257
        %v5344 = vadd.f32 %v5024, %v5259
        %v5345 = vadd.f32 %v5025, %v5261
        %v5346 = vadd.f32 %v5026, %v5263
        %v5347 = vadd.f32 %v5027, %v5265
        %v5348 = vadd.f32 %v5028, %v5267
        %v5349 = vadd.f32 %v5029, %v5269
        %v5350 = vadd.f32 %v5030, %v5271
        %v5351 = vadd.f32 %v5031, %v5273
        %v5352 = vadd.f32 %v5032, %v5275
        %v5353 = vadd.f32 %v5033, %v5277
        %v5354 = vadd.f32 %v5034, %v5279
        %v5355 = vadd.f32 %v5035, %v5281
        %v5356 = vadd.f32 %v5036, %v5283
        %v5357 = vadd.f32 %v5037, %v5285
        %v5358 = vadd.f32 %v5038, %v5287
        %v5359 = vadd.f32 %v5039, %v5289
        %v5360 = vadd.f32 %v5040, %v5291
        %v5361 = vadd.f32 %v5041, %v5293
        %v5362 = vadd.f32 %v5042, %v5295
        %v5363 = vadd.f32 %v5043, %v5297
        %v5364 = vadd.f32 %v5044, %v5299
        %v5365 = vadd.f32 %v5045, %v5301
        %v5366 = vtanh.pop %v5334
        %v5367 = vtanh.pop %v5335
        %v5368 = vtanh.pop %v5336
        %v5369 = vtanh.pop %v5337
        %v5370 = vtanh.pop %v5338
        %v5371 = vtanh.pop %v5339
        %v5372 = vtanh.pop %v5340
        %v5373 = vtanh.pop %v5341
        %v5374 = vtanh.pop %v5342
        %v5375 = vtanh.pop %v5343
        %v5376 = vtanh.pop %v5344
        %v5377 = vtanh.pop %v5345
        %v5378 = vtanh.pop %v5346
        %v5379 = vtanh.pop %v5347
        %v5380 = vtanh.pop %v5348
        %v5381 = vtanh.pop %v5349
        %v5382 = vtanh.pop %v5350
        %v5383 = vtanh.pop %v5351
        %v5384 = vtanh.pop %v5352
        %v5385 = vtanh.pop %v5353
        %v5386 = vtanh.pop %v5354
        %v5387 = vtanh.pop %v5355
        %v5388 = vtanh.pop %v5356
        %v5389 = vtanh.pop %v5357
        %v5390 = vtanh.pop %v5358
        %v5391 = vtanh.pop %v5359
        %v5392 = vtanh.pop %v5360
        %v5393 = vtanh.pop %v5361
        %v5394 = vtanh.pop %v5362
        %v5395 = vtanh.pop %v5363
        %v5396 = vtanh.pop %v5364
        %v5397 = vtanh.pop %v5365
        %5430 = vrot.lane.b32.xlu0 %v5366, 64
        %v5431 = vpop.permute.xlu0 %5430
        %5432 = vrot.lane.b32.xlu0 %v5367, 64
        %v5433 = vpop.permute.xlu0 %5432
        %5434 = vrot.lane.b32.xlu0 %v5368, 64
        %v5435 = vpop.permute.xlu0 %5434
        %5436 = vrot.lane.b32.xlu0 %v5369, 64
        %v5437 = vpop.permute.xlu0 %5436
        %5438 = vrot.lane.b32.xlu0 %v5370, 64
        %v5439 = vpop.permute.xlu0 %5438
        %5440 = vrot.lane.b32.xlu0 %v5371, 64
        %v5441 = vpop.permute.xlu0 %5440
        %5442 = vrot.lane.b32.xlu0 %v5372, 64
        %v5443 = vpop.permute.xlu0 %5442
        %5444 = vrot.lane.b32.xlu0 %v5373, 64
        %v5445 = vpop.permute.xlu0 %5444
        %5446 = vrot.lane.b32.xlu0 %v5374, 64
        %v5447 = vpop.permute.xlu0 %5446
        %5448 = vrot.lane.b32.xlu0 %v5375, 64
        %v5449 = vpop.permute.xlu0 %5448
        %5450 = vrot.lane.b32.xlu0 %v5376, 64
        %v5451 = vpop.permute.xlu0 %5450
        %5452 = vrot.lane.b32.xlu0 %v5377, 64
        %v5453 = vpop.permute.xlu0 %5452
        %5454 = vrot.lane.b32.xlu0 %v5378, 64
        %v5455 = vpop.permute.xlu0 %5454
        %5456 = vrot.lane.b32.xlu0 %v5379, 64
        %v5457 = vpop.permute.xlu0 %5456
        %5458 = vrot.lane.b32.xlu0 %v5380, 64
        %v5459 = vpop.permute.xlu0 %5458
        %5460 = vrot.lane.b32.xlu0 %v5381, 64
        %v5461 = vpop.permute.xlu0 %5460
        %5462 = vrot.lane.b32.xlu0 %v5382, 64
        %v5463 = vpop.permute.xlu0 %5462
        %5464 = vrot.lane.b32.xlu0 %v5383, 64
        %v5465 = vpop.permute.xlu0 %5464
        %5466 = vrot.lane.b32.xlu0 %v5384, 64
        %v5467 = vpop.permute.xlu0 %5466
        %5468 = vrot.lane.b32.xlu0 %v5385, 64
        %v5469 = vpop.permute.xlu0 %5468
        %5470 = vrot.lane.b32.xlu0 %v5386, 64
        %v5471 = vpop.permute.xlu0 %5470
        %5472 = vrot.lane.b32.xlu0 %v5387, 64
        %v5473 = vpop.permute.xlu0 %5472
        %5474 = vrot.lane.b32.xlu0 %v5388, 64
        %v5475 = vpop.permute.xlu0 %5474
        %5476 = vrot.lane.b32.xlu0 %v5389, 64
        %v5477 = vpop.permute.xlu0 %5476
        %5478 = vrot.lane.b32.xlu0 %v5390, 64
        %v5479 = vpop.permute.xlu0 %5478
        %5480 = vrot.lane.b32.xlu0 %v5391, 64
        %v5481 = vpop.permute.xlu0 %5480
        %5482 = vrot.lane.b32.xlu0 %v5392, 64
        %v5483 = vpop.permute.xlu0 %5482
        %5484 = vrot.lane.b32.xlu0 %v5393, 64
        %v5485 = vpop.permute.xlu0 %5484
        %5486 = vrot.lane.b32.xlu0 %v5394, 64
        %v5487 = vpop.permute.xlu0 %5486
        %5488 = vrot.lane.b32.xlu0 %v5395, 64
        %v5489 = vpop.permute.xlu0 %5488
        %5490 = vrot.lane.b32.xlu0 %v5396, 64
        %v5491 = vpop.permute.xlu0 %5490
        %5492 = vrot.lane.b32.xlu0 %v5397, 64
        %v5493 = vpop.permute.xlu0 %5492
        %v5526 = vmul.f32 %v4791, %v5431
        %v5527 = vmul.f32 %v4793, %v5433
        %v5528 = vmul.f32 %v4795, %v5435
        %v5529 = vmul.f32 %v4797, %v5437
        %v5530 = vmul.f32 %v4799, %v5439
        %v5531 = vmul.f32 %v4801, %v5441
        %v5532 = vmul.f32 %v4803, %v5443
        %v5533 = vmul.f32 %v4805, %v5445
        %v5534 = vmul.f32 %v4807, %v5447
        %v5535 = vmul.f32 %v4809, %v5449
        %v5536 = vmul.f32 %v4811, %v5451
        %v5537 = vmul.f32 %v4813, %v5453
        %v5538 = vmul.f32 %v4815, %v5455
        %v5539 = vmul.f32 %v4817, %v5457
        %v5540 = vmul.f32 %v4819, %v5459
        %v5541 = vmul.f32 %v4821, %v5461
        %v5542 = vmul.f32 %v4823, %v5463
        %v5543 = vmul.f32 %v4825, %v5465
        %v5544 = vmul.f32 %v4827, %v5467
        %v5545 = vmul.f32 %v4829, %v5469
        %v5546 = vmul.f32 %v4831, %v5471
        %v5547 = vmul.f32 %v4833, %v5473
        %v5548 = vmul.f32 %v4835, %v5475
        %v5549 = vmul.f32 %v4837, %v5477
        %v5550 = vmul.f32 %v4839, %v5479
        %v5551 = vmul.f32 %v4841, %v5481
        %v5552 = vmul.f32 %v4843, %v5483
        %v5553 = vmul.f32 %v4845, %v5485
        %v5554 = vmul.f32 %v4847, %v5487
        %v5555 = vmul.f32 %v4849, %v5489
        %v5556 = vmul.f32 %v4851, %v5491
        %v5557 = vmul.f32 %v4853, %v5493
        %v5558 = vpack.c.bf16 %v3670, %v3669
        %v5559 = vpack.c.bf16 %v3672, %v3671
        %v5560 = vpack.c.bf16 %v3674, %v3673
        %v5561 = vpack.c.bf16 %v3676, %v3675
        %v5562 = vpack.c.bf16 %v3678, %v3677
        %v5563 = vpack.c.bf16 %v3680, %v3679
        %v5564 = vpack.c.bf16 %v3682, %v3681
        %v5565 = vpack.c.bf16 %v3684, %v3683
        %v5566 = vpack.c.bf16 %v3686, %v3685
        %v5567 = vpack.c.bf16 %v3688, %v3687
        %v5568 = vpack.c.bf16 %v3690, %v3689
        %v5569 = vpack.c.bf16 %v3692, %v3691
        %v5570 = vpack.c.bf16 %v3694, %v3693
        %v5571 = vpack.c.bf16 %v3696, %v3695
        %v5572 = vpack.c.bf16 %v3698, %v3697
        %v5573 = vpack.c.bf16 %v3700, %v3699
        %v5574 = vpack.c.bf16 %v5527, %v5526
        %v5575 = vpack.c.bf16 %v5529, %v5528
        %v5576 = vpack.c.bf16 %v5531, %v5530
        %v5577 = vpack.c.bf16 %v5533, %v5532
        %v5578 = vpack.c.bf16 %v5535, %v5534
        %v5579 = vpack.c.bf16 %v5537, %v5536
        %v5580 = vpack.c.bf16 %v5539, %v5538
        %v5581 = vpack.c.bf16 %v5541, %v5540
        %v5582 = vpack.c.bf16 %v5543, %v5542
        %v5583 = vpack.c.bf16 %v5545, %v5544
        %v5584 = vpack.c.bf16 %v5547, %v5546
        %v5585 = vpack.c.bf16 %v5549, %v5548
        %v5586 = vpack.c.bf16 %v5551, %v5550
        %v5587 = vpack.c.bf16 %v5553, %v5552
        %v5588 = vpack.c.bf16 %v5555, %v5554
        %v5589 = vpack.c.bf16 %v5557, %v5556
        %v5590 = vld [vmem:[%s2 + $0x68] sm:$0xf]
        %v5591 = vld [vmem:[%s2 + $0x70] sm:$0xf]
        %v5592 = vld [vmem:[%s2 + $0x78] sm:$0xf]
        %v5593 = vld [vmem:[%s2 + $0x80] sm:$0xf]
        %v5594 = vld [vmem:[%s2 + $0x88] sm:$0xf]
        %v5595 = vld [vmem:[%s2 + $0x90] sm:$0xf]
        %v5596 = vld [vmem:[%s2 + $0x98] sm:$0xf]
        %v5597 = vld [vmem:[%s2 + $0xa0] sm:$0xf]
        %5614 = vrot.lane.b32.xlu0 %v5574, 32
        %v5615 = vpop.permute.xlu0 %5614
        %5616 = vrot.lane.b32.xlu0 %v5575, 32
        %v5617 = vpop.permute.xlu0 %5616
        %5618 = vrot.lane.b32.xlu0 %v5576, 32
        %v5619 = vpop.permute.xlu0 %5618
        %5620 = vrot.lane.b32.xlu0 %v5577, 32
        %v5621 = vpop.permute.xlu0 %5620
        %5622 = vrot.lane.b32.xlu0 %v5578, 32
        %v5623 = vpop.permute.xlu0 %5622
        %5624 = vrot.lane.b32.xlu0 %v5579, 32
        %v5625 = vpop.permute.xlu0 %5624
        %5626 = vrot.lane.b32.xlu0 %v5580, 32
        %v5627 = vpop.permute.xlu0 %5626
        %5628 = vrot.lane.b32.xlu0 %v5581, 32
        %v5629 = vpop.permute.xlu0 %5628
        %5630 = vrot.lane.b32.xlu0 %v5582, 32
        %v5631 = vpop.permute.xlu0 %5630
        %5632 = vrot.lane.b32.xlu0 %v5583, 32
        %v5633 = vpop.permute.xlu0 %5632
        %5634 = vrot.lane.b32.xlu0 %v5584, 32
        %v5635 = vpop.permute.xlu0 %5634
        %5636 = vrot.lane.b32.xlu0 %v5585, 32
        %v5637 = vpop.permute.xlu0 %5636
        %5638 = vrot.lane.b32.xlu0 %v5586, 32
        %v5639 = vpop.permute.xlu0 %5638
        %5640 = vrot.lane.b32.xlu0 %v5587, 32
        %v5641 = vpop.permute.xlu0 %5640
        %5642 = vrot.lane.b32.xlu0 %v5588, 32
        %v5643 = vpop.permute.xlu0 %5642
        %5644 = vrot.lane.b32.xlu0 %v5589, 32
        %v5645 = vpop.permute.xlu0 %5644
        %v5650 = vunpack.c.l.b16 %v5594
        %v5651 = vunpack.c.l.b16 %v5595
        %v5652 = vunpack.c.l.b16 %v5596
        %v5653 = vunpack.c.l.b16 %v5597
        %v5654 = vpack.c.b16 %v5651, %v5650
        %v5655 = vpack.c.b16 %v5653, %v5652
        %v5659 = vsel %vm2563, %v5615, 0
        %v5662 = vsel %vm2563, %v5617, 0
        %v5665 = vsel %vm2563, %v5619, 0
        %v5668 = vsel %vm2563, %v5621, 0
        %v5671 = vsel %vm2563, %v5623, 0
        %v5674 = vsel %vm2563, %v5625, 0
        %v5677 = vsel %vm2563, %v5627, 0
        %v5680 = vsel %vm2563, %v5629, 0
        %v5683 = vsel %vm2563, %v5631, 0
        %v5686 = vsel %vm2563, %v5633, 0
        %v5689 = vsel %vm2563, %v5635, 0
        %v5692 = vsel %vm2563, %v5637, 0
        %v5695 = vsel %vm2563, %v5639, 0
        %v5698 = vsel %vm2563, %v5641, 0
        %v5701 = vsel %vm2563, %v5643, 0
        %v5704 = vsel %vm2563, %v5645, 0
        %5706 = vmatprep.subr.bf16.mxu0 0
        %5707 = vmatpush1.bf16.msra.mxu0 %v5654
        %5708 = vmatprep.subr.bf16.mxu0 0
        %5709 = vmatpush1.bf16.msra.mxu0 %v5655
        %5710 = vmatprep.subr.bf16.mxu0 0
        %5711 = vmatpush1.bf16.msra.mxu0 0
        %5712 = vmatprep.subr.bf16.mxu0 0
        %5713 = vmatpush1.bf16.msra.mxu0 0
        %5714 = vmatprep.subr.bf16.mxu0 0
        %5715 = vmatpush1.bf16.msra.mxu0 0
        %5716 = vmatprep.subr.bf16.mxu0 0
        %5717 = vmatpush1.bf16.msra.mxu0 0
        %5718 = vmatprep.subr.bf16.mxu0 0
        %5719 = vmatpush1.bf16.msra.mxu0 0
        %5720 = vmatprep.subr.bf16.mxu0 0
        %5721 = vmatpush1.bf16.msra.mxu0 0
        %5722 = vmatprep.subr.bf16.mxu0 0
        %5723 = vmatpush1.bf16.msra.mxu0 0
        %5724 = vmatprep.subr.bf16.mxu0 0
        %5725 = vmatpush1.bf16.msra.mxu0 0
        %5726 = vmatprep.subr.bf16.mxu0 0
        %5727 = vmatpush1.bf16.msra.mxu0 0
        %5728 = vmatprep.subr.bf16.mxu0 0
        %5729 = vmatpush1.bf16.msra.mxu0 0
        %5730 = vmatprep.subr.bf16.mxu0 0
        %5731 = vmatpush1.bf16.msra.mxu0 0
        %5732 = vmatprep.subr.bf16.mxu0 0
        %5733 = vmatpush1.bf16.msra.mxu0 0
        %5734 = vmatprep.subr.bf16.mxu0 0
        %5735 = vmatpush1.bf16.msra.mxu0 0
        %5736 = vmatprep.subr.bf16.mxu0 0
        %5737 = vmatpush1.bf16.msra.mxu0 0
        %5738 = vmatprep.mubr.bf16.mxu0 0
        %5739 = vmatmul.mubr.bf16.gmra.mrb[0].mxu0 %v5659
        %v5740 = vpop.f32.mrb[0].mxu0
        %v5741 = vadd.f32 0.0, %v5740
        %v5742 = vpop.f32.mrb[0].mxu0
        %v5743 = vpop.f32.mrb[0].mxu0
        %v5744 = vadd.f32 0.0, %v5743
        %v5745 = vpop.f32.mrb[0].mxu0
        %5746 = vmatprep.mubr.bf16.mxu0 0
        %5747 = vmatmul.mubr.bf16.gmra.mrb[0].mxu0 %v5662
        %v5748 = vpop.f32.mrb[0].mxu0
        %v5749 = vadd.f32 0.0, %v5748
        %v5750 = vpop.f32.mrb[0].mxu0
        %v5751 = vpop.f32.mrb[0].mxu0
        %v5752 = vadd.f32 0.0, %v5751
        %v5753 = vpop.f32.mrb[0].mxu0
        %5754 = vmatprep.mubr.bf16.mxu0 0
        %5755 = vmatmul.mubr.bf16.gmra.mrb[0].mxu0 %v5665
        %v5756 = vpop.f32.mrb[0].mxu0
        %v5757 = vadd.f32 0.0, %v5756
        %v5758 = vpop.f32.mrb[0].mxu0
        %v5759 = vpop.f32.mrb[0].mxu0
        %v5760 = vadd.f32 0.0, %v5759
        %v5761 = vpop.f32.mrb[0].mxu0
        %5762 = vmatprep.mubr.bf16.mxu0 0
        %5763 = vmatmul.mubr.bf16.gmra.mrb[0].mxu0 %v5668
        %v5764 = vpop.f32.mrb[0].mxu0
        %v5765 = vadd.f32 0.0, %v5764
        %v5766 = vpop.f32.mrb[0].mxu0
        %v5767 = vpop.f32.mrb[0].mxu0
        %v5768 = vadd.f32 0.0, %v5767
        %v5769 = vpop.f32.mrb[0].mxu0
        %5770 = vmatprep.mubr.bf16.mxu0 0
        %5771 = vmatmul.mubr.bf16.gmra.mrb[0].mxu0 %v5671
        %v5772 = vpop.f32.mrb[0].mxu0
        %v5773 = vadd.f32 0.0, %v5772
        %v5774 = vpop.f32.mrb[0].mxu0
        %v5775 = vpop.f32.mrb[0].mxu0
        %v5776 = vadd.f32 0.0, %v5775
        %v5777 = vpop.f32.mrb[0].mxu0
        %5778 = vmatprep.mubr.bf16.mxu0 0
        %5779 = vmatmul.mubr.bf16.gmra.mrb[0].mxu0 %v5674
        %v5780 = vpop.f32.mrb[0].mxu0
        %v5781 = vadd.f32 0.0, %v5780
        %v5782 = vpop.f32.mrb[0].mxu0
        %v5783 = vpop.f32.mrb[0].mxu0
        %v5784 = vadd.f32 0.0, %v5783
        %v5785 = vpop.f32.mrb[0].mxu0
        %5786 = vmatprep.mubr.bf16.mxu0 0
        %5787 = vmatmul.mubr.bf16.gmra.mrb[0].mxu0 %v5677
        %v5788 = vpop.f32.mrb[0].mxu0
        %v5789 = vadd.f32 0.0, %v5788
        %v5790 = vpop.f32.mrb[0].mxu0
        %v5791 = vpop.f32.mrb[0].mxu0
        %v5792 = vadd.f32 0.0, %v5791
        %v5793 = vpop.f32.mrb[0].mxu0
        %5794 = vmatprep.mubr.bf16.mxu0 0
        %5795 = vmatmul.mubr.bf16.gmra.mrb[0].mxu0 %v5680
        %v5796 = vpop.f32.mrb[0].mxu0
        %v5797 = vadd.f32 0.0, %v5796
        %v5798 = vpop.f32.mrb[0].mxu0
        %v5799 = vpop.f32.mrb[0].mxu0
        %v5800 = vadd.f32 0.0, %v5799
        %v5801 = vpop.f32.mrb[0].mxu0
        %5802 = vmatprep.mubr.bf16.mxu0 0
        %5803 = vmatmul.mubr.bf16.gmra.mrb[0].mxu0 %v5683
        %v5804 = vpop.f32.mrb[0].mxu0
        %v5805 = vadd.f32 0.0, %v5804
        %v5806 = vpop.f32.mrb[0].mxu0
        %v5807 = vpop.f32.mrb[0].mxu0
        %v5808 = vadd.f32 0.0, %v5807
        %v5809 = vpop.f32.mrb[0].mxu0
        %5810 = vmatprep.mubr.bf16.mxu0 0
        %5811 = vmatmul.mubr.bf16.gmra.mrb[0].mxu0 %v5686
        %v5812 = vpop.f32.mrb[0].mxu0
        %v5813 = vadd.f32 0.0, %v5812
        %v5814 = vpop.f32.mrb[0].mxu0
        %v5815 = vpop.f32.mrb[0].mxu0
        %v5816 = vadd.f32 0.0, %v5815
        %v5817 = vpop.f32.mrb[0].mxu0
        %5818 = vmatprep.mubr.bf16.mxu0 0
        %5819 = vmatmul.mubr.bf16.gmra.mrb[0].mxu0 %v5689
        %v5820 = vpop.f32.mrb[0].mxu0
        %v5821 = vadd.f32 0.0, %v5820
        %v5822 = vpop.f32.mrb[0].mxu0
        %v5823 = vpop.f32.mrb[0].mxu0
        %v5824 = vadd.f32 0.0, %v5823
        %v5825 = vpop.f32.mrb[0].mxu0
        %5826 = vmatprep.mubr.bf16.mxu0 0
        %5827 = vmatmul.mubr.bf16.gmra.mrb[0].mxu0 %v5692
        %v5828 = vpop.f32.mrb[0].mxu0
        %v5829 = vadd.f32 0.0, %v5828
        %v5830 = vpop.f32.mrb[0].mxu0
        %v5831 = vpop.f32.mrb[0].mxu0
        %v5832 = vadd.f32 0.0, %v5831
        %v5833 = vpop.f32.mrb[0].mxu0
        %5834 = vmatprep.mubr.bf16.mxu0 0
        %5835 = vmatmul.mubr.bf16.gmra.mrb[0].mxu0 %v5695
        %v5836 = vpop.f32.mrb[0].mxu0
        %v5837 = vadd.f32 0.0, %v5836
        %v5838 = vpop.f32.mrb[0].mxu0
        %v5839 = vpop.f32.mrb[0].mxu0
        %v5840 = vadd.f32 0.0, %v5839
        %v5841 = vpop.f32.mrb[0].mxu0
        %5842 = vmatprep.mubr.bf16.mxu0 0
        %5843 = vmatmul.mubr.bf16.gmra.mrb[0].mxu0 %v5698
        %v5844 = vpop.f32.mrb[0].mxu0
        %v5845 = vadd.f32 0.0, %v5844
        %v5846 = vpop.f32.mrb[0].mxu0
        %v5847 = vpop.f32.mrb[0].mxu0
        %v5848 = vadd.f32 0.0, %v5847
        %v5849 = vpop.f32.mrb[0].mxu0
        %5850 = vmatprep.mubr.bf16.mxu0 0
        %5851 = vmatmul.mubr.bf16.gmra.mrb[0].mxu0 %v5701
        %v5852 = vpop.f32.mrb[0].mxu0
        %v5853 = vadd.f32 0.0, %v5852
        %v5854 = vpop.f32.mrb[0].mxu0
        %v5855 = vpop.f32.mrb[0].mxu0
        %v5856 = vadd.f32 0.0, %v5855
        %v5857 = vpop.f32.mrb[0].mxu0
        %5858 = vmatprep.mubr.bf16.mxu0 0
        %5859 = vmatmul.mubr.bf16.gmra.mrb[0].mxu0 %v5704
        %v5860 = vpop.f32.mrb[0].mxu0
        %v5861 = vadd.f32 0.0, %v5860
        %v5862 = vpop.f32.mrb[0].mxu0
        %v5863 = vpop.f32.mrb[0].mxu0
        %v5864 = vadd.f32 0.0, %v5863
        %v5865 = vpop.f32.mrb[0].mxu0
        %5866 = vmatprep.mubr.bf16.mxu0 0
        %5867 = vmatmul.mubr.bf16.gmra.mrb[0].mxu0 %v4422
        %v5868 = vpop.f32.mrb[0].mxu0
        %v5869 = vadd.f32 0.0, %v5868
        %v5870 = vpop.f32.mrb[0].mxu0
        %v5871 = vpop.f32.mrb[0].mxu0
        %v5872 = vadd.f32 0.0, %v5871
        %v5873 = vpop.f32.mrb[0].mxu0
        %5874 = vmatprep.mubr.bf16.mxu0 0
        %5875 = vmatmul.mubr.bf16.gmra.mrb[0].mxu0 %v4425
        %v5876 = vpop.f32.mrb[0].mxu0
        %v5877 = vadd.f32 0.0, %v5876
        %v5878 = vpop.f32.mrb[0].mxu0
        %v5879 = vpop.f32.mrb[0].mxu0
        %v5880 = vadd.f32 0.0, %v5879
        %v5881 = vpop.f32.mrb[0].mxu0
        %5882 = vmatprep.mubr.bf16.mxu0 0
        %5883 = vmatmul.mubr.bf16.gmra.mrb[0].mxu0 %v4428
        %v5884 = vpop.f32.mrb[0].mxu0
        %v5885 = vadd.f32 0.0, %v5884
        %v5886 = vpop.f32.mrb[0].mxu0
        %v5887 = vpop.f32.mrb[0].mxu0
        %v5888 = vadd.f32 0.0, %v5887
        %v5889 = vpop.f32.mrb[0].mxu0
        %5890 = vmatprep.mubr.bf16.mxu0 0
        %5891 = vmatmul.mubr.bf16.gmra.mrb[0].mxu0 %v4431
        %v5892 = vpop.f32.mrb[0].mxu0
        %v5893 = vadd.f32 0.0, %v5892
        %v5894 = vpop.f32.mrb[0].mxu0
        %v5895 = vpop.f32.mrb[0].mxu0
        %v5896 = vadd.f32 0.0, %v5895
        %v5897 = vpop.f32.mrb[0].mxu0
        %5898 = vmatprep.mubr.bf16.mxu0 0
        %5899 = vmatmul.mubr.bf16.gmra.mrb[0].mxu0 %v4434
        %v5900 = vpop.f32.mrb[0].mxu0
        %v5901 = vadd.f32 0.0, %v5900
        %v5902 = vpop.f32.mrb[0].mxu0
        %v5903 = vpop.f32.mrb[0].mxu0
        %v5904 = vadd.f32 0.0, %v5903
        %v5905 = vpop.f32.mrb[0].mxu0
        %5906 = vmatprep.mubr.bf16.mxu0 0
        %5907 = vmatmul.mubr.bf16.gmra.mrb[0].mxu0 %v4437
        %v5908 = vpop.f32.mrb[0].mxu0
        %v5909 = vadd.f32 0.0, %v5908
        %v5910 = vpop.f32.mrb[0].mxu0
        %v5911 = vpop.f32.mrb[0].mxu0
        %v5912 = vadd.f32 0.0, %v5911
        %v5913 = vpop.f32.mrb[0].mxu0
        %5914 = vmatprep.mubr.bf16.mxu0 0
        %5915 = vmatmul.mubr.bf16.gmra.mrb[0].mxu0 %v4440
        %v5916 = vpop.f32.mrb[0].mxu0
        %v5917 = vadd.f32 0.0, %v5916
        %v5918 = vpop.f32.mrb[0].mxu0
        %v5919 = vpop.f32.mrb[0].mxu0
        %v5920 = vadd.f32 0.0, %v5919
        %v5921 = vpop.f32.mrb[0].mxu0
        %5922 = vmatprep.mubr.bf16.mxu0 0
        %5923 = vmatmul.mubr.bf16.gmra.mrb[0].mxu0 %v4443
        %v5924 = vpop.f32.mrb[0].mxu0
        %v5925 = vadd.f32 0.0, %v5924
        %v5926 = vpop.f32.mrb[0].mxu0
        %v5927 = vpop.f32.mrb[0].mxu0
        %v5928 = vadd.f32 0.0, %v5927
        %v5929 = vpop.f32.mrb[0].mxu0
        %5930 = vmatprep.mubr.bf16.mxu0 0
        %5931 = vmatmul.mubr.bf16.gmra.mrb[0].mxu0 %v4446
        %v5932 = vpop.f32.mrb[0].mxu0
        %v5933 = vadd.f32 0.0, %v5932
        %v5934 = vpop.f32.mrb[0].mxu0
        %v5935 = vpop.f32.mrb[0].mxu0
        %v5936 = vadd.f32 0.0, %v5935
        %v5937 = vpop.f32.mrb[0].mxu0
        %5938 = vmatprep.mubr.bf16.mxu0 0
        %5939 = vmatmul.mubr.bf16.gmra.mrb[0].mxu0 %v4449
        %v5940 = vpop.f32.mrb[0].mxu0
        %v5941 = vadd.f32 0.0, %v5940
        %v5942 = vpop.f32.mrb[0].mxu0
        %v5943 = vpop.f32.mrb[0].mxu0
        %v5944 = vadd.f32 0.0, %v5943
        %v5945 = vpop.f32.mrb[0].mxu0
        %5946 = vmatprep.mubr.bf16.mxu0 0
        %5947 = vmatmul.mubr.bf16.gmra.mrb[0].mxu0 %v4452
        %v5948 = vpop.f32.mrb[0].mxu0
        %v5949 = vadd.f32 0.0, %v5948
        %v5950 = vpop.f32.mrb[0].mxu0
        %v5951 = vpop.f32.mrb[0].mxu0
        %v5952 = vadd.f32 0.0, %v5951
        %v5953 = vpop.f32.mrb[0].mxu0
        %5954 = vmatprep.mubr.bf16.mxu0 0
        %5955 = vmatmul.mubr.bf16.gmra.mrb[0].mxu0 %v4455
        %v5956 = vpop.f32.mrb[0].mxu0
        %v5957 = vadd.f32 0.0, %v5956
        %v5958 = vpop.f32.mrb[0].mxu0
        %v5959 = vpop.f32.mrb[0].mxu0
        %v5960 = vadd.f32 0.0, %v5959
        %v5961 = vpop.f32.mrb[0].mxu0
        %5962 = vmatprep.mubr.bf16.mxu0 0
        %5963 = vmatmul.mubr.bf16.gmra.mrb[0].mxu0 %v4458
        %v5964 = vpop.f32.mrb[0].mxu0
        %v5965 = vadd.f32 0.0, %v5964
        %v5966 = vpop.f32.mrb[0].mxu0
        %v5967 = vpop.f32.mrb[0].mxu0
        %v5968 = vadd.f32 0.0, %v5967
        %v5969 = vpop.f32.mrb[0].mxu0
        %5970 = vmatprep.mubr.bf16.mxu0 0
        %5971 = vmatmul.mubr.bf16.gmra.mrb[0].mxu0 %v4461
        %v5972 = vpop.f32.mrb[0].mxu0
        %v5973 = vadd.f32 0.0, %v5972
        %v5974 = vpop.f32.mrb[0].mxu0
        %v5975 = vpop.f32.mrb[0].mxu0
        %v5976 = vadd.f32 0.0, %v5975
        %v5977 = vpop.f32.mrb[0].mxu0
        %5978 = vmatprep.mubr.bf16.mxu0 0
        %5979 = vmatmul.mubr.bf16.gmra.mrb[0].mxu0 %v4464
        %v5980 = vpop.f32.mrb[0].mxu0
        %v5981 = vadd.f32 0.0, %v5980
        %v5982 = vpop.f32.mrb[0].mxu0
        %v5983 = vpop.f32.mrb[0].mxu0
        %v5984 = vadd.f32 0.0, %v5983
        %v5985 = vpop.f32.mrb[0].mxu0
        %5986 = vmatprep.mubr.bf16.mxu0 0
        %5987 = vmatmul.mubr.bf16.gmra.mrb[0].mxu0 %v4467
        %v5988 = vpop.f32.mrb[0].mxu0
        %v5989 = vadd.f32 0.0, %v5988
        %v5990 = vpop.f32.mrb[0].mxu0
        %v5991 = vpop.f32.mrb[0].mxu0
        %v5992 = vadd.f32 0.0, %v5991
        %v5993 = vpop.f32.mrb[0].mxu0
        %5994 = vdwg.mxu0
        %6011 = vrot.lane.b32.xlu0 %v5558, 32
        %v6012 = vpop.permute.xlu0 %6011
        %6013 = vrot.lane.b32.xlu0 %v5559, 32
        %v6014 = vpop.permute.xlu0 %6013
        %6015 = vrot.lane.b32.xlu0 %v5560, 32
        %v6016 = vpop.permute.xlu0 %6015
        %6017 = vrot.lane.b32.xlu0 %v5561, 32
        %v6018 = vpop.permute.xlu0 %6017
        %6019 = vrot.lane.b32.xlu0 %v5562, 32
        %v6020 = vpop.permute.xlu0 %6019
        %6021 = vrot.lane.b32.xlu0 %v5563, 32
        %v6022 = vpop.permute.xlu0 %6021
        %6023 = vrot.lane.b32.xlu0 %v5564, 32
        %v6024 = vpop.permute.xlu0 %6023
        %6025 = vrot.lane.b32.xlu0 %v5565, 32
        %v6026 = vpop.permute.xlu0 %6025
        %6027 = vrot.lane.b32.xlu0 %v5566, 32
        %v6028 = vpop.permute.xlu0 %6027
        %6029 = vrot.lane.b32.xlu0 %v5567, 32
        %v6030 = vpop.permute.xlu0 %6029
        %6031 = vrot.lane.b32.xlu0 %v5568, 32
        %v6032 = vpop.permute.xlu0 %6031
        %6033 = vrot.lane.b32.xlu0 %v5569, 32
        %v6034 = vpop.permute.xlu0 %6033
        %6035 = vrot.lane.b32.xlu0 %v5570, 32
        %v6036 = vpop.permute.xlu0 %6035
        %6037 = vrot.lane.b32.xlu0 %v5571, 32
        %v6038 = vpop.permute.xlu0 %6037
        %6039 = vrot.lane.b32.xlu0 %v5572, 32
        %v6040 = vpop.permute.xlu0 %6039
        %6041 = vrot.lane.b32.xlu0 %v5573, 32
        %v6042 = vpop.permute.xlu0 %6041
        %v6047 = vunpack.c.l.b16 %v5590
        %v6048 = vunpack.c.l.b16 %v5591
        %v6049 = vunpack.c.l.b16 %v5592
        %v6050 = vunpack.c.l.b16 %v5593
        %v6051 = vpack.c.b16 %v6048, %v6047
        %v6052 = vpack.c.b16 %v6050, %v6049
        %v6056 = vsel %vm2563, %v6012, 0
        %v6059 = vsel %vm2563, %v6014, 0
        %v6062 = vsel %vm2563, %v6016, 0
        %v6065 = vsel %vm2563, %v6018, 0
        %v6068 = vsel %vm2563, %v6020, 0
        %v6071 = vsel %vm2563, %v6022, 0
        %v6074 = vsel %vm2563, %v6024, 0
        %v6077 = vsel %vm2563, %v6026, 0
        %v6080 = vsel %vm2563, %v6028, 0
        %v6083 = vsel %vm2563, %v6030, 0
        %v6086 = vsel %vm2563, %v6032, 0
        %v6089 = vsel %vm2563, %v6034, 0
        %v6092 = vsel %vm2563, %v6036, 0
        %v6095 = vsel %vm2563, %v6038, 0
        %v6098 = vsel %vm2563, %v6040, 0
        %v6101 = vsel %vm2563, %v6042, 0
        %6103 = vmatprep.subr.bf16.mxu0 0
        %6104 = vmatpush1.bf16.msra.mxu0 %v6051
        %6105 = vmatprep.subr.bf16.mxu0 0
        %6106 = vmatpush1.bf16.msra.mxu0 %v6052
        %6107 = vmatprep.subr.bf16.mxu0 0
        %6108 = vmatpush1.bf16.msra.mxu0 0
        %6109 = vmatprep.subr.bf16.mxu0 0
        %6110 = vmatpush1.bf16.msra.mxu0 0
        %6111 = vmatprep.subr.bf16.mxu0 0
        %6112 = vmatpush1.bf16.msra.mxu0 0
        %6113 = vmatprep.subr.bf16.mxu0 0
        %6114 = vmatpush1.bf16.msra.mxu0 0
        %6115 = vmatprep.subr.bf16.mxu0 0
        %6116 = vmatpush1.bf16.msra.mxu0 0
        %6117 = vmatprep.subr.bf16.mxu0 0
        %6118 = vmatpush1.bf16.msra.mxu0 0
        %6119 = vmatprep.subr.bf16.mxu0 0
        %6120 = vmatpush1.bf16.msra.mxu0 0
        %6121 = vmatprep.subr.bf16.mxu0 0
        %6122 = vmatpush1.bf16.msra.mxu0 0
        %6123 = vmatprep.subr.bf16.mxu0 0
        %6124 = vmatpush1.bf16.msra.mxu0 0
        %6125 = vmatprep.subr.bf16.mxu0 0
        %6126 = vmatpush1.bf16.msra.mxu0 0
        %6127 = vmatprep.subr.bf16.mxu0 0
        %6128 = vmatpush1.bf16.msra.mxu0 0
        %6129 = vmatprep.subr.bf16.mxu0 0
        %6130 = vmatpush1.bf16.msra.mxu0 0
        %6131 = vmatprep.subr.bf16.mxu0 0
        %6132 = vmatpush1.bf16.msra.mxu0 0
        %6133 = vmatprep.subr.bf16.mxu0 0
        %6134 = vmatpush1.bf16.msra.mxu0 0
        %6135 = vmatprep.mubr.bf16.mxu0 0
        %6136 = vmatmul.mubr.bf16.gmra.mrb[0].mxu0 %v2565
        %v6137 = vpop.f32.mrb[0].mxu0
        %v6138 = vadd.f32 %v5741, %v6137
        %v6139 = vpop.f32.mrb[0].mxu0
        %v6140 = vpop.f32.mrb[0].mxu0
        %v6141 = vadd.f32 %v5744, %v6140
        %v6142 = vpop.f32.mrb[0].mxu0
        %6143 = vmatprep.mubr.bf16.mxu0 0
        %6144 = vmatmul.mubr.bf16.gmra.mrb[0].mxu0 %v2568
        %v6145 = vpop.f32.mrb[0].mxu0
        %v6146 = vadd.f32 %v5749, %v6145
        %v6147 = vpop.f32.mrb[0].mxu0
        %v6148 = vpop.f32.mrb[0].mxu0
        %v6149 = vadd.f32 %v5752, %v6148
        %v6150 = vpop.f32.mrb[0].mxu0
        %6151 = vmatprep.mubr.bf16.mxu0 0
        %6152 = vmatmul.mubr.bf16.gmra.mrb[0].mxu0 %v2571
        %v6153 = vpop.f32.mrb[0].mxu0
        %v6154 = vadd.f32 %v5757, %v6153
        %v6155 = vpop.f32.mrb[0].mxu0
        %v6156 = vpop.f32.mrb[0].mxu0
        %v6157 = vadd.f32 %v5760, %v6156
        %v6158 = vpop.f32.mrb[0].mxu0
        %6159 = vmatprep.mubr.bf16.mxu0 0
        %6160 = vmatmul.mubr.bf16.gmra.mrb[0].mxu0 %v2574
        %v6161 = vpop.f32.mrb[0].mxu0
        %v6162 = vadd.f32 %v5765, %v6161
        %v6163 = vpop.f32.mrb[0].mxu0
        %v6164 = vpop.f32.mrb[0].mxu0
        %v6165 = vadd.f32 %v5768, %v6164
        %v6166 = vpop.f32.mrb[0].mxu0
        %6167 = vmatprep.mubr.bf16.mxu0 0
        %6168 = vmatmul.mubr.bf16.gmra.mrb[0].mxu0 %v2577
        %v6169 = vpop.f32.mrb[0].mxu0
        %v6170 = vadd.f32 %v5773, %v6169
        %v6171 = vpop.f32.mrb[0].mxu0
        %v6172 = vpop.f32.mrb[0].mxu0
        %v6173 = vadd.f32 %v5776, %v6172
        %v6174 = vpop.f32.mrb[0].mxu0
        %6175 = vmatprep.mubr.bf16.mxu0 0
        %6176 = vmatmul.mubr.bf16.gmra.mrb[0].mxu0 %v2580
        %v6177 = vpop.f32.mrb[0].mxu0
        %v6178 = vadd.f32 %v5781, %v6177
        %v6179 = vpop.f32.mrb[0].mxu0
        %v6180 = vpop.f32.mrb[0].mxu0
        %v6181 = vadd.f32 %v5784, %v6180
        %v6182 = vpop.f32.mrb[0].mxu0
        %6183 = vmatprep.mubr.bf16.mxu0 0
        %6184 = vmatmul.mubr.bf16.gmra.mrb[0].mxu0 %v2583
        %v6185 = vpop.f32.mrb[0].mxu0
        %v6186 = vadd.f32 %v5789, %v6185
        %v6187 = vpop.f32.mrb[0].mxu0
        %v6188 = vpop.f32.mrb[0].mxu0
        %v6189 = vadd.f32 %v5792, %v6188
        %v6190 = vpop.f32.mrb[0].mxu0
        %6191 = vmatprep.mubr.bf16.mxu0 0
        %6192 = vmatmul.mubr.bf16.gmra.mrb[0].mxu0 %v2586
        %v6193 = vpop.f32.mrb[0].mxu0
        %v6194 = vadd.f32 %v5797, %v6193
        %v6195 = vpop.f32.mrb[0].mxu0
        %v6196 = vpop.f32.mrb[0].mxu0
        %v6197 = vadd.f32 %v5800, %v6196
        %v6198 = vpop.f32.mrb[0].mxu0
        %6199 = vmatprep.mubr.bf16.mxu0 0
        %6200 = vmatmul.mubr.bf16.gmra.mrb[0].mxu0 %v2589
        %v6201 = vpop.f32.mrb[0].mxu0
        %v6202 = vadd.f32 %v5805, %v6201
        %v6203 = vpop.f32.mrb[0].mxu0
        %v6204 = vpop.f32.mrb[0].mxu0
        %v6205 = vadd.f32 %v5808, %v6204
        %v6206 = vpop.f32.mrb[0].mxu0
        %6207 = vmatprep.mubr.bf16.mxu0 0
        %6208 = vmatmul.mubr.bf16.gmra.mrb[0].mxu0 %v2592
        %v6209 = vpop.f32.mrb[0].mxu0
        %v6210 = vadd.f32 %v5813, %v6209
        %v6211 = vpop.f32.mrb[0].mxu0
        %v6212 = vpop.f32.mrb[0].mxu0
        %v6213 = vadd.f32 %v5816, %v6212
        %v6214 = vpop.f32.mrb[0].mxu0
        %6215 = vmatprep.mubr.bf16.mxu0 0
        %6216 = vmatmul.mubr.bf16.gmra.mrb[0].mxu0 %v2595
        %v6217 = vpop.f32.mrb[0].mxu0
        %v6218 = vadd.f32 %v5821, %v6217
        %v6219 = vpop.f32.mrb[0].mxu0
        %v6220 = vpop.f32.mrb[0].mxu0
        %v6221 = vadd.f32 %v5824, %v6220
        %v6222 = vpop.f32.mrb[0].mxu0
        %6223 = vmatprep.mubr.bf16.mxu0 0
        %6224 = vmatmul.mubr.bf16.gmra.mrb[0].mxu0 %v2598
        %v6225 = vpop.f32.mrb[0].mxu0
        %v6226 = vadd.f32 %v5829, %v6225
        %v6227 = vpop.f32.mrb[0].mxu0
        %v6228 = vpop.f32.mrb[0].mxu0
        %v6229 = vadd.f32 %v5832, %v6228
        %v6230 = vpop.f32.mrb[0].mxu0
        %6231 = vmatprep.mubr.bf16.mxu0 0
        %6232 = vmatmul.mubr.bf16.gmra.mrb[0].mxu0 %v2601
        %v6233 = vpop.f32.mrb[0].mxu0
        %v6234 = vadd.f32 %v5837, %v6233
        %v6235 = vpop.f32.mrb[0].mxu0
        %v6236 = vpop.f32.mrb[0].mxu0
        %v6237 = vadd.f32 %v5840, %v6236
        %v6238 = vpop.f32.mrb[0].mxu0
        %6239 = vmatprep.mubr.bf16.mxu0 0
        %6240 = vmatmul.mubr.bf16.gmra.mrb[0].mxu0 %v2604
        %v6241 = vpop.f32.mrb[0].mxu0
        %v6242 = vadd.f32 %v5845, %v6241
        %v6243 = vpop.f32.mrb[0].mxu0
        %v6244 = vpop.f32.mrb[0].mxu0
        %v6245 = vadd.f32 %v5848, %v6244
        %v6246 = vpop.f32.mrb[0].mxu0
        %6247 = vmatprep.mubr.bf16.mxu0 0
        %6248 = vmatmul.mubr.bf16.gmra.mrb[0].mxu0 %v2607
        %v6249 = vpop.f32.mrb[0].mxu0
        %v6250 = vadd.f32 %v5853, %v6249
        %v6251 = vpop.f32.mrb[0].mxu0
        %v6252 = vpop.f32.mrb[0].mxu0
        %v6253 = vadd.f32 %v5856, %v6252
        %v6254 = vpop.f32.mrb[0].mxu0
        %6255 = vmatprep.mubr.bf16.mxu0 0
        %6256 = vmatmul.mubr.bf16.gmra.mrb[0].mxu0 %v2610
        %v6257 = vpop.f32.mrb[0].mxu0
        %v6258 = vadd.f32 %v5861, %v6257
        %v6259 = vpop.f32.mrb[0].mxu0
        %v6260 = vpop.f32.mrb[0].mxu0
        %v6261 = vadd.f32 %v5864, %v6260
        %v6262 = vpop.f32.mrb[0].mxu0
        %6263 = vmatprep.mubr.bf16.mxu0 0
        %6264 = vmatmul.mubr.bf16.gmra.mrb[0].mxu0 %v6056
        %v6265 = vpop.f32.mrb[0].mxu0
        %v6266 = vadd.f32 %v5869, %v6265
        %v6267 = vpop.f32.mrb[0].mxu0
        %v6268 = vpop.f32.mrb[0].mxu0
        %v6269 = vadd.f32 %v5872, %v6268
        %v6270 = vpop.f32.mrb[0].mxu0
        %6271 = vmatprep.mubr.bf16.mxu0 0
        %6272 = vmatmul.mubr.bf16.gmra.mrb[0].mxu0 %v6059
        %v6273 = vpop.f32.mrb[0].mxu0
        %v6274 = vadd.f32 %v5877, %v6273
        %v6275 = vpop.f32.mrb[0].mxu0
        %v6276 = vpop.f32.mrb[0].mxu0
        %v6277 = vadd.f32 %v5880, %v6276
        %v6278 = vpop.f32.mrb[0].mxu0
        %6279 = vmatprep.mubr.bf16.mxu0 0
        %6280 = vmatmul.mubr.bf16.gmra.mrb[0].mxu0 %v6062
        %v6281 = vpop.f32.mrb[0].mxu0
        %v6282 = vadd.f32 %v5885, %v6281
        %v6283 = vpop.f32.mrb[0].mxu0
        %v6284 = vpop.f32.mrb[0].mxu0
        %v6285 = vadd.f32 %v5888, %v6284
        %v6286 = vpop.f32.mrb[0].mxu0
        %6287 = vmatprep.mubr.bf16.mxu0 0
        %6288 = vmatmul.mubr.bf16.gmra.mrb[0].mxu0 %v6065
        %v6289 = vpop.f32.mrb[0].mxu0
        %v6290 = vadd.f32 %v5893, %v6289
        %v6291 = vpop.f32.mrb[0].mxu0
        %v6292 = vpop.f32.mrb[0].mxu0
        %v6293 = vadd.f32 %v5896, %v6292
        %v6294 = vpop.f32.mrb[0].mxu0
        %6295 = vmatprep.mubr.bf16.mxu0 0
        %6296 = vmatmul.mubr.bf16.gmra.mrb[0].mxu0 %v6068
        %v6297 = vpop.f32.mrb[0].mxu0
        %v6298 = vadd.f32 %v5901, %v6297
        %v6299 = vpop.f32.mrb[0].mxu0
        %v6300 = vpop.f32.mrb[0].mxu0
        %v6301 = vadd.f32 %v5904, %v6300
        %v6302 = vpop.f32.mrb[0].mxu0
        %6303 = vmatprep.mubr.bf16.mxu0 0
        %6304 = vmatmul.mubr.bf16.gmra.mrb[0].mxu0 %v6071
        %v6305 = vpop.f32.mrb[0].mxu0
        %v6306 = vadd.f32 %v5909, %v6305
        %v6307 = vpop.f32.mrb[0].mxu0
        %v6308 = vpop.f32.mrb[0].mxu0
        %v6309 = vadd.f32 %v5912, %v6308
        %v6310 = vpop.f32.mrb[0].mxu0
        %6311 = vmatprep.mubr.bf16.mxu0 0
        %6312 = vmatmul.mubr.bf16.gmra.mrb[0].mxu0 %v6074
        %v6313 = vpop.f32.mrb[0].mxu0
        %v6314 = vadd.f32 %v5917, %v6313
        %v6315 = vpop.f32.mrb[0].mxu0
        %v6316 = vpop.f32.mrb[0].mxu0
        %v6317 = vadd.f32 %v5920, %v6316
        %v6318 = vpop.f32.mrb[0].mxu0
        %6319 = vmatprep.mubr.bf16.mxu0 0
        %6320 = vmatmul.mubr.bf16.gmra.mrb[0].mxu0 %v6077
        %v6321 = vpop.f32.mrb[0].mxu0
        %v6322 = vadd.f32 %v5925, %v6321
        %v6323 = vpop.f32.mrb[0].mxu0
        %v6324 = vpop.f32.mrb[0].mxu0
        %v6325 = vadd.f32 %v5928, %v6324
        %v6326 = vpop.f32.mrb[0].mxu0
        %6327 = vmatprep.mubr.bf16.mxu0 0
        %6328 = vmatmul.mubr.bf16.gmra.mrb[0].mxu0 %v6080
        %v6329 = vpop.f32.mrb[0].mxu0
        %v6330 = vadd.f32 %v5933, %v6329
        %v6331 = vpop.f32.mrb[0].mxu0
        %v6332 = vpop.f32.mrb[0].mxu0
        %v6333 = vadd.f32 %v5936, %v6332
        %v6334 = vpop.f32.mrb[0].mxu0
        %6335 = vmatprep.mubr.bf16.mxu0 0
        %6336 = vmatmul.mubr.bf16.gmra.mrb[0].mxu0 %v6083
        %v6337 = vpop.f32.mrb[0].mxu0
        %v6338 = vadd.f32 %v5941, %v6337
        %v6339 = vpop.f32.mrb[0].mxu0
        %v6340 = vpop.f32.mrb[0].mxu0
        %v6341 = vadd.f32 %v5944, %v6340
        %v6342 = vpop.f32.mrb[0].mxu0
        %6343 = vmatprep.mubr.bf16.mxu0 0
        %6344 = vmatmul.mubr.bf16.gmra.mrb[0].mxu0 %v6086
        %v6345 = vpop.f32.mrb[0].mxu0
        %v6346 = vadd.f32 %v5949, %v6345
        %v6347 = vpop.f32.mrb[0].mxu0
        %v6348 = vpop.f32.mrb[0].mxu0
        %v6349 = vadd.f32 %v5952, %v6348
        %v6350 = vpop.f32.mrb[0].mxu0
        %6351 = vmatprep.mubr.bf16.mxu0 0
        %6352 = vmatmul.mubr.bf16.gmra.mrb[0].mxu0 %v6089
        %v6353 = vpop.f32.mrb[0].mxu0
        %v6354 = vadd.f32 %v5957, %v6353
        %v6355 = vpop.f32.mrb[0].mxu0
        %v6356 = vpop.f32.mrb[0].mxu0
        %v6357 = vadd.f32 %v5960, %v6356
        %v6358 = vpop.f32.mrb[0].mxu0
        %6359 = vmatprep.mubr.bf16.mxu0 0
        %6360 = vmatmul.mubr.bf16.gmra.mrb[0].mxu0 %v6092
        %v6361 = vpop.f32.mrb[0].mxu0
        %v6362 = vadd.f32 %v5965, %v6361
        %v6363 = vpop.f32.mrb[0].mxu0
        %v6364 = vpop.f32.mrb[0].mxu0
        %v6365 = vadd.f32 %v5968, %v6364
        %v6366 = vpop.f32.mrb[0].mxu0
        %6367 = vmatprep.mubr.bf16.mxu0 0
        %6368 = vmatmul.mubr.bf16.gmra.mrb[0].mxu0 %v6095
        %v6369 = vpop.f32.mrb[0].mxu0
        %v6370 = vadd.f32 %v5973, %v6369
        %v6371 = vpop.f32.mrb[0].mxu0
        %v6372 = vpop.f32.mrb[0].mxu0
        %v6373 = vadd.f32 %v5976, %v6372
        %v6374 = vpop.f32.mrb[0].mxu0
        %6375 = vmatprep.mubr.bf16.mxu0 0
        %6376 = vmatmul.mubr.bf16.gmra.mrb[0].mxu0 %v6098
        %v6377 = vpop.f32.mrb[0].mxu0
        %v6378 = vadd.f32 %v5981, %v6377
        %v6379 = vpop.f32.mrb[0].mxu0
        %v6380 = vpop.f32.mrb[0].mxu0
        %v6381 = vadd.f32 %v5984, %v6380
        %v6382 = vpop.f32.mrb[0].mxu0
        %6383 = vmatprep.mubr.bf16.mxu0 0
        %6384 = vmatmul.mubr.bf16.gmra.mrb[0].mxu0 %v6101
        %v6385 = vpop.f32.mrb[0].mxu0
        %v6386 = vadd.f32 %v5989, %v6385
        %v6387 = vpop.f32.mrb[0].mxu0
        %v6388 = vpop.f32.mrb[0].mxu0
        %v6389 = vadd.f32 %v5992, %v6388
        %v6390 = vpop.f32.mrb[0].mxu0
        %6391 = vdwg.mxu0
        %v6392 = vadd.f32 %v6138, %v305
        %v6393 = vadd.f32 %v6141, %v305
        %v6394 = vadd.f32 %v6146, %v305
        %v6395 = vadd.f32 %v6149, %v305
        %v6396 = vadd.f32 %v6154, %v305
        %v6397 = vadd.f32 %v6157, %v305
        %v6398 = vadd.f32 %v6162, %v305
        %v6399 = vadd.f32 %v6165, %v305
        %v6400 = vadd.f32 %v6170, %v305
        %v6401 = vadd.f32 %v6173, %v305
        %v6402 = vadd.f32 %v6178, %v305
        %v6403 = vadd.f32 %v6181, %v305
        %v6404 = vadd.f32 %v6186, %v305
        %v6405 = vadd.f32 %v6189, %v305
        %v6406 = vadd.f32 %v6194, %v305
        %v6407 = vadd.f32 %v6197, %v305
        %v6408 = vadd.f32 %v6202, %v305
        %v6409 = vadd.f32 %v6205, %v305
        %v6410 = vadd.f32 %v6210, %v305
        %v6411 = vadd.f32 %v6213, %v305
        %v6412 = vadd.f32 %v6218, %v305
        %v6413 = vadd.f32 %v6221, %v305
        %v6414 = vadd.f32 %v6226, %v305
        %v6415 = vadd.f32 %v6229, %v305
        %v6416 = vadd.f32 %v6234, %v305
        %v6417 = vadd.f32 %v6237, %v305
        %v6418 = vadd.f32 %v6242, %v305
        %v6419 = vadd.f32 %v6245, %v305
        %v6420 = vadd.f32 %v6250, %v305
        %v6421 = vadd.f32 %v6253, %v305
        %v6422 = vadd.f32 %v6258, %v305
        %v6423 = vadd.f32 %v6261, %v305
        %v6424 = vadd.f32 %v6266, %v305
        %v6425 = vadd.f32 %v6269, %v305
        %v6426 = vadd.f32 %v6274, %v305
        %v6427 = vadd.f32 %v6277, %v305
        %v6428 = vadd.f32 %v6282, %v305
        %v6429 = vadd.f32 %v6285, %v305
        %v6430 = vadd.f32 %v6290, %v305
        %v6431 = vadd.f32 %v6293, %v305
        %v6432 = vadd.f32 %v6298, %v305
        %v6433 = vadd.f32 %v6301, %v305
        %v6434 = vadd.f32 %v6306, %v305
        %v6435 = vadd.f32 %v6309, %v305
        %v6436 = vadd.f32 %v6314, %v305
        %v6437 = vadd.f32 %v6317, %v305
        %v6438 = vadd.f32 %v6322, %v305
        %v6439 = vadd.f32 %v6325, %v305
        %v6440 = vadd.f32 %v6330, %v305
        %v6441 = vadd.f32 %v6333, %v305
        %v6442 = vadd.f32 %v6338, %v305
        %v6443 = vadd.f32 %v6341, %v305
        %v6444 = vadd.f32 %v6346, %v305
        %v6445 = vadd.f32 %v6349, %v305
        %v6446 = vadd.f32 %v6354, %v305
        %v6447 = vadd.f32 %v6357, %v305
        %v6448 = vadd.f32 %v6362, %v305
        %v6449 = vadd.f32 %v6365, %v305
        %v6450 = vadd.f32 %v6370, %v305
        %v6451 = vadd.f32 %v6373, %v305
        %v6452 = vadd.f32 %v6378, %v305
        %v6453 = vadd.f32 %v6381, %v305
        %v6454 = vadd.f32 %v6386, %v305
        %v6455 = vadd.f32 %v6389, %v305
        %v6456 = vmax.f32 %v6392, %v6424
        %v6457 = vmax.f32 %v6393, %v6425
        %v6458 = vmax.f32 %v6394, %v6426
        %v6459 = vmax.f32 %v6395, %v6427
        %v6460 = vmax.f32 %v6396, %v6428
        %v6461 = vmax.f32 %v6397, %v6429
        %v6462 = vmax.f32 %v6398, %v6430
        %v6463 = vmax.f32 %v6399, %v6431
        %v6464 = vmax.f32 %v6400, %v6432
        %v6465 = vmax.f32 %v6401, %v6433
        %v6466 = vmax.f32 %v6402, %v6434
        %v6467 = vmax.f32 %v6403, %v6435
        %v6468 = vmax.f32 %v6404, %v6436
        %v6469 = vmax.f32 %v6405, %v6437
        %v6470 = vmax.f32 %v6406, %v6438
        %v6471 = vmax.f32 %v6407, %v6439
        %v6472 = vmax.f32 %v6408, %v6440
        %v6473 = vmax.f32 %v6409, %v6441
        %v6474 = vmax.f32 %v6410, %v6442
        %v6475 = vmax.f32 %v6411, %v6443
        %v6476 = vmax.f32 %v6412, %v6444
        %v6477 = vmax.f32 %v6413, %v6445
        %v6478 = vmax.f32 %v6414, %v6446
        %v6479 = vmax.f32 %v6415, %v6447
        %v6480 = vmax.f32 %v6416, %v6448
        %v6481 = vmax.f32 %v6417, %v6449
        %v6482 = vmax.f32 %v6418, %v6450
        %v6483 = vmax.f32 %v6419, %v6451
        %v6484 = vmax.f32 %v6420, %v6452
        %v6485 = vmax.f32 %v6421, %v6453
        %v6486 = vmax.f32 %v6422, %v6454
        %v6487 = vmax.f32 %v6423, %v6455
        %v6488 = vsub.f32 %v6392, %v6456
        %v6489 = vsub.f32 %v6393, %v6457
        %v6490 = vsub.f32 %v6394, %v6458
        %v6491 = vsub.f32 %v6395, %v6459
        %v6492 = vsub.f32 %v6396, %v6460
        %v6493 = vsub.f32 %v6397, %v6461
        %v6494 = vsub.f32 %v6398, %v6462
        %v6495 = vsub.f32 %v6399, %v6463
        %v6496 = vsub.f32 %v6400, %v6464
        %v6497 = vsub.f32 %v6401, %v6465
        %v6498 = vsub.f32 %v6402, %v6466
        %v6499 = vsub.f32 %v6403, %v6467
        %v6500 = vsub.f32 %v6404, %v6468
        %v6501 = vsub.f32 %v6405, %v6469
        %v6502 = vsub.f32 %v6406, %v6470
        %v6503 = vsub.f32 %v6407, %v6471
        %v6504 = vsub.f32 %v6408, %v6472
        %v6505 = vsub.f32 %v6409, %v6473
        %v6506 = vsub.f32 %v6410, %v6474
        %v6507 = vsub.f32 %v6411, %v6475
        %v6508 = vsub.f32 %v6412, %v6476
        %v6509 = vsub.f32 %v6413, %v6477
        %v6510 = vsub.f32 %v6414, %v6478
        %v6511 = vsub.f32 %v6415, %v6479
        %v6512 = vsub.f32 %v6416, %v6480
        %v6513 = vsub.f32 %v6417, %v6481
        %v6514 = vsub.f32 %v6418, %v6482
        %v6515 = vsub.f32 %v6419, %v6483
        %v6516 = vsub.f32 %v6420, %v6484
        %v6517 = vsub.f32 %v6421, %v6485
        %v6518 = vsub.f32 %v6422, %v6486
        %v6519 = vsub.f32 %v6423, %v6487
        %v6520 = vmul.f32 %v6488, 1.442695
        %v6521 = vpow.pop %v6520
        %v6522 = vmul.f32 %v6489, 1.442695
        %v6523 = vpow.pop %v6522
        %v6524 = vmul.f32 %v6490, 1.442695
        %v6525 = vpow.pop %v6524
        %v6526 = vmul.f32 %v6491, 1.442695
        %v6527 = vpow.pop %v6526
        %v6528 = vmul.f32 %v6492, 1.442695
        %v6529 = vpow.pop %v6528
        %v6530 = vmul.f32 %v6493, 1.442695
        %v6531 = vpow.pop %v6530
        %v6532 = vmul.f32 %v6494, 1.442695
        %v6533 = vpow.pop %v6532
        %v6534 = vmul.f32 %v6495, 1.442695
        %v6535 = vpow.pop %v6534
        %v6536 = vmul.f32 %v6496, 1.442695
        %v6537 = vpow.pop %v6536
        %v6538 = vmul.f32 %v6497, 1.442695
        %v6539 = vpow.pop %v6538
        %v6540 = vmul.f32 %v6498, 1.442695
        %v6541 = vpow.pop %v6540
        %v6542 = vmul.f32 %v6499, 1.442695
        %v6543 = vpow.pop %v6542
        %v6544 = vmul.f32 %v6500, 1.442695
        %v6545 = vpow.pop %v6544
        %v6546 = vmul.f32 %v6501, 1.442695
        %v6547 = vpow.pop %v6546
        %v6548 = vmul.f32 %v6502, 1.442695
        %v6549 = vpow.pop %v6548
        %v6550 = vmul.f32 %v6503, 1.442695
        %v6551 = vpow.pop %v6550
        %v6552 = vmul.f32 %v6504, 1.442695
        %v6553 = vpow.pop %v6552
        %v6554 = vmul.f32 %v6505, 1.442695
        %v6555 = vpow.pop %v6554
        %v6556 = vmul.f32 %v6506, 1.442695
        %v6557 = vpow.pop %v6556
        %v6558 = vmul.f32 %v6507, 1.442695
        %v6559 = vpow.pop %v6558
        %v6560 = vmul.f32 %v6508, 1.442695
        %v6561 = vpow.pop %v6560
        %v6562 = vmul.f32 %v6509, 1.442695
        %v6563 = vpow.pop %v6562
        %v6564 = vmul.f32 %v6510, 1.442695
        %v6565 = vpow.pop %v6564
        %v6566 = vmul.f32 %v6511, 1.442695
        %v6567 = vpow.pop %v6566
        %v6568 = vmul.f32 %v6512, 1.442695
        %v6569 = vpow.pop %v6568
        %v6570 = vmul.f32 %v6513, 1.442695
        %v6571 = vpow.pop %v6570
        %v6572 = vmul.f32 %v6514, 1.442695
        %v6573 = vpow.pop %v6572
        %v6574 = vmul.f32 %v6515, 1.442695
        %v6575 = vpow.pop %v6574
        %v6576 = vmul.f32 %v6516, 1.442695
        %v6577 = vpow.pop %v6576
        %v6578 = vmul.f32 %v6517, 1.442695
        %v6579 = vpow.pop %v6578
        %v6580 = vmul.f32 %v6518, 1.442695
        %v6581 = vpow.pop %v6580
        %v6582 = vmul.f32 %v6519, 1.442695
        %v6583 = vpow.pop %v6582
        %v6584 = vsub.f32 %v6424, %v6456
        %v6585 = vsub.f32 %v6425, %v6457
        %v6586 = vsub.f32 %v6426, %v6458
        %v6587 = vsub.f32 %v6427, %v6459
        %v6588 = vsub.f32 %v6428, %v6460
        %v6589 = vsub.f32 %v6429, %v6461
        %v6590 = vsub.f32 %v6430, %v6462
        %v6591 = vsub.f32 %v6431, %v6463
        %v6592 = vsub.f32 %v6432, %v6464
        %v6593 = vsub.f32 %v6433, %v6465
        %v6594 = vsub.f32 %v6434, %v6466
        %v6595 = vsub.f32 %v6435, %v6467
        %v6596 = vsub.f32 %v6436, %v6468
        %v6597 = vsub.f32 %v6437, %v6469
        %v6598 = vsub.f32 %v6438, %v6470
        %v6599 = vsub.f32 %v6439, %v6471
        %v6600 = vsub.f32 %v6440, %v6472
        %v6601 = vsub.f32 %v6441, %v6473
        %v6602 = vsub.f32 %v6442, %v6474
        %v6603 = vsub.f32 %v6443, %v6475
        %v6604 = vsub.f32 %v6444, %v6476
        %v6605 = vsub.f32 %v6445, %v6477
        %v6606 = vsub.f32 %v6446, %v6478
        %v6607 = vsub.f32 %v6447, %v6479
        %v6608 = vsub.f32 %v6448, %v6480
        %v6609 = vsub.f32 %v6449, %v6481
        %v6610 = vsub.f32 %v6450, %v6482
        %v6611 = vsub.f32 %v6451, %v6483
        %v6612 = vsub.f32 %v6452, %v6484
        %v6613 = vsub.f32 %v6453, %v6485
        %v6614 = vsub.f32 %v6454, %v6486
        %v6615 = vsub.f32 %v6455, %v6487
        %v6616 = vmul.f32 %v6584, 1.442695
        %v6617 = vpow.pop %v6616
        %v6618 = vmul.f32 %v6585, 1.442695
        %v6619 = vpow.pop %v6618
        %v6620 = vmul.f32 %v6586, 1.442695
        %v6621 = vpow.pop %v6620
        %v6622 = vmul.f32 %v6587, 1.442695
        %v6623 = vpow.pop %v6622
        %v6624 = vmul.f32 %v6588, 1.442695
        %v6625 = vpow.pop %v6624
        %v6626 = vmul.f32 %v6589, 1.442695
        %v6627 = vpow.pop %v6626
        %v6628 = vmul.f32 %v6590, 1.442695
        %v6629 = vpow.pop %v6628
        %v6630 = vmul.f32 %v6591, 1.442695
        %v6631 = vpow.pop %v6630
        %v6632 = vmul.f32 %v6592, 1.442695
        %v6633 = vpow.pop %v6632
        %v6634 = vmul.f32 %v6593, 1.442695
        %v6635 = vpow.pop %v6634
        %v6636 = vmul.f32 %v6594, 1.442695
        %v6637 = vpow.pop %v6636
        %v6638 = vmul.f32 %v6595, 1.442695
        %v6639 = vpow.pop %v6638
        %v6640 = vmul.f32 %v6596, 1.442695
        %v6641 = vpow.pop %v6640
        %v6642 = vmul.f32 %v6597, 1.442695
        %v6643 = vpow.pop %v6642
        %v6644 = vmul.f32 %v6598, 1.442695
        %v6645 = vpow.pop %v6644
        %v6646 = vmul.f32 %v6599, 1.442695
        %v6647 = vpow.pop %v6646
        %v6648 = vmul.f32 %v6600, 1.442695
        %v6649 = vpow.pop %v6648
        %v6650 = vmul.f32 %v6601, 1.442695
        %v6651 = vpow.pop %v6650
        %v6652 = vmul.f32 %v6602, 1.442695
        %v6653 = vpow.pop %v6652
        %v6654 = vmul.f32 %v6603, 1.442695
        %v6655 = vpow.pop %v6654
        %v6656 = vmul.f32 %v6604, 1.442695
        %v6657 = vpow.pop %v6656
        %v6658 = vmul.f32 %v6605, 1.442695
        %v6659 = vpow.pop %v6658
        %v6660 = vmul.f32 %v6606, 1.442695
        %v6661 = vpow.pop %v6660
        %v6662 = vmul.f32 %v6607, 1.442695
        %v6663 = vpow.pop %v6662
        %v6664 = vmul.f32 %v6608, 1.442695
        %v6665 = vpow.pop %v6664
        %v6666 = vmul.f32 %v6609, 1.442695
        %v6667 = vpow.pop %v6666
        %v6668 = vmul.f32 %v6610, 1.442695
        %v6669 = vpow.pop %v6668
        %v6670 = vmul.f32 %v6611, 1.442695
        %v6671 = vpow.pop %v6670
        %v6672 = vmul.f32 %v6612, 1.442695
        %v6673 = vpow.pop %v6672
        %v6674 = vmul.f32 %v6613, 1.442695
        %v6675 = vpow.pop %v6674
        %v6676 = vmul.f32 %v6614, 1.442695
        %v6677 = vpow.pop %v6676
        %v6678 = vmul.f32 %v6615, 1.442695
        %v6679 = vpow.pop %v6678
        %v6680 = vadd.f32 %v6521, %v6617
        %v6681 = vadd.f32 %v6523, %v6619
        %v6682 = vadd.f32 %v6525, %v6621
        %v6683 = vadd.f32 %v6527, %v6623
        %v6684 = vadd.f32 %v6529, %v6625
        %v6685 = vadd.f32 %v6531, %v6627
        %v6686 = vadd.f32 %v6533, %v6629
        %v6687 = vadd.f32 %v6535, %v6631
        %v6688 = vadd.f32 %v6537, %v6633
        %v6689 = vadd.f32 %v6539, %v6635
        %v6690 = vadd.f32 %v6541, %v6637
        %v6691 = vadd.f32 %v6543, %v6639
        %v6692 = vadd.f32 %v6545, %v6641
        %v6693 = vadd.f32 %v6547, %v6643
        %v6694 = vadd.f32 %v6549, %v6645
        %v6695 = vadd.f32 %v6551, %v6647
        %v6696 = vadd.f32 %v6553, %v6649
        %v6697 = vadd.f32 %v6555, %v6651
        %v6698 = vadd.f32 %v6557, %v6653
        %v6699 = vadd.f32 %v6559, %v6655
        %v6700 = vadd.f32 %v6561, %v6657
        %v6701 = vadd.f32 %v6563, %v6659
        %v6702 = vadd.f32 %v6565, %v6661
        %v6703 = vadd.f32 %v6567, %v6663
        %v6704 = vadd.f32 %v6569, %v6665
        %v6705 = vadd.f32 %v6571, %v6667
        %v6706 = vadd.f32 %v6573, %v6669
        %v6707 = vadd.f32 %v6575, %v6671
        %v6708 = vadd.f32 %v6577, %v6673
        %v6709 = vadd.f32 %v6579, %v6675
        %v6710 = vadd.f32 %v6581, %v6677
        %v6711 = vadd.f32 %v6583, %v6679
        %v6712 = vrcp.pop %v6680
        %v6713 = vrcp.pop %v6681
        %v6714 = vrcp.pop %v6682
        %v6715 = vrcp.pop %v6683
        %v6716 = vrcp.pop %v6684
        %v6717 = vrcp.pop %v6685
        %v6718 = vrcp.pop %v6686
        %v6719 = vrcp.pop %v6687
        %v6720 = vrcp.pop %v6688
        %v6721 = vrcp.pop %v6689
        %v6722 = vrcp.pop %v6690
        %v6723 = vrcp.pop %v6691
        %v6724 = vrcp.pop %v6692
        %v6725 = vrcp.pop %v6693
        %v6726 = vrcp.pop %v6694
        %v6727 = vrcp.pop %v6695
        %v6728 = vrcp.pop %v6696
        %v6729 = vrcp.pop %v6697
        %v6730 = vrcp.pop %v6698
        %v6731 = vrcp.pop %v6699
        %v6732 = vrcp.pop %v6700
        %v6733 = vrcp.pop %v6701
        %v6734 = vrcp.pop %v6702
        %v6735 = vrcp.pop %v6703
        %v6736 = vrcp.pop %v6704
        %v6737 = vrcp.pop %v6705
        %v6738 = vrcp.pop %v6706
        %v6739 = vrcp.pop %v6707
        %v6740 = vrcp.pop %v6708
        %v6741 = vrcp.pop %v6709
        %v6742 = vrcp.pop %v6710
        %v6743 = vrcp.pop %v6711
        %v6744 = vmul.f32 %v6521, %v6712
        %v6745 = vmul.f32 %v6523, %v6713
        %v6746 = vmul.f32 %v6525, %v6714
        %v6747 = vmul.f32 %v6527, %v6715
        %v6748 = vmul.f32 %v6529, %v6716
        %v6749 = vmul.f32 %v6531, %v6717
        %v6750 = vmul.f32 %v6533, %v6718
        %v6751 = vmul.f32 %v6535, %v6719
        %v6752 = vmul.f32 %v6537, %v6720
        %v6753 = vmul.f32 %v6539, %v6721
        %v6754 = vmul.f32 %v6541, %v6722
        %v6755 = vmul.f32 %v6543, %v6723
        %v6756 = vmul.f32 %v6545, %v6724
        %v6757 = vmul.f32 %v6547, %v6725
        %v6758 = vmul.f32 %v6549, %v6726
        %v6759 = vmul.f32 %v6551, %v6727
        %v6760 = vmul.f32 %v6553, %v6728
        %v6761 = vmul.f32 %v6555, %v6729
        %v6762 = vmul.f32 %v6557, %v6730
        %v6763 = vmul.f32 %v6559, %v6731
        %v6764 = vmul.f32 %v6561, %v6732
        %v6765 = vmul.f32 %v6563, %v6733
        %v6766 = vmul.f32 %v6565, %v6734
        %v6767 = vmul.f32 %v6567, %v6735
        %v6768 = vmul.f32 %v6569, %v6736
        %v6769 = vmul.f32 %v6571, %v6737
        %v6770 = vmul.f32 %v6573, %v6738
        %v6771 = vmul.f32 %v6575, %v6739
        %v6772 = vmul.f32 %v6577, %v6740
        %v6773 = vmul.f32 %v6579, %v6741
        %v6774 = vmul.f32 %v6581, %v6742
        %v6775 = vmul.f32 %v6583, %v6743
        %6777 = vset.pattern.permute.xlu0 0
        %6778 = vperm.xlu0 %6777, %v6744
        %v6779 = vpop.permute.xlu0 %6778
        %6782 = vset.pattern.permute.xlu0 0
        %6783 = vperm.xlu0 %6782, %v6745
        %v6784 = vpop.permute.xlu0 %6783
        %6787 = vset.pattern.permute.xlu0 0
        %6788 = vperm.xlu0 %6787, %v6746
        %v6789 = vpop.permute.xlu0 %6788
        %6792 = vset.pattern.permute.xlu0 0
        %6793 = vperm.xlu0 %6792, %v6747
        %v6794 = vpop.permute.xlu0 %6793
        %6797 = vset.pattern.permute.xlu0 0
        %6798 = vperm.xlu0 %6797, %v6748
        %v6799 = vpop.permute.xlu0 %6798
        %6802 = vset.pattern.permute.xlu0 0
        %6803 = vperm.xlu0 %6802, %v6749
        %v6804 = vpop.permute.xlu0 %6803
        %6807 = vset.pattern.permute.xlu0 0
        %6808 = vperm.xlu0 %6807, %v6750
        %v6809 = vpop.permute.xlu0 %6808
        %6812 = vset.pattern.permute.xlu0 0
        %6813 = vperm.xlu0 %6812, %v6751
        %v6814 = vpop.permute.xlu0 %6813
        %6817 = vset.pattern.permute.xlu0 0
        %6818 = vperm.xlu0 %6817, %v6752
        %v6819 = vpop.permute.xlu0 %6818
        %6822 = vset.pattern.permute.xlu0 0
        %6823 = vperm.xlu0 %6822, %v6753
        %v6824 = vpop.permute.xlu0 %6823
        %6827 = vset.pattern.permute.xlu0 0
        %6828 = vperm.xlu0 %6827, %v6754
        %v6829 = vpop.permute.xlu0 %6828
        %6832 = vset.pattern.permute.xlu0 0
        %6833 = vperm.xlu0 %6832, %v6755
        %v6834 = vpop.permute.xlu0 %6833
        %6837 = vset.pattern.permute.xlu0 0
        %6838 = vperm.xlu0 %6837, %v6756
        %v6839 = vpop.permute.xlu0 %6838
        %6842 = vset.pattern.permute.xlu0 0
        %6843 = vperm.xlu0 %6842, %v6757
        %v6844 = vpop.permute.xlu0 %6843
        %6847 = vset.pattern.permute.xlu0 0
        %6848 = vperm.xlu0 %6847, %v6758
        %v6849 = vpop.permute.xlu0 %6848
        %6852 = vset.pattern.permute.xlu0 0
        %6853 = vperm.xlu0 %6852, %v6759
        %v6854 = vpop.permute.xlu0 %6853
        %6857 = vset.pattern.permute.xlu0 0
        %6858 = vperm.xlu0 %6857, %v6760
        %v6859 = vpop.permute.xlu0 %6858
        %6862 = vset.pattern.permute.xlu0 0
        %6863 = vperm.xlu0 %6862, %v6761
        %v6864 = vpop.permute.xlu0 %6863
        %6867 = vset.pattern.permute.xlu0 0
        %6868 = vperm.xlu0 %6867, %v6762
        %v6869 = vpop.permute.xlu0 %6868
        %6872 = vset.pattern.permute.xlu0 0
        %6873 = vperm.xlu0 %6872, %v6763
        %v6874 = vpop.permute.xlu0 %6873
        %6877 = vset.pattern.permute.xlu0 0
        %6878 = vperm.xlu0 %6877, %v6764
        %v6879 = vpop.permute.xlu0 %6878
        %6882 = vset.pattern.permute.xlu0 0
        %6883 = vperm.xlu0 %6882, %v6765
        %v6884 = vpop.permute.xlu0 %6883
        %6887 = vset.pattern.permute.xlu0 0
        %6888 = vperm.xlu0 %6887, %v6766
        %v6889 = vpop.permute.xlu0 %6888
        %6892 = vset.pattern.permute.xlu0 0
        %6893 = vperm.xlu0 %6892, %v6767
        %v6894 = vpop.permute.xlu0 %6893
        %6897 = vset.pattern.permute.xlu0 0
        %6898 = vperm.xlu0 %6897, %v6768
        %v6899 = vpop.permute.xlu0 %6898
        %6902 = vset.pattern.permute.xlu0 0
        %6903 = vperm.xlu0 %6902, %v6769
        %v6904 = vpop.permute.xlu0 %6903
        %6907 = vset.pattern.permute.xlu0 0
        %6908 = vperm.xlu0 %6907, %v6770
        %v6909 = vpop.permute.xlu0 %6908
        %6912 = vset.pattern.permute.xlu0 0
        %6913 = vperm.xlu0 %6912, %v6771
        %v6914 = vpop.permute.xlu0 %6913
        %6917 = vset.pattern.permute.xlu0 0
        %6918 = vperm.xlu0 %6917, %v6772
        %v6919 = vpop.permute.xlu0 %6918
        %6922 = vset.pattern.permute.xlu0 0
        %6923 = vperm.xlu0 %6922, %v6773
        %v6924 = vpop.permute.xlu0 %6923
        %6927 = vset.pattern.permute.xlu0 0
        %6928 = vperm.xlu0 %6927, %v6774
        %v6929 = vpop.permute.xlu0 %6928
        %6932 = vset.pattern.permute.xlu0 0
        %6933 = vperm.xlu0 %6932, %v6775
        %v6934 = vpop.permute.xlu0 %6933
        %v6936 = vmul.f32 %v6779, %v939
        %v6937 = vmul.f32 %v6784, %v940
        %v6938 = vmul.f32 %v6789, %v941
        %v6939 = vmul.f32 %v6794, %v942
        %v6940 = vmul.f32 %v6799, %v943
        %v6941 = vmul.f32 %v6804, %v944
        %v6942 = vmul.f32 %v6809, %v945
        %v6943 = vmul.f32 %v6814, %v946
        %v6944 = vmul.f32 %v6819, %v947
        %v6945 = vmul.f32 %v6824, %v948
        %v6946 = vmul.f32 %v6829, %v949
        %v6947 = vmul.f32 %v6834, %v950
        %v6948 = vmul.f32 %v6839, %v951
        %v6949 = vmul.f32 %v6844, %v952
        %v6950 = vmul.f32 %v6849, %v953
        %v6951 = vmul.f32 %v6854, %v954
        %v6952 = vmul.f32 %v6859, %v955
        %v6953 = vmul.f32 %v6864, %v956
        %v6954 = vmul.f32 %v6869, %v957
        %v6955 = vmul.f32 %v6874, %v958
        %v6956 = vmul.f32 %v6879, %v959
        %v6957 = vmul.f32 %v6884, %v960
        %v6958 = vmul.f32 %v6889, %v961
        %v6959 = vmul.f32 %v6894, %v962
        %v6960 = vmul.f32 %v6899, %v963
        %v6961 = vmul.f32 %v6904, %v964
        %v6962 = vmul.f32 %v6909, %v965
        %v6963 = vmul.f32 %v6914, %v966
        %v6964 = vmul.f32 %v6919, %v967
        %v6965 = vmul.f32 %v6924, %v968
        %v6966 = vmul.f32 %v6929, %v969
        %v6967 = vmul.f32 %v6934, %v970
        %v6968 = vmul.f32 %v6617, %v6712
        %v6969 = vmul.f32 %v6619, %v6713
        %v6970 = vmul.f32 %v6621, %v6714
        %v6971 = vmul.f32 %v6623, %v6715
        %v6972 = vmul.f32 %v6625, %v6716
        %v6973 = vmul.f32 %v6627, %v6717
        %v6974 = vmul.f32 %v6629, %v6718
        %v6975 = vmul.f32 %v6631, %v6719
        %v6976 = vmul.f32 %v6633, %v6720
        %v6977 = vmul.f32 %v6635, %v6721
        %v6978 = vmul.f32 %v6637, %v6722
        %v6979 = vmul.f32 %v6639, %v6723
        %v6980 = vmul.f32 %v6641, %v6724
        %v6981 = vmul.f32 %v6643, %v6725
        %v6982 = vmul.f32 %v6645, %v6726
        %v6983 = vmul.f32 %v6647, %v6727
        %v6984 = vmul.f32 %v6649, %v6728
        %v6985 = vmul.f32 %v6651, %v6729
        %v6986 = vmul.f32 %v6653, %v6730
        %v6987 = vmul.f32 %v6655, %v6731
        %v6988 = vmul.f32 %v6657, %v6732
        %v6989 = vmul.f32 %v6659, %v6733
        %v6990 = vmul.f32 %v6661, %v6734
        %v6991 = vmul.f32 %v6663, %v6735
        %v6992 = vmul.f32 %v6665, %v6736
        %v6993 = vmul.f32 %v6667, %v6737
        %v6994 = vmul.f32 %v6669, %v6738
        %v6995 = vmul.f32 %v6671, %v6739
        %v6996 = vmul.f32 %v6673, %v6740
        %v6997 = vmul.f32 %v6675, %v6741
        %v6998 = vmul.f32 %v6677, %v6742
        %v6999 = vmul.f32 %v6679, %v6743
        %7001 = vset.pattern.permute.xlu0 0
        %7002 = vperm.xlu0 %7001, %v6968
        %v7003 = vpop.permute.xlu0 %7002
        %7006 = vset.pattern.permute.xlu0 0
        %7007 = vperm.xlu0 %7006, %v6969
        %v7008 = vpop.permute.xlu0 %7007
        %7011 = vset.pattern.permute.xlu0 0
        %7012 = vperm.xlu0 %7011, %v6970
        %v7013 = vpop.permute.xlu0 %7012
        %7016 = vset.pattern.permute.xlu0 0
        %7017 = vperm.xlu0 %7016, %v6971
        %v7018 = vpop.permute.xlu0 %7017
        %7021 = vset.pattern.permute.xlu0 0
        %7022 = vperm.xlu0 %7021, %v6972
        %v7023 = vpop.permute.xlu0 %7022
        %7026 = vset.pattern.permute.xlu0 0
        %7027 = vperm.xlu0 %7026, %v6973
        %v7028 = vpop.permute.xlu0 %7027
        %7031 = vset.pattern.permute.xlu0 0
        %7032 = vperm.xlu0 %7031, %v6974
        %v7033 = vpop.permute.xlu0 %7032
        %7036 = vset.pattern.permute.xlu0 0
        %7037 = vperm.xlu0 %7036, %v6975
        %v7038 = vpop.permute.xlu0 %7037
        %7041 = vset.pattern.permute.xlu0 0
        %7042 = vperm.xlu0 %7041, %v6976
        %v7043 = vpop.permute.xlu0 %7042
        %7046 = vset.pattern.permute.xlu0 0
        %7047 = vperm.xlu0 %7046, %v6977
        %v7048 = vpop.permute.xlu0 %7047
        %7051 = vset.pattern.permute.xlu0 0
        %7052 = vperm.xlu0 %7051, %v6978
        %v7053 = vpop.permute.xlu0 %7052
        %7056 = vset.pattern.permute.xlu0 0
        %7057 = vperm.xlu0 %7056, %v6979
        %v7058 = vpop.permute.xlu0 %7057
        %7061 = vset.pattern.permute.xlu0 0
        %7062 = vperm.xlu0 %7061, %v6980
        %v7063 = vpop.permute.xlu0 %7062
        %7066 = vset.pattern.permute.xlu0 0
        %7067 = vperm.xlu0 %7066, %v6981
        %v7068 = vpop.permute.xlu0 %7067
        %7071 = vset.pattern.permute.xlu0 0
        %7072 = vperm.xlu0 %7071, %v6982
        %v7073 = vpop.permute.xlu0 %7072
        %7076 = vset.pattern.permute.xlu0 0
        %7077 = vperm.xlu0 %7076, %v6983
        %v7078 = vpop.permute.xlu0 %7077
        %7081 = vset.pattern.permute.xlu0 0
        %7082 = vperm.xlu0 %7081, %v6984
        %v7083 = vpop.permute.xlu0 %7082
        %7086 = vset.pattern.permute.xlu0 0
        %7087 = vperm.xlu0 %7086, %v6985
        %v7088 = vpop.permute.xlu0 %7087
        %7091 = vset.pattern.permute.xlu0 0
        %7092 = vperm.xlu0 %7091, %v6986
        %v7093 = vpop.permute.xlu0 %7092
        %7096 = vset.pattern.permute.xlu0 0
        %7097 = vperm.xlu0 %7096, %v6987
        %v7098 = vpop.permute.xlu0 %7097
        %7101 = vset.pattern.permute.xlu0 0
        %7102 = vperm.xlu0 %7101, %v6988
        %v7103 = vpop.permute.xlu0 %7102
        %7106 = vset.pattern.permute.xlu0 0
        %7107 = vperm.xlu0 %7106, %v6989
        %v7108 = vpop.permute.xlu0 %7107
        %7111 = vset.pattern.permute.xlu0 0
        %7112 = vperm.xlu0 %7111, %v6990
        %v7113 = vpop.permute.xlu0 %7112
        %7116 = vset.pattern.permute.xlu0 0
        %7117 = vperm.xlu0 %7116, %v6991
        %v7118 = vpop.permute.xlu0 %7117
        %7121 = vset.pattern.permute.xlu0 0
        %7122 = vperm.xlu0 %7121, %v6992
        %v7123 = vpop.permute.xlu0 %7122
        %7126 = vset.pattern.permute.xlu0 0
        %7127 = vperm.xlu0 %7126, %v6993
        %v7128 = vpop.permute.xlu0 %7127
        %7131 = vset.pattern.permute.xlu0 0
        %7132 = vperm.xlu0 %7131, %v6994
        %v7133 = vpop.permute.xlu0 %7132
        %7136 = vset.pattern.permute.xlu0 0
        %7137 = vperm.xlu0 %7136, %v6995
        %v7138 = vpop.permute.xlu0 %7137
        %7141 = vset.pattern.permute.xlu0 0
        %7142 = vperm.xlu0 %7141, %v6996
        %v7143 = vpop.permute.xlu0 %7142
        %7146 = vset.pattern.permute.xlu0 0
        %7147 = vperm.xlu0 %7146, %v6997
        %v7148 = vpop.permute.xlu0 %7147
        %7151 = vset.pattern.permute.xlu0 0
        %7152 = vperm.xlu0 %7151, %v6998
        %v7153 = vpop.permute.xlu0 %7152
        %7156 = vset.pattern.permute.xlu0 0
        %7157 = vperm.xlu0 %7156, %v6999
        %v7158 = vpop.permute.xlu0 %7157
        %v7160 = vmul.f32 %v7003, %v1382
        %v7161 = vmul.f32 %v7008, %v1383
        %v7162 = vmul.f32 %v7013, %v1384
        %v7163 = vmul.f32 %v7018, %v1385
        %v7164 = vmul.f32 %v7023, %v1386
        %v7165 = vmul.f32 %v7028, %v1387
        %v7166 = vmul.f32 %v7033, %v1388
        %v7167 = vmul.f32 %v7038, %v1389
        %v7168 = vmul.f32 %v7043, %v1390
        %v7169 = vmul.f32 %v7048, %v1391
        %v7170 = vmul.f32 %v7053, %v1392
        %v7171 = vmul.f32 %v7058, %v1393
        %v7172 = vmul.f32 %v7063, %v1394
        %v7173 = vmul.f32 %v7068, %v1395
        %v7174 = vmul.f32 %v7073, %v1396
        %v7175 = vmul.f32 %v7078, %v1397
        %v7176 = vmul.f32 %v7083, %v1398
        %v7177 = vmul.f32 %v7088, %v1399
        %v7178 = vmul.f32 %v7093, %v1400
        %v7179 = vmul.f32 %v7098, %v1401
        %v7180 = vmul.f32 %v7103, %v1402
        %v7181 = vmul.f32 %v7108, %v1403
        %v7182 = vmul.f32 %v7113, %v1404
        %v7183 = vmul.f32 %v7118, %v1405
        %v7184 = vmul.f32 %v7123, %v1406
        %v7185 = vmul.f32 %v7128, %v1407
        %v7186 = vmul.f32 %v7133, %v1408
        %v7187 = vmul.f32 %v7138, %v1409
        %v7188 = vmul.f32 %v7143, %v1410
        %v7189 = vmul.f32 %v7148, %v1411
        %v7190 = vmul.f32 %v7153, %v1412
        %v7191 = vmul.f32 %v7158, %v1413
        %v7192 = vadd.f32 %v6936, %v7160
        %v7193 = vadd.f32 %v6937, %v7161
        %v7194 = vadd.f32 %v6938, %v7162
        %v7195 = vadd.f32 %v6939, %v7163
        %v7196 = vadd.f32 %v6940, %v7164
        %v7197 = vadd.f32 %v6941, %v7165
        %v7198 = vadd.f32 %v6942, %v7166
        %v7199 = vadd.f32 %v6943, %v7167
        %v7200 = vadd.f32 %v6944, %v7168
        %v7201 = vadd.f32 %v6945, %v7169
        %v7202 = vadd.f32 %v6946, %v7170
        %v7203 = vadd.f32 %v6947, %v7171
        %v7204 = vadd.f32 %v6948, %v7172
        %v7205 = vadd.f32 %v6949, %v7173
        %v7206 = vadd.f32 %v6950, %v7174
        %v7207 = vadd.f32 %v6951, %v7175
        %v7208 = vadd.f32 %v6952, %v7176
        %v7209 = vadd.f32 %v6953, %v7177
        %v7210 = vadd.f32 %v6954, %v7178
        %v7211 = vadd.f32 %v6955, %v7179
        %v7212 = vadd.f32 %v6956, %v7180
        %v7213 = vadd.f32 %v6957, %v7181
        %v7214 = vadd.f32 %v6958, %v7182
        %v7215 = vadd.f32 %v6959, %v7183
        %v7216 = vadd.f32 %v6960, %v7184
        %v7217 = vadd.f32 %v6961, %v7185
        %v7218 = vadd.f32 %v6962, %v7186
        %v7219 = vadd.f32 %v6963, %v7187
        %v7220 = vadd.f32 %v6964, %v7188
        %v7221 = vadd.f32 %v6965, %v7189
        %v7222 = vadd.f32 %v6966, %v7190
        %v7223 = vadd.f32 %v6967, %v7191
        %v7224 = vpack.c.bf16 %v7193, %v7192
        %v7225 = vpack.c.bf16 %v7195, %v7194
        %v7226 = vpack.c.bf16 %v7197, %v7196
        %v7227 = vpack.c.bf16 %v7199, %v7198
        %v7228 = vpack.c.bf16 %v7201, %v7200
        %v7229 = vpack.c.bf16 %v7203, %v7202
        %v7230 = vpack.c.bf16 %v7205, %v7204
        %v7231 = vpack.c.bf16 %v7207, %v7206
        %v7232 = vpack.c.bf16 %v7209, %v7208
        %v7233 = vpack.c.bf16 %v7211, %v7210
        %v7234 = vpack.c.bf16 %v7213, %v7212
        %v7235 = vpack.c.bf16 %v7215, %v7214
        %v7236 = vpack.c.bf16 %v7217, %v7216
        %v7237 = vpack.c.bf16 %v7219, %v7218
        %v7238 = vpack.c.bf16 %v7221, %v7220
        %v7239 = vpack.c.bf16 %v7223, %v7222
        %7240 = vmatprep.subr.bf16.mxu0 0
        %7241 = vmatpush1.bf16.msra.mxu0 %v7224
        %7242 = vmatprep.subr.bf16.mxu0 0
        %7243 = vmatpush1.bf16.msra.mxu0 %v7225
        %7244 = vmatprep.subr.bf16.mxu0 0
        %7245 = vmatpush1.bf16.msra.mxu0 %v7226
        %7246 = vmatprep.subr.bf16.mxu0 0
        %7247 = vmatpush1.bf16.msra.mxu0 %v7227
        %7248 = vmatprep.subr.bf16.mxu0 0
        %7249 = vmatpush1.bf16.msra.mxu0 %v7228
        %7250 = vmatprep.subr.bf16.mxu0 0
        %7251 = vmatpush1.bf16.msra.mxu0 %v7229
        %7252 = vmatprep.subr.bf16.mxu0 0
        %7253 = vmatpush1.bf16.msra.mxu0 %v7230
        %7254 = vmatprep.subr.bf16.mxu0 0
        %7255 = vmatpush1.bf16.msra.mxu0 %v7231
        %7256 = vmatprep.subr.bf16.mxu0 0
        %7257 = vmatpush1.bf16.msra.mxu0 %v7232
        %7258 = vmatprep.subr.bf16.mxu0 0
        %7259 = vmatpush1.bf16.msra.mxu0 %v7233
        %7260 = vmatprep.subr.bf16.mxu0 0
        %7261 = vmatpush1.bf16.msra.mxu0 %v7234
        %7262 = vmatprep.subr.bf16.mxu0 0
        %7263 = vmatpush1.bf16.msra.mxu0 %v7235
        %7264 = vmatprep.subr.bf16.mxu0 0
        %7265 = vmatpush1.bf16.msra.mxu0 %v7236
        %7266 = vmatprep.subr.bf16.mxu0 0
        %7267 = vmatpush1.bf16.msra.mxu0 %v7237
        %7268 = vmatprep.subr.bf16.mxu0 0
        %7269 = vmatpush1.bf16.msra.mxu0 %v7238
        %7270 = vmatprep.subr.bf16.mxu0 0
        %7271 = vmatpush1.bf16.msra.mxu0 %v7239
        %7272 = vmatprep.mubr.bf16.mxu0 %v715
        %7273 = vmatmul.mubr.bf16.gmra.mrb[0].mxu0 %v714
        %v7274 = vpop.f32.mrb[0].mxu0
        %v7275 = vadd.f32 0.0, %v7274
        %v7276 = vpop.f32.mrb[0].mxu0
        %v7277 = vpop.f32.mrb[0].mxu0
        %v7278 = vadd.f32 0.0, %v7277
        %v7279 = vpop.f32.mrb[0].mxu0
        %7280 = vmatprep.mubr.bf16.mxu0 %v717
        %7281 = vmatmul.mubr.bf16.gmra.mrb[0].mxu0 %v716
        %v7282 = vpop.f32.mrb[0].mxu0
        %v7283 = vadd.f32 0.0, %v7282
        %v7284 = vpop.f32.mrb[0].mxu0
        %v7285 = vpop.f32.mrb[0].mxu0
        %v7286 = vadd.f32 0.0, %v7285
        %v7287 = vpop.f32.mrb[0].mxu0
        %7288 = vmatprep.mubr.bf16.mxu0 %v719
        %7289 = vmatmul.mubr.bf16.gmra.mrb[0].mxu0 %v718
        %v7290 = vpop.f32.mrb[0].mxu0
        %v7291 = vadd.f32 0.0, %v7290
        %v7292 = vpop.f32.mrb[0].mxu0
        %v7293 = vpop.f32.mrb[0].mxu0
        %v7294 = vadd.f32 0.0, %v7293
        %v7295 = vpop.f32.mrb[0].mxu0
        %7296 = vmatprep.mubr.bf16.mxu0 %v721
        %7297 = vmatmul.mubr.bf16.gmra.mrb[0].mxu0 %v720
        %v7298 = vpop.f32.mrb[0].mxu0
        %v7299 = vadd.f32 0.0, %v7298
        %v7300 = vpop.f32.mrb[0].mxu0
        %v7301 = vpop.f32.mrb[0].mxu0
        %v7302 = vadd.f32 0.0, %v7301
        %v7303 = vpop.f32.mrb[0].mxu0
        %7304 = vmatprep.mubr.bf16.mxu0 %v723
        %7305 = vmatmul.mubr.bf16.gmra.mrb[0].mxu0 %v722
        %v7306 = vpop.f32.mrb[0].mxu0
        %v7307 = vadd.f32 0.0, %v7306
        %v7308 = vpop.f32.mrb[0].mxu0
        %v7309 = vpop.f32.mrb[0].mxu0
        %v7310 = vadd.f32 0.0, %v7309
        %v7311 = vpop.f32.mrb[0].mxu0
        %7312 = vmatprep.mubr.bf16.mxu0 %v725
        %7313 = vmatmul.mubr.bf16.gmra.mrb[0].mxu0 %v724
        %v7314 = vpop.f32.mrb[0].mxu0
        %v7315 = vadd.f32 0.0, %v7314
        %v7316 = vpop.f32.mrb[0].mxu0
        %v7317 = vpop.f32.mrb[0].mxu0
        %v7318 = vadd.f32 0.0, %v7317
        %v7319 = vpop.f32.mrb[0].mxu0
        %7320 = vmatprep.mubr.bf16.mxu0 %v727
        %7321 = vmatmul.mubr.bf16.gmra.mrb[0].mxu0 %v726
        %v7322 = vpop.f32.mrb[0].mxu0
        %v7323 = vadd.f32 0.0, %v7322
        %v7324 = vpop.f32.mrb[0].mxu0
        %v7325 = vpop.f32.mrb[0].mxu0
        %v7326 = vadd.f32 0.0, %v7325
        %v7327 = vpop.f32.mrb[0].mxu0
        %7328 = vmatprep.mubr.bf16.mxu0 %v729
        %7329 = vmatmul.mubr.bf16.gmra.mrb[0].mxu0 %v728
        %v7330 = vpop.f32.mrb[0].mxu0
        %v7331 = vadd.f32 0.0, %v7330
        %v7332 = vpop.f32.mrb[0].mxu0
        %v7333 = vpop.f32.mrb[0].mxu0
        %v7334 = vadd.f32 0.0, %v7333
        %v7335 = vpop.f32.mrb[0].mxu0
        %7336 = vmatprep.mubr.bf16.mxu0 %v731
        %7337 = vmatmul.mubr.bf16.gmra.mrb[0].mxu0 %v730
        %v7338 = vpop.f32.mrb[0].mxu0
        %v7339 = vadd.f32 0.0, %v7338
        %v7340 = vpop.f32.mrb[0].mxu0
        %v7341 = vpop.f32.mrb[0].mxu0
        %v7342 = vadd.f32 0.0, %v7341
        %v7343 = vpop.f32.mrb[0].mxu0
        %7344 = vmatprep.mubr.bf16.mxu0 %v733
        %7345 = vmatmul.mubr.bf16.gmra.mrb[0].mxu0 %v732
        %v7346 = vpop.f32.mrb[0].mxu0
        %v7347 = vadd.f32 0.0, %v7346
        %v7348 = vpop.f32.mrb[0].mxu0
        %v7349 = vpop.f32.mrb[0].mxu0
        %v7350 = vadd.f32 0.0, %v7349
        %v7351 = vpop.f32.mrb[0].mxu0
        %7352 = vmatprep.mubr.bf16.mxu0 %v735
        %7353 = vmatmul.mubr.bf16.gmra.mrb[0].mxu0 %v734
        %v7354 = vpop.f32.mrb[0].mxu0
        %v7355 = vadd.f32 0.0, %v7354
        %v7356 = vpop.f32.mrb[0].mxu0
        %v7357 = vpop.f32.mrb[0].mxu0
        %v7358 = vadd.f32 0.0, %v7357
        %v7359 = vpop.f32.mrb[0].mxu0
        %7360 = vmatprep.mubr.bf16.mxu0 %v737
        %7361 = vmatmul.mubr.bf16.gmra.mrb[0].mxu0 %v736
        %v7362 = vpop.f32.mrb[0].mxu0
        %v7363 = vadd.f32 0.0, %v7362
        %v7364 = vpop.f32.mrb[0].mxu0
        %v7365 = vpop.f32.mrb[0].mxu0
        %v7366 = vadd.f32 0.0, %v7365
        %v7367 = vpop.f32.mrb[0].mxu0
        %7368 = vmatprep.mubr.bf16.mxu0 %v739
        %7369 = vmatmul.mubr.bf16.gmra.mrb[0].mxu0 %v738
        %v7370 = vpop.f32.mrb[0].mxu0
        %v7371 = vadd.f32 0.0, %v7370
        %v7372 = vpop.f32.mrb[0].mxu0
        %v7373 = vpop.f32.mrb[0].mxu0
        %v7374 = vadd.f32 0.0, %v7373
        %v7375 = vpop.f32.mrb[0].mxu0
        %7376 = vmatprep.mubr.bf16.mxu0 %v741
        %7377 = vmatmul.mubr.bf16.gmra.mrb[0].mxu0 %v740
        %v7378 = vpop.f32.mrb[0].mxu0
        %v7379 = vadd.f32 0.0, %v7378
        %v7380 = vpop.f32.mrb[0].mxu0
        %v7381 = vpop.f32.mrb[0].mxu0
        %v7382 = vadd.f32 0.0, %v7381
        %v7383 = vpop.f32.mrb[0].mxu0
        %7384 = vmatprep.mubr.bf16.mxu0 %v743
        %7385 = vmatmul.mubr.bf16.gmra.mrb[0].mxu0 %v742
        %v7386 = vpop.f32.mrb[0].mxu0
        %v7387 = vadd.f32 0.0, %v7386
        %v7388 = vpop.f32.mrb[0].mxu0
        %v7389 = vpop.f32.mrb[0].mxu0
        %v7390 = vadd.f32 0.0, %v7389
        %v7391 = vpop.f32.mrb[0].mxu0
        %7392 = vmatprep.mubr.bf16.mxu0 %v745
        %7393 = vmatmul.mubr.bf16.gmra.mrb[0].mxu0 %v744
        %v7394 = vpop.f32.mrb[0].mxu0
        %v7395 = vadd.f32 0.0, %v7394
        %v7396 = vpop.f32.mrb[0].mxu0
        %v7397 = vpop.f32.mrb[0].mxu0
        %v7398 = vadd.f32 0.0, %v7397
        %v7399 = vpop.f32.mrb[0].mxu0
        %7400 = vdwg.mxu0
        %v7401 = vpack.c.bf16 %v7278, %v7275
        %v7402 = vpack.c.bf16 %v7286, %v7283
        %v7403 = vpack.c.bf16 %v7294, %v7291
        %v7404 = vpack.c.bf16 %v7302, %v7299
        %v7405 = vpack.c.bf16 %v7310, %v7307
        %v7406 = vpack.c.bf16 %v7318, %v7315
        %v7407 = vpack.c.bf16 %v7326, %v7323
        %v7408 = vpack.c.bf16 %v7334, %v7331
        %v7409 = vpack.c.bf16 %v7342, %v7339
        %v7410 = vpack.c.bf16 %v7350, %v7347
        %v7411 = vpack.c.bf16 %v7358, %v7355
        %v7412 = vpack.c.bf16 %v7366, %v7363
        %v7413 = vpack.c.bf16 %v7374, %v7371
        %v7414 = vpack.c.bf16 %v7382, %v7379
        %v7415 = vpack.c.bf16 %v7390, %v7387
        %v7416 = vpack.c.bf16 %v7398, %v7395
        %v7417 = vld [vmem:[%s2 + $0xa8] sm:$0xf]
        %v7418 = vld [vmem:[%s2 + $0xb0] sm:$0xf]
        %v7421 = vunpack.c.l.b16 %v7417
        %v7422 = vunpack.c.l.b16 %v7418
        %v7423 = vpack.c.b16 %v7422, %v7421
        %v7426 = vsel %vm995, %v7401, 0
        %v7429 = vsel %vm995, %v7402, 0
        %v7432 = vsel %vm995, %v7403, 0
        %v7435 = vsel %vm995, %v7404, 0
        %v7438 = vsel %vm995, %v7405, 0
        %v7441 = vsel %vm995, %v7406, 0
        %v7444 = vsel %vm995, %v7407, 0
        %v7447 = vsel %vm995, %v7408, 0
        %v7450 = vsel %vm995, %v7409, 0
        %v7453 = vsel %vm995, %v7410, 0
        %v7456 = vsel %vm995, %v7411, 0
        %v7459 = vsel %vm995, %v7412, 0
        %v7462 = vsel %vm995, %v7413, 0
        %v7465 = vsel %vm995, %v7414, 0
        %v7468 = vsel %vm995, %v7415, 0
        %v7471 = vsel %vm995, %v7416, 0
        %7473 = vmatprep.subr.bf16.mxu0 0
        %7474 = vmatpush1.bf16.msra.mxu0 %v7423
        %7475 = vmatprep.subr.bf16.mxu0 0
        %7476 = vmatpush1.bf16.msra.mxu0 0
        %7477 = vmatprep.subr.bf16.mxu0 0
        %7478 = vmatpush1.bf16.msra.mxu0 0
        %7479 = vmatprep.subr.bf16.mxu0 0
        %7480 = vmatpush1.bf16.msra.mxu0 0
        %7481 = vmatprep.subr.bf16.mxu0 0
        %7482 = vmatpush1.bf16.msra.mxu0 0
        %7483 = vmatprep.subr.bf16.mxu0 0
        %7484 = vmatpush1.bf16.msra.mxu0 0
        %7485 = vmatprep.subr.bf16.mxu0 0
        %7486 = vmatpush1.bf16.msra.mxu0 0
        %7487 = vmatprep.subr.bf16.mxu0 0
        %7488 = vmatpush1.bf16.msra.mxu0 0
        %7489 = vmatprep.subr.bf16.mxu0 0
        %7490 = vmatpush1.bf16.msra.mxu0 0
        %7491 = vmatprep.subr.bf16.mxu0 0
        %7492 = vmatpush1.bf16.msra.mxu0 0
        %7493 = vmatprep.subr.bf16.mxu0 0
        %7494 = vmatpush1.bf16.msra.mxu0 0
        %7495 = vmatprep.subr.bf16.mxu0 0
        %7496 = vmatpush1.bf16.msra.mxu0 0
        %7497 = vmatprep.subr.bf16.mxu0 0
        %7498 = vmatpush1.bf16.msra.mxu0 0
        %7499 = vmatprep.subr.bf16.mxu0 0
        %7500 = vmatpush1.bf16.msra.mxu0 0
        %7501 = vmatprep.subr.bf16.mxu0 0
        %7502 = vmatpush1.bf16.msra.mxu0 0
        %7503 = vmatprep.subr.bf16.mxu0 0
        %7504 = vmatpush1.bf16.msra.mxu0 0
        %7505 = vmatprep.mubr.bf16.mxu0 0
        %7506 = vmatmul.mubr.bf16.gmra.mrb[0].mxu0 %v7426
        %v7507 = vpop.f32.mrb[0].mxu0
        %v7508 = vadd.f32 %v306, %v7507
        %v7509 = vpop.f32.mrb[0].mxu0
        %v7510 = vpop.f32.mrb[0].mxu0
        %v7511 = vadd.f32 %v306, %v7510
        %v7512 = vpop.f32.mrb[0].mxu0
        %7513 = vmatprep.mubr.bf16.mxu0 0
        %7514 = vmatmul.mubr.bf16.gmra.mrb[0].mxu0 %v7429
        %v7515 = vpop.f32.mrb[0].mxu0
        %v7516 = vadd.f32 %v306, %v7515
        %v7517 = vpop.f32.mrb[0].mxu0
        %v7518 = vpop.f32.mrb[0].mxu0
        %v7519 = vadd.f32 %v306, %v7518
        %v7520 = vpop.f32.mrb[0].mxu0
        %7521 = vmatprep.mubr.bf16.mxu0 0
        %7522 = vmatmul.mubr.bf16.gmra.mrb[0].mxu0 %v7432
        %v7523 = vpop.f32.mrb[0].mxu0
        %v7524 = vadd.f32 %v306, %v7523
        %v7525 = vpop.f32.mrb[0].mxu0
        %v7526 = vpop.f32.mrb[0].mxu0
        %v7527 = vadd.f32 %v306, %v7526
        %v7528 = vpop.f32.mrb[0].mxu0
        %7529 = vmatprep.mubr.bf16.mxu0 0
        %7530 = vmatmul.mubr.bf16.gmra.mrb[0].mxu0 %v7435
        %v7531 = vpop.f32.mrb[0].mxu0
        %v7532 = vadd.f32 %v306, %v7531
        %v7533 = vpop.f32.mrb[0].mxu0
        %v7534 = vpop.f32.mrb[0].mxu0
        %v7535 = vadd.f32 %v306, %v7534
        %v7536 = vpop.f32.mrb[0].mxu0
        %7537 = vmatprep.mubr.bf16.mxu0 0
        %7538 = vmatmul.mubr.bf16.gmra.mrb[0].mxu0 %v7438
        %v7539 = vpop.f32.mrb[0].mxu0
        %v7540 = vadd.f32 %v306, %v7539
        %v7541 = vpop.f32.mrb[0].mxu0
        %v7542 = vpop.f32.mrb[0].mxu0
        %v7543 = vadd.f32 %v306, %v7542
        %v7544 = vpop.f32.mrb[0].mxu0
        %7545 = vmatprep.mubr.bf16.mxu0 0
        %7546 = vmatmul.mubr.bf16.gmra.mrb[0].mxu0 %v7441
        %v7547 = vpop.f32.mrb[0].mxu0
        %v7548 = vadd.f32 %v306, %v7547
        %v7549 = vpop.f32.mrb[0].mxu0
        %v7550 = vpop.f32.mrb[0].mxu0
        %v7551 = vadd.f32 %v306, %v7550
        %v7552 = vpop.f32.mrb[0].mxu0
        %7553 = vmatprep.mubr.bf16.mxu0 0
        %7554 = vmatmul.mubr.bf16.gmra.mrb[0].mxu0 %v7444
        %v7555 = vpop.f32.mrb[0].mxu0
        %v7556 = vadd.f32 %v306, %v7555
        %v7557 = vpop.f32.mrb[0].mxu0
        %v7558 = vpop.f32.mrb[0].mxu0
        %v7559 = vadd.f32 %v306, %v7558
        %v7560 = vpop.f32.mrb[0].mxu0
        %7561 = vmatprep.mubr.bf16.mxu0 0
        %7562 = vmatmul.mubr.bf16.gmra.mrb[0].mxu0 %v7447
        %v7563 = vpop.f32.mrb[0].mxu0
        %v7564 = vadd.f32 %v306, %v7563
        %v7565 = vpop.f32.mrb[0].mxu0
        %v7566 = vpop.f32.mrb[0].mxu0
        %v7567 = vadd.f32 %v306, %v7566
        %v7568 = vpop.f32.mrb[0].mxu0
        %7569 = vmatprep.mubr.bf16.mxu0 0
        %7570 = vmatmul.mubr.bf16.gmra.mrb[0].mxu0 %v7450
        %v7571 = vpop.f32.mrb[0].mxu0
        %v7572 = vadd.f32 %v306, %v7571
        %v7573 = vpop.f32.mrb[0].mxu0
        %v7574 = vpop.f32.mrb[0].mxu0
        %v7575 = vadd.f32 %v306, %v7574
        %v7576 = vpop.f32.mrb[0].mxu0
        %7577 = vmatprep.mubr.bf16.mxu0 0
        %7578 = vmatmul.mubr.bf16.gmra.mrb[0].mxu0 %v7453
        %v7579 = vpop.f32.mrb[0].mxu0
        %v7580 = vadd.f32 %v306, %v7579
        %v7581 = vpop.f32.mrb[0].mxu0
        %v7582 = vpop.f32.mrb[0].mxu0
        %v7583 = vadd.f32 %v306, %v7582
        %v7584 = vpop.f32.mrb[0].mxu0
        %7585 = vmatprep.mubr.bf16.mxu0 0
        %7586 = vmatmul.mubr.bf16.gmra.mrb[0].mxu0 %v7456
        %v7587 = vpop.f32.mrb[0].mxu0
        %v7588 = vadd.f32 %v306, %v7587
        %v7589 = vpop.f32.mrb[0].mxu0
        %v7590 = vpop.f32.mrb[0].mxu0
        %v7591 = vadd.f32 %v306, %v7590
        %v7592 = vpop.f32.mrb[0].mxu0
        %7593 = vmatprep.mubr.bf16.mxu0 0
        %7594 = vmatmul.mubr.bf16.gmra.mrb[0].mxu0 %v7459
        %v7595 = vpop.f32.mrb[0].mxu0
        %v7596 = vadd.f32 %v306, %v7595
        %v7597 = vpop.f32.mrb[0].mxu0
        %v7598 = vpop.f32.mrb[0].mxu0
        %v7599 = vadd.f32 %v306, %v7598
        %v7600 = vpop.f32.mrb[0].mxu0
        %7601 = vmatprep.mubr.bf16.mxu0 0
        %7602 = vmatmul.mubr.bf16.gmra.mrb[0].mxu0 %v7462
        %v7603 = vpop.f32.mrb[0].mxu0
        %v7604 = vadd.f32 %v306, %v7603
        %v7605 = vpop.f32.mrb[0].mxu0
        %v7606 = vpop.f32.mrb[0].mxu0
        %v7607 = vadd.f32 %v306, %v7606
        %v7608 = vpop.f32.mrb[0].mxu0
        %7609 = vmatprep.mubr.bf16.mxu0 0
        %7610 = vmatmul.mubr.bf16.gmra.mrb[0].mxu0 %v7465
        %v7611 = vpop.f32.mrb[0].mxu0
        %v7612 = vadd.f32 %v306, %v7611
        %v7613 = vpop.f32.mrb[0].mxu0
        %v7614 = vpop.f32.mrb[0].mxu0
        %v7615 = vadd.f32 %v306, %v7614
        %v7616 = vpop.f32.mrb[0].mxu0
        %7617 = vmatprep.mubr.bf16.mxu0 0
        %7618 = vmatmul.mubr.bf16.gmra.mrb[0].mxu0 %v7468
        %v7619 = vpop.f32.mrb[0].mxu0
        %v7620 = vadd.f32 %v306, %v7619
        %v7621 = vpop.f32.mrb[0].mxu0
        %v7622 = vpop.f32.mrb[0].mxu0
        %v7623 = vadd.f32 %v306, %v7622
        %v7624 = vpop.f32.mrb[0].mxu0
        %7625 = vmatprep.mubr.bf16.mxu0 0
        %7626 = vmatmul.mubr.bf16.gmra.mrb[0].mxu0 %v7471
        %v7627 = vpop.f32.mrb[0].mxu0
        %v7628 = vadd.f32 %v306, %v7627
        %v7629 = vpop.f32.mrb[0].mxu0
        %v7630 = vpop.f32.mrb[0].mxu0
        %v7631 = vadd.f32 %v306, %v7630
        %v7632 = vpop.f32.mrb[0].mxu0
        %7633 = vdwg.mxu0
        %7634 = vst [vmem:[%s230] sm:$0xff] %v7508
        %7635 = vst [vmem:[%s230 + $0x8] sm:$0xff] %v7511
        %7636 = vst [vmem:[%s230 + $0x10] sm:$0xff] %v7516
        %7637 = vst [vmem:[%s230 + $0x18] sm:$0xff] %v7519
        %7638 = vst [vmem:[%s230 + $0x20] sm:$0xff] %v7524
        %7639 = vst [vmem:[%s230 + $0x28] sm:$0xff] %v7527
        %7640 = vst [vmem:[%s230 + $0x30] sm:$0xff] %v7532
        %7641 = vst [vmem:[%s230 + $0x38] sm:$0xff] %v7535
        %7642 = vst [vmem:[%s230 + $0x40] sm:$0xff] %v7540
        %7643 = vst [vmem:[%s230 + $0x48] sm:$0xff] %v7543
        %7644 = vst [vmem:[%s230 + $0x50] sm:$0xff] %v7548
        %7645 = vst [vmem:[%s230 + $0x58] sm:$0xff] %v7551
        %7646 = vst [vmem:[%s230 + $0x60] sm:$0xff] %v7556
        %7647 = vst [vmem:[%s230 + $0x68] sm:$0xff] %v7559
        %7648 = vst [vmem:[%s230 + $0x70] sm:$0xff] %v7564
        %7649 = vst [vmem:[%s230 + $0x78] sm:$0xff] %v7567
        %7650 = vst [vmem:[%s230 + $0x80] sm:$0xff] %v7572
        %7651 = vst [vmem:[%s230 + $0x88] sm:$0xff] %v7575
        %7652 = vst [vmem:[%s230 + $0x90] sm:$0xff] %v7580
        %7653 = vst [vmem:[%s230 + $0x98] sm:$0xff] %v7583
        %7654 = vst [vmem:[%s230 + $0xa0] sm:$0xff] %v7588
        %7655 = vst [vmem:[%s230 + $0xa8] sm:$0xff] %v7591
        %7656 = vst [vmem:[%s230 + $0xb0] sm:$0xff] %v7596
        %7657 = vst [vmem:[%s230 + $0xb8] sm:$0xff] %v7599
        %7658 = vst [vmem:[%s230 + $0xc0] sm:$0xff] %v7604
        %7659 = vst [vmem:[%s230 + $0xc8] sm:$0xff] %v7607
        %7660 = vst [vmem:[%s230 + $0xd0] sm:$0xff] %v7612
        %7661 = vst [vmem:[%s230 + $0xd8] sm:$0xff] %v7615
        %7662 = vst [vmem:[%s230 + $0xe0] sm:$0xff] %v7620
        %7663 = vst [vmem:[%s230 + $0xe8] sm:$0xff] %v7623
        %7664 = vst [vmem:[%s230 + $0xf0] sm:$0xff] %v7628
        %7665 = vst [vmem:[%s230 + $0xf8] sm:$0xff] %v7631
        %s7666 = sand.u32 %s123, 1
        %s7667 = scalar_lea.sflag [#allocation4], %s7666
        %s7668 = sand.u32 %s123, 1
        %s7669 = smul.addr %s7668, 256
        %s7670 = scalar_lea.vmem [#allocation5], %s7669
        // Predicated region
        $region41: #{tpu_custom_call.1} parent=35 // pred_check
          %p7671 = pneg %p133
        $region42: #{tpu_custom_call.1} parent=35 // pred_check_branch
          %7673 = sbr.rel (%p7671) target = $region44
        $region43: #{tpu_custom_call.1} parent=35 // pred_region
          %s7675 = ssub.s32 4096, 4096
          %7676 = vsyncadd %s7667, %s7675
          %s7677 = smul.addr %s21, 32
          %s7678 = smul.addr %s7677, 128
          %s7679 = scalar_lea.hbm %s4, %s7678
          %s7680 = sshll.u32 %s7670, 4
          %s7681 = int_to_ptr.vmem [resolvable:$true] %s7680
          %7686 = dma.vmem_to_hbm [thread:$0]  %s7681, 4096, %s7679, %s7667, 128, 128, 8
        $region44: #{tpu_custom_call.1} parent=35 // pred_fallthru
          _
      $region36: #{tpu_custom_call.1} parent=5 // pred_fallthru
        _
      %p7687 = scmp.le.s32.totalorder 2, %s16
      // Predicated region
      $region45: #{tpu_custom_call.1} parent=5 // pred_check
        %p7688 = pneg %p7687
      $region46: #{tpu_custom_call.1} parent=5 // pred_check_branch
        %7690 = sbr.rel (%p7688) target = $region48
      $region47: #{tpu_custom_call.1} parent=5 // pred_region
        %s7691 = ssub.s32 %s16, 2
        // Predicated region
        $region49: #{tpu_custom_call.1} parent=47 // pred_check
          %p7692 = pneg %p139
        $region50: #{tpu_custom_call.1} parent=47 // pred_check_branch
          %7694 = sbr.rel (%p7692) target = $region52
        $region51: #{tpu_custom_call.1} parent=47 // pred_region
          %s7695 = sand.u32 %s124, 1
          %s7696 = scalar_lea.sflag [#allocation4], %s7695
          %s7697 = sand.u32 %s124, 1
          %s7698 = smul.addr %s7697, 256
          %s7699 = scalar_lea.vmem [#allocation5], %s7698
          %7700 = dma.done %s7696, 4096
        $region52: #{tpu_custom_call.1} parent=47 // pred_fallthru
          _
      $region48: #{tpu_custom_call.1} parent=5 // pred_fallthru
        _
    $region6: #{tpu_custom_call.1} parent=1 // loop_footer
      %s20 = sadd.s32 1, %s16
    $region7: #{tpu_custom_call.1} parent=1 // loop_footer_branch
      %15 = sbr.rel target = $region3
    $region8: #{tpu_custom_call.1} parent=1 // loop_exit
      _
    %7701 = vsyncpa [#allocation3], 1
    %s7702 = scalar_lea.sflag [#allocation3], 1
    %7703 = vsyncpa %s7702, 1
    %7704 = vsyncpa [#allocation4], 1
    %s7705 = scalar_lea.sflag [#allocation4], 1
    %7706 = vsyncpa %s7705, 1

</llo_original>
